<compile_context>
chip_gen: v7x
topology: tpu7x:2x2x1
jax: 0.10.0
libtpu: 0.0.40
codegen_flags: <defaults>
</compile_context>

<pallas_src>
import functools

import jax
import jax.numpy as jnp
from jax.experimental import pallas as pl
from jax.experimental.pallas import tpu as pltpu

LANE = 128
VMEM_LIMIT = 48 * 1024 * 1024   # > default scoped limits (16/32 MiB), < v7x physical 64 MiB


def _round_up(x, m):
    return (x + m - 1) // m * m


def _pick_tm(M, tmax=512):
    """Largest row tile <= tmax that divides M (multiple of 8), M itself if small, 0 if none."""
    if M <= tmax:
        return M
    for t in range(tmax - (tmax % 8), 7, -8):
        if M % t == 0:
            return t
    return 0


def _pick_th(Ho, max_th=16):
    """Largest divisor of Ho that is <= max_th (output-row tile for the depthwise kernel)."""
    for t in range(min(Ho, max_th), 0, -1):
        if Ho % t == 0:
            return t
    return Ho


# ----------------------------------------------------------------------------- fused matmul + BN + act

def _mm_bn_act_kernel(x_ref, w_ref, s_ref, b_ref, o_ref, *, act):
    x = x_ref[...]
    if x.dtype != jnp.bfloat16:
        x = x.astype(jnp.bfloat16)
    y = jnp.dot(x, w_ref[...], preferred_element_type=jnp.float32)
    y = y * s_ref[...] + b_ref[...]
    if act == "silu":
        y = y * jax.nn.sigmoid(y)
    elif act == "sigmoid":
        y = jax.nn.sigmoid(y)
    o_ref[...] = y.astype(o_ref.dtype)


def pl_matmul_bn_act(x, w, scale, bias, act=None, out_dtype=jnp.bfloat16, tm_max=512):
    """x: [M, Kp] bf16/f32, w: [Kp, Np] bf16 (Kp, Np multiples of 128), scale/bias: [Np]."""
    M, Kp = x.shape
    Np = w.shape[1]
    tm = _pick_tm(M, tm_max)
    if tm == 0:
        # TODO(synk): awkward M with no multiple-of-8 divisor <= tm_max; padded-copy fallback.
        tm = tm_max
        Mp = _round_up(M, tm)
        x = jnp.pad(x, ((0, Mp - M), (0, 0)))
    else:
        Mp = M
    grid_m = Mp // tm
    # TODO(synk): for very large Kp add a K grid axis with an f32 accumulator (P3 pattern)
    #             and 256-multiple padding on v6e/v7x MXUs.
    out = pl.pallas_call(
        functools.partial(_mm_bn_act_kernel, act=act),
        out_shape=jax.ShapeDtypeStruct((Mp, Np), out_dtype),
        grid=(grid_m,),
        in_specs=[
            pl.BlockSpec((tm, Kp), lambda i: (i, 0)),
            pl.BlockSpec((Kp, Np), lambda i: (0, 0)),
            pl.BlockSpec((1, Np), lambda i: (0, 0)),
            pl.BlockSpec((1, Np), lambda i: (0, 0)),
        ],
        out_specs=pl.BlockSpec((tm, Np), lambda i: (i, 0)),
        compiler_params=pltpu.CompilerParams(
            dimension_semantics=("parallel",), vmem_limit_bytes=VMEM_LIMIT),
    )(x, w, scale.reshape(1, Np).astype(jnp.float32),
      bias.reshape(1, Np).astype(jnp.float32))
    return out[:M] if Mp != M else out


def _mm_bn_act_gate_kernel(x_ref, g_ref, w_ref, s_ref, b_ref, o_ref, *, act):
    # per-sample SE gate fused into the projection matmul (no extra activation round trip)
    xg = x_ref[0] * g_ref[0].astype(x_ref.dtype)                 # (tr, Kp) bf16
    y = jnp.dot(xg.astype(jnp.bfloat16), w_ref[...], preferred_element_type=jnp.float32)
    y = y * s_ref[...] + b_ref[...]
    if act == "silu":
        y = y * jax.nn.sigmoid(y)
    o_ref[0] = y.astype(o_ref.dtype)


def pl_matmul_bn_act_gated(x3, gate, w, scale, bias, act=None,
                           out_dtype=jnp.bfloat16, tr_max=512):
    """x3: [N, HW, Kp] bf16, gate: [N, 1, Kp] f32, w: [Kp, Np] bf16."""
    N, HW, Kp = x3.shape
    Np = w.shape[1]
    tr = _pick_tm(HW, tr_max)
    if tr == 0:
        tr = HW
    grid_r = HW // tr
    return pl.pallas_call(
        functools.partial(_mm_bn_act_gate_kernel, act=act),
        out_shape=jax.ShapeDtypeStruct((N, HW, Np), out_dtype),
        grid=(N, grid_r),
        in_specs=[
            pl.BlockSpec((1, tr, Kp), lambda n, r: (n, r, 0)),
            pl.BlockSpec((1, 1, Kp), lambda n, r: (n, 0, 0)),
            pl.BlockSpec((Kp, Np), lambda n, r: (0, 0)),
            pl.BlockSpec((1, Np), lambda n, r: (0, 0)),
            pl.BlockSpec((1, Np), lambda n, r: (0, 0)),
        ],
        out_specs=pl.BlockSpec((1, tr, Np), lambda n, r: (n, r, 0)),
        compiler_params=pltpu.CompilerParams(
            dimension_semantics=("parallel", "parallel"), vmem_limit_bytes=VMEM_LIMIT),
    )(x3, gate, w, scale.reshape(1, Np).astype(jnp.float32),
      bias.reshape(1, Np).astype(jnp.float32))


# ----------------------------------------------------------------------------- fused depthwise + BN + SiLU (+ SE reduce/gate)

def _dw_bn_silu_se_kernel(*refs, k, stride, th, wo, wc, n_halo, has_se, inv_hw):
    main = refs[0]
    halos = refs[1:1 + n_halo]
    w_ref, s_ref, b_ref = refs[1 + n_halo:4 + n_halo]
    idx = 4 + n_halo
    if has_se:
        w1_ref, w2_ref = refs[idx], refs[idx + 1]
        o_ref, g_ref = refs[idx + 2], refs[idx + 3]
        pooled = refs[idx + 4]
    else:
        o_ref = refs[idx]

    s = stride
    rt = pl.program_id(1)
    C = o_ref.shape[-1]

    # hoist invariant loads out of the unrolled tap loops (no re-broadcast per tap/chunk)
    w = w_ref[...]        # (k*k, C) f32
    sc = s_ref[...]       # (1, C)  f32
    bi = b_ref[...]       # (1, C)  f32

    if has_se:
        @pl.when(rt == 0)
        def _():
            pooled[...] = jnp.zeros_like(pooled)

    def window(p, row, c0, width):
        # rows [0, th) come from the main row block; rows [th, th+halo) from per-row halo refs
        if row < th:
            return main[p, row, c0:c0 + width, :]
        return halos[row - th][p, 0, c0:c0 + width, :]

    tile_sum = jnp.zeros((1, C), jnp.float32)
    for r in range(th):
        for w0 in range(0, wo, wc):
            cw = min(wc, wo - w0)
            acc = jnp.zeros((cw, C), jnp.float32)       # bounded (~<=128 KB) -> stays in vregs
            for i in range(k):
                for j in range(k):
                    t = i * k + j
                    p = (i % s) * s + (j % s)           # parity plane
                    win = window(p, r + i // s, w0 + j // s, cw)   # bf16 (cw, C)
                    acc = acc + win * w[t:t + 1]        # bf16 * f32 -> f32 accumulate
            y = acc * sc + bi
            y = y * jax.nn.sigmoid(y)                   # SiLU
            o_ref[0, r, w0:w0 + cw, :] = y.astype(o_ref.dtype)
            if has_se:
                tile_sum = tile_sum + jnp.sum(y, axis=0, keepdims=True)

    if has_se:
        pooled[...] = pooled[...] + tile_sum            # incremental spatial sum across row tiles

        @pl.when(rt == pl.num_programs(1) - 1)
        def _():
            pm = pooled[...] * inv_hw                                       # (1, C) global mean
            h = jnp.sum(pm * w1_ref[...], axis=-1, keepdims=True)           # (Sqp, 1)
            h = h * jax.nn.sigmoid(h)                                       # SiLU
            g = jax.nn.sigmoid(jnp.sum(h * w2_ref[...], axis=0, keepdims=True))
            g_ref[...] = g.reshape(1, 1, C)


def pl_depthwise_bn_silu_se(x, k, stride, w_dw, scale, bias, w1=None, w2=None):
    """Row-tiled fused depthwise conv (SAME pad) + BN + SiLU [+ SE squeeze/gate compute].

    x: [N, H, W, C] bf16 (C multiple of 128, padded channels == 0)
    w_dw: [k*k, C]; scale/bias: [C]; w1/w2: [Sqp, C] (SE weights, row = output unit).
    Returns (y [N, Ho, Wo, C] bf16, gate [N, 1, C] f32 or None).
    """
    N, H, W, C = x.shape
    p_lo, p_hi = _same_pad(k)
    xp = jnp.pad(x, ((0, 0), (p_lo, p_hi), (p_lo, p_hi), (0, 0)))
    Hp, Wp = H + p_lo + p_hi, W + p_lo + p_hi
    s = stride
    Ho = (Hp - k) // s + 1
    Wo = (Wp - k) // s + 1
    Hs = -(-Hp // s)
    Ws = -(-Wp // s)
    if Hs * s != Hp or Ws * s != Wp:
        xp = jnp.pad(xp, ((0, 0), (0, Hs * s - Hp), (0, Ws * s - Wp), (0, 0)))
    ss = s * s
    # space-to-depth: every tap becomes a stride-1 window of one parity plane (1x HBM copy).
    xsd = (xp.reshape(N, Hs, s, Ws, s, C)
             .transpose(0, 2, 4, 1, 3, 5)
             .reshape(N * ss, Hs, Ws, C))
    halo = (k - 1) // s                          # extra bottom rows needed per row tile
    th = _pick_th(Ho)                            # output-row tile (divides Ho)
    RT = Ho // th
    wc = max(1, min(Wo, (128 * 1024) // (C * 4)))  # keep the f32 accumulator ~<=128 KB
    has_se = w1 is not None

    kern = functools.partial(_dw_bn_silu_se_kernel, k=k, stride=s, th=th, wo=Wo,
                             wc=wc, n_halo=halo, has_se=has_se,
                             inv_hw=1.0 / float(Ho * Wo))

    in_specs = [pl.BlockSpec((ss, th, Ws, C), lambda n, rt: (n, rt, 0, 0))]
    for d in range(halo):
        in_specs.append(pl.BlockSpec(
            (ss, 1, Ws, C), lambda n, rt, d=d: (n, (rt + 1) * th + d, 0, 0)))
    in_specs += [
        pl.BlockSpec((k * k, C), lambda n, rt: (0, 0)),
        pl.BlockSpec((1, C), lambda n, rt: (0, 0)),
        pl.BlockSpec((1, C), lambda n, rt: (0, 0)),
    ]
    args = [xsd] + [xsd] * halo + [
        w_dw.astype(jnp.float32),
        scale.reshape(1, C).astype(jnp.float32),
        bias.reshape(1, C).astype(jnp.float32),
    ]
    if has_se:
        Sqp = w1.shape[0]
        in_specs += [pl.BlockSpec((Sqp, C), lambda n, rt: (0, 0)),
                     pl.BlockSpec((Sqp, C), lambda n, rt: (0, 0))]
        args += [w1.astype(jnp.float32), w2.astype(jnp.float32)]
        out_shape = (jax.ShapeDtypeStruct((N, Ho, Wo, C), jnp.bfloat16),
                     jax.ShapeDtypeStruct((N, 1, C), jnp.float32))
        out_specs = (pl.BlockSpec((1, th, Wo, C), lambda n, rt: (n, rt, 0, 0)),
                     pl.BlockSpec((1, 1, C), lambda n, rt: (n, 0, 0)))
        scratch = [pltpu.VMEM((1, C), jnp.float32)]
    else:
        out_shape = jax.ShapeDtypeStruct((N, Ho, Wo, C), jnp.bfloat16)
        out_specs = pl.BlockSpec((1, th, Wo, C), lambda n, rt: (n, rt, 0, 0))
        scratch = []

    res = pl.pallas_call(
        kern,
        out_shape=out_shape,
        grid=(N, RT),
        in_specs=in_specs,
        out_specs=out_specs,
        scratch_shapes=scratch,
        compiler_params=pltpu.CompilerParams(
            dimension_semantics=("parallel", "arbitrary"),
            vmem_limit_bytes=VMEM_LIMIT),
    )(*args)
    if has_se:
        y, gate = res
        return y, gate
    return res, None


# ----------------------------------------------------------------------------- global average pool (head)

def _avgpool_kernel(x_ref, o_ref):
    o_ref[...] = jnp.mean(x_ref[...].astype(jnp.float32), axis=1,
                          keepdims=True).astype(o_ref.dtype)


def pl_avgpool(x):
    """x: [N, HW, C] bf16 -> [N, C] bf16 (global spatial mean, per-sample grid)."""
    # TODO(synk): add a spatial-chunk "arbitrary" axis if the head feature map ever gets large.
    N, HW, C = x.shape
    out = pl.pallas_call(
        _avgpool_kernel,
        out_shape=jax.ShapeDtypeStruct((N, 1, C), jnp.bfloat16),
        grid=(N,),
        in_specs=[pl.BlockSpec((1, HW, C), lambda n: (n, 0, 0))],
        out_specs=pl.BlockSpec((1, 1, C), lambda n: (n, 0, 0)),
        compiler_params=pltpu.CompilerParams(
            dimension_semantics=("parallel",), vmem_limit_bytes=VMEM_LIMIT),
    )(x)
    return out[:, 0, :]


# ----------------------------------------------------------------------------- JAX glue (padding / im2col / layout)

def _same_pad(k):
    # matches Conv2dSamePadding: (left, right) = (k//2 + (k - 2*(k//2)) - 1, k//2)
    return k // 2 + (k - 2 * (k // 2)) - 1, k // 2


def _extract_taps(x, k, stride):
    """x: [N, H, W, C] -> list of k*k arrays [N, Ho, Wo, C] (tap order i*k + j)."""
    p_lo, p_hi = _same_pad(k)
    xp = jnp.pad(x, ((0, 0), (p_lo, p_hi), (p_lo, p_hi), (0, 0)))
    N, Hp, Wp, C = xp.shape
    Ho = (Hp - k) // stride + 1
    Wo = (Wp - k) // stride + 1
    taps = []
    for i in range(k):
        for j in range(k):
            taps.append(xp[:, i:i + Ho * stride:stride, j:j + Wo * stride:stride, :])
    return taps, Ho, Wo


def conv1x1_bn_act(x, w_pt, bn, act, gate=None, out_dtype=jnp.bfloat16):
    """1x1 conv + BN + act [+ fused per-sample SE gate]. x: [N,H,W,Cp] bf16."""
    N, H, W, Cp = x.shape
    Cout, Cin = w_pt.shape[0], w_pt.shape[1]
    Cop = _round_up(Cout, LANE)
    w = jnp.pad(w_pt[:, :, 0, 0].T, ((0, Cp - Cin), (0, Cop - Cout))).astype(jnp.bfloat16)
    scale = jnp.pad(bn[0], (0, Cop - Cout))
    bias = jnp.pad(bn[1], (0, Cop - Cout))
    if gate is not None:
        y = pl_matmul_bn_act_gated(x.reshape(N, H * W, Cp), gate, w, scale, bias,
                                   act, out_dtype)
        return y.reshape(N, H, W, Cop)
    y = pl_matmul_bn_act(x.reshape(N * H * W, Cp), w, scale, bias, act, out_dtype)
    return y.reshape(N, H, W, Cop)


def conv_kxk_bn_act(x, w_pt, stride, bn, act):
    """Dense kxk conv (stem, Cin=3) via bf16 im2col + fused matmul. w_pt: [Cout, Cin, k, k]."""
    # TODO(synk): move the 3x3 window reads in-kernel (like the depthwise path) so the
    #             K-padded patch matrix is never materialized; negligible for the 3-ch stem.
    Cout, Cin, k, _ = w_pt.shape
    taps, Ho, Wo = _extract_taps(x, k, stride)
    N = x.shape[0]
    K = k * k * Cin
    Kp = _round_up(K, LANE)
    Cop = _round_up(Cout, LANE)
    patches = jnp.stack(taps, axis=3).reshape(N * Ho * Wo, K).astype(jnp.bfloat16)
    patches = jnp.pad(patches, ((0, 0), (0, Kp - K)))
    w_mat = jnp.transpose(w_pt, (2, 3, 1, 0)).reshape(K, Cout)
    w_mat = jnp.pad(w_mat, ((0, Kp - K), (0, Cop - Cout))).astype(jnp.bfloat16)
    scale = jnp.pad(bn[0], (0, Cop - Cout))
    bias = jnp.pad(bn[1], (0, Cop - Cout))
    y = pl_matmul_bn_act(patches, w_mat, scale, bias, act)
    return y.reshape(N, Ho, Wo, Cop)


def mbconv_forward(x, blk):
    if blk["expand_ratio"] != 1:
        x = conv1x1_bn_act(x, blk["expand_w"], blk["bn0"], "silu")
    k, stride = blk["k"], blk["stride"]
    Cep = x.shape[-1]                       # padded expand channels
    Ce = blk["dw_w"].shape[0]
    w_dw = jnp.pad(jnp.transpose(blk["dw_w"][:, 0], (1, 2, 0)).reshape(k * k, Ce),
                   ((0, 0), (0, Cep - Ce)))
    scale1 = jnp.pad(blk["bn1"][0], (0, Cep - Ce))
    bias1 = jnp.pad(blk["bn1"][1], (0, Cep - Ce))
    if "se1_w" in blk:
        sq = blk["se1_w"].shape[0]
        sqp = _round_up(sq, 8)              # sublane padding only (not 128)
        w1 = jnp.pad(blk["se1_w"][:, :, 0, 0], ((0, sqp - sq), (0, Cep - Ce)))
        w2 = jnp.pad(blk["se2_w"][:, :, 0, 0].T, ((0, sqp - sq), (0, Cep - Ce)))
    else:
        w1 = w2 = None
    xf, gate = pl_depthwise_bn_silu_se(x, k, stride, w_dw, scale1, bias1, w1, w2)
    # SE gate applied fused inside the projection matmul (per-sample gate input).
    return conv1x1_bn_act(xf, blk["p_w"], blk["bn2"], None, gate=gate)


def efficientnet_forward(x_nchw, P, cfg):
    x = jnp.transpose(x_nchw, (0, 2, 3, 1)).astype(jnp.bfloat16)   # NCHW -> NHWC, bf16
    # stage1: stem conv k=3 stride=2 + BN + SiLU
    x = conv_kxk_bn_act(x, P["stem_w"], 2, P["stem_bn"], "silu")
    # MBConv stages
    for stage in P["stages"]:
        for blk in stage:
            x = mbconv_forward(x, blk)
    # final head: 1x1 conv + BN, global avgpool, (dropout=identity), linear
    x = conv1x1_bn_act(x, P["final_w"], P["final_bn"], None)
    N, H, W, Cp = x.shape
    pooled = pl_avgpool(x.reshape(N, H * W, Cp))                  # [N, Cp] bf16
    nc = cfg.num_classes
    ncp = _round_up(nc, LANE)
    c_head = P["lin_w"].shape[1]
    w = jnp.pad(P["lin_w"].T, ((0, Cp - c_head), (0, ncp - nc))).astype(jnp.bfloat16)
    scale = jnp.pad(jnp.ones((nc,), jnp.float32), (0, ncp - nc))
    bias = jnp.pad(P["lin_b"], (0, ncp - nc))
    logits = pl_matmul_bn_act(pooled, w, scale, bias, None, out_dtype=jnp.float32)
    return logits[:, :nc]


# ----------------------------------------------------------------------------- deterministic parameter init

class KeyGen:
    def __init__(self, key):
        self.key = key
        self.i = 0

    def __call__(self):
        self.i += 1
        return jax.random.fold_in(self.key, self.i)


def _conv_w(kg, cout, cin, k):
    return jax.random.normal(kg(), (cout, cin, k, k), jnp.float32) * 0.1


def _dwconv_w(kg, c, k):
    return jax.random.normal(kg(), (c, 1, k, k), jnp.float32) * 0.1


def _make_bn(kg, c, eps=1e-3):
    # eval-mode BatchNorm folded into (scale, shift)
    gamma = jax.random.uniform(kg(), (c,), jnp.float32, 0.5, 1.5)
    beta = jax.random.normal(kg(), (c,), jnp.float32) * 0.1
    rmean = jax.random.normal(kg(), (c,), jnp.float32) * 0.1
    rvar = jax.random.uniform(kg(), (c,), jnp.float32, 0.5, 1.5)
    scale = gamma / jnp.sqrt(rvar + eps)
    shift = beta - rmean * scale
    return scale, shift


class Config:
    num_classes = 10
    dropout = 0.2
    width_coef = 0.05  # -> head channels = int(1280 * 0.05) = 64
    # (expand_ratio, filter_size, num_repeats, in_channels, out_channels, stride, padding, se_ratio)
    stages = [
        (1, 3, 1, 8, 16, 1, 1, 0.25),
        (6, 3, 2, 16, 24, 2, 1, 0.25),
    ]


def build_params(cfg, kg):
    P = {}
    c1 = cfg.stages[0][3]
    P["stem_w"] = _conv_w(kg, c1, 3, 3)
    P["stem_bn"] = _make_bn(kg, c1)
    stages = []
    for (er, k, nrep, cin, cout, stride, _pad, se_r) in cfg.stages:
        blocks = []
        c_in, s = cin, stride
        for _ in range(nrep):
            blk = {"k": k, "stride": s, "expand_ratio": er}
            ce = c_in * er
            if er != 1:
                blk["expand_w"] = _conv_w(kg, ce, c_in, 1)
                blk["bn0"] = _make_bn(kg, ce)
            blk["dw_w"] = _dwconv_w(kg, ce, k)
            blk["bn1"] = _make_bn(kg, ce)
            if se_r:
                sq = int(c_in * se_r)
                blk["se1_w"] = _conv_w(kg, sq, ce, 1)
                blk["se2_w"] = _conv_w(kg, ce, sq, 1)
            blk["p_w"] = _conv_w(kg, cout, ce, 1)
            blk["bn2"] = _make_bn(kg, cout)
            blocks.append(blk)
            c_in, s = cout, 1
        stages.append(blocks)
    P["stages"] = stages
    c_last = cfg.stages[-1][4]
    c_head = int(1280 * cfg.width_coef)
    P["final_w"] = _conv_w(kg, c_head, c_last, 1)
    P["final_bn"] = _make_bn(kg, c_head)
    P["lin_w"] = jax.random.normal(kg(), (cfg.num_classes, c_head), jnp.float32) * 0.1
    P["lin_b"] = jax.random.normal(kg(), (cfg.num_classes,), jnp.float32) * 0.1
    return P


# ----------------------------------------------------------------------------- main

if __name__ == "__main__":
    cfg = Config()
    kg = KeyGen(jax.random.PRNGKey(0))
    params = build_params(cfg, kg)

    x = jax.random.normal(jax.random.fold_in(jax.random.PRNGKey(0), 12345),
                          (2, 3, 16, 16), jnp.float32)  # NCHW like the PyTorch module

    fwd = jax.jit(lambda a: efficientnet_forward(a, params, cfg))
    out = fwd(x)
    out = jax.block_until_ready(out)
    assert out.shape == (2, cfg.num_classes), out.shape
    assert bool(jnp.all(jnp.isfinite(out)))
    print("KERNEL_OK")
</pallas_src>

<mosaic_0001>
module attributes {stable_mosaic.version = 11 : i64} {
  func.func @_mm_bn_act_gate_kernel(%arg0: i32, %arg1: i32, %arg2: memref<1x64x128xbf16, #tpu.memory_space<vmem>>, %arg3: memref<1x1x128xf32, #tpu.memory_space<vmem>>, %arg4: memref<128x128xbf16, #tpu.memory_space<vmem>>, %arg5: memref<1x128xf32, #tpu.memory_space<vmem>>, %arg6: memref<1x128xf32, #tpu.memory_space<vmem>>, %arg7: memref<1x64x128xbf16, #tpu.memory_space<vmem>>) attributes {dimension_semantics = [#tpu.dimension_semantics<parallel>, #tpu.dimension_semantics<parallel>], iteration_bounds = array<i64: 2, 1>, scalar_prefetch = 0 : i64, scratch_operands = 0 : i64, tpu.core_type = #tpu.core_type<tc>, window_params = [{transform_indices = @transform_0, window_bounds = array<i64: 1, 64, 128>}, {transform_indices = @transform_1, window_bounds = array<i64: 1, 1, 128>}, {pipeline_mode = #tpu.pipeline_mode<synchronous>, transform_indices = @transform_2, window_bounds = array<i64: 128, 128>}, {pipeline_mode = #tpu.pipeline_mode<synchronous>, transform_indices = @transform_3, window_bounds = array<i64: 1, 128>}, {pipeline_mode = #tpu.pipeline_mode<synchronous>, transform_indices = @transform_4, window_bounds = array<i64: 1, 128>}, {transform_indices = @transform_5, window_bounds = array<i64: 1, 64, 128>}]} {
    %c0 = arith.constant 0 : index
    %c0_0 = arith.constant 0 : index
    %c0_1 = arith.constant 0 : index
    %0 = vector.load %arg2[%c0, %c0_0, %c0_1] : memref<1x64x128xbf16, #tpu.memory_space<vmem>>, vector<1x64x128xbf16>
    %1 = vector.shape_cast %0 : vector<1x64x128xbf16> to vector<64x128xbf16>
    %c0_2 = arith.constant 0 : index
    %c0_3 = arith.constant 0 : index
    %c0_4 = arith.constant 0 : index
    %2 = vector.load %arg3[%c0_2, %c0_3, %c0_4] : memref<1x1x128xf32, #tpu.memory_space<vmem>>, vector<1x1x128xf32>
    %3 = vector.shape_cast %2 : vector<1x1x128xf32> to vector<1x128xf32>
    %4 = arith.truncf %3 : vector<1x128xf32> to vector<1x128xbf16>
    %5 = vector.broadcast %4 : vector<1x128xbf16> to vector<64x128xbf16>
    %6 = arith.mulf %1, %5 : vector<64x128xbf16>
    %c0_5 = arith.constant 0 : index
    %c0_6 = arith.constant 0 : index
    %7 = vector.load %arg4[%c0_5, %c0_6] : memref<128x128xbf16, #tpu.memory_space<vmem>>, vector<128x128xbf16>
    %cst = arith.constant dense<0.000000e+00> : vector<64x128xf32>
    %8 = tpu.matmul %6, %7, %cst {dimension_numbers = #tpu.dot_dimension_numbers<[1], [0], [0], [1], [0, 0, 1, 1], [], []>} : vector<64x128xbf16>, vector<128x128xbf16>, vector<64x128xf32> -> vector<64x128xf32>
    %c0_7 = arith.constant 0 : index
    %c0_8 = arith.constant 0 : index
    %9 = vector.load %arg5[%c0_7, %c0_8] : memref<1x128xf32, #tpu.memory_space<vmem>>, vector<1x128xf32>
    %10 = vector.broadcast %9 : vector<1x128xf32> to vector<64x128xf32>
    %11 = arith.mulf %8, %10 : vector<64x128xf32>
    %c0_9 = arith.constant 0 : index
    %c0_10 = arith.constant 0 : index
    %12 = vector.load %arg6[%c0_9, %c0_10] : memref<1x128xf32, #tpu.memory_space<vmem>>, vector<1x128xf32>
    %13 = vector.broadcast %12 : vector<1x128xf32> to vector<64x128xf32>
    %14 = arith.addf %11, %13 : vector<64x128xf32>
    %15 = arith.truncf %14 : vector<64x128xf32> to vector<64x128xbf16>
    %c0_11 = arith.constant 0 : index
    %c0_12 = arith.constant 0 : index
    %c0_13 = arith.constant 0 : index
    %16 = vector.load %arg7[%c0_11, %c0_12, %c0_13] : memref<1x64x128xbf16, #tpu.memory_space<vmem>>, vector<1x64x128xbf16>
    %17 = vector.shape_cast %16 : vector<1x64x128xbf16> to vector<64x128xbf16>
    %18 = vector.shape_cast %15 : vector<64x128xbf16> to vector<1x64x128xbf16>
    tpu.vector_store %arg7[%c0_11, %c0_12, %c0_13], %18 {strides = array<i32>} : memref<1x64x128xbf16, #tpu.memory_space<vmem>>, vector<1x64x128xbf16>,
    return
  }
  func.func @transform_0(%arg0: i32, %arg1: i32) -> (i32, i32, i32) {
    %c0_i32 = arith.constant 0 : i32
    %c0_i32_0 = arith.constant 0 : i32
    return %arg0, %arg1, %c0_i32 : i32, i32, i32
  }
  func.func @transform_1(%arg0: i32, %arg1: i32) -> (i32, i32, i32) {
    %c0_i32 = arith.constant 0 : i32
    %c0_i32_0 = arith.constant 0 : i32
    %c0_i32_1 = arith.constant 0 : i32
    return %arg0, %c0_i32, %c0_i32_0 : i32, i32, i32
  }
  func.func @transform_2(%arg0: i32, %arg1: i32) -> (i32, i32) {
    %c0_i32 = arith.constant 0 : i32
    %c0_i32_0 = arith.constant 0 : i32
    %c0_i32_1 = arith.constant 0 : i32
    return %c0_i32, %c0_i32_0 : i32, i32
  }
  func.func @transform_3(%arg0: i32, %arg1: i32) -> (i32, i32) {
    %c0_i32 = arith.constant 0 : i32
    %c0_i32_0 = arith.constant 0 : i32
    %c0_i32_1 = arith.constant 0 : i32
    return %c0_i32, %c0_i32_0 : i32, i32
  }
  func.func @transform_4(%arg0: i32, %arg1: i32) -> (i32, i32) {
    %c0_i32 = arith.constant 0 : i32
    %c0_i32_0 = arith.constant 0 : i32
    %c0_i32_1 = arith.constant 0 : i32
    return %c0_i32, %c0_i32_0 : i32, i32
  }
  func.func @transform_5(%arg0: i32, %arg1: i32) -> (i32, i32, i32) {
    %c0_i32 = arith.constant 0 : i32
    %c0_i32_0 = arith.constant 0 : i32
    return %arg0, %arg1, %c0_i32 : i32, i32, i32
  }
}

module attributes {stable_mosaic.version = 11 : i64} {
  func.func @_mm_bn_act_kernel(%arg0: i32, %arg1: memref<128x128xbf16, #tpu.memory_space<vmem>>, %arg2: memref<128x128xbf16, #tpu.memory_space<vmem>>, %arg3: memref<1x128xf32, #tpu.memory_space<vmem>>, %arg4: memref<1x128xf32, #tpu.memory_space<vmem>>, %arg5: memref<128x128xbf16, #tpu.memory_space<vmem>>) attributes {dimension_semantics = [#tpu.dimension_semantics<parallel>], iteration_bounds = array<i64: 1>, scalar_prefetch = 0 : i64, scratch_operands = 0 : i64, tpu.core_type = #tpu.core_type<tc>, window_params = [{transform_indices = @transform_0, window_bounds = array<i64: 128, 128>}, {pipeline_mode = #tpu.pipeline_mode<synchronous>, transform_indices = @transform_1, window_bounds = array<i64: 128, 128>}, {pipeline_mode = #tpu.pipeline_mode<synchronous>, transform_indices = @transform_2, window_bounds = array<i64: 1, 128>}, {pipeline_mode = #tpu.pipeline_mode<synchronous>, transform_indices = @transform_3, window_bounds = array<i64: 1, 128>}, {transform_indices = @transform_4, window_bounds = array<i64: 128, 128>}]} {
    %c0 = arith.constant 0 : index
    %c0_0 = arith.constant 0 : index
    %0 = vector.load %arg1[%c0, %c0_0] : memref<128x128xbf16, #tpu.memory_space<vmem>>, vector<128x128xbf16>
    %c0_1 = arith.constant 0 : index
    %c0_2 = arith.constant 0 : index
    %1 = vector.load %arg2[%c0_1, %c0_2] : memref<128x128xbf16, #tpu.memory_space<vmem>>, vector<128x128xbf16>
    %cst = arith.constant dense<0.000000e+00> : vector<128x128xf32>
    %2 = tpu.matmul %0, %1, %cst {dimension_numbers = #tpu.dot_dimension_numbers<[1], [0], [0], [1], [0, 0, 1, 1], [], []>} : vector<128x128xbf16>, vector<128x128xbf16>, vector<128x128xf32> -> vector<128x128xf32>
    %c0_3 = arith.constant 0 : index
    %c0_4 = arith.constant 0 : index
    %3 = vector.load %arg3[%c0_3, %c0_4] : memref<1x128xf32, #tpu.memory_space<vmem>>, vector<1x128xf32>
    %4 = vector.broadcast %3 : vector<1x128xf32> to vector<128x128xf32>
    %5 = arith.mulf %2, %4 : vector<128x128xf32>
    %c0_5 = arith.constant 0 : index
    %c0_6 = arith.constant 0 : index
    %6 = vector.load %arg4[%c0_5, %c0_6] : memref<1x128xf32, #tpu.memory_space<vmem>>, vector<1x128xf32>
    %7 = vector.broadcast %6 : vector<1x128xf32> to vector<128x128xf32>
    %8 = arith.addf %5, %7 : vector<128x128xf32>
    %9 = arith.negf %8 : vector<128x128xf32>
    %10 = math.exp %9 : vector<128x128xf32>
    %cst_7 = arith.constant 1.000000e+00 : f32
    %11 = vector.broadcast %cst_7 : f32 to vector<128x128xf32>
    %12 = arith.addf %11, %10 : vector<128x128xf32>
    %13 = arith.divf %11, %12 : vector<128x128xf32>
    %14 = arith.mulf %8, %13 : vector<128x128xf32>
    %15 = arith.truncf %14 : vector<128x128xf32> to vector<128x128xbf16>
    %c0_8 = arith.constant 0 : index
    %c0_9 = arith.constant 0 : index
    %16 = vector.load %arg5[%c0_8, %c0_9] : memref<128x128xbf16, #tpu.memory_space<vmem>>, vector<128x128xbf16>
    tpu.vector_store %arg5[%c0_8, %c0_9], %15 {strides = array<i32>} : memref<128x128xbf16, #tpu.memory_space<vmem>>, vector<128x128xbf16>,
    return
  }
  func.func @transform_0(%arg0: i32) -> (i32, i32) {
    %c0_i32 = arith.constant 0 : i32
    %c0_i32_0 = arith.constant 0 : i32
    return %arg0, %c0_i32 : i32, i32
  }
  func.func @transform_1(%arg0: i32) -> (i32, i32) {
    %c0_i32 = arith.constant 0 : i32
    %c0_i32_0 = arith.constant 0 : i32
    %c0_i32_1 = arith.constant 0 : i32
    return %c0_i32, %c0_i32_0 : i32, i32
  }
  func.func @transform_2(%arg0: i32) -> (i32, i32) {
    %c0_i32 = arith.constant 0 : i32
    %c0_i32_0 = arith.constant 0 : i32
    %c0_i32_1 = arith.constant 0 : i32
    return %c0_i32, %c0_i32_0 : i32, i32
  }
  func.func @transform_3(%arg0: i32) -> (i32, i32) {
    %c0_i32 = arith.constant 0 : i32
    %c0_i32_0 = arith.constant 0 : i32
    %c0_i32_1 = arith.constant 0 : i32
    return %c0_i32, %c0_i32_0 : i32, i32
  }
  func.func @transform_4(%arg0: i32) -> (i32, i32) {
    %c0_i32 = arith.constant 0 : i32
    %c0_i32_0 = arith.constant 0 : i32
    return %arg0, %c0_i32 : i32, i32
  }
}

module attributes {stable_mosaic.version = 11 : i64} {
  func.func @_dw_bn_silu_se_kernel(%arg0: i32, %arg1: i32, %arg2: memref<1x8x10x128xbf16, #tpu.memory_space<vmem>>, %arg3: memref<1x1x10x128xbf16, #tpu.memory_space<vmem>>, %arg4: memref<1x1x10x128xbf16, #tpu.memory_space<vmem>>, %arg5: memref<9x128xf32, #tpu.memory_space<vmem>>, %arg6: memref<1x128xf32, #tpu.memory_space<vmem>>, %arg7: memref<1x128xf32, #tpu.memory_space<vmem>>, %arg8: memref<8x128xf32, #tpu.memory_space<vmem>>, %arg9: memref<8x128xf32, #tpu.memory_space<vmem>>, %arg10: memref<1x8x8x128xbf16, #tpu.memory_space<vmem>>, %arg11: memref<1x1x128xf32, #tpu.memory_space<vmem>>, %arg12: memref<1x128xf32, #tpu.memory_space<vmem>>) attributes {dimension_semantics = [#tpu.dimension_semantics<parallel>, #tpu.dimension_semantics<arbitrary>], iteration_bounds = array<i64: 2, 1>, scalar_prefetch = 0 : i64, scratch_operands = 1 : i64, tpu.core_type = #tpu.core_type<tc>, window_params = [{transform_indices = @transform_0, window_bounds = array<i64: 1, 8, 10, 128>}, {transform_indices = @transform_1, window_bounds = array<i64: 1, 1, 10, 128>}, {transform_indices = @transform_2, window_bounds = array<i64: 1, 1, 10, 128>}, {pipeline_mode = #tpu.pipeline_mode<synchronous>, transform_indices = @transform_3, window_bounds = array<i64: 9, 128>}, {pipeline_mode = #tpu.pipeline_mode<synchronous>, transform_indices = @transform_4, window_bounds = array<i64: 1, 128>}, {pipeline_mode = #tpu.pipeline_mode<synchronous>, transform_indices = @transform_5, window_bounds = array<i64: 1, 128>}, {pipeline_mode = #tpu.pipeline_mode<synchronous>, transform_indices = @transform_6, window_bounds = array<i64: 8, 128>}, {pipeline_mode = #tpu.pipeline_mode<synchronous>, transform_indices = @transform_7, window_bounds = array<i64: 8, 128>}, {transform_indices = @transform_8, window_bounds = array<i64: 1, 8, 8, 128>}, {transform_indices = @transform_9, window_bounds = array<i64: 1, 1, 128>}]} {
    %c0 = arith.constant 0 : index
    %c0_0 = arith.constant 0 : index
    %0 = vector.load %arg5[%c0, %c0_0] : memref<9x128xf32, #tpu.memory_space<vmem>>, vector<9x128xf32>
    %c0_1 = arith.constant 0 : index
    %c0_2 = arith.constant 0 : index
    %1 = vector.load %arg6[%c0_1, %c0_2] : memref<1x128xf32, #tpu.memory_space<vmem>>, vector<1x128xf32>
    %c0_3 = arith.constant 0 : index
    %c0_4 = arith.constant 0 : index
    %2 = vector.load %arg7[%c0_3, %c0_4] : memref<1x128xf32, #tpu.memory_space<vmem>>, vector<1x128xf32>
    %c0_i32 = arith.constant 0 : i32
    %3 = arith.cmpi eq, %arg1, %c0_i32 : i32
    %4 = arith.extui %3 : i1 to i32
    %c0_i32_5 = arith.constant 0 : i32
    %5 = arith.cmpi ne, %4, %c0_i32_5 : i32
    scf.if %5 {
      %cst_349 = arith.constant 0.000000e+00 : f32
      %661 = vector.broadcast %cst_349 : f32 to vector<1x128xf32>
      %c0_350 = arith.constant 0 : index
      %c0_351 = arith.constant 0 : index
      %662 = vector.load %arg12[%c0_350, %c0_351] : memref<1x128xf32, #tpu.memory_space<vmem>>, vector<1x128xf32>
      tpu.vector_store %arg12[%c0_350, %c0_351], %661 {strides = array<i32>} : memref<1x128xf32, #tpu.memory_space<vmem>>, vector<1x128xf32>,
    } else {
    }
    %cst = arith.constant 0.000000e+00 : f32
    %6 = vector.broadcast %cst : f32 to vector<1x128xf32>
    %cst_6 = arith.constant 0.000000e+00 : f32
    %7 = vector.broadcast %cst_6 : f32 to vector<8x128xf32>
    %c0_7 = arith.constant 0 : index
    %c0_8 = arith.constant 0 : index
    %c0_9 = arith.constant 0 : index
    %c0_10 = arith.constant 0 : index
    %8 = vector.load %arg2[%c0_7, %c0_8, %c0_9, %c0_10] : memref<1x8x10x128xbf16, #tpu.memory_space<vmem>>, vector<1x1x8x128xbf16>
    %9 = vector.shape_cast %8 : vector<1x1x8x128xbf16> to vector<8x128xbf16>
    %10 = vector.extract_strided_slice %0 {offsets = [0, 0], sizes = [1, 128], strides = [1, 1]} : vector<9x128xf32> to vector<1x128xf32>
    %11 = arith.extf %9 : vector<8x128xbf16> to vector<8x128xf32>
    %12 = vector.broadcast %10 : vector<1x128xf32> to vector<8x128xf32>
    %13 = arith.mulf %11, %12 : vector<8x128xf32>
    %14 = arith.addf %7, %13 : vector<8x128xf32>
    %c0_11 = arith.constant 0 : index
    %c0_12 = arith.constant 0 : index
    %c1 = arith.constant 1 : index
    %c0_13 = arith.constant 0 : index
    %15 = vector.load %arg2[%c0_11, %c0_12, %c1, %c0_13] : memref<1x8x10x128xbf16, #tpu.memory_space<vmem>>, vector<1x1x8x128xbf16>
    %16 = vector.shape_cast %15 : vector<1x1x8x128xbf16> to vector<8x128xbf16>
    %17 = vector.extract_strided_slice %0 {offsets = [1, 0], sizes = [1, 128], strides = [1, 1]} : vector<9x128xf32> to vector<1x128xf32>
    %18 = arith.extf %16 : vector<8x128xbf16> to vector<8x128xf32>
    %19 = vector.broadcast %17 : vector<1x128xf32> to vector<8x128xf32>
    %20 = arith.mulf %18, %19 : vector<8x128xf32>
    %21 = arith.addf %14, %20 : vector<8x128xf32>
    %c0_14 = arith.constant 0 : index
    %c0_15 = arith.constant 0 : index
    %c2 = arith.constant 2 : index
    %c0_16 = arith.constant 0 : index
    %22 = vector.load %arg2[%c0_14, %c0_15, %c2, %c0_16] : memref<1x8x10x128xbf16, #tpu.memory_space<vmem>>, vector<1x1x8x128xbf16>
    %23 = vector.shape_cast %22 : vector<1x1x8x128xbf16> to vector<8x128xbf16>
    %24 = vector.extract_strided_slice %0 {offsets = [2, 0], sizes = [1, 128], strides = [1, 1]} : vector<9x128xf32> to vector<1x128xf32>
    %25 = arith.extf %23 : vector<8x128xbf16> to vector<8x128xf32>
    %26 = vector.broadcast %24 : vector<1x128xf32> to vector<8x128xf32>
    %27 = arith.mulf %25, %26 : vector<8x128xf32>
    %28 = arith.addf %21, %27 : vector<8x128xf32>
    %c0_17 = arith.constant 0 : index
    %c1_18 = arith.constant 1 : index
    %c0_19 = arith.constant 0 : index
    %c0_20 = arith.constant 0 : index
    %29 = vector.load %arg2[%c0_17, %c1_18, %c0_19, %c0_20] : memref<1x8x10x128xbf16, #tpu.memory_space<vmem>>, vector<1x1x8x128xbf16>
    %30 = vector.shape_cast %29 : vector<1x1x8x128xbf16> to vector<8x128xbf16>
    %31 = vector.extract_strided_slice %0 {offsets = [3, 0], sizes = [1, 128], strides = [1, 1]} : vector<9x128xf32> to vector<1x128xf32>
    %32 = arith.extf %30 : vector<8x128xbf16> to vector<8x128xf32>
    %33 = vector.broadcast %31 : vector<1x128xf32> to vector<8x128xf32>
    %34 = arith.mulf %32, %33 : vector<8x128xf32>
    %35 = arith.addf %28, %34 : vector<8x128xf32>
    %c0_21 = arith.constant 0 : index
    %c1_22 = arith.constant 1 : index
    %c1_23 = arith.constant 1 : index
    %c0_24 = arith.constant 0 : index
    %36 = vector.load %arg2[%c0_21, %c1_22, %c1_23, %c0_24] : memref<1x8x10x128xbf16, #tpu.memory_space<vmem>>, vector<1x1x8x128xbf16>
    %37 = vector.shape_cast %36 : vector<1x1x8x128xbf16> to vector<8x128xbf16>
    %38 = vector.extract_strided_slice %0 {offsets = [4, 0], sizes = [1, 128], strides = [1, 1]} : vector<9x128xf32> to vector<1x128xf32>
    %39 = arith.extf %37 : vector<8x128xbf16> to vector<8x128xf32>
    %40 = vector.broadcast %38 : vector<1x128xf32> to vector<8x128xf32>
    %41 = arith.mulf %39, %40 : vector<8x128xf32>
    %42 = arith.addf %35, %41 : vector<8x128xf32>
    %c0_25 = arith.constant 0 : index
    %c1_26 = arith.constant 1 : index
    %c2_27 = arith.constant 2 : index
    %c0_28 = arith.constant 0 : index
    %43 = vector.load %arg2[%c0_25, %c1_26, %c2_27, %c0_28] : memref<1x8x10x128xbf16, #tpu.memory_space<vmem>>, vector<1x1x8x128xbf16>
    %44 = vector.shape_cast %43 : vector<1x1x8x128xbf16> to vector<8x128xbf16>
    %45 = vector.extract_strided_slice %0 {offsets = [5, 0], sizes = [1, 128], strides = [1, 1]} : vector<9x128xf32> to vector<1x128xf32>
    %46 = arith.extf %44 : vector<8x128xbf16> to vector<8x128xf32>
    %47 = vector.broadcast %45 : vector<1x128xf32> to vector<8x128xf32>
    %48 = arith.mulf %46, %47 : vector<8x128xf32>
    %49 = arith.addf %42, %48 : vector<8x128xf32>
    %c0_29 = arith.constant 0 : index
    %c2_30 = arith.constant 2 : index
    %c0_31 = arith.constant 0 : index
    %c0_32 = arith.constant 0 : index
    %50 = vector.load %arg2[%c0_29, %c2_30, %c0_31, %c0_32] : memref<1x8x10x128xbf16, #tpu.memory_space<vmem>>, vector<1x1x8x128xbf16>
    %51 = vector.shape_cast %50 : vector<1x1x8x128xbf16> to vector<8x128xbf16>
    %52 = vector.extract_strided_slice %0 {offsets = [6, 0], sizes = [1, 128], strides = [1, 1]} : vector<9x128xf32> to vector<1x128xf32>
    %53 = arith.extf %51 : vector<8x128xbf16> to vector<8x128xf32>
    %54 = vector.broadcast %52 : vector<1x128xf32> to vector<8x128xf32>
    %55 = arith.mulf %53, %54 : vector<8x128xf32>
    %56 = arith.addf %49, %55 : vector<8x128xf32>
    %c0_33 = arith.constant 0 : index
    %c2_34 = arith.constant 2 : index
    %c1_35 = arith.constant 1 : index
    %c0_36 = arith.constant 0 : index
    %57 = vector.load %arg2[%c0_33, %c2_34, %c1_35, %c0_36] : memref<1x8x10x128xbf16, #tpu.memory_space<vmem>>, vector<1x1x8x128xbf16>
    %58 = vector.shape_cast %57 : vector<1x1x8x128xbf16> to vector<8x128xbf16>
    %59 = vector.extract_strided_slice %0 {offsets = [7, 0], sizes = [1, 128], strides = [1, 1]} : vector<9x128xf32> to vector<1x128xf32>
    %60 = arith.extf %58 : vector<8x128xbf16> to vector<8x128xf32>
    %61 = vector.broadcast %59 : vector<1x128xf32> to vector<8x128xf32>
    %62 = arith.mulf %60, %61 : vector<8x128xf32>
    %63 = arith.addf %56, %62 : vector<8x128xf32>
    %c0_37 = arith.constant 0 : index
    %c2_38 = arith.constant 2 : index
    %c2_39 = arith.constant 2 : index
    %c0_40 = arith.constant 0 : index
    %64 = vector.load %arg2[%c0_37, %c2_38, %c2_39, %c0_40] : memref<1x8x10x128xbf16, #tpu.memory_space<vmem>>, vector<1x1x8x128xbf16>
    %65 = vector.shape_cast %64 : vector<1x1x8x128xbf16> to vector<8x128xbf16>
    %66 = vector.extract_strided_slice %0 {offsets = [8, 0], sizes = [1, 128], strides = [1, 1]} : vector<9x128xf32> to vector<1x128xf32>
    %67 = arith.extf %65 : vector<8x128xbf16> to vector<8x128xf32>
    %68 = vector.broadcast %66 : vector<1x128xf32> to vector<8x128xf32>
    %69 = arith.mulf %67, %68 : vector<8x128xf32>
    %70 = arith.addf %63, %69 : vector<8x128xf32>
    %71 = vector.broadcast %1 : vector<1x128xf32> to vector<8x128xf32>
    %72 = arith.mulf %70, %71 : vector<8x128xf32>
    %73 = vector.broadcast %2 : vector<1x128xf32> to vector<8x128xf32>
    %74 = arith.addf %72, %73 : vector<8x128xf32>
    %75 = arith.negf %74 : vector<8x128xf32>
    %76 = math.exp %75 : vector<8x128xf32>
    %cst_41 = arith.constant 1.000000e+00 : f32
    %77 = vector.broadcast %cst_41 : f32 to vector<8x128xf32>
    %78 = arith.addf %77, %76 : vector<8x128xf32>
    %79 = arith.divf %77, %78 : vector<8x128xf32>
    %80 = arith.mulf %74, %79 : vector<8x128xf32>
    %81 = arith.truncf %80 : vector<8x128xf32> to vector<8x128xbf16>
    %c0_42 = arith.constant 0 : index
    %c0_43 = arith.constant 0 : index
    %c0_44 = arith.constant 0 : index
    %c0_45 = arith.constant 0 : index
    %82 = vector.load %arg10[%c0_42, %c0_43, %c0_44, %c0_45] : memref<1x8x8x128xbf16, #tpu.memory_space<vmem>>, vector<1x1x8x128xbf16>
    %83 = vector.shape_cast %82 : vector<1x1x8x128xbf16> to vector<8x128xbf16>
    %84 = vector.shape_cast %81 : vector<8x128xbf16> to vector<1x1x8x128xbf16>
    tpu.vector_store %arg10[%c0_42, %c0_43, %c0_44, %c0_45], %84 {strides = array<i32>} : memref<1x8x8x128xbf16, #tpu.memory_space<vmem>>, vector<1x1x8x128xbf16>,
    %cst_46 = arith.constant dense<0.000000e+00> : vector<128xf32>
    %85 = vector.multi_reduction <add>, %80, %cst_46 [0] : vector<8x128xf32> to vector<128xf32>
    %86 = vector.shape_cast %85 : vector<128xf32> to vector<1x128xf32>
    %87 = arith.addf %6, %86 : vector<1x128xf32>
    %cst_47 = arith.constant 0.000000e+00 : f32
    %88 = vector.broadcast %cst_47 : f32 to vector<8x128xf32>
    %c0_48 = arith.constant 0 : index
    %c1_49 = arith.constant 1 : index
    %c0_50 = arith.constant 0 : index
    %c0_51 = arith.constant 0 : index
    %89 = vector.load %arg2[%c0_48, %c1_49, %c0_50, %c0_51] : memref<1x8x10x128xbf16, #tpu.memory_space<vmem>>, vector<1x1x8x128xbf16>
    %90 = vector.shape_cast %89 : vector<1x1x8x128xbf16> to vector<8x128xbf16>
    %91 = vector.extract_strided_slice %0 {offsets = [0, 0], sizes = [1, 128], strides = [1, 1]} : vector<9x128xf32> to vector<1x128xf32>
    %92 = arith.extf %90 : vector<8x128xbf16> to vector<8x128xf32>
    %93 = vector.broadcast %91 : vector<1x128xf32> to vector<8x128xf32>
    %94 = arith.mulf %92, %93 : vector<8x128xf32>
    %95 = arith.addf %88, %94 : vector<8x128xf32>
    %c0_52 = arith.constant 0 : index
    %c1_53 = arith.constant 1 : index
    %c1_54 = arith.constant 1 : index
    %c0_55 = arith.constant 0 : index
    %96 = vector.load %arg2[%c0_52, %c1_53, %c1_54, %c0_55] : memref<1x8x10x128xbf16, #tpu.memory_space<vmem>>, vector<1x1x8x128xbf16>
    %97 = vector.shape_cast %96 : vector<1x1x8x128xbf16> to vector<8x128xbf16>
    %98 = vector.extract_strided_slice %0 {offsets = [1, 0], sizes = [1, 128], strides = [1, 1]} : vector<9x128xf32> to vector<1x128xf32>
    %99 = arith.extf %97 : vector<8x128xbf16> to vector<8x128xf32>
    %100 = vector.broadcast %98 : vector<1x128xf32> to vector<8x128xf32>
    %101 = arith.mulf %99, %100 : vector<8x128xf32>
    %102 = arith.addf %95, %101 : vector<8x128xf32>
    %c0_56 = arith.constant 0 : index
    %c1_57 = arith.constant 1 : index
    %c2_58 = arith.constant 2 : index
    %c0_59 = arith.constant 0 : index
    %103 = vector.load %arg2[%c0_56, %c1_57, %c2_58, %c0_59] : memref<1x8x10x128xbf16, #tpu.memory_space<vmem>>, vector<1x1x8x128xbf16>
    %104 = vector.shape_cast %103 : vector<1x1x8x128xbf16> to vector<8x128xbf16>
    %105 = vector.extract_strided_slice %0 {offsets = [2, 0], sizes = [1, 128], strides = [1, 1]} : vector<9x128xf32> to vector<1x128xf32>
    %106 = arith.extf %104 : vector<8x128xbf16> to vector<8x128xf32>
    %107 = vector.broadcast %105 : vector<1x128xf32> to vector<8x128xf32>
    %108 = arith.mulf %106, %107 : vector<8x128xf32>
    %109 = arith.addf %102, %108 : vector<8x128xf32>
    %c0_60 = arith.constant 0 : index
    %c2_61 = arith.constant 2 : index
    %c0_62 = arith.constant 0 : index
    %c0_63 = arith.constant 0 : index
    %110 = vector.load %arg2[%c0_60, %c2_61, %c0_62, %c0_63] : memref<1x8x10x128xbf16, #tpu.memory_space<vmem>>, vector<1x1x8x128xbf16>
    %111 = vector.shape_cast %110 : vector<1x1x8x128xbf16> to vector<8x128xbf16>
    %112 = vector.extract_strided_slice %0 {offsets = [3, 0], sizes = [1, 128], strides = [1, 1]} : vector<9x128xf32> to vector<1x128xf32>
    %113 = arith.extf %111 : vector<8x128xbf16> to vector<8x128xf32>
    %114 = vector.broadcast %112 : vector<1x128xf32> to vector<8x128xf32>
    %115 = arith.mulf %113, %114 : vector<8x128xf32>
    %116 = arith.addf %109, %115 : vector<8x128xf32>
    %c0_64 = arith.constant 0 : index
    %c2_65 = arith.constant 2 : index
    %c1_66 = arith.constant 1 : index
    %c0_67 = arith.constant 0 : index
    %117 = vector.load %arg2[%c0_64, %c2_65, %c1_66, %c0_67] : memref<1x8x10x128xbf16, #tpu.memory_space<vmem>>, vector<1x1x8x128xbf16>
    %118 = vector.shape_cast %117 : vector<1x1x8x128xbf16> to vector<8x128xbf16>
    %119 = vector.extract_strided_slice %0 {offsets = [4, 0], sizes = [1, 128], strides = [1, 1]} : vector<9x128xf32> to vector<1x128xf32>
    %120 = arith.extf %118 : vector<8x128xbf16> to vector<8x128xf32>
    %121 = vector.broadcast %119 : vector<1x128xf32> to vector<8x128xf32>
    %122 = arith.mulf %120, %121 : vector<8x128xf32>
    %123 = arith.addf %116, %122 : vector<8x128xf32>
    %c0_68 = arith.constant 0 : index
    %c2_69 = arith.constant 2 : index
    %c2_70 = arith.constant 2 : index
    %c0_71 = arith.constant 0 : index
    %124 = vector.load %arg2[%c0_68, %c2_69, %c2_70, %c0_71] : memref<1x8x10x128xbf16, #tpu.memory_space<vmem>>, vector<1x1x8x128xbf16>
    %125 = vector.shape_cast %124 : vector<1x1x8x128xbf16> to vector<8x128xbf16>
    %126 = vector.extract_strided_slice %0 {offsets = [5, 0], sizes = [1, 128], strides = [1, 1]} : vector<9x128xf32> to vector<1x128xf32>
    %127 = arith.extf %125 : vector<8x128xbf16> to vector<8x128xf32>
    %128 = vector.broadcast %126 : vector<1x128xf32> to vector<8x128xf32>
    %129 = arith.mulf %127, %128 : vector<8x128xf32>
    %130 = arith.addf %123, %129 : vector<8x128xf32>
    %c0_72 = arith.constant 0 : index
    %c3 = arith.constant 3 : index
    %c0_73 = arith.constant 0 : index
    %c0_74 = arith.constant 0 : index
    %131 = vector.load %arg2[%c0_72, %c3, %c0_73, %c0_74] : memref<1x8x10x128xbf16, #tpu.memory_space<vmem>>, vector<1x1x8x128xbf16>
    %132 = vector.shape_cast %131 : vector<1x1x8x128xbf16> to vector<8x128xbf16>
    %133 = vector.extract_strided_slice %0 {offsets = [6, 0], sizes = [1, 128], strides = [1, 1]} : vector<9x128xf32> to vector<1x128xf32>
    %134 = arith.extf %132 : vector<8x128xbf16> to vector<8x128xf32>
    %135 = vector.broadcast %133 : vector<1x128xf32> to vector<8x128xf32>
    %136 = arith.mulf %134, %135 : vector<8x128xf32>
    %137 = arith.addf %130, %136 : vector<8x128xf32>
    %c0_75 = arith.constant 0 : index
    %c3_76 = arith.constant 3 : index
    %c1_77 = arith.constant 1 : index
    %c0_78 = arith.constant 0 : index
    %138 = vector.load %arg2[%c0_75, %c3_76, %c1_77, %c0_78] : memref<1x8x10x128xbf16, #tpu.memory_space<vmem>>, vector<1x1x8x128xbf16>
    %139 = vector.shape_cast %138 : vector<1x1x8x128xbf16> to vector<8x128xbf16>
    %140 = vector.extract_strided_slice %0 {offsets = [7, 0], sizes = [1, 128], strides = [1, 1]} : vector<9x128xf32> to vector<1x128xf32>
    %141 = arith.extf %139 : vector<8x128xbf16> to vector<8x128xf32>
    %142 = vector.broadcast %140 : vector<1x128xf32> to vector<8x128xf32>
    %143 = arith.mulf %141, %142 : vector<8x128xf32>
    %144 = arith.addf %137, %143 : vector<8x128xf32>
    %c0_79 = arith.constant 0 : index
    %c3_80 = arith.constant 3 : index
    %c2_81 = arith.constant 2 : index
    %c0_82 = arith.constant 0 : index
    %145 = vector.load %arg2[%c0_79, %c3_80, %c2_81, %c0_82] : memref<1x8x10x128xbf16, #tpu.memory_space<vmem>>, vector<1x1x8x128xbf16>
    %146 = vector.shape_cast %145 : vector<1x1x8x128xbf16> to vector<8x128xbf16>
    %147 = vector.extract_strided_slice %0 {offsets = [8, 0], sizes = [1, 128], strides = [1, 1]} : vector<9x128xf32> to vector<1x128xf32>
    %148 = arith.extf %146 : vector<8x128xbf16> to vector<8x128xf32>
    %149 = vector.broadcast %147 : vector<1x128xf32> to vector<8x128xf32>
    %150 = arith.mulf %148, %149 : vector<8x128xf32>
    %151 = arith.addf %144, %150 : vector<8x128xf32>
    %152 = vector.broadcast %1 : vector<1x128xf32> to vector<8x128xf32>
    %153 = arith.mulf %151, %152 : vector<8x128xf32>
    %154 = vector.broadcast %2 : vector<1x128xf32> to vector<8x128xf32>
    %155 = arith.addf %153, %154 : vector<8x128xf32>
    %156 = arith.negf %155 : vector<8x128xf32>
    %157 = math.exp %156 : vector<8x128xf32>
    %cst_83 = arith.constant 1.000000e+00 : f32
    %158 = vector.broadcast %cst_83 : f32 to vector<8x128xf32>
    %159 = arith.addf %158, %157 : vector<8x128xf32>
    %160 = arith.divf %158, %159 : vector<8x128xf32>
    %161 = arith.mulf %155, %160 : vector<8x128xf32>
    %162 = arith.truncf %161 : vector<8x128xf32> to vector<8x128xbf16>
    %c0_84 = arith.constant 0 : index
    %c1_85 = arith.constant 1 : index
    %c0_86 = arith.constant 0 : index
    %c0_87 = arith.constant 0 : index
    %163 = vector.load %arg10[%c0_84, %c1_85, %c0_86, %c0_87] : memref<1x8x8x128xbf16, #tpu.memory_space<vmem>>, vector<1x1x8x128xbf16>
    %164 = vector.shape_cast %163 : vector<1x1x8x128xbf16> to vector<8x128xbf16>
    %165 = vector.shape_cast %162 : vector<8x128xbf16> to vector<1x1x8x128xbf16>
    tpu.vector_store %arg10[%c0_84, %c1_85, %c0_86, %c0_87], %165 {strides = array<i32>} : memref<1x8x8x128xbf16, #tpu.memory_space<vmem>>, vector<1x1x8x128xbf16>,
    %cst_88 = arith.constant dense<0.000000e+00> : vector<128xf32>
    %166 = vector.multi_reduction <add>, %161, %cst_88 [0] : vector<8x128xf32> to vector<128xf32>
    %167 = vector.shape_cast %166 : vector<128xf32> to vector<1x128xf32>
    %168 = arith.addf %87, %167 : vector<1x128xf32>
    %cst_89 = arith.constant 0.000000e+00 : f32
    %169 = vector.broadcast %cst_89 : f32 to vector<8x128xf32>
    %c0_90 = arith.constant 0 : index
    %c2_91 = arith.constant 2 : index
    %c0_92 = arith.constant 0 : index
    %c0_93 = arith.constant 0 : index
    %170 = vector.load %arg2[%c0_90, %c2_91, %c0_92, %c0_93] : memref<1x8x10x128xbf16, #tpu.memory_space<vmem>>, vector<1x1x8x128xbf16>
    %171 = vector.shape_cast %170 : vector<1x1x8x128xbf16> to vector<8x128xbf16>
    %172 = vector.extract_strided_slice %0 {offsets = [0, 0], sizes = [1, 128], strides = [1, 1]} : vector<9x128xf32> to vector<1x128xf32>
    %173 = arith.extf %171 : vector<8x128xbf16> to vector<8x128xf32>
    %174 = vector.broadcast %172 : vector<1x128xf32> to vector<8x128xf32>
    %175 = arith.mulf %173, %174 : vector<8x128xf32>
    %176 = arith.addf %169, %175 : vector<8x128xf32>
    %c0_94 = arith.constant 0 : index
    %c2_95 = arith.constant 2 : index
    %c1_96 = arith.constant 1 : index
    %c0_97 = arith.constant 0 : index
    %177 = vector.load %arg2[%c0_94, %c2_95, %c1_96, %c0_97] : memref<1x8x10x128xbf16, #tpu.memory_space<vmem>>, vector<1x1x8x128xbf16>
    %178 = vector.shape_cast %177 : vector<1x1x8x128xbf16> to vector<8x128xbf16>
    %179 = vector.extract_strided_slice %0 {offsets = [1, 0], sizes = [1, 128], strides = [1, 1]} : vector<9x128xf32> to vector<1x128xf32>
    %180 = arith.extf %178 : vector<8x128xbf16> to vector<8x128xf32>
    %181 = vector.broadcast %179 : vector<1x128xf32> to vector<8x128xf32>
    %182 = arith.mulf %180, %181 : vector<8x128xf32>
    %183 = arith.addf %176, %182 : vector<8x128xf32>
    %c0_98 = arith.constant 0 : index
    %c2_99 = arith.constant 2 : index
    %c2_100 = arith.constant 2 : index
    %c0_101 = arith.constant 0 : index
    %184 = vector.load %arg2[%c0_98, %c2_99, %c2_100, %c0_101] : memref<1x8x10x128xbf16, #tpu.memory_space<vmem>>, vector<1x1x8x128xbf16>
    %185 = vector.shape_cast %184 : vector<1x1x8x128xbf16> to vector<8x128xbf16>
    %186 = vector.extract_strided_slice %0 {offsets = [2, 0], sizes = [1, 128], strides = [1, 1]} : vector<9x128xf32> to vector<1x128xf32>
    %187 = arith.extf %185 : vector<8x128xbf16> to vector<8x128xf32>
    %188 = vector.broadcast %186 : vector<1x128xf32> to vector<8x128xf32>
    %189 = arith.mulf %187, %188 : vector<8x128xf32>
    %190 = arith.addf %183, %189 : vector<8x128xf32>
    %c0_102 = arith.constant 0 : index
    %c3_103 = arith.constant 3 : index
    %c0_104 = arith.constant 0 : index
    %c0_105 = arith.constant 0 : index
    %191 = vector.load %arg2[%c0_102, %c3_103, %c0_104, %c0_105] : memref<1x8x10x128xbf16, #tpu.memory_space<vmem>>, vector<1x1x8x128xbf16>
    %192 = vector.shape_cast %191 : vector<1x1x8x128xbf16> to vector<8x128xbf16>
    %193 = vector.extract_strided_slice %0 {offsets = [3, 0], sizes = [1, 128], strides = [1, 1]} : vector<9x128xf32> to vector<1x128xf32>
    %194 = arith.extf %192 : vector<8x128xbf16> to vector<8x128xf32>
    %195 = vector.broadcast %193 : vector<1x128xf32> to vector<8x128xf32>
    %196 = arith.mulf %194, %195 : vector<8x128xf32>
    %197 = arith.addf %190, %196 : vector<8x128xf32>
    %c0_106 = arith.constant 0 : index
    %c3_107 = arith.constant 3 : index
    %c1_108 = arith.constant 1 : index
    %c0_109 = arith.constant 0 : index
    %198 = vector.load %arg2[%c0_106, %c3_107, %c1_108, %c0_109] : memref<1x8x10x128xbf16, #tpu.memory_space<vmem>>, vector<1x1x8x128xbf16>
    %199 = vector.shape_cast %198 : vector<1x1x8x128xbf16> to vector<8x128xbf16>
    %200 = vector.extract_strided_slice %0 {offsets = [4, 0], sizes = [1, 128], strides = [1, 1]} : vector<9x128xf32> to vector<1x128xf32>
    %201 = arith.extf %199 : vector<8x128xbf16> to vector<8x128xf32>
    %202 = vector.broadcast %200 : vector<1x128xf32> to vector<8x128xf32>
    %203 = arith.mulf %201, %202 : vector<8x128xf32>
    %204 = arith.addf %197, %203 : vector<8x128xf32>
    %c0_110 = arith.constant 0 : index
    %c3_111 = arith.constant 3 : index
    %c2_112 = arith.constant 2 : index
    %c0_113 = arith.constant 0 : index
    %205 = vector.load %arg2[%c0_110, %c3_111, %c2_112, %c0_113] : memref<1x8x10x128xbf16, #tpu.memory_space<vmem>>, vector<1x1x8x128xbf16>
    %206 = vector.shape_cast %205 : vector<1x1x8x128xbf16> to vector<8x128xbf16>
    %207 = vector.extract_strided_slice %0 {offsets = [5, 0], sizes = [1, 128], strides = [1, 1]} : vector<9x128xf32> to vector<1x128xf32>
    %208 = arith.extf %206 : vector<8x128xbf16> to vector<8x128xf32>
    %209 = vector.broadcast %207 : vector<1x128xf32> to vector<8x128xf32>
    %210 = arith.mulf %208, %209 : vector<8x128xf32>
    %211 = arith.addf %204, %210 : vector<8x128xf32>
    %c0_114 = arith.constant 0 : index
    %c4 = arith.constant 4 : index
    %c0_115 = arith.constant 0 : index
    %c0_116 = arith.constant 0 : index
    %212 = vector.load %arg2[%c0_114, %c4, %c0_115, %c0_116] : memref<1x8x10x128xbf16, #tpu.memory_space<vmem>>, vector<1x1x8x128xbf16>
    %213 = vector.shape_cast %212 : vector<1x1x8x128xbf16> to vector<8x128xbf16>
    %214 = vector.extract_strided_slice %0 {offsets = [6, 0], sizes = [1, 128], strides = [1, 1]} : vector<9x128xf32> to vector<1x128xf32>
    %215 = arith.extf %213 : vector<8x128xbf16> to vector<8x128xf32>
    %216 = vector.broadcast %214 : vector<1x128xf32> to vector<8x128xf32>
    %217 = arith.mulf %215, %216 : vector<8x128xf32>
    %218 = arith.addf %211, %217 : vector<8x128xf32>
    %c0_117 = arith.constant 0 : index
    %c4_118 = arith.constant 4 : index
    %c1_119 = arith.constant 1 : index
    %c0_120 = arith.constant 0 : index
    %219 = vector.load %arg2[%c0_117, %c4_118, %c1_119, %c0_120] : memref<1x8x10x128xbf16, #tpu.memory_space<vmem>>, vector<1x1x8x128xbf16>
    %220 = vector.shape_cast %219 : vector<1x1x8x128xbf16> to vector<8x128xbf16>
    %221 = vector.extract_strided_slice %0 {offsets = [7, 0], sizes = [1, 128], strides = [1, 1]} : vector<9x128xf32> to vector<1x128xf32>
    %222 = arith.extf %220 : vector<8x128xbf16> to vector<8x128xf32>
    %223 = vector.broadcast %221 : vector<1x128xf32> to vector<8x128xf32>
    %224 = arith.mulf %222, %223 : vector<8x128xf32>
    %225 = arith.addf %218, %224 : vector<8x128xf32>
    %c0_121 = arith.constant 0 : index
    %c4_122 = arith.constant 4 : index
    %c2_123 = arith.constant 2 : index
    %c0_124 = arith.constant 0 : index
    %226 = vector.load %arg2[%c0_121, %c4_122, %c2_123, %c0_124] : memref<1x8x10x128xbf16, #tpu.memory_space<vmem>>, vector<1x1x8x128xbf16>
    %227 = vector.shape_cast %226 : vector<1x1x8x128xbf16> to vector<8x128xbf16>
    %228 = vector.extract_strided_slice %0 {offsets = [8, 0], sizes = [1, 128], strides = [1, 1]} : vector<9x128xf32> to vector<1x128xf32>
    %229 = arith.extf %227 : vector<8x128xbf16> to vector<8x128xf32>
    %230 = vector.broadcast %228 : vector<1x128xf32> to vector<8x128xf32>
    %231 = arith.mulf %229, %230 : vector<8x128xf32>
    %232 = arith.addf %225, %231 : vector<8x128xf32>
    %233 = vector.broadcast %1 : vector<1x128xf32> to vector<8x128xf32>
    %234 = arith.mulf %232, %233 : vector<8x128xf32>
    %235 = vector.broadcast %2 : vector<1x128xf32> to vector<8x128xf32>
    %236 = arith.addf %234, %235 : vector<8x128xf32>
    %237 = arith.negf %236 : vector<8x128xf32>
    %238 = math.exp %237 : vector<8x128xf32>
    %cst_125 = arith.constant 1.000000e+00 : f32
    %239 = vector.broadcast %cst_125 : f32 to vector<8x128xf32>
    %240 = arith.addf %239, %238 : vector<8x128xf32>
    %241 = arith.divf %239, %240 : vector<8x128xf32>
    %242 = arith.mulf %236, %241 : vector<8x128xf32>
    %243 = arith.truncf %242 : vector<8x128xf32> to vector<8x128xbf16>
    %c0_126 = arith.constant 0 : index
    %c2_127 = arith.constant 2 : index
    %c0_128 = arith.constant 0 : index
    %c0_129 = arith.constant 0 : index
    %244 = vector.load %arg10[%c0_126, %c2_127, %c0_128, %c0_129] : memref<1x8x8x128xbf16, #tpu.memory_space<vmem>>, vector<1x1x8x128xbf16>
    %245 = vector.shape_cast %244 : vector<1x1x8x128xbf16> to vector<8x128xbf16>
    %246 = vector.shape_cast %243 : vector<8x128xbf16> to vector<1x1x8x128xbf16>
    tpu.vector_store %arg10[%c0_126, %c2_127, %c0_128, %c0_129], %246 {strides = array<i32>} : memref<1x8x8x128xbf16, #tpu.memory_space<vmem>>, vector<1x1x8x128xbf16>,
    %cst_130 = arith.constant dense<0.000000e+00> : vector<128xf32>
    %247 = vector.multi_reduction <add>, %242, %cst_130 [0] : vector<8x128xf32> to vector<128xf32>
    %248 = vector.shape_cast %247 : vector<128xf32> to vector<1x128xf32>
    %249 = arith.addf %168, %248 : vector<1x128xf32>
    %cst_131 = arith.constant 0.000000e+00 : f32
    %250 = vector.broadcast %cst_131 : f32 to vector<8x128xf32>
    %c0_132 = arith.constant 0 : index
    %c3_133 = arith.constant 3 : index
    %c0_134 = arith.constant 0 : index
    %c0_135 = arith.constant 0 : index
    %251 = vector.load %arg2[%c0_132, %c3_133, %c0_134, %c0_135] : memref<1x8x10x128xbf16, #tpu.memory_space<vmem>>, vector<1x1x8x128xbf16>
    %252 = vector.shape_cast %251 : vector<1x1x8x128xbf16> to vector<8x128xbf16>
    %253 = vector.extract_strided_slice %0 {offsets = [0, 0], sizes = [1, 128], strides = [1, 1]} : vector<9x128xf32> to vector<1x128xf32>
    %254 = arith.extf %252 : vector<8x128xbf16> to vector<8x128xf32>
    %255 = vector.broadcast %253 : vector<1x128xf32> to vector<8x128xf32>
    %256 = arith.mulf %254, %255 : vector<8x128xf32>
    %257 = arith.addf %250, %256 : vector<8x128xf32>
    %c0_136 = arith.constant 0 : index
    %c3_137 = arith.constant 3 : index
    %c1_138 = arith.constant 1 : index
    %c0_139 = arith.constant 0 : index
    %258 = vector.load %arg2[%c0_136, %c3_137, %c1_138, %c0_139] : memref<1x8x10x128xbf16, #tpu.memory_space<vmem>>, vector<1x1x8x128xbf16>
    %259 = vector.shape_cast %258 : vector<1x1x8x128xbf16> to vector<8x128xbf16>
    %260 = vector.extract_strided_slice %0 {offsets = [1, 0], sizes = [1, 128], strides = [1, 1]} : vector<9x128xf32> to vector<1x128xf32>
    %261 = arith.extf %259 : vector<8x128xbf16> to vector<8x128xf32>
    %262 = vector.broadcast %260 : vector<1x128xf32> to vector<8x128xf32>
    %263 = arith.mulf %261, %262 : vector<8x128xf32>
    %264 = arith.addf %257, %263 : vector<8x128xf32>
    %c0_140 = arith.constant 0 : index
    %c3_141 = arith.constant 3 : index
    %c2_142 = arith.constant 2 : index
    %c0_143 = arith.constant 0 : index
    %265 = vector.load %arg2[%c0_140, %c3_141, %c2_142, %c0_143] : memref<1x8x10x128xbf16, #tpu.memory_space<vmem>>, vector<1x1x8x128xbf16>
    %266 = vector.shape_cast %265 : vector<1x1x8x128xbf16> to vector<8x128xbf16>
    %267 = vector.extract_strided_slice %0 {offsets = [2, 0], sizes = [1, 128], strides = [1, 1]} : vector<9x128xf32> to vector<1x128xf32>
    %268 = arith.extf %266 : vector<8x128xbf16> to vector<8x128xf32>
    %269 = vector.broadcast %267 : vector<1x128xf32> to vector<8x128xf32>
    %270 = arith.mulf %268, %269 : vector<8x128xf32>
    %271 = arith.addf %264, %270 : vector<8x128xf32>
    %c0_144 = arith.constant 0 : index
    %c4_145 = arith.constant 4 : index
    %c0_146 = arith.constant 0 : index
    %c0_147 = arith.constant 0 : index
    %272 = vector.load %arg2[%c0_144, %c4_145, %c0_146, %c0_147] : memref<1x8x10x128xbf16, #tpu.memory_space<vmem>>, vector<1x1x8x128xbf16>
    %273 = vector.shape_cast %272 : vector<1x1x8x128xbf16> to vector<8x128xbf16>
    %274 = vector.extract_strided_slice %0 {offsets = [3, 0], sizes = [1, 128], strides = [1, 1]} : vector<9x128xf32> to vector<1x128xf32>
    %275 = arith.extf %273 : vector<8x128xbf16> to vector<8x128xf32>
    %276 = vector.broadcast %274 : vector<1x128xf32> to vector<8x128xf32>
    %277 = arith.mulf %275, %276 : vector<8x128xf32>
    %278 = arith.addf %271, %277 : vector<8x128xf32>
    %c0_148 = arith.constant 0 : index
    %c4_149 = arith.constant 4 : index
    %c1_150 = arith.constant 1 : index
    %c0_151 = arith.constant 0 : index
    %279 = vector.load %arg2[%c0_148, %c4_149, %c1_150, %c0_151] : memref<1x8x10x128xbf16, #tpu.memory_space<vmem>>, vector<1x1x8x128xbf16>
    %280 = vector.shape_cast %279 : vector<1x1x8x128xbf16> to vector<8x128xbf16>
    %281 = vector.extract_strided_slice %0 {offsets = [4, 0], sizes = [1, 128], strides = [1, 1]} : vector<9x128xf32> to vector<1x128xf32>
    %282 = arith.extf %280 : vector<8x128xbf16> to vector<8x128xf32>
    %283 = vector.broadcast %281 : vector<1x128xf32> to vector<8x128xf32>
    %284 = arith.mulf %282, %283 : vector<8x128xf32>
    %285 = arith.addf %278, %284 : vector<8x128xf32>
    %c0_152 = arith.constant 0 : index
    %c4_153 = arith.constant 4 : index
    %c2_154 = arith.constant 2 : index
    %c0_155 = arith.constant 0 : index
    %286 = vector.load %arg2[%c0_152, %c4_153, %c2_154, %c0_155] : memref<1x8x10x128xbf16, #tpu.memory_space<vmem>>, vector<1x1x8x128xbf16>
    %287 = vector.shape_cast %286 : vector<1x1x8x128xbf16> to vector<8x128xbf16>
    %288 = vector.extract_strided_slice %0 {offsets = [5, 0], sizes = [1, 128], strides = [1, 1]} : vector<9x128xf32> to vector<1x128xf32>
    %289 = arith.extf %287 : vector<8x128xbf16> to vector<8x128xf32>
    %290 = vector.broadcast %288 : vector<1x128xf32> to vector<8x128xf32>
    %291 = arith.mulf %289, %290 : vector<8x128xf32>
    %292 = arith.addf %285, %291 : vector<8x128xf32>
    %c0_156 = arith.constant 0 : index
    %c5 = arith.constant 5 : index
    %c0_157 = arith.constant 0 : index
    %c0_158 = arith.constant 0 : index
    %293 = vector.load %arg2[%c0_156, %c5, %c0_157, %c0_158] : memref<1x8x10x128xbf16, #tpu.memory_space<vmem>>, vector<1x1x8x128xbf16>
    %294 = vector.shape_cast %293 : vector<1x1x8x128xbf16> to vector<8x128xbf16>
    %295 = vector.extract_strided_slice %0 {offsets = [6, 0], sizes = [1, 128], strides = [1, 1]} : vector<9x128xf32> to vector<1x128xf32>
    %296 = arith.extf %294 : vector<8x128xbf16> to vector<8x128xf32>
    %297 = vector.broadcast %295 : vector<1x128xf32> to vector<8x128xf32>
    %298 = arith.mulf %296, %297 : vector<8x128xf32>
    %299 = arith.addf %292, %298 : vector<8x128xf32>
    %c0_159 = arith.constant 0 : index
    %c5_160 = arith.constant 5 : index
    %c1_161 = arith.constant 1 : index
    %c0_162 = arith.constant 0 : index
    %300 = vector.load %arg2[%c0_159, %c5_160, %c1_161, %c0_162] : memref<1x8x10x128xbf16, #tpu.memory_space<vmem>>, vector<1x1x8x128xbf16>
    %301 = vector.shape_cast %300 : vector<1x1x8x128xbf16> to vector<8x128xbf16>
    %302 = vector.extract_strided_slice %0 {offsets = [7, 0], sizes = [1, 128], strides = [1, 1]} : vector<9x128xf32> to vector<1x128xf32>
    %303 = arith.extf %301 : vector<8x128xbf16> to vector<8x128xf32>
    %304 = vector.broadcast %302 : vector<1x128xf32> to vector<8x128xf32>
    %305 = arith.mulf %303, %304 : vector<8x128xf32>
    %306 = arith.addf %299, %305 : vector<8x128xf32>
    %c0_163 = arith.constant 0 : index
    %c5_164 = arith.constant 5 : index
    %c2_165 = arith.constant 2 : index
    %c0_166 = arith.constant 0 : index
    %307 = vector.load %arg2[%c0_163, %c5_164, %c2_165, %c0_166] : memref<1x8x10x128xbf16, #tpu.memory_space<vmem>>, vector<1x1x8x128xbf16>
    %308 = vector.shape_cast %307 : vector<1x1x8x128xbf16> to vector<8x128xbf16>
    %309 = vector.extract_strided_slice %0 {offsets = [8, 0], sizes = [1, 128], strides = [1, 1]} : vector<9x128xf32> to vector<1x128xf32>
    %310 = arith.extf %308 : vector<8x128xbf16> to vector<8x128xf32>
    %311 = vector.broadcast %309 : vector<1x128xf32> to vector<8x128xf32>
    %312 = arith.mulf %310, %311 : vector<8x128xf32>
    %313 = arith.addf %306, %312 : vector<8x128xf32>
    %314 = vector.broadcast %1 : vector<1x128xf32> to vector<8x128xf32>
    %315 = arith.mulf %313, %314 : vector<8x128xf32>
    %316 = vector.broadcast %2 : vector<1x128xf32> to vector<8x128xf32>
    %317 = arith.addf %315, %316 : vector<8x128xf32>
    %318 = arith.negf %317 : vector<8x128xf32>
    %319 = math.exp %318 : vector<8x128xf32>
    %cst_167 = arith.constant 1.000000e+00 : f32
    %320 = vector.broadcast %cst_167 : f32 to vector<8x128xf32>
    %321 = arith.addf %320, %319 : vector<8x128xf32>
    %322 = arith.divf %320, %321 : vector<8x128xf32>
    %323 = arith.mulf %317, %322 : vector<8x128xf32>
    %324 = arith.truncf %323 : vector<8x128xf32> to vector<8x128xbf16>
    %c0_168 = arith.constant 0 : index
    %c3_169 = arith.constant 3 : index
    %c0_170 = arith.constant 0 : index
    %c0_171 = arith.constant 0 : index
    %325 = vector.load %arg10[%c0_168, %c3_169, %c0_170, %c0_171] : memref<1x8x8x128xbf16, #tpu.memory_space<vmem>>, vector<1x1x8x128xbf16>
    %326 = vector.shape_cast %325 : vector<1x1x8x128xbf16> to vector<8x128xbf16>
    %327 = vector.shape_cast %324 : vector<8x128xbf16> to vector<1x1x8x128xbf16>
    tpu.vector_store %arg10[%c0_168, %c3_169, %c0_170, %c0_171], %327 {strides = array<i32>} : memref<1x8x8x128xbf16, #tpu.memory_space<vmem>>, vector<1x1x8x128xbf16>,
    %cst_172 = arith.constant dense<0.000000e+00> : vector<128xf32>
    %328 = vector.multi_reduction <add>, %323, %cst_172 [0] : vector<8x128xf32> to vector<128xf32>
    %329 = vector.shape_cast %328 : vector<128xf32> to vector<1x128xf32>
    %330 = arith.addf %249, %329 : vector<1x128xf32>
    %cst_173 = arith.constant 0.000000e+00 : f32
    %331 = vector.broadcast %cst_173 : f32 to vector<8x128xf32>
    %c0_174 = arith.constant 0 : index
    %c4_175 = arith.constant 4 : index
    %c0_176 = arith.constant 0 : index
    %c0_177 = arith.constant 0 : index
    %332 = vector.load %arg2[%c0_174, %c4_175, %c0_176, %c0_177] : memref<1x8x10x128xbf16, #tpu.memory_space<vmem>>, vector<1x1x8x128xbf16>
    %333 = vector.shape_cast %332 : vector<1x1x8x128xbf16> to vector<8x128xbf16>
    %334 = vector.extract_strided_slice %0 {offsets = [0, 0], sizes = [1, 128], strides = [1, 1]} : vector<9x128xf32> to vector<1x128xf32>
    %335 = arith.extf %333 : vector<8x128xbf16> to vector<8x128xf32>
    %336 = vector.broadcast %334 : vector<1x128xf32> to vector<8x128xf32>
    %337 = arith.mulf %335, %336 : vector<8x128xf32>
    %338 = arith.addf %331, %337 : vector<8x128xf32>
    %c0_178 = arith.constant 0 : index
    %c4_179 = arith.constant 4 : index
    %c1_180 = arith.constant 1 : index
    %c0_181 = arith.constant 0 : index
    %339 = vector.load %arg2[%c0_178, %c4_179, %c1_180, %c0_181] : memref<1x8x10x128xbf16, #tpu.memory_space<vmem>>, vector<1x1x8x128xbf16>
    %340 = vector.shape_cast %339 : vector<1x1x8x128xbf16> to vector<8x128xbf16>
    %341 = vector.extract_strided_slice %0 {offsets = [1, 0], sizes = [1, 128], strides = [1, 1]} : vector<9x128xf32> to vector<1x128xf32>
    %342 = arith.extf %340 : vector<8x128xbf16> to vector<8x128xf32>
    %343 = vector.broadcast %341 : vector<1x128xf32> to vector<8x128xf32>
    %344 = arith.mulf %342, %343 : vector<8x128xf32>
    %345 = arith.addf %338, %344 : vector<8x128xf32>
    %c0_182 = arith.constant 0 : index
    %c4_183 = arith.constant 4 : index
    %c2_184 = arith.constant 2 : index
    %c0_185 = arith.constant 0 : index
    %346 = vector.load %arg2[%c0_182, %c4_183, %c2_184, %c0_185] : memref<1x8x10x128xbf16, #tpu.memory_space<vmem>>, vector<1x1x8x128xbf16>
    %347 = vector.shape_cast %346 : vector<1x1x8x128xbf16> to vector<8x128xbf16>
    %348 = vector.extract_strided_slice %0 {offsets = [2, 0], sizes = [1, 128], strides = [1, 1]} : vector<9x128xf32> to vector<1x128xf32>
    %349 = arith.extf %347 : vector<8x128xbf16> to vector<8x128xf32>
    %350 = vector.broadcast %348 : vector<1x128xf32> to vector<8x128xf32>
    %351 = arith.mulf %349, %350 : vector<8x128xf32>
    %352 = arith.addf %345, %351 : vector<8x128xf32>
    %c0_186 = arith.constant 0 : index
    %c5_187 = arith.constant 5 : index
    %c0_188 = arith.constant 0 : index
    %c0_189 = arith.constant 0 : index
    %353 = vector.load %arg2[%c0_186, %c5_187, %c0_188, %c0_189] : memref<1x8x10x128xbf16, #tpu.memory_space<vmem>>, vector<1x1x8x128xbf16>
    %354 = vector.shape_cast %353 : vector<1x1x8x128xbf16> to vector<8x128xbf16>
    %355 = vector.extract_strided_slice %0 {offsets = [3, 0], sizes = [1, 128], strides = [1, 1]} : vector<9x128xf32> to vector<1x128xf32>
    %356 = arith.extf %354 : vector<8x128xbf16> to vector<8x128xf32>
    %357 = vector.broadcast %355 : vector<1x128xf32> to vector<8x128xf32>
    %358 = arith.mulf %356, %357 : vector<8x128xf32>
    %359 = arith.addf %352, %358 : vector<8x128xf32>
    %c0_190 = arith.constant 0 : index
    %c5_191 = arith.constant 5 : index
    %c1_192 = arith.constant 1 : index
    %c0_193 = arith.constant 0 : index
    %360 = vector.load %arg2[%c0_190, %c5_191, %c1_192, %c0_193] : memref<1x8x10x128xbf16, #tpu.memory_space<vmem>>, vector<1x1x8x128xbf16>
    %361 = vector.shape_cast %360 : vector<1x1x8x128xbf16> to vector<8x128xbf16>
    %362 = vector.extract_strided_slice %0 {offsets = [4, 0], sizes = [1, 128], strides = [1, 1]} : vector<9x128xf32> to vector<1x128xf32>
    %363 = arith.extf %361 : vector<8x128xbf16> to vector<8x128xf32>
    %364 = vector.broadcast %362 : vector<1x128xf32> to vector<8x128xf32>
    %365 = arith.mulf %363, %364 : vector<8x128xf32>
    %366 = arith.addf %359, %365 : vector<8x128xf32>
    %c0_194 = arith.constant 0 : index
    %c5_195 = arith.constant 5 : index
    %c2_196 = arith.constant 2 : index
    %c0_197 = arith.constant 0 : index
    %367 = vector.load %arg2[%c0_194, %c5_195, %c2_196, %c0_197] : memref<1x8x10x128xbf16, #tpu.memory_space<vmem>>, vector<1x1x8x128xbf16>
    %368 = vector.shape_cast %367 : vector<1x1x8x128xbf16> to vector<8x128xbf16>
    %369 = vector.extract_strided_slice %0 {offsets = [5, 0], sizes = [1, 128], strides = [1, 1]} : vector<9x128xf32> to vector<1x128xf32>
    %370 = arith.extf %368 : vector<8x128xbf16> to vector<8x128xf32>
    %371 = vector.broadcast %369 : vector<1x128xf32> to vector<8x128xf32>
    %372 = arith.mulf %370, %371 : vector<8x128xf32>
    %373 = arith.addf %366, %372 : vector<8x128xf32>
    %c0_198 = arith.constant 0 : index
    %c6 = arith.constant 6 : index
    %c0_199 = arith.constant 0 : index
    %c0_200 = arith.constant 0 : index
    %374 = vector.load %arg2[%c0_198, %c6, %c0_199, %c0_200] : memref<1x8x10x128xbf16, #tpu.memory_space<vmem>>, vector<1x1x8x128xbf16>
    %375 = vector.shape_cast %374 : vector<1x1x8x128xbf16> to vector<8x128xbf16>
    %376 = vector.extract_strided_slice %0 {offsets = [6, 0], sizes = [1, 128], strides = [1, 1]} : vector<9x128xf32> to vector<1x128xf32>
    %377 = arith.extf %375 : vector<8x128xbf16> to vector<8x128xf32>
    %378 = vector.broadcast %376 : vector<1x128xf32> to vector<8x128xf32>
    %379 = arith.mulf %377, %378 : vector<8x128xf32>
    %380 = arith.addf %373, %379 : vector<8x128xf32>
    %c0_201 = arith.constant 0 : index
    %c6_202 = arith.constant 6 : index
    %c1_203 = arith.constant 1 : index
    %c0_204 = arith.constant 0 : index
    %381 = vector.load %arg2[%c0_201, %c6_202, %c1_203, %c0_204] : memref<1x8x10x128xbf16, #tpu.memory_space<vmem>>, vector<1x1x8x128xbf16>
    %382 = vector.shape_cast %381 : vector<1x1x8x128xbf16> to vector<8x128xbf16>
    %383 = vector.extract_strided_slice %0 {offsets = [7, 0], sizes = [1, 128], strides = [1, 1]} : vector<9x128xf32> to vector<1x128xf32>
    %384 = arith.extf %382 : vector<8x128xbf16> to vector<8x128xf32>
    %385 = vector.broadcast %383 : vector<1x128xf32> to vector<8x128xf32>
    %386 = arith.mulf %384, %385 : vector<8x128xf32>
    %387 = arith.addf %380, %386 : vector<8x128xf32>
    %c0_205 = arith.constant 0 : index
    %c6_206 = arith.constant 6 : index
    %c2_207 = arith.constant 2 : index
    %c0_208 = arith.constant 0 : index
    %388 = vector.load %arg2[%c0_205, %c6_206, %c2_207, %c0_208] : memref<1x8x10x128xbf16, #tpu.memory_space<vmem>>, vector<1x1x8x128xbf16>
    %389 = vector.shape_cast %388 : vector<1x1x8x128xbf16> to vector<8x128xbf16>
    %390 = vector.extract_strided_slice %0 {offsets = [8, 0], sizes = [1, 128], strides = [1, 1]} : vector<9x128xf32> to vector<1x128xf32>
    %391 = arith.extf %389 : vector<8x128xbf16> to vector<8x128xf32>
    %392 = vector.broadcast %390 : vector<1x128xf32> to vector<8x128xf32>
    %393 = arith.mulf %391, %392 : vector<8x128xf32>
    %394 = arith.addf %387, %393 : vector<8x128xf32>
    %395 = vector.broadcast %1 : vector<1x128xf32> to vector<8x128xf32>
    %396 = arith.mulf %394, %395 : vector<8x128xf32>
    %397 = vector.broadcast %2 : vector<1x128xf32> to vector<8x128xf32>
    %398 = arith.addf %396, %397 : vector<8x128xf32>
    %399 = arith.negf %398 : vector<8x128xf32>
    %400 = math.exp %399 : vector<8x128xf32>
    %cst_209 = arith.constant 1.000000e+00 : f32
    %401 = vector.broadcast %cst_209 : f32 to vector<8x128xf32>
    %402 = arith.addf %401, %400 : vector<8x128xf32>
    %403 = arith.divf %401, %402 : vector<8x128xf32>
    %404 = arith.mulf %398, %403 : vector<8x128xf32>
    %405 = arith.truncf %404 : vector<8x128xf32> to vector<8x128xbf16>
    %c0_210 = arith.constant 0 : index
    %c4_211 = arith.constant 4 : index
    %c0_212 = arith.constant 0 : index
    %c0_213 = arith.constant 0 : index
    %406 = vector.load %arg10[%c0_210, %c4_211, %c0_212, %c0_213] : memref<1x8x8x128xbf16, #tpu.memory_space<vmem>>, vector<1x1x8x128xbf16>
    %407 = vector.shape_cast %406 : vector<1x1x8x128xbf16> to vector<8x128xbf16>
    %408 = vector.shape_cast %405 : vector<8x128xbf16> to vector<1x1x8x128xbf16>
    tpu.vector_store %arg10[%c0_210, %c4_211, %c0_212, %c0_213], %408 {strides = array<i32>} : memref<1x8x8x128xbf16, #tpu.memory_space<vmem>>, vector<1x1x8x128xbf16>,
    %cst_214 = arith.constant dense<0.000000e+00> : vector<128xf32>
    %409 = vector.multi_reduction <add>, %404, %cst_214 [0] : vector<8x128xf32> to vector<128xf32>
    %410 = vector.shape_cast %409 : vector<128xf32> to vector<1x128xf32>
    %411 = arith.addf %330, %410 : vector<1x128xf32>
    %cst_215 = arith.constant 0.000000e+00 : f32
    %412 = vector.broadcast %cst_215 : f32 to vector<8x128xf32>
    %c0_216 = arith.constant 0 : index
    %c5_217 = arith.constant 5 : index
    %c0_218 = arith.constant 0 : index
    %c0_219 = arith.constant 0 : index
    %413 = vector.load %arg2[%c0_216, %c5_217, %c0_218, %c0_219] : memref<1x8x10x128xbf16, #tpu.memory_space<vmem>>, vector<1x1x8x128xbf16>
    %414 = vector.shape_cast %413 : vector<1x1x8x128xbf16> to vector<8x128xbf16>
    %415 = vector.extract_strided_slice %0 {offsets = [0, 0], sizes = [1, 128], strides = [1, 1]} : vector<9x128xf32> to vector<1x128xf32>
    %416 = arith.extf %414 : vector<8x128xbf16> to vector<8x128xf32>
    %417 = vector.broadcast %415 : vector<1x128xf32> to vector<8x128xf32>
    %418 = arith.mulf %416, %417 : vector<8x128xf32>
    %419 = arith.addf %412, %418 : vector<8x128xf32>
    %c0_220 = arith.constant 0 : index
    %c5_221 = arith.constant 5 : index
    %c1_222 = arith.constant 1 : index
    %c0_223 = arith.constant 0 : index
    %420 = vector.load %arg2[%c0_220, %c5_221, %c1_222, %c0_223] : memref<1x8x10x128xbf16, #tpu.memory_space<vmem>>, vector<1x1x8x128xbf16>
    %421 = vector.shape_cast %420 : vector<1x1x8x128xbf16> to vector<8x128xbf16>
    %422 = vector.extract_strided_slice %0 {offsets = [1, 0], sizes = [1, 128], strides = [1, 1]} : vector<9x128xf32> to vector<1x128xf32>
    %423 = arith.extf %421 : vector<8x128xbf16> to vector<8x128xf32>
    %424 = vector.broadcast %422 : vector<1x128xf32> to vector<8x128xf32>
    %425 = arith.mulf %423, %424 : vector<8x128xf32>
    %426 = arith.addf %419, %425 : vector<8x128xf32>
    %c0_224 = arith.constant 0 : index
    %c5_225 = arith.constant 5 : index
    %c2_226 = arith.constant 2 : index
    %c0_227 = arith.constant 0 : index
    %427 = vector.load %arg2[%c0_224, %c5_225, %c2_226, %c0_227] : memref<1x8x10x128xbf16, #tpu.memory_space<vmem>>, vector<1x1x8x128xbf16>
    %428 = vector.shape_cast %427 : vector<1x1x8x128xbf16> to vector<8x128xbf16>
    %429 = vector.extract_strided_slice %0 {offsets = [2, 0], sizes = [1, 128], strides = [1, 1]} : vector<9x128xf32> to vector<1x128xf32>
    %430 = arith.extf %428 : vector<8x128xbf16> to vector<8x128xf32>
    %431 = vector.broadcast %429 : vector<1x128xf32> to vector<8x128xf32>
    %432 = arith.mulf %430, %431 : vector<8x128xf32>
    %433 = arith.addf %426, %432 : vector<8x128xf32>
    %c0_228 = arith.constant 0 : index
    %c6_229 = arith.constant 6 : index
    %c0_230 = arith.constant 0 : index
    %c0_231 = arith.constant 0 : index
    %434 = vector.load %arg2[%c0_228, %c6_229, %c0_230, %c0_231] : memref<1x8x10x128xbf16, #tpu.memory_space<vmem>>, vector<1x1x8x128xbf16>
    %435 = vector.shape_cast %434 : vector<1x1x8x128xbf16> to vector<8x128xbf16>
    %436 = vector.extract_strided_slice %0 {offsets = [3, 0], sizes = [1, 128], strides = [1, 1]} : vector<9x128xf32> to vector<1x128xf32>
    %437 = arith.extf %435 : vector<8x128xbf16> to vector<8x128xf32>
    %438 = vector.broadcast %436 : vector<1x128xf32> to vector<8x128xf32>
    %439 = arith.mulf %437, %438 : vector<8x128xf32>
    %440 = arith.addf %433, %439 : vector<8x128xf32>
    %c0_232 = arith.constant 0 : index
    %c6_233 = arith.constant 6 : index
    %c1_234 = arith.constant 1 : index
    %c0_235 = arith.constant 0 : index
    %441 = vector.load %arg2[%c0_232, %c6_233, %c1_234, %c0_235] : memref<1x8x10x128xbf16, #tpu.memory_space<vmem>>, vector<1x1x8x128xbf16>
    %442 = vector.shape_cast %441 : vector<1x1x8x128xbf16> to vector<8x128xbf16>
    %443 = vector.extract_strided_slice %0 {offsets = [4, 0], sizes = [1, 128], strides = [1, 1]} : vector<9x128xf32> to vector<1x128xf32>
    %444 = arith.extf %442 : vector<8x128xbf16> to vector<8x128xf32>
    %445 = vector.broadcast %443 : vector<1x128xf32> to vector<8x128xf32>
    %446 = arith.mulf %444, %445 : vector<8x128xf32>
    %447 = arith.addf %440, %446 : vector<8x128xf32>
    %c0_236 = arith.constant 0 : index
    %c6_237 = arith.constant 6 : index
    %c2_238 = arith.constant 2 : index
    %c0_239 = arith.constant 0 : index
    %448 = vector.load %arg2[%c0_236, %c6_237, %c2_238, %c0_239] : memref<1x8x10x128xbf16, #tpu.memory_space<vmem>>, vector<1x1x8x128xbf16>
    %449 = vector.shape_cast %448 : vector<1x1x8x128xbf16> to vector<8x128xbf16>
    %450 = vector.extract_strided_slice %0 {offsets = [5, 0], sizes = [1, 128], strides = [1, 1]} : vector<9x128xf32> to vector<1x128xf32>
    %451 = arith.extf %449 : vector<8x128xbf16> to vector<8x128xf32>
    %452 = vector.broadcast %450 : vector<1x128xf32> to vector<8x128xf32>
    %453 = arith.mulf %451, %452 : vector<8x128xf32>
    %454 = arith.addf %447, %453 : vector<8x128xf32>
    %c0_240 = arith.constant 0 : index
    %c7 = arith.constant 7 : index
    %c0_241 = arith.constant 0 : index
    %c0_242 = arith.constant 0 : index
    %455 = vector.load %arg2[%c0_240, %c7, %c0_241, %c0_242] : memref<1x8x10x128xbf16, #tpu.memory_space<vmem>>, vector<1x1x8x128xbf16>
    %456 = vector.shape_cast %455 : vector<1x1x8x128xbf16> to vector<8x128xbf16>
    %457 = vector.extract_strided_slice %0 {offsets = [6, 0], sizes = [1, 128], strides = [1, 1]} : vector<9x128xf32> to vector<1x128xf32>
    %458 = arith.extf %456 : vector<8x128xbf16> to vector<8x128xf32>
    %459 = vector.broadcast %457 : vector<1x128xf32> to vector<8x128xf32>
    %460 = arith.mulf %458, %459 : vector<8x128xf32>
    %461 = arith.addf %454, %460 : vector<8x128xf32>
    %c0_243 = arith.constant 0 : index
    %c7_244 = arith.constant 7 : index
    %c1_245 = arith.constant 1 : index
    %c0_246 = arith.constant 0 : index
    %462 = vector.load %arg2[%c0_243, %c7_244, %c1_245, %c0_246] : memref<1x8x10x128xbf16, #tpu.memory_space<vmem>>, vector<1x1x8x128xbf16>
    %463 = vector.shape_cast %462 : vector<1x1x8x128xbf16> to vector<8x128xbf16>
    %464 = vector.extract_strided_slice %0 {offsets = [7, 0], sizes = [1, 128], strides = [1, 1]} : vector<9x128xf32> to vector<1x128xf32>
    %465 = arith.extf %463 : vector<8x128xbf16> to vector<8x128xf32>
    %466 = vector.broadcast %464 : vector<1x128xf32> to vector<8x128xf32>
    %467 = arith.mulf %465, %466 : vector<8x128xf32>
    %468 = arith.addf %461, %467 : vector<8x128xf32>
    %c0_247 = arith.constant 0 : index
    %c7_248 = arith.constant 7 : index
    %c2_249 = arith.constant 2 : index
    %c0_250 = arith.constant 0 : index
    %469 = vector.load %arg2[%c0_247, %c7_248, %c2_249, %c0_250] : memref<1x8x10x128xbf16, #tpu.memory_space<vmem>>, vector<1x1x8x128xbf16>
    %470 = vector.shape_cast %469 : vector<1x1x8x128xbf16> to vector<8x128xbf16>
    %471 = vector.extract_strided_slice %0 {offsets = [8, 0], sizes = [1, 128], strides = [1, 1]} : vector<9x128xf32> to vector<1x128xf32>
    %472 = arith.extf %470 : vector<8x128xbf16> to vector<8x128xf32>
    %473 = vector.broadcast %471 : vector<1x128xf32> to vector<8x128xf32>
    %474 = arith.mulf %472, %473 : vector<8x128xf32>
    %475 = arith.addf %468, %474 : vector<8x128xf32>
    %476 = vector.broadcast %1 : vector<1x128xf32> to vector<8x128xf32>
    %477 = arith.mulf %475, %476 : vector<8x128xf32>
    %478 = vector.broadcast %2 : vector<1x128xf32> to vector<8x128xf32>
    %479 = arith.addf %477, %478 : vector<8x128xf32>
    %480 = arith.negf %479 : vector<8x128xf32>
    %481 = math.exp %480 : vector<8x128xf32>
    %cst_251 = arith.constant 1.000000e+00 : f32
    %482 = vector.broadcast %cst_251 : f32 to vector<8x128xf32>
    %483 = arith.addf %482, %481 : vector<8x128xf32>
    %484 = arith.divf %482, %483 : vector<8x128xf32>
    %485 = arith.mulf %479, %484 : vector<8x128xf32>
    %486 = arith.truncf %485 : vector<8x128xf32> to vector<8x128xbf16>
    %c0_252 = arith.constant 0 : index
    %c5_253 = arith.constant 5 : index
    %c0_254 = arith.constant 0 : index
    %c0_255 = arith.constant 0 : index
    %487 = vector.load %arg10[%c0_252, %c5_253, %c0_254, %c0_255] : memref<1x8x8x128xbf16, #tpu.memory_space<vmem>>, vector<1x1x8x128xbf16>
    %488 = vector.shape_cast %487 : vector<1x1x8x128xbf16> to vector<8x128xbf16>
    %489 = vector.shape_cast %486 : vector<8x128xbf16> to vector<1x1x8x128xbf16>
    tpu.vector_store %arg10[%c0_252, %c5_253, %c0_254, %c0_255], %489 {strides = array<i32>} : memref<1x8x8x128xbf16, #tpu.memory_space<vmem>>, vector<1x1x8x128xbf16>,
    %cst_256 = arith.constant dense<0.000000e+00> : vector<128xf32>
    %490 = vector.multi_reduction <add>, %485, %cst_256 [0] : vector<8x128xf32> to vector<128xf32>
    %491 = vector.shape_cast %490 : vector<128xf32> to vector<1x128xf32>
    %492 = arith.addf %411, %491 : vector<1x128xf32>
    %cst_257 = arith.constant 0.000000e+00 : f32
    %493 = vector.broadcast %cst_257 : f32 to vector<8x128xf32>
    %c0_258 = arith.constant 0 : index
    %c6_259 = arith.constant 6 : index
    %c0_260 = arith.constant 0 : index
    %c0_261 = arith.constant 0 : index
    %494 = vector.load %arg2[%c0_258, %c6_259, %c0_260, %c0_261] : memref<1x8x10x128xbf16, #tpu.memory_space<vmem>>, vector<1x1x8x128xbf16>
    %495 = vector.shape_cast %494 : vector<1x1x8x128xbf16> to vector<8x128xbf16>
    %496 = vector.extract_strided_slice %0 {offsets = [0, 0], sizes = [1, 128], strides = [1, 1]} : vector<9x128xf32> to vector<1x128xf32>
    %497 = arith.extf %495 : vector<8x128xbf16> to vector<8x128xf32>
    %498 = vector.broadcast %496 : vector<1x128xf32> to vector<8x128xf32>
    %499 = arith.mulf %497, %498 : vector<8x128xf32>
    %500 = arith.addf %493, %499 : vector<8x128xf32>
    %c0_262 = arith.constant 0 : index
    %c6_263 = arith.constant 6 : index
    %c1_264 = arith.constant 1 : index
    %c0_265 = arith.constant 0 : index
    %501 = vector.load %arg2[%c0_262, %c6_263, %c1_264, %c0_265] : memref<1x8x10x128xbf16, #tpu.memory_space<vmem>>, vector<1x1x8x128xbf16>
    %502 = vector.shape_cast %501 : vector<1x1x8x128xbf16> to vector<8x128xbf16>
    %503 = vector.extract_strided_slice %0 {offsets = [1, 0], sizes = [1, 128], strides = [1, 1]} : vector<9x128xf32> to vector<1x128xf32>
    %504 = arith.extf %502 : vector<8x128xbf16> to vector<8x128xf32>
    %505 = vector.broadcast %503 : vector<1x128xf32> to vector<8x128xf32>
    %506 = arith.mulf %504, %505 : vector<8x128xf32>
    %507 = arith.addf %500, %506 : vector<8x128xf32>
    %c0_266 = arith.constant 0 : index
    %c6_267 = arith.constant 6 : index
    %c2_268 = arith.constant 2 : index
    %c0_269 = arith.constant 0 : index
    %508 = vector.load %arg2[%c0_266, %c6_267, %c2_268, %c0_269] : memref<1x8x10x128xbf16, #tpu.memory_space<vmem>>, vector<1x1x8x128xbf16>
    %509 = vector.shape_cast %508 : vector<1x1x8x128xbf16> to vector<8x128xbf16>
    %510 = vector.extract_strided_slice %0 {offsets = [2, 0], sizes = [1, 128], strides = [1, 1]} : vector<9x128xf32> to vector<1x128xf32>
    %511 = arith.extf %509 : vector<8x128xbf16> to vector<8x128xf32>
    %512 = vector.broadcast %510 : vector<1x128xf32> to vector<8x128xf32>
    %513 = arith.mulf %511, %512 : vector<8x128xf32>
    %514 = arith.addf %507, %513 : vector<8x128xf32>
    %c0_270 = arith.constant 0 : index
    %c7_271 = arith.constant 7 : index
    %c0_272 = arith.constant 0 : index
    %c0_273 = arith.constant 0 : index
    %515 = vector.load %arg2[%c0_270, %c7_271, %c0_272, %c0_273] : memref<1x8x10x128xbf16, #tpu.memory_space<vmem>>, vector<1x1x8x128xbf16>
    %516 = vector.shape_cast %515 : vector<1x1x8x128xbf16> to vector<8x128xbf16>
    %517 = vector.extract_strided_slice %0 {offsets = [3, 0], sizes = [1, 128], strides = [1, 1]} : vector<9x128xf32> to vector<1x128xf32>
    %518 = arith.extf %516 : vector<8x128xbf16> to vector<8x128xf32>
    %519 = vector.broadcast %517 : vector<1x128xf32> to vector<8x128xf32>
    %520 = arith.mulf %518, %519 : vector<8x128xf32>
    %521 = arith.addf %514, %520 : vector<8x128xf32>
    %c0_274 = arith.constant 0 : index
    %c7_275 = arith.constant 7 : index
    %c1_276 = arith.constant 1 : index
    %c0_277 = arith.constant 0 : index
    %522 = vector.load %arg2[%c0_274, %c7_275, %c1_276, %c0_277] : memref<1x8x10x128xbf16, #tpu.memory_space<vmem>>, vector<1x1x8x128xbf16>
    %523 = vector.shape_cast %522 : vector<1x1x8x128xbf16> to vector<8x128xbf16>
    %524 = vector.extract_strided_slice %0 {offsets = [4, 0], sizes = [1, 128], strides = [1, 1]} : vector<9x128xf32> to vector<1x128xf32>
    %525 = arith.extf %523 : vector<8x128xbf16> to vector<8x128xf32>
    %526 = vector.broadcast %524 : vector<1x128xf32> to vector<8x128xf32>
    %527 = arith.mulf %525, %526 : vector<8x128xf32>
    %528 = arith.addf %521, %527 : vector<8x128xf32>
    %c0_278 = arith.constant 0 : index
    %c7_279 = arith.constant 7 : index
    %c2_280 = arith.constant 2 : index
    %c0_281 = arith.constant 0 : index
    %529 = vector.load %arg2[%c0_278, %c7_279, %c2_280, %c0_281] : memref<1x8x10x128xbf16, #tpu.memory_space<vmem>>, vector<1x1x8x128xbf16>
    %530 = vector.shape_cast %529 : vector<1x1x8x128xbf16> to vector<8x128xbf16>
    %531 = vector.extract_strided_slice %0 {offsets = [5, 0], sizes = [1, 128], strides = [1, 1]} : vector<9x128xf32> to vector<1x128xf32>
    %532 = arith.extf %530 : vector<8x128xbf16> to vector<8x128xf32>
    %533 = vector.broadcast %531 : vector<1x128xf32> to vector<8x128xf32>
    %534 = arith.mulf %532, %533 : vector<8x128xf32>
    %535 = arith.addf %528, %534 : vector<8x128xf32>
    %c0_282 = arith.constant 0 : index
    %c0_283 = arith.constant 0 : index
    %c0_284 = arith.constant 0 : index
    %c0_285 = arith.constant 0 : index
    %536 = vector.load %arg3[%c0_282, %c0_283, %c0_284, %c0_285] : memref<1x1x10x128xbf16, #tpu.memory_space<vmem>>, vector<1x1x8x128xbf16>
    %537 = vector.shape_cast %536 : vector<1x1x8x128xbf16> to vector<8x128xbf16>
    %538 = vector.extract_strided_slice %0 {offsets = [6, 0], sizes = [1, 128], strides = [1, 1]} : vector<9x128xf32> to vector<1x128xf32>
    %539 = arith.extf %537 : vector<8x128xbf16> to vector<8x128xf32>
    %540 = vector.broadcast %538 : vector<1x128xf32> to vector<8x128xf32>
    %541 = arith.mulf %539, %540 : vector<8x128xf32>
    %542 = arith.addf %535, %541 : vector<8x128xf32>
    %c0_286 = arith.constant 0 : index
    %c0_287 = arith.constant 0 : index
    %c1_288 = arith.constant 1 : index
    %c0_289 = arith.constant 0 : index
    %543 = vector.load %arg3[%c0_286, %c0_287, %c1_288, %c0_289] : memref<1x1x10x128xbf16, #tpu.memory_space<vmem>>, vector<1x1x8x128xbf16>
    %544 = vector.shape_cast %543 : vector<1x1x8x128xbf16> to vector<8x128xbf16>
    %545 = vector.extract_strided_slice %0 {offsets = [7, 0], sizes = [1, 128], strides = [1, 1]} : vector<9x128xf32> to vector<1x128xf32>
    %546 = arith.extf %544 : vector<8x128xbf16> to vector<8x128xf32>
    %547 = vector.broadcast %545 : vector<1x128xf32> to vector<8x128xf32>
    %548 = arith.mulf %546, %547 : vector<8x128xf32>
    %549 = arith.addf %542, %548 : vector<8x128xf32>
    %c0_290 = arith.constant 0 : index
    %c0_291 = arith.constant 0 : index
    %c2_292 = arith.constant 2 : index
    %c0_293 = arith.constant 0 : index
    %550 = vector.load %arg3[%c0_290, %c0_291, %c2_292, %c0_293] : memref<1x1x10x128xbf16, #tpu.memory_space<vmem>>, vector<1x1x8x128xbf16>
    %551 = vector.shape_cast %550 : vector<1x1x8x128xbf16> to vector<8x128xbf16>
    %552 = vector.extract_strided_slice %0 {offsets = [8, 0], sizes = [1, 128], strides = [1, 1]} : vector<9x128xf32> to vector<1x128xf32>
    %553 = arith.extf %551 : vector<8x128xbf16> to vector<8x128xf32>
    %554 = vector.broadcast %552 : vector<1x128xf32> to vector<8x128xf32>
    %555 = arith.mulf %553, %554 : vector<8x128xf32>
    %556 = arith.addf %549, %555 : vector<8x128xf32>
    %557 = vector.broadcast %1 : vector<1x128xf32> to vector<8x128xf32>
    %558 = arith.mulf %556, %557 : vector<8x128xf32>
    %559 = vector.broadcast %2 : vector<1x128xf32> to vector<8x128xf32>
    %560 = arith.addf %558, %559 : vector<8x128xf32>
    %561 = arith.negf %560 : vector<8x128xf32>
    %562 = math.exp %561 : vector<8x128xf32>
    %cst_294 = arith.constant 1.000000e+00 : f32
    %563 = vector.broadcast %cst_294 : f32 to vector<8x128xf32>
    %564 = arith.addf %563, %562 : vector<8x128xf32>
    %565 = arith.divf %563, %564 : vector<8x128xf32>
    %566 = arith.mulf %560, %565 : vector<8x128xf32>
    %567 = arith.truncf %566 : vector<8x128xf32> to vector<8x128xbf16>
    %c0_295 = arith.constant 0 : index
    %c6_296 = arith.constant 6 : index
    %c0_297 = arith.constant 0 : index
    %c0_298 = arith.constant 0 : index
    %568 = vector.load %arg10[%c0_295, %c6_296, %c0_297, %c0_298] : memref<1x8x8x128xbf16, #tpu.memory_space<vmem>>, vector<1x1x8x128xbf16>
    %569 = vector.shape_cast %568 : vector<1x1x8x128xbf16> to vector<8x128xbf16>
    %570 = vector.shape_cast %567 : vector<8x128xbf16> to vector<1x1x8x128xbf16>
    tpu.vector_store %arg10[%c0_295, %c6_296, %c0_297, %c0_298], %570 {strides = array<i32>} : memref<1x8x8x128xbf16, #tpu.memory_space<vmem>>, vector<1x1x8x128xbf16>,
    %cst_299 = arith.constant dense<0.000000e+00> : vector<128xf32>
    %571 = vector.multi_reduction <add>, %566, %cst_299 [0] : vector<8x128xf32> to vector<128xf32>
    %572 = vector.shape_cast %571 : vector<128xf32> to vector<1x128xf32>
    %573 = arith.addf %492, %572 : vector<1x128xf32>
    %cst_300 = arith.constant 0.000000e+00 : f32
    %574 = vector.broadcast %cst_300 : f32 to vector<8x128xf32>
    %c0_301 = arith.constant 0 : index
    %c7_302 = arith.constant 7 : index
    %c0_303 = arith.constant 0 : index
    %c0_304 = arith.constant 0 : index
    %575 = vector.load %arg2[%c0_301, %c7_302, %c0_303, %c0_304] : memref<1x8x10x128xbf16, #tpu.memory_space<vmem>>, vector<1x1x8x128xbf16>
    %576 = vector.shape_cast %575 : vector<1x1x8x128xbf16> to vector<8x128xbf16>
    %577 = vector.extract_strided_slice %0 {offsets = [0, 0], sizes = [1, 128], strides = [1, 1]} : vector<9x128xf32> to vector<1x128xf32>
    %578 = arith.extf %576 : vector<8x128xbf16> to vector<8x128xf32>
    %579 = vector.broadcast %577 : vector<1x128xf32> to vector<8x128xf32>
    %580 = arith.mulf %578, %579 : vector<8x128xf32>
    %581 = arith.addf %574, %580 : vector<8x128xf32>
    %c0_305 = arith.constant 0 : index
    %c7_306 = arith.constant 7 : index
    %c1_307 = arith.constant 1 : index
    %c0_308 = arith.constant 0 : index
    %582 = vector.load %arg2[%c0_305, %c7_306, %c1_307, %c0_308] : memref<1x8x10x128xbf16, #tpu.memory_space<vmem>>, vector<1x1x8x128xbf16>
    %583 = vector.shape_cast %582 : vector<1x1x8x128xbf16> to vector<8x128xbf16>
    %584 = vector.extract_strided_slice %0 {offsets = [1, 0], sizes = [1, 128], strides = [1, 1]} : vector<9x128xf32> to vector<1x128xf32>
    %585 = arith.extf %583 : vector<8x128xbf16> to vector<8x128xf32>
    %586 = vector.broadcast %584 : vector<1x128xf32> to vector<8x128xf32>
    %587 = arith.mulf %585, %586 : vector<8x128xf32>
    %588 = arith.addf %581, %587 : vector<8x128xf32>
    %c0_309 = arith.constant 0 : index
    %c7_310 = arith.constant 7 : index
    %c2_311 = arith.constant 2 : index
    %c0_312 = arith.constant 0 : index
    %589 = vector.load %arg2[%c0_309, %c7_310, %c2_311, %c0_312] : memref<1x8x10x128xbf16, #tpu.memory_space<vmem>>, vector<1x1x8x128xbf16>
    %590 = vector.shape_cast %589 : vector<1x1x8x128xbf16> to vector<8x128xbf16>
    %591 = vector.extract_strided_slice %0 {offsets = [2, 0], sizes = [1, 128], strides = [1, 1]} : vector<9x128xf32> to vector<1x128xf32>
    %592 = arith.extf %590 : vector<8x128xbf16> to vector<8x128xf32>
    %593 = vector.broadcast %591 : vector<1x128xf32> to vector<8x128xf32>
    %594 = arith.mulf %592, %593 : vector<8x128xf32>
    %595 = arith.addf %588, %594 : vector<8x128xf32>
    %c0_313 = arith.constant 0 : index
    %c0_314 = arith.constant 0 : index
    %c0_315 = arith.constant 0 : index
    %c0_316 = arith.constant 0 : index
    %596 = vector.load %arg3[%c0_313, %c0_314, %c0_315, %c0_316] : memref<1x1x10x128xbf16, #tpu.memory_space<vmem>>, vector<1x1x8x128xbf16>
    %597 = vector.shape_cast %596 : vector<1x1x8x128xbf16> to vector<8x128xbf16>
    %598 = vector.extract_strided_slice %0 {offsets = [3, 0], sizes = [1, 128], strides = [1, 1]} : vector<9x128xf32> to vector<1x128xf32>
    %599 = arith.extf %597 : vector<8x128xbf16> to vector<8x128xf32>
    %600 = vector.broadcast %598 : vector<1x128xf32> to vector<8x128xf32>
    %601 = arith.mulf %599, %600 : vector<8x128xf32>
    %602 = arith.addf %595, %601 : vector<8x128xf32>
    %c0_317 = arith.constant 0 : index
    %c0_318 = arith.constant 0 : index
    %c1_319 = arith.constant 1 : index
    %c0_320 = arith.constant 0 : index
    %603 = vector.load %arg3[%c0_317, %c0_318, %c1_319, %c0_320] : memref<1x1x10x128xbf16, #tpu.memory_space<vmem>>, vector<1x1x8x128xbf16>
    %604 = vector.shape_cast %603 : vector<1x1x8x128xbf16> to vector<8x128xbf16>
    %605 = vector.extract_strided_slice %0 {offsets = [4, 0], sizes = [1, 128], strides = [1, 1]} : vector<9x128xf32> to vector<1x128xf32>
    %606 = arith.extf %604 : vector<8x128xbf16> to vector<8x128xf32>
    %607 = vector.broadcast %605 : vector<1x128xf32> to vector<8x128xf32>
    %608 = arith.mulf %606, %607 : vector<8x128xf32>
    %609 = arith.addf %602, %608 : vector<8x128xf32>
    %c0_321 = arith.constant 0 : index
    %c0_322 = arith.constant 0 : index
    %c2_323 = arith.constant 2 : index
    %c0_324 = arith.constant 0 : index
    %610 = vector.load %arg3[%c0_321, %c0_322, %c2_323, %c0_324] : memref<1x1x10x128xbf16, #tpu.memory_space<vmem>>, vector<1x1x8x128xbf16>
    %611 = vector.shape_cast %610 : vector<1x1x8x128xbf16> to vector<8x128xbf16>
    %612 = vector.extract_strided_slice %0 {offsets = [5, 0], sizes = [1, 128], strides = [1, 1]} : vector<9x128xf32> to vector<1x128xf32>
    %613 = arith.extf %611 : vector<8x128xbf16> to vector<8x128xf32>
    %614 = vector.broadcast %612 : vector<1x128xf32> to vector<8x128xf32>
    %615 = arith.mulf %613, %614 : vector<8x128xf32>
    %616 = arith.addf %609, %615 : vector<8x128xf32>
    %c0_325 = arith.constant 0 : index
    %c0_326 = arith.constant 0 : index
    %c0_327 = arith.constant 0 : index
    %c0_328 = arith.constant 0 : index
    %617 = vector.load %arg4[%c0_325, %c0_326, %c0_327, %c0_328] : memref<1x1x10x128xbf16, #tpu.memory_space<vmem>>, vector<1x1x8x128xbf16>
    %618 = vector.shape_cast %617 : vector<1x1x8x128xbf16> to vector<8x128xbf16>
    %619 = vector.extract_strided_slice %0 {offsets = [6, 0], sizes = [1, 128], strides = [1, 1]} : vector<9x128xf32> to vector<1x128xf32>
    %620 = arith.extf %618 : vector<8x128xbf16> to vector<8x128xf32>
    %621 = vector.broadcast %619 : vector<1x128xf32> to vector<8x128xf32>
    %622 = arith.mulf %620, %621 : vector<8x128xf32>
    %623 = arith.addf %616, %622 : vector<8x128xf32>
    %c0_329 = arith.constant 0 : index
    %c0_330 = arith.constant 0 : index
    %c1_331 = arith.constant 1 : index
    %c0_332 = arith.constant 0 : index
    %624 = vector.load %arg4[%c0_329, %c0_330, %c1_331, %c0_332] : memref<1x1x10x128xbf16, #tpu.memory_space<vmem>>, vector<1x1x8x128xbf16>
    %625 = vector.shape_cast %624 : vector<1x1x8x128xbf16> to vector<8x128xbf16>
    %626 = vector.extract_strided_slice %0 {offsets = [7, 0], sizes = [1, 128], strides = [1, 1]} : vector<9x128xf32> to vector<1x128xf32>
    %627 = arith.extf %625 : vector<8x128xbf16> to vector<8x128xf32>
    %628 = vector.broadcast %626 : vector<1x128xf32> to vector<8x128xf32>
    %629 = arith.mulf %627, %628 : vector<8x128xf32>
    %630 = arith.addf %623, %629 : vector<8x128xf32>
    %c0_333 = arith.constant 0 : index
    %c0_334 = arith.constant 0 : index
    %c2_335 = arith.constant 2 : index
    %c0_336 = arith.constant 0 : index
    %631 = vector.load %arg4[%c0_333, %c0_334, %c2_335, %c0_336] : memref<1x1x10x128xbf16, #tpu.memory_space<vmem>>, vector<1x1x8x128xbf16>
    %632 = vector.shape_cast %631 : vector<1x1x8x128xbf16> to vector<8x128xbf16>
    %633 = vector.extract_strided_slice %0 {offsets = [8, 0], sizes = [1, 128], strides = [1, 1]} : vector<9x128xf32> to vector<1x128xf32>
    %634 = arith.extf %632 : vector<8x128xbf16> to vector<8x128xf32>
    %635 = vector.broadcast %633 : vector<1x128xf32> to vector<8x128xf32>
    %636 = arith.mulf %634, %635 : vector<8x128xf32>
    %637 = arith.addf %630, %636 : vector<8x128xf32>
    %638 = vector.broadcast %1 : vector<1x128xf32> to vector<8x128xf32>
    %639 = arith.mulf %637, %638 : vector<8x128xf32>
    %640 = vector.broadcast %2 : vector<1x128xf32> to vector<8x128xf32>
    %641 = arith.addf %639, %640 : vector<8x128xf32>
    %642 = arith.negf %641 : vector<8x128xf32>
    %643 = math.exp %642 : vector<8x128xf32>
    %cst_337 = arith.constant 1.000000e+00 : f32
    %644 = vector.broadcast %cst_337 : f32 to vector<8x128xf32>
    %645 = arith.addf %644, %643 : vector<8x128xf32>
    %646 = arith.divf %644, %645 : vector<8x128xf32>
    %647 = arith.mulf %641, %646 : vector<8x128xf32>
    %648 = arith.truncf %647 : vector<8x128xf32> to vector<8x128xbf16>
    %c0_338 = arith.constant 0 : index
    %c7_339 = arith.constant 7 : index
    %c0_340 = arith.constant 0 : index
    %c0_341 = arith.constant 0 : index
    %649 = vector.load %arg10[%c0_338, %c7_339, %c0_340, %c0_341] : memref<1x8x8x128xbf16, #tpu.memory_space<vmem>>, vector<1x1x8x128xbf16>
    %650 = vector.shape_cast %649 : vector<1x1x8x128xbf16> to vector<8x128xbf16>
    %651 = vector.shape_cast %648 : vector<8x128xbf16> to vector<1x1x8x128xbf16>
    tpu.vector_store %arg10[%c0_338, %c7_339, %c0_340, %c0_341], %651 {strides = array<i32>} : memref<1x8x8x128xbf16, #tpu.memory_space<vmem>>, vector<1x1x8x128xbf16>,
    %cst_342 = arith.constant dense<0.000000e+00> : vector<128xf32>
    %652 = vector.multi_reduction <add>, %647, %cst_342 [0] : vector<8x128xf32> to vector<128xf32>
    %653 = vector.shape_cast %652 : vector<128xf32> to vector<1x128xf32>
    %654 = arith.addf %573, %653 : vector<1x128xf32>
    %c0_343 = arith.constant 0 : index
    %c0_344 = arith.constant 0 : index
    %655 = vector.load %arg12[%c0_343, %c0_344] : memref<1x128xf32, #tpu.memory_space<vmem>>, vector<1x128xf32>
    %656 = arith.addf %655, %654 : vector<1x128xf32>
    %c0_345 = arith.constant 0 : index
    %c0_346 = arith.constant 0 : index
    %657 = vector.load %arg12[%c0_345, %c0_346] : memref<1x128xf32, #tpu.memory_space<vmem>>, vector<1x128xf32>
    tpu.vector_store %arg12[%c0_345, %c0_346], %656 {strides = array<i32>} : memref<1x128xf32, #tpu.memory_space<vmem>>, vector<1x128xf32>,
    %c0_i32_347 = arith.constant 0 : i32
    %658 = arith.cmpi eq, %arg1, %c0_i32_347 : i32
    %659 = arith.extui %658 : i1 to i32
    %c0_i32_348 = arith.constant 0 : i32
    %660 = arith.cmpi ne, %659, %c0_i32_348 : i32
    scf.if %660 {
      %c0_349 = arith.constant 0 : index
      %c0_350 = arith.constant 0 : index
      %661 = vector.load %arg12[%c0_349, %c0_350] : memref<1x128xf32, #tpu.memory_space<vmem>>, vector<1x128xf32>
      %cst_351 = arith.constant 1.562500e-02 : f32
      %662 = vector.broadcast %cst_351 : f32 to vector<1x128xf32>
      %663 = arith.mulf %661, %662 : vector<1x128xf32>
      %c0_352 = arith.constant 0 : index
      %c0_353 = arith.constant 0 : index
      %664 = vector.load %arg8[%c0_352, %c0_353] : memref<8x128xf32, #tpu.memory_space<vmem>>, vector<8x128xf32>
      %665 = vector.broadcast %663 : vector<1x128xf32> to vector<8x128xf32>
      %666 = arith.mulf %665, %664 : vector<8x128xf32>
      %cst_354 = arith.constant dense<0.000000e+00> : vector<8xf32>
      %667 = vector.multi_reduction <add>, %666, %cst_354 [1] : vector<8x128xf32> to vector<8xf32>
      %668 = vector.shape_cast %667 : vector<8xf32> to vector<8x1xf32>
      %669 = arith.negf %668 : vector<8x1xf32>
      %670 = math.exp %669 : vector<8x1xf32>
      %cst_355 = arith.constant 1.000000e+00 : f32
      %671 = vector.broadcast %cst_355 : f32 to vector<8x1xf32>
      %672 = arith.addf %671, %670 : vector<8x1xf32>
      %673 = arith.divf %671, %672 : vector<8x1xf32>
      %674 = arith.mulf %668, %673 : vector<8x1xf32>
      %c0_356 = arith.constant 0 : index
      %c0_357 = arith.constant 0 : index
      %675 = vector.load %arg9[%c0_356, %c0_357] : memref<8x128xf32, #tpu.memory_space<vmem>>, vector<8x128xf32>
      %676 = vector.broadcast %674 : vector<8x1xf32> to vector<8x128xf32>
      %677 = arith.mulf %676, %675 : vector<8x128xf32>
      %cst_358 = arith.constant dense<0.000000e+00> : vector<128xf32>
      %678 = vector.multi_reduction <add>, %677, %cst_358 [0] : vector<8x128xf32> to vector<128xf32>
      %679 = vector.shape_cast %678 : vector<128xf32> to vector<1x128xf32>
      %680 = arith.negf %679 : vector<1x128xf32>
      %681 = math.exp %680 : vector<1x128xf32>
      %cst_359 = arith.constant 1.000000e+00 : f32
      %682 = vector.broadcast %cst_359 : f32 to vector<1x128xf32>
      %683 = arith.addf %682, %681 : vector<1x128xf32>
      %684 = arith.divf %682, %683 : vector<1x128xf32>
      %685 = vector.shape_cast %684 : vector<1x128xf32> to vector<1x1x128xf32>
      %c0_360 = arith.constant 0 : index
      %c0_361 = arith.constant 0 : index
      %c0_362 = arith.constant 0 : index
      %686 = vector.load %arg11[%c0_360, %c0_361, %c0_362] : memref<1x1x128xf32, #tpu.memory_space<vmem>>, vector<1x1x128xf32>
      tpu.vector_store %arg11[%c0_360, %c0_361, %c0_362], %685 {strides = array<i32>} : memref<1x1x128xf32, #tpu.memory_space<vmem>>, vector<1x1x128xf32>,
    } else {
    }
    return
  }
  func.func @transform_0(%arg0: i32, %arg1: i32) -> (i32, i32, i32, i32) {
    %c0_i32 = arith.constant 0 : i32
    %c0_i32_0 = arith.constant 0 : i32
    %c0_i32_1 = arith.constant 0 : i32
    return %arg0, %arg1, %c0_i32, %c0_i32_0 : i32, i32, i32, i32
  }
  func.func @transform_1(%arg0: i32, %arg1: i32) -> (i32, i32, i32, i32) {
    %c1_i32 = arith.constant 1 : i32
    %0 = arith.addi %arg1, %c1_i32 : i32
    %c8_i32 = arith.constant 8 : i32
    %1 = arith.muli %0, %c8_i32 : i32
    %c0_i32 = arith.constant 0 : i32
    %2 = arith.addi %1, %c0_i32 : i32
    %c0_i32_0 = arith.constant 0 : i32
    %c0_i32_1 = arith.constant 0 : i32
    %c0_i32_2 = arith.constant 0 : i32
    return %arg0, %2, %c0_i32_0, %c0_i32_1 : i32, i32, i32, i32
  }
  func.func @transform_2(%arg0: i32, %arg1: i32) -> (i32, i32, i32, i32) {
    %c1_i32 = arith.constant 1 : i32
    %0 = arith.addi %arg1, %c1_i32 : i32
    %c8_i32 = arith.constant 8 : i32
    %1 = arith.muli %0, %c8_i32 : i32
    %c1_i32_0 = arith.constant 1 : i32
    %2 = arith.addi %1, %c1_i32_0 : i32
    %c0_i32 = arith.constant 0 : i32
    %c0_i32_1 = arith.constant 0 : i32
    %c0_i32_2 = arith.constant 0 : i32
    return %arg0, %2, %c0_i32, %c0_i32_1 : i32, i32, i32, i32
  }
  func.func @transform_3(%arg0: i32, %arg1: i32) -> (i32, i32) {
    %c0_i32 = arith.constant 0 : i32
    %c0_i32_0 = arith.constant 0 : i32
    %c0_i32_1 = arith.constant 0 : i32
    return %c0_i32, %c0_i32_0 : i32, i32
  }
  func.func @transform_4(%arg0: i32, %arg1: i32) -> (i32, i32) {
    %c0_i32 = arith.constant 0 : i32
    %c0_i32_0 = arith.constant 0 : i32
    %c0_i32_1 = arith.constant 0 : i32
    return %c0_i32, %c0_i32_0 : i32, i32
  }
  func.func @transform_5(%arg0: i32, %arg1: i32) -> (i32, i32) {
    %c0_i32 = arith.constant 0 : i32
    %c0_i32_0 = arith.constant 0 : i32
    %c0_i32_1 = arith.constant 0 : i32
    return %c0_i32, %c0_i32_0 : i32, i32
  }
  func.func @transform_6(%arg0: i32, %arg1: i32) -> (i32, i32) {
    %c0_i32 = arith.constant 0 : i32
    %c0_i32_0 = arith.constant 0 : i32
    %c0_i32_1 = arith.constant 0 : i32
    return %c0_i32, %c0_i32_0 : i32, i32
  }
  func.func @transform_7(%arg0: i32, %arg1: i32) -> (i32, i32) {
    %c0_i32 = arith.constant 0 : i32
    %c0_i32_0 = arith.constant 0 : i32
    %c0_i32_1 = arith.constant 0 : i32
    return %c0_i32, %c0_i32_0 : i32, i32
  }
  func.func @transform_8(%arg0: i32, %arg1: i32) -> (i32, i32, i32, i32) {
    %c0_i32 = arith.constant 0 : i32
    %c0_i32_0 = arith.constant 0 : i32
    %c0_i32_1 = arith.constant 0 : i32
    return %arg0, %arg1, %c0_i32, %c0_i32_0 : i32, i32, i32, i32
  }
  func.func @transform_9(%arg0: i32, %arg1: i32) -> (i32, i32, i32) {
    %c0_i32 = arith.constant 0 : i32
    %c0_i32_0 = arith.constant 0 : i32
    %c0_i32_1 = arith.constant 0 : i32
    return %arg0, %c0_i32, %c0_i32_0 : i32, i32, i32
  }
}

module attributes {stable_mosaic.version = 11 : i64} {
  func.func @_dw_bn_silu_se_kernel(%arg0: i32, %arg1: i32, %arg2: memref<4x4x5x128xbf16, #tpu.memory_space<vmem>>, %arg3: memref<4x1x5x128xbf16, #tpu.memory_space<vmem>>, %arg4: memref<9x128xf32, #tpu.memory_space<vmem>>, %arg5: memref<1x128xf32, #tpu.memory_space<vmem>>, %arg6: memref<1x128xf32, #tpu.memory_space<vmem>>, %arg7: memref<8x128xf32, #tpu.memory_space<vmem>>, %arg8: memref<8x128xf32, #tpu.memory_space<vmem>>, %arg9: memref<1x4x4x128xbf16, #tpu.memory_space<vmem>>, %arg10: memref<1x1x128xf32, #tpu.memory_space<vmem>>, %arg11: memref<1x128xf32, #tpu.memory_space<vmem>>) attributes {dimension_semantics = [#tpu.dimension_semantics<parallel>, #tpu.dimension_semantics<arbitrary>], iteration_bounds = array<i64: 2, 1>, scalar_prefetch = 0 : i64, scratch_operands = 1 : i64, tpu.core_type = #tpu.core_type<tc>, window_params = [{transform_indices = @transform_0, window_bounds = array<i64: 4, 4, 5, 128>}, {transform_indices = @transform_1, window_bounds = array<i64: 4, 1, 5, 128>}, {pipeline_mode = #tpu.pipeline_mode<synchronous>, transform_indices = @transform_2, window_bounds = array<i64: 9, 128>}, {pipeline_mode = #tpu.pipeline_mode<synchronous>, transform_indices = @transform_3, window_bounds = array<i64: 1, 128>}, {pipeline_mode = #tpu.pipeline_mode<synchronous>, transform_indices = @transform_4, window_bounds = array<i64: 1, 128>}, {pipeline_mode = #tpu.pipeline_mode<synchronous>, transform_indices = @transform_5, window_bounds = array<i64: 8, 128>}, {pipeline_mode = #tpu.pipeline_mode<synchronous>, transform_indices = @transform_6, window_bounds = array<i64: 8, 128>}, {transform_indices = @transform_7, window_bounds = array<i64: 1, 4, 4, 128>}, {transform_indices = @transform_8, window_bounds = array<i64: 1, 1, 128>}]} {
    %c0 = arith.constant 0 : index
    %c0_0 = arith.constant 0 : index
    %0 = vector.load %arg4[%c0, %c0_0] : memref<9x128xf32, #tpu.memory_space<vmem>>, vector<9x128xf32>
    %c0_1 = arith.constant 0 : index
    %c0_2 = arith.constant 0 : index
    %1 = vector.load %arg5[%c0_1, %c0_2] : memref<1x128xf32, #tpu.memory_space<vmem>>, vector<1x128xf32>
    %c0_3 = arith.constant 0 : index
    %c0_4 = arith.constant 0 : index
    %2 = vector.load %arg6[%c0_3, %c0_4] : memref<1x128xf32, #tpu.memory_space<vmem>>, vector<1x128xf32>
    %c0_i32 = arith.constant 0 : i32
    %3 = arith.cmpi eq, %arg1, %c0_i32 : i32
    %4 = arith.extui %3 : i1 to i32
    %c0_i32_5 = arith.constant 0 : i32
    %5 = arith.cmpi ne, %4, %c0_i32_5 : i32
    scf.if %5 {
      %cst_181 = arith.constant 0.000000e+00 : f32
      %337 = vector.broadcast %cst_181 : f32 to vector<1x128xf32>
      %c0_182 = arith.constant 0 : index
      %c0_183 = arith.constant 0 : index
      %338 = vector.load %arg11[%c0_182, %c0_183] : memref<1x128xf32, #tpu.memory_space<vmem>>, vector<1x128xf32>
      tpu.vector_store %arg11[%c0_182, %c0_183], %337 {strides = array<i32>} : memref<1x128xf32, #tpu.memory_space<vmem>>, vector<1x128xf32>,
    } else {
    }
    %cst = arith.constant 0.000000e+00 : f32
    %6 = vector.broadcast %cst : f32 to vector<1x128xf32>
    %cst_6 = arith.constant 0.000000e+00 : f32
    %7 = vector.broadcast %cst_6 : f32 to vector<4x128xf32>
    %c0_7 = arith.constant 0 : index
    %c0_8 = arith.constant 0 : index
    %c0_9 = arith.constant 0 : index
    %c0_10 = arith.constant 0 : index
    %8 = vector.load %arg2[%c0_7, %c0_8, %c0_9, %c0_10] : memref<4x4x5x128xbf16, #tpu.memory_space<vmem>>, vector<1x1x4x128xbf16>
    %9 = vector.shape_cast %8 : vector<1x1x4x128xbf16> to vector<4x128xbf16>
    %10 = vector.extract_strided_slice %0 {offsets = [0, 0], sizes = [1, 128], strides = [1, 1]} : vector<9x128xf32> to vector<1x128xf32>
    %11 = arith.extf %9 : vector<4x128xbf16> to vector<4x128xf32>
    %12 = vector.broadcast %10 : vector<1x128xf32> to vector<4x128xf32>
    %13 = arith.mulf %11, %12 : vector<4x128xf32>
    %14 = arith.addf %7, %13 : vector<4x128xf32>
    %c1 = arith.constant 1 : index
    %c0_11 = arith.constant 0 : index
    %c0_12 = arith.constant 0 : index
    %c0_13 = arith.constant 0 : index
    %15 = vector.load %arg2[%c1, %c0_11, %c0_12, %c0_13] : memref<4x4x5x128xbf16, #tpu.memory_space<vmem>>, vector<1x1x4x128xbf16>
    %16 = vector.shape_cast %15 : vector<1x1x4x128xbf16> to vector<4x128xbf16>
    %17 = vector.extract_strided_slice %0 {offsets = [1, 0], sizes = [1, 128], strides = [1, 1]} : vector<9x128xf32> to vector<1x128xf32>
    %18 = arith.extf %16 : vector<4x128xbf16> to vector<4x128xf32>
    %19 = vector.broadcast %17 : vector<1x128xf32> to vector<4x128xf32>
    %20 = arith.mulf %18, %19 : vector<4x128xf32>
    %21 = arith.addf %14, %20 : vector<4x128xf32>
    %c0_14 = arith.constant 0 : index
    %c0_15 = arith.constant 0 : index
    %c1_16 = arith.constant 1 : index
    %c0_17 = arith.constant 0 : index
    %22 = vector.load %arg2[%c0_14, %c0_15, %c1_16, %c0_17] : memref<4x4x5x128xbf16, #tpu.memory_space<vmem>>, vector<1x1x4x128xbf16>
    %23 = vector.shape_cast %22 : vector<1x1x4x128xbf16> to vector<4x128xbf16>
    %24 = vector.extract_strided_slice %0 {offsets = [2, 0], sizes = [1, 128], strides = [1, 1]} : vector<9x128xf32> to vector<1x128xf32>
    %25 = arith.extf %23 : vector<4x128xbf16> to vector<4x128xf32>
    %26 = vector.broadcast %24 : vector<1x128xf32> to vector<4x128xf32>
    %27 = arith.mulf %25, %26 : vector<4x128xf32>
    %28 = arith.addf %21, %27 : vector<4x128xf32>
    %c2 = arith.constant 2 : index
    %c0_18 = arith.constant 0 : index
    %c0_19 = arith.constant 0 : index
    %c0_20 = arith.constant 0 : index
    %29 = vector.load %arg2[%c2, %c0_18, %c0_19, %c0_20] : memref<4x4x5x128xbf16, #tpu.memory_space<vmem>>, vector<1x1x4x128xbf16>
    %30 = vector.shape_cast %29 : vector<1x1x4x128xbf16> to vector<4x128xbf16>
    %31 = vector.extract_strided_slice %0 {offsets = [3, 0], sizes = [1, 128], strides = [1, 1]} : vector<9x128xf32> to vector<1x128xf32>
    %32 = arith.extf %30 : vector<4x128xbf16> to vector<4x128xf32>
    %33 = vector.broadcast %31 : vector<1x128xf32> to vector<4x128xf32>
    %34 = arith.mulf %32, %33 : vector<4x128xf32>
    %35 = arith.addf %28, %34 : vector<4x128xf32>
    %c3 = arith.constant 3 : index
    %c0_21 = arith.constant 0 : index
    %c0_22 = arith.constant 0 : index
    %c0_23 = arith.constant 0 : index
    %36 = vector.load %arg2[%c3, %c0_21, %c0_22, %c0_23] : memref<4x4x5x128xbf16, #tpu.memory_space<vmem>>, vector<1x1x4x128xbf16>
    %37 = vector.shape_cast %36 : vector<1x1x4x128xbf16> to vector<4x128xbf16>
    %38 = vector.extract_strided_slice %0 {offsets = [4, 0], sizes = [1, 128], strides = [1, 1]} : vector<9x128xf32> to vector<1x128xf32>
    %39 = arith.extf %37 : vector<4x128xbf16> to vector<4x128xf32>
    %40 = vector.broadcast %38 : vector<1x128xf32> to vector<4x128xf32>
    %41 = arith.mulf %39, %40 : vector<4x128xf32>
    %42 = arith.addf %35, %41 : vector<4x128xf32>
    %c2_24 = arith.constant 2 : index
    %c0_25 = arith.constant 0 : index
    %c1_26 = arith.constant 1 : index
    %c0_27 = arith.constant 0 : index
    %43 = vector.load %arg2[%c2_24, %c0_25, %c1_26, %c0_27] : memref<4x4x5x128xbf16, #tpu.memory_space<vmem>>, vector<1x1x4x128xbf16>
    %44 = vector.shape_cast %43 : vector<1x1x4x128xbf16> to vector<4x128xbf16>
    %45 = vector.extract_strided_slice %0 {offsets = [5, 0], sizes = [1, 128], strides = [1, 1]} : vector<9x128xf32> to vector<1x128xf32>
    %46 = arith.extf %44 : vector<4x128xbf16> to vector<4x128xf32>
    %47 = vector.broadcast %45 : vector<1x128xf32> to vector<4x128xf32>
    %48 = arith.mulf %46, %47 : vector<4x128xf32>
    %49 = arith.addf %42, %48 : vector<4x128xf32>
    %c0_28 = arith.constant 0 : index
    %c1_29 = arith.constant 1 : index
    %c0_30 = arith.constant 0 : index
    %c0_31 = arith.constant 0 : index
    %50 = vector.load %arg2[%c0_28, %c1_29, %c0_30, %c0_31] : memref<4x4x5x128xbf16, #tpu.memory_space<vmem>>, vector<1x1x4x128xbf16>
    %51 = vector.shape_cast %50 : vector<1x1x4x128xbf16> to vector<4x128xbf16>
    %52 = vector.extract_strided_slice %0 {offsets = [6, 0], sizes = [1, 128], strides = [1, 1]} : vector<9x128xf32> to vector<1x128xf32>
    %53 = arith.extf %51 : vector<4x128xbf16> to vector<4x128xf32>
    %54 = vector.broadcast %52 : vector<1x128xf32> to vector<4x128xf32>
    %55 = arith.mulf %53, %54 : vector<4x128xf32>
    %56 = arith.addf %49, %55 : vector<4x128xf32>
    %c1_32 = arith.constant 1 : index
    %c1_33 = arith.constant 1 : index
    %c0_34 = arith.constant 0 : index
    %c0_35 = arith.constant 0 : index
    %57 = vector.load %arg2[%c1_32, %c1_33, %c0_34, %c0_35] : memref<4x4x5x128xbf16, #tpu.memory_space<vmem>>, vector<1x1x4x128xbf16>
    %58 = vector.shape_cast %57 : vector<1x1x4x128xbf16> to vector<4x128xbf16>
    %59 = vector.extract_strided_slice %0 {offsets = [7, 0], sizes = [1, 128], strides = [1, 1]} : vector<9x128xf32> to vector<1x128xf32>
    %60 = arith.extf %58 : vector<4x128xbf16> to vector<4x128xf32>
    %61 = vector.broadcast %59 : vector<1x128xf32> to vector<4x128xf32>
    %62 = arith.mulf %60, %61 : vector<4x128xf32>
    %63 = arith.addf %56, %62 : vector<4x128xf32>
    %c0_36 = arith.constant 0 : index
    %c1_37 = arith.constant 1 : index
    %c1_38 = arith.constant 1 : index
    %c0_39 = arith.constant 0 : index
    %64 = vector.load %arg2[%c0_36, %c1_37, %c1_38, %c0_39] : memref<4x4x5x128xbf16, #tpu.memory_space<vmem>>, vector<1x1x4x128xbf16>
    %65 = vector.shape_cast %64 : vector<1x1x4x128xbf16> to vector<4x128xbf16>
    %66 = vector.extract_strided_slice %0 {offsets = [8, 0], sizes = [1, 128], strides = [1, 1]} : vector<9x128xf32> to vector<1x128xf32>
    %67 = arith.extf %65 : vector<4x128xbf16> to vector<4x128xf32>
    %68 = vector.broadcast %66 : vector<1x128xf32> to vector<4x128xf32>
    %69 = arith.mulf %67, %68 : vector<4x128xf32>
    %70 = arith.addf %63, %69 : vector<4x128xf32>
    %71 = vector.broadcast %1 : vector<1x128xf32> to vector<4x128xf32>
    %72 = arith.mulf %70, %71 : vector<4x128xf32>
    %73 = vector.broadcast %2 : vector<1x128xf32> to vector<4x128xf32>
    %74 = arith.addf %72, %73 : vector<4x128xf32>
    %75 = arith.negf %74 : vector<4x128xf32>
    %76 = math.exp %75 : vector<4x128xf32>
    %cst_40 = arith.constant 1.000000e+00 : f32
    %77 = vector.broadcast %cst_40 : f32 to vector<4x128xf32>
    %78 = arith.addf %77, %76 : vector<4x128xf32>
    %79 = arith.divf %77, %78 : vector<4x128xf32>
    %80 = arith.mulf %74, %79 : vector<4x128xf32>
    %81 = arith.truncf %80 : vector<4x128xf32> to vector<4x128xbf16>
    %c0_41 = arith.constant 0 : index
    %c0_42 = arith.constant 0 : index
    %c0_43 = arith.constant 0 : index
    %c0_44 = arith.constant 0 : index
    %82 = vector.load %arg9[%c0_41, %c0_42, %c0_43, %c0_44] : memref<1x4x4x128xbf16, #tpu.memory_space<vmem>>, vector<1x1x4x128xbf16>
    %83 = vector.shape_cast %82 : vector<1x1x4x128xbf16> to vector<4x128xbf16>
    %84 = vector.shape_cast %81 : vector<4x128xbf16> to vector<1x1x4x128xbf16>
    tpu.vector_store %arg9[%c0_41, %c0_42, %c0_43, %c0_44], %84 {strides = array<i32>} : memref<1x4x4x128xbf16, #tpu.memory_space<vmem>>, vector<1x1x4x128xbf16>,
    %cst_45 = arith.constant dense<0.000000e+00> : vector<128xf32>
    %85 = vector.multi_reduction <add>, %80, %cst_45 [0] : vector<4x128xf32> to vector<128xf32>
    %86 = vector.shape_cast %85 : vector<128xf32> to vector<1x128xf32>
    %87 = arith.addf %6, %86 : vector<1x128xf32>
    %cst_46 = arith.constant 0.000000e+00 : f32
    %88 = vector.broadcast %cst_46 : f32 to vector<4x128xf32>
    %c0_47 = arith.constant 0 : index
    %c1_48 = arith.constant 1 : index
    %c0_49 = arith.constant 0 : index
    %c0_50 = arith.constant 0 : index
    %89 = vector.load %arg2[%c0_47, %c1_48, %c0_49, %c0_50] : memref<4x4x5x128xbf16, #tpu.memory_space<vmem>>, vector<1x1x4x128xbf16>
    %90 = vector.shape_cast %89 : vector<1x1x4x128xbf16> to vector<4x128xbf16>
    %91 = vector.extract_strided_slice %0 {offsets = [0, 0], sizes = [1, 128], strides = [1, 1]} : vector<9x128xf32> to vector<1x128xf32>
    %92 = arith.extf %90 : vector<4x128xbf16> to vector<4x128xf32>
    %93 = vector.broadcast %91 : vector<1x128xf32> to vector<4x128xf32>
    %94 = arith.mulf %92, %93 : vector<4x128xf32>
    %95 = arith.addf %88, %94 : vector<4x128xf32>
    %c1_51 = arith.constant 1 : index
    %c1_52 = arith.constant 1 : index
    %c0_53 = arith.constant 0 : index
    %c0_54 = arith.constant 0 : index
    %96 = vector.load %arg2[%c1_51, %c1_52, %c0_53, %c0_54] : memref<4x4x5x128xbf16, #tpu.memory_space<vmem>>, vector<1x1x4x128xbf16>
    %97 = vector.shape_cast %96 : vector<1x1x4x128xbf16> to vector<4x128xbf16>
    %98 = vector.extract_strided_slice %0 {offsets = [1, 0], sizes = [1, 128], strides = [1, 1]} : vector<9x128xf32> to vector<1x128xf32>
    %99 = arith.extf %97 : vector<4x128xbf16> to vector<4x128xf32>
    %100 = vector.broadcast %98 : vector<1x128xf32> to vector<4x128xf32>
    %101 = arith.mulf %99, %100 : vector<4x128xf32>
    %102 = arith.addf %95, %101 : vector<4x128xf32>
    %c0_55 = arith.constant 0 : index
    %c1_56 = arith.constant 1 : index
    %c1_57 = arith.constant 1 : index
    %c0_58 = arith.constant 0 : index
    %103 = vector.load %arg2[%c0_55, %c1_56, %c1_57, %c0_58] : memref<4x4x5x128xbf16, #tpu.memory_space<vmem>>, vector<1x1x4x128xbf16>
    %104 = vector.shape_cast %103 : vector<1x1x4x128xbf16> to vector<4x128xbf16>
    %105 = vector.extract_strided_slice %0 {offsets = [2, 0], sizes = [1, 128], strides = [1, 1]} : vector<9x128xf32> to vector<1x128xf32>
    %106 = arith.extf %104 : vector<4x128xbf16> to vector<4x128xf32>
    %107 = vector.broadcast %105 : vector<1x128xf32> to vector<4x128xf32>
    %108 = arith.mulf %106, %107 : vector<4x128xf32>
    %109 = arith.addf %102, %108 : vector<4x128xf32>
    %c2_59 = arith.constant 2 : index
    %c1_60 = arith.constant 1 : index
    %c0_61 = arith.constant 0 : index
    %c0_62 = arith.constant 0 : index
    %110 = vector.load %arg2[%c2_59, %c1_60, %c0_61, %c0_62] : memref<4x4x5x128xbf16, #tpu.memory_space<vmem>>, vector<1x1x4x128xbf16>
    %111 = vector.shape_cast %110 : vector<1x1x4x128xbf16> to vector<4x128xbf16>
    %112 = vector.extract_strided_slice %0 {offsets = [3, 0], sizes = [1, 128], strides = [1, 1]} : vector<9x128xf32> to vector<1x128xf32>
    %113 = arith.extf %111 : vector<4x128xbf16> to vector<4x128xf32>
    %114 = vector.broadcast %112 : vector<1x128xf32> to vector<4x128xf32>
    %115 = arith.mulf %113, %114 : vector<4x128xf32>
    %116 = arith.addf %109, %115 : vector<4x128xf32>
    %c3_63 = arith.constant 3 : index
    %c1_64 = arith.constant 1 : index
    %c0_65 = arith.constant 0 : index
    %c0_66 = arith.constant 0 : index
    %117 = vector.load %arg2[%c3_63, %c1_64, %c0_65, %c0_66] : memref<4x4x5x128xbf16, #tpu.memory_space<vmem>>, vector<1x1x4x128xbf16>
    %118 = vector.shape_cast %117 : vector<1x1x4x128xbf16> to vector<4x128xbf16>
    %119 = vector.extract_strided_slice %0 {offsets = [4, 0], sizes = [1, 128], strides = [1, 1]} : vector<9x128xf32> to vector<1x128xf32>
    %120 = arith.extf %118 : vector<4x128xbf16> to vector<4x128xf32>
    %121 = vector.broadcast %119 : vector<1x128xf32> to vector<4x128xf32>
    %122 = arith.mulf %120, %121 : vector<4x128xf32>
    %123 = arith.addf %116, %122 : vector<4x128xf32>
    %c2_67 = arith.constant 2 : index
    %c1_68 = arith.constant 1 : index
    %c1_69 = arith.constant 1 : index
    %c0_70 = arith.constant 0 : index
    %124 = vector.load %arg2[%c2_67, %c1_68, %c1_69, %c0_70] : memref<4x4x5x128xbf16, #tpu.memory_space<vmem>>, vector<1x1x4x128xbf16>
    %125 = vector.shape_cast %124 : vector<1x1x4x128xbf16> to vector<4x128xbf16>
    %126 = vector.extract_strided_slice %0 {offsets = [5, 0], sizes = [1, 128], strides = [1, 1]} : vector<9x128xf32> to vector<1x128xf32>
    %127 = arith.extf %125 : vector<4x128xbf16> to vector<4x128xf32>
    %128 = vector.broadcast %126 : vector<1x128xf32> to vector<4x128xf32>
    %129 = arith.mulf %127, %128 : vector<4x128xf32>
    %130 = arith.addf %123, %129 : vector<4x128xf32>
    %c0_71 = arith.constant 0 : index
    %c2_72 = arith.constant 2 : index
    %c0_73 = arith.constant 0 : index
    %c0_74 = arith.constant 0 : index
    %131 = vector.load %arg2[%c0_71, %c2_72, %c0_73, %c0_74] : memref<4x4x5x128xbf16, #tpu.memory_space<vmem>>, vector<1x1x4x128xbf16>
    %132 = vector.shape_cast %131 : vector<1x1x4x128xbf16> to vector<4x128xbf16>
    %133 = vector.extract_strided_slice %0 {offsets = [6, 0], sizes = [1, 128], strides = [1, 1]} : vector<9x128xf32> to vector<1x128xf32>
    %134 = arith.extf %132 : vector<4x128xbf16> to vector<4x128xf32>
    %135 = vector.broadcast %133 : vector<1x128xf32> to vector<4x128xf32>
    %136 = arith.mulf %134, %135 : vector<4x128xf32>
    %137 = arith.addf %130, %136 : vector<4x128xf32>
    %c1_75 = arith.constant 1 : index
    %c2_76 = arith.constant 2 : index
    %c0_77 = arith.constant 0 : index
    %c0_78 = arith.constant 0 : index
    %138 = vector.load %arg2[%c1_75, %c2_76, %c0_77, %c0_78] : memref<4x4x5x128xbf16, #tpu.memory_space<vmem>>, vector<1x1x4x128xbf16>
    %139 = vector.shape_cast %138 : vector<1x1x4x128xbf16> to vector<4x128xbf16>
    %140 = vector.extract_strided_slice %0 {offsets = [7, 0], sizes = [1, 128], strides = [1, 1]} : vector<9x128xf32> to vector<1x128xf32>
    %141 = arith.extf %139 : vector<4x128xbf16> to vector<4x128xf32>
    %142 = vector.broadcast %140 : vector<1x128xf32> to vector<4x128xf32>
    %143 = arith.mulf %141, %142 : vector<4x128xf32>
    %144 = arith.addf %137, %143 : vector<4x128xf32>
    %c0_79 = arith.constant 0 : index
    %c2_80 = arith.constant 2 : index
    %c1_81 = arith.constant 1 : index
    %c0_82 = arith.constant 0 : index
    %145 = vector.load %arg2[%c0_79, %c2_80, %c1_81, %c0_82] : memref<4x4x5x128xbf16, #tpu.memory_space<vmem>>, vector<1x1x4x128xbf16>
    %146 = vector.shape_cast %145 : vector<1x1x4x128xbf16> to vector<4x128xbf16>
    %147 = vector.extract_strided_slice %0 {offsets = [8, 0], sizes = [1, 128], strides = [1, 1]} : vector<9x128xf32> to vector<1x128xf32>
    %148 = arith.extf %146 : vector<4x128xbf16> to vector<4x128xf32>
    %149 = vector.broadcast %147 : vector<1x128xf32> to vector<4x128xf32>
    %150 = arith.mulf %148, %149 : vector<4x128xf32>
    %151 = arith.addf %144, %150 : vector<4x128xf32>
    %152 = vector.broadcast %1 : vector<1x128xf32> to vector<4x128xf32>
    %153 = arith.mulf %151, %152 : vector<4x128xf32>
    %154 = vector.broadcast %2 : vector<1x128xf32> to vector<4x128xf32>
    %155 = arith.addf %153, %154 : vector<4x128xf32>
    %156 = arith.negf %155 : vector<4x128xf32>
    %157 = math.exp %156 : vector<4x128xf32>
    %cst_83 = arith.constant 1.000000e+00 : f32
    %158 = vector.broadcast %cst_83 : f32 to vector<4x128xf32>
    %159 = arith.addf %158, %157 : vector<4x128xf32>
    %160 = arith.divf %158, %159 : vector<4x128xf32>
    %161 = arith.mulf %155, %160 : vector<4x128xf32>
    %162 = arith.truncf %161 : vector<4x128xf32> to vector<4x128xbf16>
    %c0_84 = arith.constant 0 : index
    %c1_85 = arith.constant 1 : index
    %c0_86 = arith.constant 0 : index
    %c0_87 = arith.constant 0 : index
    %163 = vector.load %arg9[%c0_84, %c1_85, %c0_86, %c0_87] : memref<1x4x4x128xbf16, #tpu.memory_space<vmem>>, vector<1x1x4x128xbf16>
    %164 = vector.shape_cast %163 : vector<1x1x4x128xbf16> to vector<4x128xbf16>
    %165 = vector.shape_cast %162 : vector<4x128xbf16> to vector<1x1x4x128xbf16>
    tpu.vector_store %arg9[%c0_84, %c1_85, %c0_86, %c0_87], %165 {strides = array<i32>} : memref<1x4x4x128xbf16, #tpu.memory_space<vmem>>, vector<1x1x4x128xbf16>,
    %cst_88 = arith.constant dense<0.000000e+00> : vector<128xf32>
    %166 = vector.multi_reduction <add>, %161, %cst_88 [0] : vector<4x128xf32> to vector<128xf32>
    %167 = vector.shape_cast %166 : vector<128xf32> to vector<1x128xf32>
    %168 = arith.addf %87, %167 : vector<1x128xf32>
    %cst_89 = arith.constant 0.000000e+00 : f32
    %169 = vector.broadcast %cst_89 : f32 to vector<4x128xf32>
    %c0_90 = arith.constant 0 : index
    %c2_91 = arith.constant 2 : index
    %c0_92 = arith.constant 0 : index
    %c0_93 = arith.constant 0 : index
    %170 = vector.load %arg2[%c0_90, %c2_91, %c0_92, %c0_93] : memref<4x4x5x128xbf16, #tpu.memory_space<vmem>>, vector<1x1x4x128xbf16>
    %171 = vector.shape_cast %170 : vector<1x1x4x128xbf16> to vector<4x128xbf16>
    %172 = vector.extract_strided_slice %0 {offsets = [0, 0], sizes = [1, 128], strides = [1, 1]} : vector<9x128xf32> to vector<1x128xf32>
    %173 = arith.extf %171 : vector<4x128xbf16> to vector<4x128xf32>
    %174 = vector.broadcast %172 : vector<1x128xf32> to vector<4x128xf32>
    %175 = arith.mulf %173, %174 : vector<4x128xf32>
    %176 = arith.addf %169, %175 : vector<4x128xf32>
    %c1_94 = arith.constant 1 : index
    %c2_95 = arith.constant 2 : index
    %c0_96 = arith.constant 0 : index
    %c0_97 = arith.constant 0 : index
    %177 = vector.load %arg2[%c1_94, %c2_95, %c0_96, %c0_97] : memref<4x4x5x128xbf16, #tpu.memory_space<vmem>>, vector<1x1x4x128xbf16>
    %178 = vector.shape_cast %177 : vector<1x1x4x128xbf16> to vector<4x128xbf16>
    %179 = vector.extract_strided_slice %0 {offsets = [1, 0], sizes = [1, 128], strides = [1, 1]} : vector<9x128xf32> to vector<1x128xf32>
    %180 = arith.extf %178 : vector<4x128xbf16> to vector<4x128xf32>
    %181 = vector.broadcast %179 : vector<1x128xf32> to vector<4x128xf32>
    %182 = arith.mulf %180, %181 : vector<4x128xf32>
    %183 = arith.addf %176, %182 : vector<4x128xf32>
    %c0_98 = arith.constant 0 : index
    %c2_99 = arith.constant 2 : index
    %c1_100 = arith.constant 1 : index
    %c0_101 = arith.constant 0 : index
    %184 = vector.load %arg2[%c0_98, %c2_99, %c1_100, %c0_101] : memref<4x4x5x128xbf16, #tpu.memory_space<vmem>>, vector<1x1x4x128xbf16>
    %185 = vector.shape_cast %184 : vector<1x1x4x128xbf16> to vector<4x128xbf16>
    %186 = vector.extract_strided_slice %0 {offsets = [2, 0], sizes = [1, 128], strides = [1, 1]} : vector<9x128xf32> to vector<1x128xf32>
    %187 = arith.extf %185 : vector<4x128xbf16> to vector<4x128xf32>
    %188 = vector.broadcast %186 : vector<1x128xf32> to vector<4x128xf32>
    %189 = arith.mulf %187, %188 : vector<4x128xf32>
    %190 = arith.addf %183, %189 : vector<4x128xf32>
    %c2_102 = arith.constant 2 : index
    %c2_103 = arith.constant 2 : index
    %c0_104 = arith.constant 0 : index
    %c0_105 = arith.constant 0 : index
    %191 = vector.load %arg2[%c2_102, %c2_103, %c0_104, %c0_105] : memref<4x4x5x128xbf16, #tpu.memory_space<vmem>>, vector<1x1x4x128xbf16>
    %192 = vector.shape_cast %191 : vector<1x1x4x128xbf16> to vector<4x128xbf16>
    %193 = vector.extract_strided_slice %0 {offsets = [3, 0], sizes = [1, 128], strides = [1, 1]} : vector<9x128xf32> to vector<1x128xf32>
    %194 = arith.extf %192 : vector<4x128xbf16> to vector<4x128xf32>
    %195 = vector.broadcast %193 : vector<1x128xf32> to vector<4x128xf32>
    %196 = arith.mulf %194, %195 : vector<4x128xf32>
    %197 = arith.addf %190, %196 : vector<4x128xf32>
    %c3_106 = arith.constant 3 : index
    %c2_107 = arith.constant 2 : index
    %c0_108 = arith.constant 0 : index
    %c0_109 = arith.constant 0 : index
    %198 = vector.load %arg2[%c3_106, %c2_107, %c0_108, %c0_109] : memref<4x4x5x128xbf16, #tpu.memory_space<vmem>>, vector<1x1x4x128xbf16>
    %199 = vector.shape_cast %198 : vector<1x1x4x128xbf16> to vector<4x128xbf16>
    %200 = vector.extract_strided_slice %0 {offsets = [4, 0], sizes = [1, 128], strides = [1, 1]} : vector<9x128xf32> to vector<1x128xf32>
    %201 = arith.extf %199 : vector<4x128xbf16> to vector<4x128xf32>
    %202 = vector.broadcast %200 : vector<1x128xf32> to vector<4x128xf32>
    %203 = arith.mulf %201, %202 : vector<4x128xf32>
    %204 = arith.addf %197, %203 : vector<4x128xf32>
    %c2_110 = arith.constant 2 : index
    %c2_111 = arith.constant 2 : index
    %c1_112 = arith.constant 1 : index
    %c0_113 = arith.constant 0 : index
    %205 = vector.load %arg2[%c2_110, %c2_111, %c1_112, %c0_113] : memref<4x4x5x128xbf16, #tpu.memory_space<vmem>>, vector<1x1x4x128xbf16>
    %206 = vector.shape_cast %205 : vector<1x1x4x128xbf16> to vector<4x128xbf16>
    %207 = vector.extract_strided_slice %0 {offsets = [5, 0], sizes = [1, 128], strides = [1, 1]} : vector<9x128xf32> to vector<1x128xf32>
    %208 = arith.extf %206 : vector<4x128xbf16> to vector<4x128xf32>
    %209 = vector.broadcast %207 : vector<1x128xf32> to vector<4x128xf32>
    %210 = arith.mulf %208, %209 : vector<4x128xf32>
    %211 = arith.addf %204, %210 : vector<4x128xf32>
    %c0_114 = arith.constant 0 : index
    %c3_115 = arith.constant 3 : index
    %c0_116 = arith.constant 0 : index
    %c0_117 = arith.constant 0 : index
    %212 = vector.load %arg2[%c0_114, %c3_115, %c0_116, %c0_117] : memref<4x4x5x128xbf16, #tpu.memory_space<vmem>>, vector<1x1x4x128xbf16>
    %213 = vector.shape_cast %212 : vector<1x1x4x128xbf16> to vector<4x128xbf16>
    %214 = vector.extract_strided_slice %0 {offsets = [6, 0], sizes = [1, 128], strides = [1, 1]} : vector<9x128xf32> to vector<1x128xf32>
    %215 = arith.extf %213 : vector<4x128xbf16> to vector<4x128xf32>
    %216 = vector.broadcast %214 : vector<1x128xf32> to vector<4x128xf32>
    %217 = arith.mulf %215, %216 : vector<4x128xf32>
    %218 = arith.addf %211, %217 : vector<4x128xf32>
    %c1_118 = arith.constant 1 : index
    %c3_119 = arith.constant 3 : index
    %c0_120 = arith.constant 0 : index
    %c0_121 = arith.constant 0 : index
    %219 = vector.load %arg2[%c1_118, %c3_119, %c0_120, %c0_121] : memref<4x4x5x128xbf16, #tpu.memory_space<vmem>>, vector<1x1x4x128xbf16>
    %220 = vector.shape_cast %219 : vector<1x1x4x128xbf16> to vector<4x128xbf16>
    %221 = vector.extract_strided_slice %0 {offsets = [7, 0], sizes = [1, 128], strides = [1, 1]} : vector<9x128xf32> to vector<1x128xf32>
    %222 = arith.extf %220 : vector<4x128xbf16> to vector<4x128xf32>
    %223 = vector.broadcast %221 : vector<1x128xf32> to vector<4x128xf32>
    %224 = arith.mulf %222, %223 : vector<4x128xf32>
    %225 = arith.addf %218, %224 : vector<4x128xf32>
    %c0_122 = arith.constant 0 : index
    %c3_123 = arith.constant 3 : index
    %c1_124 = arith.constant 1 : index
    %c0_125 = arith.constant 0 : index
    %226 = vector.load %arg2[%c0_122, %c3_123, %c1_124, %c0_125] : memref<4x4x5x128xbf16, #tpu.memory_space<vmem>>, vector<1x1x4x128xbf16>
    %227 = vector.shape_cast %226 : vector<1x1x4x128xbf16> to vector<4x128xbf16>
    %228 = vector.extract_strided_slice %0 {offsets = [8, 0], sizes = [1, 128], strides = [1, 1]} : vector<9x128xf32> to vector<1x128xf32>
    %229 = arith.extf %227 : vector<4x128xbf16> to vector<4x128xf32>
    %230 = vector.broadcast %228 : vector<1x128xf32> to vector<4x128xf32>
    %231 = arith.mulf %229, %230 : vector<4x128xf32>
    %232 = arith.addf %225, %231 : vector<4x128xf32>
    %233 = vector.broadcast %1 : vector<1x128xf32> to vector<4x128xf32>
    %234 = arith.mulf %232, %233 : vector<4x128xf32>
    %235 = vector.broadcast %2 : vector<1x128xf32> to vector<4x128xf32>
    %236 = arith.addf %234, %235 : vector<4x128xf32>
    %237 = arith.negf %236 : vector<4x128xf32>
    %238 = math.exp %237 : vector<4x128xf32>
    %cst_126 = arith.constant 1.000000e+00 : f32
    %239 = vector.broadcast %cst_126 : f32 to vector<4x128xf32>
    %240 = arith.addf %239, %238 : vector<4x128xf32>
    %241 = arith.divf %239, %240 : vector<4x128xf32>
    %242 = arith.mulf %236, %241 : vector<4x128xf32>
    %243 = arith.truncf %242 : vector<4x128xf32> to vector<4x128xbf16>
    %c0_127 = arith.constant 0 : index
    %c2_128 = arith.constant 2 : index
    %c0_129 = arith.constant 0 : index
    %c0_130 = arith.constant 0 : index
    %244 = vector.load %arg9[%c0_127, %c2_128, %c0_129, %c0_130] : memref<1x4x4x128xbf16, #tpu.memory_space<vmem>>, vector<1x1x4x128xbf16>
    %245 = vector.shape_cast %244 : vector<1x1x4x128xbf16> to vector<4x128xbf16>
    %246 = vector.shape_cast %243 : vector<4x128xbf16> to vector<1x1x4x128xbf16>
    tpu.vector_store %arg9[%c0_127, %c2_128, %c0_129, %c0_130], %246 {strides = array<i32>} : memref<1x4x4x128xbf16, #tpu.memory_space<vmem>>, vector<1x1x4x128xbf16>,
    %cst_131 = arith.constant dense<0.000000e+00> : vector<128xf32>
    %247 = vector.multi_reduction <add>, %242, %cst_131 [0] : vector<4x128xf32> to vector<128xf32>
    %248 = vector.shape_cast %247 : vector<128xf32> to vector<1x128xf32>
    %249 = arith.addf %168, %248 : vector<1x128xf32>
    %cst_132 = arith.constant 0.000000e+00 : f32
    %250 = vector.broadcast %cst_132 : f32 to vector<4x128xf32>
    %c0_133 = arith.constant 0 : index
    %c3_134 = arith.constant 3 : index
    %c0_135 = arith.constant 0 : index
    %c0_136 = arith.constant 0 : index
    %251 = vector.load %arg2[%c0_133, %c3_134, %c0_135, %c0_136] : memref<4x4x5x128xbf16, #tpu.memory_space<vmem>>, vector<1x1x4x128xbf16>
    %252 = vector.shape_cast %251 : vector<1x1x4x128xbf16> to vector<4x128xbf16>
    %253 = vector.extract_strided_slice %0 {offsets = [0, 0], sizes = [1, 128], strides = [1, 1]} : vector<9x128xf32> to vector<1x128xf32>
    %254 = arith.extf %252 : vector<4x128xbf16> to vector<4x128xf32>
    %255 = vector.broadcast %253 : vector<1x128xf32> to vector<4x128xf32>
    %256 = arith.mulf %254, %255 : vector<4x128xf32>
    %257 = arith.addf %250, %256 : vector<4x128xf32>
    %c1_137 = arith.constant 1 : index
    %c3_138 = arith.constant 3 : index
    %c0_139 = arith.constant 0 : index
    %c0_140 = arith.constant 0 : index
    %258 = vector.load %arg2[%c1_137, %c3_138, %c0_139, %c0_140] : memref<4x4x5x128xbf16, #tpu.memory_space<vmem>>, vector<1x1x4x128xbf16>
    %259 = vector.shape_cast %258 : vector<1x1x4x128xbf16> to vector<4x128xbf16>
    %260 = vector.extract_strided_slice %0 {offsets = [1, 0], sizes = [1, 128], strides = [1, 1]} : vector<9x128xf32> to vector<1x128xf32>
    %261 = arith.extf %259 : vector<4x128xbf16> to vector<4x128xf32>
    %262 = vector.broadcast %260 : vector<1x128xf32> to vector<4x128xf32>
    %263 = arith.mulf %261, %262 : vector<4x128xf32>
    %264 = arith.addf %257, %263 : vector<4x128xf32>
    %c0_141 = arith.constant 0 : index
    %c3_142 = arith.constant 3 : index
    %c1_143 = arith.constant 1 : index
    %c0_144 = arith.constant 0 : index
    %265 = vector.load %arg2[%c0_141, %c3_142, %c1_143, %c0_144] : memref<4x4x5x128xbf16, #tpu.memory_space<vmem>>, vector<1x1x4x128xbf16>
    %266 = vector.shape_cast %265 : vector<1x1x4x128xbf16> to vector<4x128xbf16>
    %267 = vector.extract_strided_slice %0 {offsets = [2, 0], sizes = [1, 128], strides = [1, 1]} : vector<9x128xf32> to vector<1x128xf32>
    %268 = arith.extf %266 : vector<4x128xbf16> to vector<4x128xf32>
    %269 = vector.broadcast %267 : vector<1x128xf32> to vector<4x128xf32>
    %270 = arith.mulf %268, %269 : vector<4x128xf32>
    %271 = arith.addf %264, %270 : vector<4x128xf32>
    %c2_145 = arith.constant 2 : index
    %c3_146 = arith.constant 3 : index
    %c0_147 = arith.constant 0 : index
    %c0_148 = arith.constant 0 : index
    %272 = vector.load %arg2[%c2_145, %c3_146, %c0_147, %c0_148] : memref<4x4x5x128xbf16, #tpu.memory_space<vmem>>, vector<1x1x4x128xbf16>
    %273 = vector.shape_cast %272 : vector<1x1x4x128xbf16> to vector<4x128xbf16>
    %274 = vector.extract_strided_slice %0 {offsets = [3, 0], sizes = [1, 128], strides = [1, 1]} : vector<9x128xf32> to vector<1x128xf32>
    %275 = arith.extf %273 : vector<4x128xbf16> to vector<4x128xf32>
    %276 = vector.broadcast %274 : vector<1x128xf32> to vector<4x128xf32>
    %277 = arith.mulf %275, %276 : vector<4x128xf32>
    %278 = arith.addf %271, %277 : vector<4x128xf32>
    %c3_149 = arith.constant 3 : index
    %c3_150 = arith.constant 3 : index
    %c0_151 = arith.constant 0 : index
    %c0_152 = arith.constant 0 : index
    %279 = vector.load %arg2[%c3_149, %c3_150, %c0_151, %c0_152] : memref<4x4x5x128xbf16, #tpu.memory_space<vmem>>, vector<1x1x4x128xbf16>
    %280 = vector.shape_cast %279 : vector<1x1x4x128xbf16> to vector<4x128xbf16>
    %281 = vector.extract_strided_slice %0 {offsets = [4, 0], sizes = [1, 128], strides = [1, 1]} : vector<9x128xf32> to vector<1x128xf32>
    %282 = arith.extf %280 : vector<4x128xbf16> to vector<4x128xf32>
    %283 = vector.broadcast %281 : vector<1x128xf32> to vector<4x128xf32>
    %284 = arith.mulf %282, %283 : vector<4x128xf32>
    %285 = arith.addf %278, %284 : vector<4x128xf32>
    %c2_153 = arith.constant 2 : index
    %c3_154 = arith.constant 3 : index
    %c1_155 = arith.constant 1 : index
    %c0_156 = arith.constant 0 : index
    %286 = vector.load %arg2[%c2_153, %c3_154, %c1_155, %c0_156] : memref<4x4x5x128xbf16, #tpu.memory_space<vmem>>, vector<1x1x4x128xbf16>
    %287 = vector.shape_cast %286 : vector<1x1x4x128xbf16> to vector<4x128xbf16>
    %288 = vector.extract_strided_slice %0 {offsets = [5, 0], sizes = [1, 128], strides = [1, 1]} : vector<9x128xf32> to vector<1x128xf32>
    %289 = arith.extf %287 : vector<4x128xbf16> to vector<4x128xf32>
    %290 = vector.broadcast %288 : vector<1x128xf32> to vector<4x128xf32>
    %291 = arith.mulf %289, %290 : vector<4x128xf32>
    %292 = arith.addf %285, %291 : vector<4x128xf32>
    %c0_157 = arith.constant 0 : index
    %c0_158 = arith.constant 0 : index
    %c0_159 = arith.constant 0 : index
    %c0_160 = arith.constant 0 : index
    %293 = vector.load %arg3[%c0_157, %c0_158, %c0_159, %c0_160] : memref<4x1x5x128xbf16, #tpu.memory_space<vmem>>, vector<1x1x4x128xbf16>
    %294 = vector.shape_cast %293 : vector<1x1x4x128xbf16> to vector<4x128xbf16>
    %295 = vector.extract_strided_slice %0 {offsets = [6, 0], sizes = [1, 128], strides = [1, 1]} : vector<9x128xf32> to vector<1x128xf32>
    %296 = arith.extf %294 : vector<4x128xbf16> to vector<4x128xf32>
    %297 = vector.broadcast %295 : vector<1x128xf32> to vector<4x128xf32>
    %298 = arith.mulf %296, %297 : vector<4x128xf32>
    %299 = arith.addf %292, %298 : vector<4x128xf32>
    %c1_161 = arith.constant 1 : index
    %c0_162 = arith.constant 0 : index
    %c0_163 = arith.constant 0 : index
    %c0_164 = arith.constant 0 : index
    %300 = vector.load %arg3[%c1_161, %c0_162, %c0_163, %c0_164] : memref<4x1x5x128xbf16, #tpu.memory_space<vmem>>, vector<1x1x4x128xbf16>
    %301 = vector.shape_cast %300 : vector<1x1x4x128xbf16> to vector<4x128xbf16>
    %302 = vector.extract_strided_slice %0 {offsets = [7, 0], sizes = [1, 128], strides = [1, 1]} : vector<9x128xf32> to vector<1x128xf32>
    %303 = arith.extf %301 : vector<4x128xbf16> to vector<4x128xf32>
    %304 = vector.broadcast %302 : vector<1x128xf32> to vector<4x128xf32>
    %305 = arith.mulf %303, %304 : vector<4x128xf32>
    %306 = arith.addf %299, %305 : vector<4x128xf32>
    %c0_165 = arith.constant 0 : index
    %c0_166 = arith.constant 0 : index
    %c1_167 = arith.constant 1 : index
    %c0_168 = arith.constant 0 : index
    %307 = vector.load %arg3[%c0_165, %c0_166, %c1_167, %c0_168] : memref<4x1x5x128xbf16, #tpu.memory_space<vmem>>, vector<1x1x4x128xbf16>
    %308 = vector.shape_cast %307 : vector<1x1x4x128xbf16> to vector<4x128xbf16>
    %309 = vector.extract_strided_slice %0 {offsets = [8, 0], sizes = [1, 128], strides = [1, 1]} : vector<9x128xf32> to vector<1x128xf32>
    %310 = arith.extf %308 : vector<4x128xbf16> to vector<4x128xf32>
    %311 = vector.broadcast %309 : vector<1x128xf32> to vector<4x128xf32>
    %312 = arith.mulf %310, %311 : vector<4x128xf32>
    %313 = arith.addf %306, %312 : vector<4x128xf32>
    %314 = vector.broadcast %1 : vector<1x128xf32> to vector<4x128xf32>
    %315 = arith.mulf %313, %314 : vector<4x128xf32>
    %316 = vector.broadcast %2 : vector<1x128xf32> to vector<4x128xf32>
    %317 = arith.addf %315, %316 : vector<4x128xf32>
    %318 = arith.negf %317 : vector<4x128xf32>
    %319 = math.exp %318 : vector<4x128xf32>
    %cst_169 = arith.constant 1.000000e+00 : f32
    %320 = vector.broadcast %cst_169 : f32 to vector<4x128xf32>
    %321 = arith.addf %320, %319 : vector<4x128xf32>
    %322 = arith.divf %320, %321 : vector<4x128xf32>
    %323 = arith.mulf %317, %322 : vector<4x128xf32>
    %324 = arith.truncf %323 : vector<4x128xf32> to vector<4x128xbf16>
    %c0_170 = arith.constant 0 : index
    %c3_171 = arith.constant 3 : index
    %c0_172 = arith.constant 0 : index
    %c0_173 = arith.constant 0 : index
    %325 = vector.load %arg9[%c0_170, %c3_171, %c0_172, %c0_173] : memref<1x4x4x128xbf16, #tpu.memory_space<vmem>>, vector<1x1x4x128xbf16>
    %326 = vector.shape_cast %325 : vector<1x1x4x128xbf16> to vector<4x128xbf16>
    %327 = vector.shape_cast %324 : vector<4x128xbf16> to vector<1x1x4x128xbf16>
    tpu.vector_store %arg9[%c0_170, %c3_171, %c0_172, %c0_173], %327 {strides = array<i32>} : memref<1x4x4x128xbf16, #tpu.memory_space<vmem>>, vector<1x1x4x128xbf16>,
    %cst_174 = arith.constant dense<0.000000e+00> : vector<128xf32>
    %328 = vector.multi_reduction <add>, %323, %cst_174 [0] : vector<4x128xf32> to vector<128xf32>
    %329 = vector.shape_cast %328 : vector<128xf32> to vector<1x128xf32>
    %330 = arith.addf %249, %329 : vector<1x128xf32>
    %c0_175 = arith.constant 0 : index
    %c0_176 = arith.constant 0 : index
    %331 = vector.load %arg11[%c0_175, %c0_176] : memref<1x128xf32, #tpu.memory_space<vmem>>, vector<1x128xf32>
    %332 = arith.addf %331, %330 : vector<1x128xf32>
    %c0_177 = arith.constant 0 : index
    %c0_178 = arith.constant 0 : index
    %333 = vector.load %arg11[%c0_177, %c0_178] : memref<1x128xf32, #tpu.memory_space<vmem>>, vector<1x128xf32>
    tpu.vector_store %arg11[%c0_177, %c0_178], %332 {strides = array<i32>} : memref<1x128xf32, #tpu.memory_space<vmem>>, vector<1x128xf32>,
    %c0_i32_179 = arith.constant 0 : i32
    %334 = arith.cmpi eq, %arg1, %c0_i32_179 : i32
    %335 = arith.extui %334 : i1 to i32
    %c0_i32_180 = arith.constant 0 : i32
    %336 = arith.cmpi ne, %335, %c0_i32_180 : i32
    scf.if %336 {
      %c0_181 = arith.constant 0 : index
      %c0_182 = arith.constant 0 : index
      %337 = vector.load %arg11[%c0_181, %c0_182] : memref<1x128xf32, #tpu.memory_space<vmem>>, vector<1x128xf32>
      %cst_183 = arith.constant 6.250000e-02 : f32
      %338 = vector.broadcast %cst_183 : f32 to vector<1x128xf32>
      %339 = arith.mulf %337, %338 : vector<1x128xf32>
      %c0_184 = arith.constant 0 : index
      %c0_185 = arith.constant 0 : index
      %340 = vector.load %arg7[%c0_184, %c0_185] : memref<8x128xf32, #tpu.memory_space<vmem>>, vector<8x128xf32>
      %341 = vector.broadcast %339 : vector<1x128xf32> to vector<8x128xf32>
      %342 = arith.mulf %341, %340 : vector<8x128xf32>
      %cst_186 = arith.constant dense<0.000000e+00> : vector<8xf32>
      %343 = vector.multi_reduction <add>, %342, %cst_186 [1] : vector<8x128xf32> to vector<8xf32>
      %344 = vector.shape_cast %343 : vector<8xf32> to vector<8x1xf32>
      %345 = arith.negf %344 : vector<8x1xf32>
      %346 = math.exp %345 : vector<8x1xf32>
      %cst_187 = arith.constant 1.000000e+00 : f32
      %347 = vector.broadcast %cst_187 : f32 to vector<8x1xf32>
      %348 = arith.addf %347, %346 : vector<8x1xf32>
      %349 = arith.divf %347, %348 : vector<8x1xf32>
      %350 = arith.mulf %344, %349 : vector<8x1xf32>
      %c0_188 = arith.constant 0 : index
      %c0_189 = arith.constant 0 : index
      %351 = vector.load %arg8[%c0_188, %c0_189] : memref<8x128xf32, #tpu.memory_space<vmem>>, vector<8x128xf32>
      %352 = vector.broadcast %350 : vector<8x1xf32> to vector<8x128xf32>
      %353 = arith.mulf %352, %351 : vector<8x128xf32>
      %cst_190 = arith.constant dense<0.000000e+00> : vector<128xf32>
      %354 = vector.multi_reduction <add>, %353, %cst_190 [0] : vector<8x128xf32> to vector<128xf32>
      %355 = vector.shape_cast %354 : vector<128xf32> to vector<1x128xf32>
      %356 = arith.negf %355 : vector<1x128xf32>
      %357 = math.exp %356 : vector<1x128xf32>
      %cst_191 = arith.constant 1.000000e+00 : f32
      %358 = vector.broadcast %cst_191 : f32 to vector<1x128xf32>
      %359 = arith.addf %358, %357 : vector<1x128xf32>
      %360 = arith.divf %358, %359 : vector<1x128xf32>
      %361 = vector.shape_cast %360 : vector<1x128xf32> to vector<1x1x128xf32>
      %c0_192 = arith.constant 0 : index
      %c0_193 = arith.constant 0 : index
      %c0_194 = arith.constant 0 : index
      %362 = vector.load %arg10[%c0_192, %c0_193, %c0_194] : memref<1x1x128xf32, #tpu.memory_space<vmem>>, vector<1x1x128xf32>
      tpu.vector_store %arg10[%c0_192, %c0_193, %c0_194], %361 {strides = array<i32>} : memref<1x1x128xf32, #tpu.memory_space<vmem>>, vector<1x1x128xf32>,
    } else {
    }
    return
  }
  func.func @transform_0(%arg0: i32, %arg1: i32) -> (i32, i32, i32, i32) {
    %c0_i32 = arith.constant 0 : i32
    %c0_i32_0 = arith.constant 0 : i32
    %c0_i32_1 = arith.constant 0 : i32
    return %arg0, %arg1, %c0_i32, %c0_i32_0 : i32, i32, i32, i32
  }
  func.func @transform_1(%arg0: i32, %arg1: i32) -> (i32, i32, i32, i32) {
    %c1_i32 = arith.constant 1 : i32
    %0 = arith.addi %arg1, %c1_i32 : i32
    %c4_i32 = arith.constant 4 : i32
    %1 = arith.muli %0, %c4_i32 : i32
    %c0_i32 = arith.constant 0 : i32
    %2 = arith.addi %1, %c0_i32 : i32
    %c0_i32_0 = arith.constant 0 : i32
    %c0_i32_1 = arith.constant 0 : i32
    %c0_i32_2 = arith.constant 0 : i32
    return %arg0, %2, %c0_i32_0, %c0_i32_1 : i32, i32, i32, i32
  }
  func.func @transform_2(%arg0: i32, %arg1: i32) -> (i32, i32) {
    %c0_i32 = arith.constant 0 : i32
    %c0_i32_0 = arith.constant 0 : i32
    %c0_i32_1 = arith.constant 0 : i32
    return %c0_i32, %c0_i32_0 : i32, i32
  }
  func.func @transform_3(%arg0: i32, %arg1: i32) -> (i32, i32) {
    %c0_i32 = arith.constant 0 : i32
    %c0_i32_0 = arith.constant 0 : i32
    %c0_i32_1 = arith.constant 0 : i32
    return %c0_i32, %c0_i32_0 : i32, i32
  }
  func.func @transform_4(%arg0: i32, %arg1: i32) -> (i32, i32) {
    %c0_i32 = arith.constant 0 : i32
    %c0_i32_0 = arith.constant 0 : i32
    %c0_i32_1 = arith.constant 0 : i32
    return %c0_i32, %c0_i32_0 : i32, i32
  }
  func.func @transform_5(%arg0: i32, %arg1: i32) -> (i32, i32) {
    %c0_i32 = arith.constant 0 : i32
    %c0_i32_0 = arith.constant 0 : i32
    %c0_i32_1 = arith.constant 0 : i32
    return %c0_i32, %c0_i32_0 : i32, i32
  }
  func.func @transform_6(%arg0: i32, %arg1: i32) -> (i32, i32) {
    %c0_i32 = arith.constant 0 : i32
    %c0_i32_0 = arith.constant 0 : i32
    %c0_i32_1 = arith.constant 0 : i32
    return %c0_i32, %c0_i32_0 : i32, i32
  }
  func.func @transform_7(%arg0: i32, %arg1: i32) -> (i32, i32, i32, i32) {
    %c0_i32 = arith.constant 0 : i32
    %c0_i32_0 = arith.constant 0 : i32
    %c0_i32_1 = arith.constant 0 : i32
    return %arg0, %arg1, %c0_i32, %c0_i32_0 : i32, i32, i32, i32
  }
  func.func @transform_8(%arg0: i32, %arg1: i32) -> (i32, i32, i32) {
    %c0_i32 = arith.constant 0 : i32
    %c0_i32_0 = arith.constant 0 : i32
    %c0_i32_1 = arith.constant 0 : i32
    return %arg0, %c0_i32, %c0_i32_0 : i32, i32, i32
  }
}

module attributes {stable_mosaic.version = 11 : i64} {
  func.func @_mm_bn_act_gate_kernel(%arg0: i32, %arg1: i32, %arg2: memref<1x16x128xbf16, #tpu.memory_space<vmem>>, %arg3: memref<1x1x128xf32, #tpu.memory_space<vmem>>, %arg4: memref<128x128xbf16, #tpu.memory_space<vmem>>, %arg5: memref<1x128xf32, #tpu.memory_space<vmem>>, %arg6: memref<1x128xf32, #tpu.memory_space<vmem>>, %arg7: memref<1x16x128xbf16, #tpu.memory_space<vmem>>) attributes {dimension_semantics = [#tpu.dimension_semantics<parallel>, #tpu.dimension_semantics<parallel>], iteration_bounds = array<i64: 2, 1>, scalar_prefetch = 0 : i64, scratch_operands = 0 : i64, tpu.core_type = #tpu.core_type<tc>, window_params = [{transform_indices = @transform_0, window_bounds = array<i64: 1, 16, 128>}, {transform_indices = @transform_1, window_bounds = array<i64: 1, 1, 128>}, {pipeline_mode = #tpu.pipeline_mode<synchronous>, transform_indices = @transform_2, window_bounds = array<i64: 128, 128>}, {pipeline_mode = #tpu.pipeline_mode<synchronous>, transform_indices = @transform_3, window_bounds = array<i64: 1, 128>}, {pipeline_mode = #tpu.pipeline_mode<synchronous>, transform_indices = @transform_4, window_bounds = array<i64: 1, 128>}, {transform_indices = @transform_5, window_bounds = array<i64: 1, 16, 128>}]} {
    %c0 = arith.constant 0 : index
    %c0_0 = arith.constant 0 : index
    %c0_1 = arith.constant 0 : index
    %0 = vector.load %arg2[%c0, %c0_0, %c0_1] : memref<1x16x128xbf16, #tpu.memory_space<vmem>>, vector<1x16x128xbf16>
    %1 = vector.shape_cast %0 : vector<1x16x128xbf16> to vector<16x128xbf16>
    %c0_2 = arith.constant 0 : index
    %c0_3 = arith.constant 0 : index
    %c0_4 = arith.constant 0 : index
    %2 = vector.load %arg3[%c0_2, %c0_3, %c0_4] : memref<1x1x128xf32, #tpu.memory_space<vmem>>, vector<1x1x128xf32>
    %3 = vector.shape_cast %2 : vector<1x1x128xf32> to vector<1x128xf32>
    %4 = arith.truncf %3 : vector<1x128xf32> to vector<1x128xbf16>
    %5 = vector.broadcast %4 : vector<1x128xbf16> to vector<16x128xbf16>
    %6 = arith.mulf %1, %5 : vector<16x128xbf16>
    %c0_5 = arith.constant 0 : index
    %c0_6 = arith.constant 0 : index
    %7 = vector.load %arg4[%c0_5, %c0_6] : memref<128x128xbf16, #tpu.memory_space<vmem>>, vector<128x128xbf16>
    %cst = arith.constant dense<0.000000e+00> : vector<16x128xf32>
    %8 = tpu.matmul %6, %7, %cst {dimension_numbers = #tpu.dot_dimension_numbers<[1], [0], [0], [1], [0, 0, 1, 1], [], []>} : vector<16x128xbf16>, vector<128x128xbf16>, vector<16x128xf32> -> vector<16x128xf32>
    %c0_7 = arith.constant 0 : index
    %c0_8 = arith.constant 0 : index
    %9 = vector.load %arg5[%c0_7, %c0_8] : memref<1x128xf32, #tpu.memory_space<vmem>>, vector<1x128xf32>
    %10 = vector.broadcast %9 : vector<1x128xf32> to vector<16x128xf32>
    %11 = arith.mulf %8, %10 : vector<16x128xf32>
    %c0_9 = arith.constant 0 : index
    %c0_10 = arith.constant 0 : index
    %12 = vector.load %arg6[%c0_9, %c0_10] : memref<1x128xf32, #tpu.memory_space<vmem>>, vector<1x128xf32>
    %13 = vector.broadcast %12 : vector<1x128xf32> to vector<16x128xf32>
    %14 = arith.addf %11, %13 : vector<16x128xf32>
    %15 = arith.truncf %14 : vector<16x128xf32> to vector<16x128xbf16>
    %c0_11 = arith.constant 0 : index
    %c0_12 = arith.constant 0 : index
    %c0_13 = arith.constant 0 : index
    %16 = vector.load %arg7[%c0_11, %c0_12, %c0_13] : memref<1x16x128xbf16, #tpu.memory_space<vmem>>, vector<1x16x128xbf16>
    %17 = vector.shape_cast %16 : vector<1x16x128xbf16> to vector<16x128xbf16>
    %18 = vector.shape_cast %15 : vector<16x128xbf16> to vector<1x16x128xbf16>
    tpu.vector_store %arg7[%c0_11, %c0_12, %c0_13], %18 {strides = array<i32>} : memref<1x16x128xbf16, #tpu.memory_space<vmem>>, vector<1x16x128xbf16>,
    return
  }
  func.func @transform_0(%arg0: i32, %arg1: i32) -> (i32, i32, i32) {
    %c0_i32 = arith.constant 0 : i32
    %c0_i32_0 = arith.constant 0 : i32
    return %arg0, %arg1, %c0_i32 : i32, i32, i32
  }
  func.func @transform_1(%arg0: i32, %arg1: i32) -> (i32, i32, i32) {
    %c0_i32 = arith.constant 0 : i32
    %c0_i32_0 = arith.constant 0 : i32
    %c0_i32_1 = arith.constant 0 : i32
    return %arg0, %c0_i32, %c0_i32_0 : i32, i32, i32
  }
  func.func @transform_2(%arg0: i32, %arg1: i32) -> (i32, i32) {
    %c0_i32 = arith.constant 0 : i32
    %c0_i32_0 = arith.constant 0 : i32
    %c0_i32_1 = arith.constant 0 : i32
    return %c0_i32, %c0_i32_0 : i32, i32
  }
  func.func @transform_3(%arg0: i32, %arg1: i32) -> (i32, i32) {
    %c0_i32 = arith.constant 0 : i32
    %c0_i32_0 = arith.constant 0 : i32
    %c0_i32_1 = arith.constant 0 : i32
    return %c0_i32, %c0_i32_0 : i32, i32
  }
  func.func @transform_4(%arg0: i32, %arg1: i32) -> (i32, i32) {
    %c0_i32 = arith.constant 0 : i32
    %c0_i32_0 = arith.constant 0 : i32
    %c0_i32_1 = arith.constant 0 : i32
    return %c0_i32, %c0_i32_0 : i32, i32
  }
  func.func @transform_5(%arg0: i32, %arg1: i32) -> (i32, i32, i32) {
    %c0_i32 = arith.constant 0 : i32
    %c0_i32_0 = arith.constant 0 : i32
    return %arg0, %arg1, %c0_i32 : i32, i32, i32
  }
}

module attributes {stable_mosaic.version = 11 : i64} {
  func.func @_mm_bn_act_kernel(%arg0: i32, %arg1: memref<32x128xbf16, #tpu.memory_space<vmem>>, %arg2: memref<128x256xbf16, #tpu.memory_space<vmem>>, %arg3: memref<1x256xf32, #tpu.memory_space<vmem>>, %arg4: memref<1x256xf32, #tpu.memory_space<vmem>>, %arg5: memref<32x256xbf16, #tpu.memory_space<vmem>>) attributes {dimension_semantics = [#tpu.dimension_semantics<parallel>], iteration_bounds = array<i64: 1>, scalar_prefetch = 0 : i64, scratch_operands = 0 : i64, tpu.core_type = #tpu.core_type<tc>, window_params = [{transform_indices = @transform_0, window_bounds = array<i64: 32, 128>}, {pipeline_mode = #tpu.pipeline_mode<synchronous>, transform_indices = @transform_1, window_bounds = array<i64: 128, 256>}, {pipeline_mode = #tpu.pipeline_mode<synchronous>, transform_indices = @transform_2, window_bounds = array<i64: 1, 256>}, {pipeline_mode = #tpu.pipeline_mode<synchronous>, transform_indices = @transform_3, window_bounds = array<i64: 1, 256>}, {transform_indices = @transform_4, window_bounds = array<i64: 32, 256>}]} {
    %c0 = arith.constant 0 : index
    %c0_0 = arith.constant 0 : index
    %0 = vector.load %arg1[%c0, %c0_0] : memref<32x128xbf16, #tpu.memory_space<vmem>>, vector<32x128xbf16>
    %c0_1 = arith.constant 0 : index
    %c0_2 = arith.constant 0 : index
    %1 = vector.load %arg2[%c0_1, %c0_2] : memref<128x256xbf16, #tpu.memory_space<vmem>>, vector<128x256xbf16>
    %cst = arith.constant dense<0.000000e+00> : vector<32x256xf32>
    %2 = tpu.matmul %0, %1, %cst {dimension_numbers = #tpu.dot_dimension_numbers<[1], [0], [0], [1], [0, 0, 1, 1], [], []>} : vector<32x128xbf16>, vector<128x256xbf16>, vector<32x256xf32> -> vector<32x256xf32>
    %c0_3 = arith.constant 0 : index
    %c0_4 = arith.constant 0 : index
    %3 = vector.load %arg3[%c0_3, %c0_4] : memref<1x256xf32, #tpu.memory_space<vmem>>, vector<1x256xf32>
    %4 = vector.broadcast %3 : vector<1x256xf32> to vector<32x256xf32>
    %5 = arith.mulf %2, %4 : vector<32x256xf32>
    %c0_5 = arith.constant 0 : index
    %c0_6 = arith.constant 0 : index
    %6 = vector.load %arg4[%c0_5, %c0_6] : memref<1x256xf32, #tpu.memory_space<vmem>>, vector<1x256xf32>
    %7 = vector.broadcast %6 : vector<1x256xf32> to vector<32x256xf32>
    %8 = arith.addf %5, %7 : vector<32x256xf32>
    %9 = arith.negf %8 : vector<32x256xf32>
    %10 = math.exp %9 : vector<32x256xf32>
    %cst_7 = arith.constant 1.000000e+00 : f32
    %11 = vector.broadcast %cst_7 : f32 to vector<32x256xf32>
    %12 = arith.addf %11, %10 : vector<32x256xf32>
    %13 = arith.divf %11, %12 : vector<32x256xf32>
    %14 = arith.mulf %8, %13 : vector<32x256xf32>
    %15 = arith.truncf %14 : vector<32x256xf32> to vector<32x256xbf16>
    %c0_8 = arith.constant 0 : index
    %c0_9 = arith.constant 0 : index
    %16 = vector.load %arg5[%c0_8, %c0_9] : memref<32x256xbf16, #tpu.memory_space<vmem>>, vector<32x256xbf16>
    tpu.vector_store %arg5[%c0_8, %c0_9], %15 {strides = array<i32>} : memref<32x256xbf16, #tpu.memory_space<vmem>>, vector<32x256xbf16>,
    return
  }
  func.func @transform_0(%arg0: i32) -> (i32, i32) {
    %c0_i32 = arith.constant 0 : i32
    %c0_i32_0 = arith.constant 0 : i32
    return %arg0, %c0_i32 : i32, i32
  }
  func.func @transform_1(%arg0: i32) -> (i32, i32) {
    %c0_i32 = arith.constant 0 : i32
    %c0_i32_0 = arith.constant 0 : i32
    %c0_i32_1 = arith.constant 0 : i32
    return %c0_i32, %c0_i32_0 : i32, i32
  }
  func.func @transform_2(%arg0: i32) -> (i32, i32) {
    %c0_i32 = arith.constant 0 : i32
    %c0_i32_0 = arith.constant 0 : i32
    %c0_i32_1 = arith.constant 0 : i32
    return %c0_i32, %c0_i32_0 : i32, i32
  }
  func.func @transform_3(%arg0: i32) -> (i32, i32) {
    %c0_i32 = arith.constant 0 : i32
    %c0_i32_0 = arith.constant 0 : i32
    %c0_i32_1 = arith.constant 0 : i32
    return %c0_i32, %c0_i32_0 : i32, i32
  }
  func.func @transform_4(%arg0: i32) -> (i32, i32) {
    %c0_i32 = arith.constant 0 : i32
    %c0_i32_0 = arith.constant 0 : i32
    return %arg0, %c0_i32 : i32, i32
  }
}

module attributes {stable_mosaic.version = 11 : i64} {
  func.func @_mm_bn_act_gate_kernel(%arg0: i32, %arg1: i32, %arg2: memref<1x16x256xbf16, #tpu.memory_space<vmem>>, %arg3: memref<1x1x256xf32, #tpu.memory_space<vmem>>, %arg4: memref<256x128xbf16, #tpu.memory_space<vmem>>, %arg5: memref<1x128xf32, #tpu.memory_space<vmem>>, %arg6: memref<1x128xf32, #tpu.memory_space<vmem>>, %arg7: memref<1x16x128xbf16, #tpu.memory_space<vmem>>) attributes {dimension_semantics = [#tpu.dimension_semantics<parallel>, #tpu.dimension_semantics<parallel>], iteration_bounds = array<i64: 2, 1>, scalar_prefetch = 0 : i64, scratch_operands = 0 : i64, tpu.core_type = #tpu.core_type<tc>, window_params = [{transform_indices = @transform_0, window_bounds = array<i64: 1, 16, 256>}, {transform_indices = @transform_1, window_bounds = array<i64: 1, 1, 256>}, {pipeline_mode = #tpu.pipeline_mode<synchronous>, transform_indices = @transform_2, window_bounds = array<i64: 256, 128>}, {pipeline_mode = #tpu.pipeline_mode<synchronous>, transform_indices = @transform_3, window_bounds = array<i64: 1, 128>}, {pipeline_mode = #tpu.pipeline_mode<synchronous>, transform_indices = @transform_4, window_bounds = array<i64: 1, 128>}, {transform_indices = @transform_5, window_bounds = array<i64: 1, 16, 128>}]} {
    %c0 = arith.constant 0 : index
    %c0_0 = arith.constant 0 : index
    %c0_1 = arith.constant 0 : index
    %0 = vector.load %arg2[%c0, %c0_0, %c0_1] : memref<1x16x256xbf16, #tpu.memory_space<vmem>>, vector<1x16x256xbf16>
    %1 = vector.shape_cast %0 : vector<1x16x256xbf16> to vector<16x256xbf16>
    %c0_2 = arith.constant 0 : index
    %c0_3 = arith.constant 0 : index
    %c0_4 = arith.constant 0 : index
    %2 = vector.load %arg3[%c0_2, %c0_3, %c0_4] : memref<1x1x256xf32, #tpu.memory_space<vmem>>, vector<1x1x256xf32>
    %3 = vector.shape_cast %2 : vector<1x1x256xf32> to vector<1x256xf32>
    %4 = arith.truncf %3 : vector<1x256xf32> to vector<1x256xbf16>
    %5 = vector.broadcast %4 : vector<1x256xbf16> to vector<16x256xbf16>
    %6 = arith.mulf %1, %5 : vector<16x256xbf16>
    %c0_5 = arith.constant 0 : index
    %c0_6 = arith.constant 0 : index
    %7 = vector.load %arg4[%c0_5, %c0_6] : memref<256x128xbf16, #tpu.memory_space<vmem>>, vector<256x128xbf16>
    %cst = arith.constant dense<0.000000e+00> : vector<16x128xf32>
    %8 = tpu.matmul %6, %7, %cst {dimension_numbers = #tpu.dot_dimension_numbers<[1], [0], [0], [1], [0, 0, 1, 1], [], []>} : vector<16x256xbf16>, vector<256x128xbf16>, vector<16x128xf32> -> vector<16x128xf32>
    %c0_7 = arith.constant 0 : index
    %c0_8 = arith.constant 0 : index
    %9 = vector.load %arg5[%c0_7, %c0_8] : memref<1x128xf32, #tpu.memory_space<vmem>>, vector<1x128xf32>
    %10 = vector.broadcast %9 : vector<1x128xf32> to vector<16x128xf32>
    %11 = arith.mulf %8, %10 : vector<16x128xf32>
    %c0_9 = arith.constant 0 : index
    %c0_10 = arith.constant 0 : index
    %12 = vector.load %arg6[%c0_9, %c0_10] : memref<1x128xf32, #tpu.memory_space<vmem>>, vector<1x128xf32>
    %13 = vector.broadcast %12 : vector<1x128xf32> to vector<16x128xf32>
    %14 = arith.addf %11, %13 : vector<16x128xf32>
    %15 = arith.truncf %14 : vector<16x128xf32> to vector<16x128xbf16>
    %c0_11 = arith.constant 0 : index
    %c0_12 = arith.constant 0 : index
    %c0_13 = arith.constant 0 : index
    %16 = vector.load %arg7[%c0_11, %c0_12, %c0_13] : memref<1x16x128xbf16, #tpu.memory_space<vmem>>, vector<1x16x128xbf16>
    %17 = vector.shape_cast %16 : vector<1x16x128xbf16> to vector<16x128xbf16>
    %18 = vector.shape_cast %15 : vector<16x128xbf16> to vector<1x16x128xbf16>
    tpu.vector_store %arg7[%c0_11, %c0_12, %c0_13], %18 {strides = array<i32>} : memref<1x16x128xbf16, #tpu.memory_space<vmem>>, vector<1x16x128xbf16>,
    return
  }
  func.func @transform_0(%arg0: i32, %arg1: i32) -> (i32, i32, i32) {
    %c0_i32 = arith.constant 0 : i32
    %c0_i32_0 = arith.constant 0 : i32
    return %arg0, %arg1, %c0_i32 : i32, i32, i32
  }
  func.func @transform_1(%arg0: i32, %arg1: i32) -> (i32, i32, i32) {
    %c0_i32 = arith.constant 0 : i32
    %c0_i32_0 = arith.constant 0 : i32
    %c0_i32_1 = arith.constant 0 : i32
    return %arg0, %c0_i32, %c0_i32_0 : i32, i32, i32
  }
  func.func @transform_2(%arg0: i32, %arg1: i32) -> (i32, i32) {
    %c0_i32 = arith.constant 0 : i32
    %c0_i32_0 = arith.constant 0 : i32
    %c0_i32_1 = arith.constant 0 : i32
    return %c0_i32, %c0_i32_0 : i32, i32
  }
  func.func @transform_3(%arg0: i32, %arg1: i32) -> (i32, i32) {
    %c0_i32 = arith.constant 0 : i32
    %c0_i32_0 = arith.constant 0 : i32
    %c0_i32_1 = arith.constant 0 : i32
    return %c0_i32, %c0_i32_0 : i32, i32
  }
  func.func @transform_4(%arg0: i32, %arg1: i32) -> (i32, i32) {
    %c0_i32 = arith.constant 0 : i32
    %c0_i32_0 = arith.constant 0 : i32
    %c0_i32_1 = arith.constant 0 : i32
    return %c0_i32, %c0_i32_0 : i32, i32
  }
  func.func @transform_5(%arg0: i32, %arg1: i32) -> (i32, i32, i32) {
    %c0_i32 = arith.constant 0 : i32
    %c0_i32_0 = arith.constant 0 : i32
    return %arg0, %arg1, %c0_i32 : i32, i32, i32
  }
}

module attributes {stable_mosaic.version = 11 : i64} {
  func.func @_dw_bn_silu_se_kernel(%arg0: i32, %arg1: i32, %arg2: memref<1x4x6x256xbf16, #tpu.memory_space<vmem>>, %arg3: memref<1x1x6x256xbf16, #tpu.memory_space<vmem>>, %arg4: memref<1x1x6x256xbf16, #tpu.memory_space<vmem>>, %arg5: memref<9x256xf32, #tpu.memory_space<vmem>>, %arg6: memref<1x256xf32, #tpu.memory_space<vmem>>, %arg7: memref<1x256xf32, #tpu.memory_space<vmem>>, %arg8: memref<8x256xf32, #tpu.memory_space<vmem>>, %arg9: memref<8x256xf32, #tpu.memory_space<vmem>>, %arg10: memref<1x4x4x256xbf16, #tpu.memory_space<vmem>>, %arg11: memref<1x1x256xf32, #tpu.memory_space<vmem>>, %arg12: memref<1x256xf32, #tpu.memory_space<vmem>>) attributes {dimension_semantics = [#tpu.dimension_semantics<parallel>, #tpu.dimension_semantics<arbitrary>], iteration_bounds = array<i64: 2, 1>, scalar_prefetch = 0 : i64, scratch_operands = 1 : i64, tpu.core_type = #tpu.core_type<tc>, window_params = [{transform_indices = @transform_0, window_bounds = array<i64: 1, 4, 6, 256>}, {transform_indices = @transform_1, window_bounds = array<i64: 1, 1, 6, 256>}, {transform_indices = @transform_2, window_bounds = array<i64: 1, 1, 6, 256>}, {pipeline_mode = #tpu.pipeline_mode<synchronous>, transform_indices = @transform_3, window_bounds = array<i64: 9, 256>}, {pipeline_mode = #tpu.pipeline_mode<synchronous>, transform_indices = @transform_4, window_bounds = array<i64: 1, 256>}, {pipeline_mode = #tpu.pipeline_mode<synchronous>, transform_indices = @transform_5, window_bounds = array<i64: 1, 256>}, {pipeline_mode = #tpu.pipeline_mode<synchronous>, transform_indices = @transform_6, window_bounds = array<i64: 8, 256>}, {pipeline_mode = #tpu.pipeline_mode<synchronous>, transform_indices = @transform_7, window_bounds = array<i64: 8, 256>}, {transform_indices = @transform_8, window_bounds = array<i64: 1, 4, 4, 256>}, {transform_indices = @transform_9, window_bounds = array<i64: 1, 1, 256>}]} {
    %c0 = arith.constant 0 : index
    %c0_0 = arith.constant 0 : index
    %0 = vector.load %arg5[%c0, %c0_0] : memref<9x256xf32, #tpu.memory_space<vmem>>, vector<9x256xf32>
    %c0_1 = arith.constant 0 : index
    %c0_2 = arith.constant 0 : index
    %1 = vector.load %arg6[%c0_1, %c0_2] : memref<1x256xf32, #tpu.memory_space<vmem>>, vector<1x256xf32>
    %c0_3 = arith.constant 0 : index
    %c0_4 = arith.constant 0 : index
    %2 = vector.load %arg7[%c0_3, %c0_4] : memref<1x256xf32, #tpu.memory_space<vmem>>, vector<1x256xf32>
    %c0_i32 = arith.constant 0 : i32
    %3 = arith.cmpi eq, %arg1, %c0_i32 : i32
    %4 = arith.extui %3 : i1 to i32
    %c0_i32_5 = arith.constant 0 : i32
    %5 = arith.cmpi ne, %4, %c0_i32_5 : i32
    scf.if %5 {
      %cst_181 = arith.constant 0.000000e+00 : f32
      %337 = vector.broadcast %cst_181 : f32 to vector<1x256xf32>
      %c0_182 = arith.constant 0 : index
      %c0_183 = arith.constant 0 : index
      %338 = vector.load %arg12[%c0_182, %c0_183] : memref<1x256xf32, #tpu.memory_space<vmem>>, vector<1x256xf32>
      tpu.vector_store %arg12[%c0_182, %c0_183], %337 {strides = array<i32>} : memref<1x256xf32, #tpu.memory_space<vmem>>, vector<1x256xf32>,
    } else {
    }
    %cst = arith.constant 0.000000e+00 : f32
    %6 = vector.broadcast %cst : f32 to vector<1x256xf32>
    %cst_6 = arith.constant 0.000000e+00 : f32
    %7 = vector.broadcast %cst_6 : f32 to vector<4x256xf32>
    %c0_7 = arith.constant 0 : index
    %c0_8 = arith.constant 0 : index
    %c0_9 = arith.constant 0 : index
    %c0_10 = arith.constant 0 : index
    %8 = vector.load %arg2[%c0_7, %c0_8, %c0_9, %c0_10] : memref<1x4x6x256xbf16, #tpu.memory_space<vmem>>, vector<1x1x4x256xbf16>
    %9 = vector.shape_cast %8 : vector<1x1x4x256xbf16> to vector<4x256xbf16>
    %10 = vector.extract_strided_slice %0 {offsets = [0, 0], sizes = [1, 256], strides = [1, 1]} : vector<9x256xf32> to vector<1x256xf32>
    %11 = arith.extf %9 : vector<4x256xbf16> to vector<4x256xf32>
    %12 = vector.broadcast %10 : vector<1x256xf32> to vector<4x256xf32>
    %13 = arith.mulf %11, %12 : vector<4x256xf32>
    %14 = arith.addf %7, %13 : vector<4x256xf32>
    %c0_11 = arith.constant 0 : index
    %c0_12 = arith.constant 0 : index
    %c1 = arith.constant 1 : index
    %c0_13 = arith.constant 0 : index
    %15 = vector.load %arg2[%c0_11, %c0_12, %c1, %c0_13] : memref<1x4x6x256xbf16, #tpu.memory_space<vmem>>, vector<1x1x4x256xbf16>
    %16 = vector.shape_cast %15 : vector<1x1x4x256xbf16> to vector<4x256xbf16>
    %17 = vector.extract_strided_slice %0 {offsets = [1, 0], sizes = [1, 256], strides = [1, 1]} : vector<9x256xf32> to vector<1x256xf32>
    %18 = arith.extf %16 : vector<4x256xbf16> to vector<4x256xf32>
    %19 = vector.broadcast %17 : vector<1x256xf32> to vector<4x256xf32>
    %20 = arith.mulf %18, %19 : vector<4x256xf32>
    %21 = arith.addf %14, %20 : vector<4x256xf32>
    %c0_14 = arith.constant 0 : index
    %c0_15 = arith.constant 0 : index
    %c2 = arith.constant 2 : index
    %c0_16 = arith.constant 0 : index
    %22 = vector.load %arg2[%c0_14, %c0_15, %c2, %c0_16] : memref<1x4x6x256xbf16, #tpu.memory_space<vmem>>, vector<1x1x4x256xbf16>
    %23 = vector.shape_cast %22 : vector<1x1x4x256xbf16> to vector<4x256xbf16>
    %24 = vector.extract_strided_slice %0 {offsets = [2, 0], sizes = [1, 256], strides = [1, 1]} : vector<9x256xf32> to vector<1x256xf32>
    %25 = arith.extf %23 : vector<4x256xbf16> to vector<4x256xf32>
    %26 = vector.broadcast %24 : vector<1x256xf32> to vector<4x256xf32>
    %27 = arith.mulf %25, %26 : vector<4x256xf32>
    %28 = arith.addf %21, %27 : vector<4x256xf32>
    %c0_17 = arith.constant 0 : index
    %c1_18 = arith.constant 1 : index
    %c0_19 = arith.constant 0 : index
    %c0_20 = arith.constant 0 : index
    %29 = vector.load %arg2[%c0_17, %c1_18, %c0_19, %c0_20] : memref<1x4x6x256xbf16, #tpu.memory_space<vmem>>, vector<1x1x4x256xbf16>
    %30 = vector.shape_cast %29 : vector<1x1x4x256xbf16> to vector<4x256xbf16>
    %31 = vector.extract_strided_slice %0 {offsets = [3, 0], sizes = [1, 256], strides = [1, 1]} : vector<9x256xf32> to vector<1x256xf32>
    %32 = arith.extf %30 : vector<4x256xbf16> to vector<4x256xf32>
    %33 = vector.broadcast %31 : vector<1x256xf32> to vector<4x256xf32>
    %34 = arith.mulf %32, %33 : vector<4x256xf32>
    %35 = arith.addf %28, %34 : vector<4x256xf32>
    %c0_21 = arith.constant 0 : index
    %c1_22 = arith.constant 1 : index
    %c1_23 = arith.constant 1 : index
    %c0_24 = arith.constant 0 : index
    %36 = vector.load %arg2[%c0_21, %c1_22, %c1_23, %c0_24] : memref<1x4x6x256xbf16, #tpu.memory_space<vmem>>, vector<1x1x4x256xbf16>
    %37 = vector.shape_cast %36 : vector<1x1x4x256xbf16> to vector<4x256xbf16>
    %38 = vector.extract_strided_slice %0 {offsets = [4, 0], sizes = [1, 256], strides = [1, 1]} : vector<9x256xf32> to vector<1x256xf32>
    %39 = arith.extf %37 : vector<4x256xbf16> to vector<4x256xf32>
    %40 = vector.broadcast %38 : vector<1x256xf32> to vector<4x256xf32>
    %41 = arith.mulf %39, %40 : vector<4x256xf32>
    %42 = arith.addf %35, %41 : vector<4x256xf32>
    %c0_25 = arith.constant 0 : index
    %c1_26 = arith.constant 1 : index
    %c2_27 = arith.constant 2 : index
    %c0_28 = arith.constant 0 : index
    %43 = vector.load %arg2[%c0_25, %c1_26, %c2_27, %c0_28] : memref<1x4x6x256xbf16, #tpu.memory_space<vmem>>, vector<1x1x4x256xbf16>
    %44 = vector.shape_cast %43 : vector<1x1x4x256xbf16> to vector<4x256xbf16>
    %45 = vector.extract_strided_slice %0 {offsets = [5, 0], sizes = [1, 256], strides = [1, 1]} : vector<9x256xf32> to vector<1x256xf32>
    %46 = arith.extf %44 : vector<4x256xbf16> to vector<4x256xf32>
    %47 = vector.broadcast %45 : vector<1x256xf32> to vector<4x256xf32>
    %48 = arith.mulf %46, %47 : vector<4x256xf32>
    %49 = arith.addf %42, %48 : vector<4x256xf32>
    %c0_29 = arith.constant 0 : index
    %c2_30 = arith.constant 2 : index
    %c0_31 = arith.constant 0 : index
    %c0_32 = arith.constant 0 : index
    %50 = vector.load %arg2[%c0_29, %c2_30, %c0_31, %c0_32] : memref<1x4x6x256xbf16, #tpu.memory_space<vmem>>, vector<1x1x4x256xbf16>
    %51 = vector.shape_cast %50 : vector<1x1x4x256xbf16> to vector<4x256xbf16>
    %52 = vector.extract_strided_slice %0 {offsets = [6, 0], sizes = [1, 256], strides = [1, 1]} : vector<9x256xf32> to vector<1x256xf32>
    %53 = arith.extf %51 : vector<4x256xbf16> to vector<4x256xf32>
    %54 = vector.broadcast %52 : vector<1x256xf32> to vector<4x256xf32>
    %55 = arith.mulf %53, %54 : vector<4x256xf32>
    %56 = arith.addf %49, %55 : vector<4x256xf32>
    %c0_33 = arith.constant 0 : index
    %c2_34 = arith.constant 2 : index
    %c1_35 = arith.constant 1 : index
    %c0_36 = arith.constant 0 : index
    %57 = vector.load %arg2[%c0_33, %c2_34, %c1_35, %c0_36] : memref<1x4x6x256xbf16, #tpu.memory_space<vmem>>, vector<1x1x4x256xbf16>
    %58 = vector.shape_cast %57 : vector<1x1x4x256xbf16> to vector<4x256xbf16>
    %59 = vector.extract_strided_slice %0 {offsets = [7, 0], sizes = [1, 256], strides = [1, 1]} : vector<9x256xf32> to vector<1x256xf32>
    %60 = arith.extf %58 : vector<4x256xbf16> to vector<4x256xf32>
    %61 = vector.broadcast %59 : vector<1x256xf32> to vector<4x256xf32>
    %62 = arith.mulf %60, %61 : vector<4x256xf32>
    %63 = arith.addf %56, %62 : vector<4x256xf32>
    %c0_37 = arith.constant 0 : index
    %c2_38 = arith.constant 2 : index
    %c2_39 = arith.constant 2 : index
    %c0_40 = arith.constant 0 : index
    %64 = vector.load %arg2[%c0_37, %c2_38, %c2_39, %c0_40] : memref<1x4x6x256xbf16, #tpu.memory_space<vmem>>, vector<1x1x4x256xbf16>
    %65 = vector.shape_cast %64 : vector<1x1x4x256xbf16> to vector<4x256xbf16>
    %66 = vector.extract_strided_slice %0 {offsets = [8, 0], sizes = [1, 256], strides = [1, 1]} : vector<9x256xf32> to vector<1x256xf32>
    %67 = arith.extf %65 : vector<4x256xbf16> to vector<4x256xf32>
    %68 = vector.broadcast %66 : vector<1x256xf32> to vector<4x256xf32>
    %69 = arith.mulf %67, %68 : vector<4x256xf32>
    %70 = arith.addf %63, %69 : vector<4x256xf32>
    %71 = vector.broadcast %1 : vector<1x256xf32> to vector<4x256xf32>
    %72 = arith.mulf %70, %71 : vector<4x256xf32>
    %73 = vector.broadcast %2 : vector<1x256xf32> to vector<4x256xf32>
    %74 = arith.addf %72, %73 : vector<4x256xf32>
    %75 = arith.negf %74 : vector<4x256xf32>
    %76 = math.exp %75 : vector<4x256xf32>
    %cst_41 = arith.constant 1.000000e+00 : f32
    %77 = vector.broadcast %cst_41 : f32 to vector<4x256xf32>
    %78 = arith.addf %77, %76 : vector<4x256xf32>
    %79 = arith.divf %77, %78 : vector<4x256xf32>
    %80 = arith.mulf %74, %79 : vector<4x256xf32>
    %81 = arith.truncf %80 : vector<4x256xf32> to vector<4x256xbf16>
    %c0_42 = arith.constant 0 : index
    %c0_43 = arith.constant 0 : index
    %c0_44 = arith.constant 0 : index
    %c0_45 = arith.constant 0 : index
    %82 = vector.load %arg10[%c0_42, %c0_43, %c0_44, %c0_45] : memref<1x4x4x256xbf16, #tpu.memory_space<vmem>>, vector<1x1x4x256xbf16>
    %83 = vector.shape_cast %82 : vector<1x1x4x256xbf16> to vector<4x256xbf16>
    %84 = vector.shape_cast %81 : vector<4x256xbf16> to vector<1x1x4x256xbf16>
    tpu.vector_store %arg10[%c0_42, %c0_43, %c0_44, %c0_45], %84 {strides = array<i32>} : memref<1x4x4x256xbf16, #tpu.memory_space<vmem>>, vector<1x1x4x256xbf16>,
    %cst_46 = arith.constant dense<0.000000e+00> : vector<256xf32>
    %85 = vector.multi_reduction <add>, %80, %cst_46 [0] : vector<4x256xf32> to vector<256xf32>
    %86 = vector.shape_cast %85 : vector<256xf32> to vector<1x256xf32>
    %87 = arith.addf %6, %86 : vector<1x256xf32>
    %cst_47 = arith.constant 0.000000e+00 : f32
    %88 = vector.broadcast %cst_47 : f32 to vector<4x256xf32>
    %c0_48 = arith.constant 0 : index
    %c1_49 = arith.constant 1 : index
    %c0_50 = arith.constant 0 : index
    %c0_51 = arith.constant 0 : index
    %89 = vector.load %arg2[%c0_48, %c1_49, %c0_50, %c0_51] : memref<1x4x6x256xbf16, #tpu.memory_space<vmem>>, vector<1x1x4x256xbf16>
    %90 = vector.shape_cast %89 : vector<1x1x4x256xbf16> to vector<4x256xbf16>
    %91 = vector.extract_strided_slice %0 {offsets = [0, 0], sizes = [1, 256], strides = [1, 1]} : vector<9x256xf32> to vector<1x256xf32>
    %92 = arith.extf %90 : vector<4x256xbf16> to vector<4x256xf32>
    %93 = vector.broadcast %91 : vector<1x256xf32> to vector<4x256xf32>
    %94 = arith.mulf %92, %93 : vector<4x256xf32>
    %95 = arith.addf %88, %94 : vector<4x256xf32>
    %c0_52 = arith.constant 0 : index
    %c1_53 = arith.constant 1 : index
    %c1_54 = arith.constant 1 : index
    %c0_55 = arith.constant 0 : index
    %96 = vector.load %arg2[%c0_52, %c1_53, %c1_54, %c0_55] : memref<1x4x6x256xbf16, #tpu.memory_space<vmem>>, vector<1x1x4x256xbf16>
    %97 = vector.shape_cast %96 : vector<1x1x4x256xbf16> to vector<4x256xbf16>
    %98 = vector.extract_strided_slice %0 {offsets = [1, 0], sizes = [1, 256], strides = [1, 1]} : vector<9x256xf32> to vector<1x256xf32>
    %99 = arith.extf %97 : vector<4x256xbf16> to vector<4x256xf32>
    %100 = vector.broadcast %98 : vector<1x256xf32> to vector<4x256xf32>
    %101 = arith.mulf %99, %100 : vector<4x256xf32>
    %102 = arith.addf %95, %101 : vector<4x256xf32>
    %c0_56 = arith.constant 0 : index
    %c1_57 = arith.constant 1 : index
    %c2_58 = arith.constant 2 : index
    %c0_59 = arith.constant 0 : index
    %103 = vector.load %arg2[%c0_56, %c1_57, %c2_58, %c0_59] : memref<1x4x6x256xbf16, #tpu.memory_space<vmem>>, vector<1x1x4x256xbf16>
    %104 = vector.shape_cast %103 : vector<1x1x4x256xbf16> to vector<4x256xbf16>
    %105 = vector.extract_strided_slice %0 {offsets = [2, 0], sizes = [1, 256], strides = [1, 1]} : vector<9x256xf32> to vector<1x256xf32>
    %106 = arith.extf %104 : vector<4x256xbf16> to vector<4x256xf32>
    %107 = vector.broadcast %105 : vector<1x256xf32> to vector<4x256xf32>
    %108 = arith.mulf %106, %107 : vector<4x256xf32>
    %109 = arith.addf %102, %108 : vector<4x256xf32>
    %c0_60 = arith.constant 0 : index
    %c2_61 = arith.constant 2 : index
    %c0_62 = arith.constant 0 : index
    %c0_63 = arith.constant 0 : index
    %110 = vector.load %arg2[%c0_60, %c2_61, %c0_62, %c0_63] : memref<1x4x6x256xbf16, #tpu.memory_space<vmem>>, vector<1x1x4x256xbf16>
    %111 = vector.shape_cast %110 : vector<1x1x4x256xbf16> to vector<4x256xbf16>
    %112 = vector.extract_strided_slice %0 {offsets = [3, 0], sizes = [1, 256], strides = [1, 1]} : vector<9x256xf32> to vector<1x256xf32>
    %113 = arith.extf %111 : vector<4x256xbf16> to vector<4x256xf32>
    %114 = vector.broadcast %112 : vector<1x256xf32> to vector<4x256xf32>
    %115 = arith.mulf %113, %114 : vector<4x256xf32>
    %116 = arith.addf %109, %115 : vector<4x256xf32>
    %c0_64 = arith.constant 0 : index
    %c2_65 = arith.constant 2 : index
    %c1_66 = arith.constant 1 : index
    %c0_67 = arith.constant 0 : index
    %117 = vector.load %arg2[%c0_64, %c2_65, %c1_66, %c0_67] : memref<1x4x6x256xbf16, #tpu.memory_space<vmem>>, vector<1x1x4x256xbf16>
    %118 = vector.shape_cast %117 : vector<1x1x4x256xbf16> to vector<4x256xbf16>
    %119 = vector.extract_strided_slice %0 {offsets = [4, 0], sizes = [1, 256], strides = [1, 1]} : vector<9x256xf32> to vector<1x256xf32>
    %120 = arith.extf %118 : vector<4x256xbf16> to vector<4x256xf32>
    %121 = vector.broadcast %119 : vector<1x256xf32> to vector<4x256xf32>
    %122 = arith.mulf %120, %121 : vector<4x256xf32>
    %123 = arith.addf %116, %122 : vector<4x256xf32>
    %c0_68 = arith.constant 0 : index
    %c2_69 = arith.constant 2 : index
    %c2_70 = arith.constant 2 : index
    %c0_71 = arith.constant 0 : index
    %124 = vector.load %arg2[%c0_68, %c2_69, %c2_70, %c0_71] : memref<1x4x6x256xbf16, #tpu.memory_space<vmem>>, vector<1x1x4x256xbf16>
    %125 = vector.shape_cast %124 : vector<1x1x4x256xbf16> to vector<4x256xbf16>
    %126 = vector.extract_strided_slice %0 {offsets = [5, 0], sizes = [1, 256], strides = [1, 1]} : vector<9x256xf32> to vector<1x256xf32>
    %127 = arith.extf %125 : vector<4x256xbf16> to vector<4x256xf32>
    %128 = vector.broadcast %126 : vector<1x256xf32> to vector<4x256xf32>
    %129 = arith.mulf %127, %128 : vector<4x256xf32>
    %130 = arith.addf %123, %129 : vector<4x256xf32>
    %c0_72 = arith.constant 0 : index
    %c3 = arith.constant 3 : index
    %c0_73 = arith.constant 0 : index
    %c0_74 = arith.constant 0 : index
    %131 = vector.load %arg2[%c0_72, %c3, %c0_73, %c0_74] : memref<1x4x6x256xbf16, #tpu.memory_space<vmem>>, vector<1x1x4x256xbf16>
    %132 = vector.shape_cast %131 : vector<1x1x4x256xbf16> to vector<4x256xbf16>
    %133 = vector.extract_strided_slice %0 {offsets = [6, 0], sizes = [1, 256], strides = [1, 1]} : vector<9x256xf32> to vector<1x256xf32>
    %134 = arith.extf %132 : vector<4x256xbf16> to vector<4x256xf32>
    %135 = vector.broadcast %133 : vector<1x256xf32> to vector<4x256xf32>
    %136 = arith.mulf %134, %135 : vector<4x256xf32>
    %137 = arith.addf %130, %136 : vector<4x256xf32>
    %c0_75 = arith.constant 0 : index
    %c3_76 = arith.constant 3 : index
    %c1_77 = arith.constant 1 : index
    %c0_78 = arith.constant 0 : index
    %138 = vector.load %arg2[%c0_75, %c3_76, %c1_77, %c0_78] : memref<1x4x6x256xbf16, #tpu.memory_space<vmem>>, vector<1x1x4x256xbf16>
    %139 = vector.shape_cast %138 : vector<1x1x4x256xbf16> to vector<4x256xbf16>
    %140 = vector.extract_strided_slice %0 {offsets = [7, 0], sizes = [1, 256], strides = [1, 1]} : vector<9x256xf32> to vector<1x256xf32>
    %141 = arith.extf %139 : vector<4x256xbf16> to vector<4x256xf32>
    %142 = vector.broadcast %140 : vector<1x256xf32> to vector<4x256xf32>
    %143 = arith.mulf %141, %142 : vector<4x256xf32>
    %144 = arith.addf %137, %143 : vector<4x256xf32>
    %c0_79 = arith.constant 0 : index
    %c3_80 = arith.constant 3 : index
    %c2_81 = arith.constant 2 : index
    %c0_82 = arith.constant 0 : index
    %145 = vector.load %arg2[%c0_79, %c3_80, %c2_81, %c0_82] : memref<1x4x6x256xbf16, #tpu.memory_space<vmem>>, vector<1x1x4x256xbf16>
    %146 = vector.shape_cast %145 : vector<1x1x4x256xbf16> to vector<4x256xbf16>
    %147 = vector.extract_strided_slice %0 {offsets = [8, 0], sizes = [1, 256], strides = [1, 1]} : vector<9x256xf32> to vector<1x256xf32>
    %148 = arith.extf %146 : vector<4x256xbf16> to vector<4x256xf32>
    %149 = vector.broadcast %147 : vector<1x256xf32> to vector<4x256xf32>
    %150 = arith.mulf %148, %149 : vector<4x256xf32>
    %151 = arith.addf %144, %150 : vector<4x256xf32>
    %152 = vector.broadcast %1 : vector<1x256xf32> to vector<4x256xf32>
    %153 = arith.mulf %151, %152 : vector<4x256xf32>
    %154 = vector.broadcast %2 : vector<1x256xf32> to vector<4x256xf32>
    %155 = arith.addf %153, %154 : vector<4x256xf32>
    %156 = arith.negf %155 : vector<4x256xf32>
    %157 = math.exp %156 : vector<4x256xf32>
    %cst_83 = arith.constant 1.000000e+00 : f32
    %158 = vector.broadcast %cst_83 : f32 to vector<4x256xf32>
    %159 = arith.addf %158, %157 : vector<4x256xf32>
    %160 = arith.divf %158, %159 : vector<4x256xf32>
    %161 = arith.mulf %155, %160 : vector<4x256xf32>
    %162 = arith.truncf %161 : vector<4x256xf32> to vector<4x256xbf16>
    %c0_84 = arith.constant 0 : index
    %c1_85 = arith.constant 1 : index
    %c0_86 = arith.constant 0 : index
    %c0_87 = arith.constant 0 : index
    %163 = vector.load %arg10[%c0_84, %c1_85, %c0_86, %c0_87] : memref<1x4x4x256xbf16, #tpu.memory_space<vmem>>, vector<1x1x4x256xbf16>
    %164 = vector.shape_cast %163 : vector<1x1x4x256xbf16> to vector<4x256xbf16>
    %165 = vector.shape_cast %162 : vector<4x256xbf16> to vector<1x1x4x256xbf16>
    tpu.vector_store %arg10[%c0_84, %c1_85, %c0_86, %c0_87], %165 {strides = array<i32>} : memref<1x4x4x256xbf16, #tpu.memory_space<vmem>>, vector<1x1x4x256xbf16>,
    %cst_88 = arith.constant dense<0.000000e+00> : vector<256xf32>
    %166 = vector.multi_reduction <add>, %161, %cst_88 [0] : vector<4x256xf32> to vector<256xf32>
    %167 = vector.shape_cast %166 : vector<256xf32> to vector<1x256xf32>
    %168 = arith.addf %87, %167 : vector<1x256xf32>
    %cst_89 = arith.constant 0.000000e+00 : f32
    %169 = vector.broadcast %cst_89 : f32 to vector<4x256xf32>
    %c0_90 = arith.constant 0 : index
    %c2_91 = arith.constant 2 : index
    %c0_92 = arith.constant 0 : index
    %c0_93 = arith.constant 0 : index
    %170 = vector.load %arg2[%c0_90, %c2_91, %c0_92, %c0_93] : memref<1x4x6x256xbf16, #tpu.memory_space<vmem>>, vector<1x1x4x256xbf16>
    %171 = vector.shape_cast %170 : vector<1x1x4x256xbf16> to vector<4x256xbf16>
    %172 = vector.extract_strided_slice %0 {offsets = [0, 0], sizes = [1, 256], strides = [1, 1]} : vector<9x256xf32> to vector<1x256xf32>
    %173 = arith.extf %171 : vector<4x256xbf16> to vector<4x256xf32>
    %174 = vector.broadcast %172 : vector<1x256xf32> to vector<4x256xf32>
    %175 = arith.mulf %173, %174 : vector<4x256xf32>
    %176 = arith.addf %169, %175 : vector<4x256xf32>
    %c0_94 = arith.constant 0 : index
    %c2_95 = arith.constant 2 : index
    %c1_96 = arith.constant 1 : index
    %c0_97 = arith.constant 0 : index
    %177 = vector.load %arg2[%c0_94, %c2_95, %c1_96, %c0_97] : memref<1x4x6x256xbf16, #tpu.memory_space<vmem>>, vector<1x1x4x256xbf16>
    %178 = vector.shape_cast %177 : vector<1x1x4x256xbf16> to vector<4x256xbf16>
    %179 = vector.extract_strided_slice %0 {offsets = [1, 0], sizes = [1, 256], strides = [1, 1]} : vector<9x256xf32> to vector<1x256xf32>
    %180 = arith.extf %178 : vector<4x256xbf16> to vector<4x256xf32>
    %181 = vector.broadcast %179 : vector<1x256xf32> to vector<4x256xf32>
    %182 = arith.mulf %180, %181 : vector<4x256xf32>
    %183 = arith.addf %176, %182 : vector<4x256xf32>
    %c0_98 = arith.constant 0 : index
    %c2_99 = arith.constant 2 : index
    %c2_100 = arith.constant 2 : index
    %c0_101 = arith.constant 0 : index
    %184 = vector.load %arg2[%c0_98, %c2_99, %c2_100, %c0_101] : memref<1x4x6x256xbf16, #tpu.memory_space<vmem>>, vector<1x1x4x256xbf16>
    %185 = vector.shape_cast %184 : vector<1x1x4x256xbf16> to vector<4x256xbf16>
    %186 = vector.extract_strided_slice %0 {offsets = [2, 0], sizes = [1, 256], strides = [1, 1]} : vector<9x256xf32> to vector<1x256xf32>
    %187 = arith.extf %185 : vector<4x256xbf16> to vector<4x256xf32>
    %188 = vector.broadcast %186 : vector<1x256xf32> to vector<4x256xf32>
    %189 = arith.mulf %187, %188 : vector<4x256xf32>
    %190 = arith.addf %183, %189 : vector<4x256xf32>
    %c0_102 = arith.constant 0 : index
    %c3_103 = arith.constant 3 : index
    %c0_104 = arith.constant 0 : index
    %c0_105 = arith.constant 0 : index
    %191 = vector.load %arg2[%c0_102, %c3_103, %c0_104, %c0_105] : memref<1x4x6x256xbf16, #tpu.memory_space<vmem>>, vector<1x1x4x256xbf16>
    %192 = vector.shape_cast %191 : vector<1x1x4x256xbf16> to vector<4x256xbf16>
    %193 = vector.extract_strided_slice %0 {offsets = [3, 0], sizes = [1, 256], strides = [1, 1]} : vector<9x256xf32> to vector<1x256xf32>
    %194 = arith.extf %192 : vector<4x256xbf16> to vector<4x256xf32>
    %195 = vector.broadcast %193 : vector<1x256xf32> to vector<4x256xf32>
    %196 = arith.mulf %194, %195 : vector<4x256xf32>
    %197 = arith.addf %190, %196 : vector<4x256xf32>
    %c0_106 = arith.constant 0 : index
    %c3_107 = arith.constant 3 : index
    %c1_108 = arith.constant 1 : index
    %c0_109 = arith.constant 0 : index
    %198 = vector.load %arg2[%c0_106, %c3_107, %c1_108, %c0_109] : memref<1x4x6x256xbf16, #tpu.memory_space<vmem>>, vector<1x1x4x256xbf16>
    %199 = vector.shape_cast %198 : vector<1x1x4x256xbf16> to vector<4x256xbf16>
    %200 = vector.extract_strided_slice %0 {offsets = [4, 0], sizes = [1, 256], strides = [1, 1]} : vector<9x256xf32> to vector<1x256xf32>
    %201 = arith.extf %199 : vector<4x256xbf16> to vector<4x256xf32>
    %202 = vector.broadcast %200 : vector<1x256xf32> to vector<4x256xf32>
    %203 = arith.mulf %201, %202 : vector<4x256xf32>
    %204 = arith.addf %197, %203 : vector<4x256xf32>
    %c0_110 = arith.constant 0 : index
    %c3_111 = arith.constant 3 : index
    %c2_112 = arith.constant 2 : index
    %c0_113 = arith.constant 0 : index
    %205 = vector.load %arg2[%c0_110, %c3_111, %c2_112, %c0_113] : memref<1x4x6x256xbf16, #tpu.memory_space<vmem>>, vector<1x1x4x256xbf16>
    %206 = vector.shape_cast %205 : vector<1x1x4x256xbf16> to vector<4x256xbf16>
    %207 = vector.extract_strided_slice %0 {offsets = [5, 0], sizes = [1, 256], strides = [1, 1]} : vector<9x256xf32> to vector<1x256xf32>
    %208 = arith.extf %206 : vector<4x256xbf16> to vector<4x256xf32>
    %209 = vector.broadcast %207 : vector<1x256xf32> to vector<4x256xf32>
    %210 = arith.mulf %208, %209 : vector<4x256xf32>
    %211 = arith.addf %204, %210 : vector<4x256xf32>
    %c0_114 = arith.constant 0 : index
    %c0_115 = arith.constant 0 : index
    %c0_116 = arith.constant 0 : index
    %c0_117 = arith.constant 0 : index
    %212 = vector.load %arg3[%c0_114, %c0_115, %c0_116, %c0_117] : memref<1x1x6x256xbf16, #tpu.memory_space<vmem>>, vector<1x1x4x256xbf16>
    %213 = vector.shape_cast %212 : vector<1x1x4x256xbf16> to vector<4x256xbf16>
    %214 = vector.extract_strided_slice %0 {offsets = [6, 0], sizes = [1, 256], strides = [1, 1]} : vector<9x256xf32> to vector<1x256xf32>
    %215 = arith.extf %213 : vector<4x256xbf16> to vector<4x256xf32>
    %216 = vector.broadcast %214 : vector<1x256xf32> to vector<4x256xf32>
    %217 = arith.mulf %215, %216 : vector<4x256xf32>
    %218 = arith.addf %211, %217 : vector<4x256xf32>
    %c0_118 = arith.constant 0 : index
    %c0_119 = arith.constant 0 : index
    %c1_120 = arith.constant 1 : index
    %c0_121 = arith.constant 0 : index
    %219 = vector.load %arg3[%c0_118, %c0_119, %c1_120, %c0_121] : memref<1x1x6x256xbf16, #tpu.memory_space<vmem>>, vector<1x1x4x256xbf16>
    %220 = vector.shape_cast %219 : vector<1x1x4x256xbf16> to vector<4x256xbf16>
    %221 = vector.extract_strided_slice %0 {offsets = [7, 0], sizes = [1, 256], strides = [1, 1]} : vector<9x256xf32> to vector<1x256xf32>
    %222 = arith.extf %220 : vector<4x256xbf16> to vector<4x256xf32>
    %223 = vector.broadcast %221 : vector<1x256xf32> to vector<4x256xf32>
    %224 = arith.mulf %222, %223 : vector<4x256xf32>
    %225 = arith.addf %218, %224 : vector<4x256xf32>
    %c0_122 = arith.constant 0 : index
    %c0_123 = arith.constant 0 : index
    %c2_124 = arith.constant 2 : index
    %c0_125 = arith.constant 0 : index
    %226 = vector.load %arg3[%c0_122, %c0_123, %c2_124, %c0_125] : memref<1x1x6x256xbf16, #tpu.memory_space<vmem>>, vector<1x1x4x256xbf16>
    %227 = vector.shape_cast %226 : vector<1x1x4x256xbf16> to vector<4x256xbf16>
    %228 = vector.extract_strided_slice %0 {offsets = [8, 0], sizes = [1, 256], strides = [1, 1]} : vector<9x256xf32> to vector<1x256xf32>
    %229 = arith.extf %227 : vector<4x256xbf16> to vector<4x256xf32>
    %230 = vector.broadcast %228 : vector<1x256xf32> to vector<4x256xf32>
    %231 = arith.mulf %229, %230 : vector<4x256xf32>
    %232 = arith.addf %225, %231 : vector<4x256xf32>
    %233 = vector.broadcast %1 : vector<1x256xf32> to vector<4x256xf32>
    %234 = arith.mulf %232, %233 : vector<4x256xf32>
    %235 = vector.broadcast %2 : vector<1x256xf32> to vector<4x256xf32>
    %236 = arith.addf %234, %235 : vector<4x256xf32>
    %237 = arith.negf %236 : vector<4x256xf32>
    %238 = math.exp %237 : vector<4x256xf32>
    %cst_126 = arith.constant 1.000000e+00 : f32
    %239 = vector.broadcast %cst_126 : f32 to vector<4x256xf32>
    %240 = arith.addf %239, %238 : vector<4x256xf32>
    %241 = arith.divf %239, %240 : vector<4x256xf32>
    %242 = arith.mulf %236, %241 : vector<4x256xf32>
    %243 = arith.truncf %242 : vector<4x256xf32> to vector<4x256xbf16>
    %c0_127 = arith.constant 0 : index
    %c2_128 = arith.constant 2 : index
    %c0_129 = arith.constant 0 : index
    %c0_130 = arith.constant 0 : index
    %244 = vector.load %arg10[%c0_127, %c2_128, %c0_129, %c0_130] : memref<1x4x4x256xbf16, #tpu.memory_space<vmem>>, vector<1x1x4x256xbf16>
    %245 = vector.shape_cast %244 : vector<1x1x4x256xbf16> to vector<4x256xbf16>
    %246 = vector.shape_cast %243 : vector<4x256xbf16> to vector<1x1x4x256xbf16>
    tpu.vector_store %arg10[%c0_127, %c2_128, %c0_129, %c0_130], %246 {strides = array<i32>} : memref<1x4x4x256xbf16, #tpu.memory_space<vmem>>, vector<1x1x4x256xbf16>,
    %cst_131 = arith.constant dense<0.000000e+00> : vector<256xf32>
    %247 = vector.multi_reduction <add>, %242, %cst_131 [0] : vector<4x256xf32> to vector<256xf32>
    %248 = vector.shape_cast %247 : vector<256xf32> to vector<1x256xf32>
    %249 = arith.addf %168, %248 : vector<1x256xf32>
    %cst_132 = arith.constant 0.000000e+00 : f32
    %250 = vector.broadcast %cst_132 : f32 to vector<4x256xf32>
    %c0_133 = arith.constant 0 : index
    %c3_134 = arith.constant 3 : index
    %c0_135 = arith.constant 0 : index
    %c0_136 = arith.constant 0 : index
    %251 = vector.load %arg2[%c0_133, %c3_134, %c0_135, %c0_136] : memref<1x4x6x256xbf16, #tpu.memory_space<vmem>>, vector<1x1x4x256xbf16>
    %252 = vector.shape_cast %251 : vector<1x1x4x256xbf16> to vector<4x256xbf16>
    %253 = vector.extract_strided_slice %0 {offsets = [0, 0], sizes = [1, 256], strides = [1, 1]} : vector<9x256xf32> to vector<1x256xf32>
    %254 = arith.extf %252 : vector<4x256xbf16> to vector<4x256xf32>
    %255 = vector.broadcast %253 : vector<1x256xf32> to vector<4x256xf32>
    %256 = arith.mulf %254, %255 : vector<4x256xf32>
    %257 = arith.addf %250, %256 : vector<4x256xf32>
    %c0_137 = arith.constant 0 : index
    %c3_138 = arith.constant 3 : index
    %c1_139 = arith.constant 1 : index
    %c0_140 = arith.constant 0 : index
    %258 = vector.load %arg2[%c0_137, %c3_138, %c1_139, %c0_140] : memref<1x4x6x256xbf16, #tpu.memory_space<vmem>>, vector<1x1x4x256xbf16>
    %259 = vector.shape_cast %258 : vector<1x1x4x256xbf16> to vector<4x256xbf16>
    %260 = vector.extract_strided_slice %0 {offsets = [1, 0], sizes = [1, 256], strides = [1, 1]} : vector<9x256xf32> to vector<1x256xf32>
    %261 = arith.extf %259 : vector<4x256xbf16> to vector<4x256xf32>
    %262 = vector.broadcast %260 : vector<1x256xf32> to vector<4x256xf32>
    %263 = arith.mulf %261, %262 : vector<4x256xf32>
    %264 = arith.addf %257, %263 : vector<4x256xf32>
    %c0_141 = arith.constant 0 : index
    %c3_142 = arith.constant 3 : index
    %c2_143 = arith.constant 2 : index
    %c0_144 = arith.constant 0 : index
    %265 = vector.load %arg2[%c0_141, %c3_142, %c2_143, %c0_144] : memref<1x4x6x256xbf16, #tpu.memory_space<vmem>>, vector<1x1x4x256xbf16>
    %266 = vector.shape_cast %265 : vector<1x1x4x256xbf16> to vector<4x256xbf16>
    %267 = vector.extract_strided_slice %0 {offsets = [2, 0], sizes = [1, 256], strides = [1, 1]} : vector<9x256xf32> to vector<1x256xf32>
    %268 = arith.extf %266 : vector<4x256xbf16> to vector<4x256xf32>
    %269 = vector.broadcast %267 : vector<1x256xf32> to vector<4x256xf32>
    %270 = arith.mulf %268, %269 : vector<4x256xf32>
    %271 = arith.addf %264, %270 : vector<4x256xf32>
    %c0_145 = arith.constant 0 : index
    %c0_146 = arith.constant 0 : index
    %c0_147 = arith.constant 0 : index
    %c0_148 = arith.constant 0 : index
    %272 = vector.load %arg3[%c0_145, %c0_146, %c0_147, %c0_148] : memref<1x1x6x256xbf16, #tpu.memory_space<vmem>>, vector<1x1x4x256xbf16>
    %273 = vector.shape_cast %272 : vector<1x1x4x256xbf16> to vector<4x256xbf16>
    %274 = vector.extract_strided_slice %0 {offsets = [3, 0], sizes = [1, 256], strides = [1, 1]} : vector<9x256xf32> to vector<1x256xf32>
    %275 = arith.extf %273 : vector<4x256xbf16> to vector<4x256xf32>
    %276 = vector.broadcast %274 : vector<1x256xf32> to vector<4x256xf32>
    %277 = arith.mulf %275, %276 : vector<4x256xf32>
    %278 = arith.addf %271, %277 : vector<4x256xf32>
    %c0_149 = arith.constant 0 : index
    %c0_150 = arith.constant 0 : index
    %c1_151 = arith.constant 1 : index
    %c0_152 = arith.constant 0 : index
    %279 = vector.load %arg3[%c0_149, %c0_150, %c1_151, %c0_152] : memref<1x1x6x256xbf16, #tpu.memory_space<vmem>>, vector<1x1x4x256xbf16>
    %280 = vector.shape_cast %279 : vector<1x1x4x256xbf16> to vector<4x256xbf16>
    %281 = vector.extract_strided_slice %0 {offsets = [4, 0], sizes = [1, 256], strides = [1, 1]} : vector<9x256xf32> to vector<1x256xf32>
    %282 = arith.extf %280 : vector<4x256xbf16> to vector<4x256xf32>
    %283 = vector.broadcast %281 : vector<1x256xf32> to vector<4x256xf32>
    %284 = arith.mulf %282, %283 : vector<4x256xf32>
    %285 = arith.addf %278, %284 : vector<4x256xf32>
    %c0_153 = arith.constant 0 : index
    %c0_154 = arith.constant 0 : index
    %c2_155 = arith.constant 2 : index
    %c0_156 = arith.constant 0 : index
    %286 = vector.load %arg3[%c0_153, %c0_154, %c2_155, %c0_156] : memref<1x1x6x256xbf16, #tpu.memory_space<vmem>>, vector<1x1x4x256xbf16>
    %287 = vector.shape_cast %286 : vector<1x1x4x256xbf16> to vector<4x256xbf16>
    %288 = vector.extract_strided_slice %0 {offsets = [5, 0], sizes = [1, 256], strides = [1, 1]} : vector<9x256xf32> to vector<1x256xf32>
    %289 = arith.extf %287 : vector<4x256xbf16> to vector<4x256xf32>
    %290 = vector.broadcast %288 : vector<1x256xf32> to vector<4x256xf32>
    %291 = arith.mulf %289, %290 : vector<4x256xf32>
    %292 = arith.addf %285, %291 : vector<4x256xf32>
    %c0_157 = arith.constant 0 : index
    %c0_158 = arith.constant 0 : index
    %c0_159 = arith.constant 0 : index
    %c0_160 = arith.constant 0 : index
    %293 = vector.load %arg4[%c0_157, %c0_158, %c0_159, %c0_160] : memref<1x1x6x256xbf16, #tpu.memory_space<vmem>>, vector<1x1x4x256xbf16>
    %294 = vector.shape_cast %293 : vector<1x1x4x256xbf16> to vector<4x256xbf16>
    %295 = vector.extract_strided_slice %0 {offsets = [6, 0], sizes = [1, 256], strides = [1, 1]} : vector<9x256xf32> to vector<1x256xf32>
    %296 = arith.extf %294 : vector<4x256xbf16> to vector<4x256xf32>
    %297 = vector.broadcast %295 : vector<1x256xf32> to vector<4x256xf32>
    %298 = arith.mulf %296, %297 : vector<4x256xf32>
    %299 = arith.addf %292, %298 : vector<4x256xf32>
    %c0_161 = arith.constant 0 : index
    %c0_162 = arith.constant 0 : index
    %c1_163 = arith.constant 1 : index
    %c0_164 = arith.constant 0 : index
    %300 = vector.load %arg4[%c0_161, %c0_162, %c1_163, %c0_164] : memref<1x1x6x256xbf16, #tpu.memory_space<vmem>>, vector<1x1x4x256xbf16>
    %301 = vector.shape_cast %300 : vector<1x1x4x256xbf16> to vector<4x256xbf16>
    %302 = vector.extract_strided_slice %0 {offsets = [7, 0], sizes = [1, 256], strides = [1, 1]} : vector<9x256xf32> to vector<1x256xf32>
    %303 = arith.extf %301 : vector<4x256xbf16> to vector<4x256xf32>
    %304 = vector.broadcast %302 : vector<1x256xf32> to vector<4x256xf32>
    %305 = arith.mulf %303, %304 : vector<4x256xf32>
    %306 = arith.addf %299, %305 : vector<4x256xf32>
    %c0_165 = arith.constant 0 : index
    %c0_166 = arith.constant 0 : index
    %c2_167 = arith.constant 2 : index
    %c0_168 = arith.constant 0 : index
    %307 = vector.load %arg4[%c0_165, %c0_166, %c2_167, %c0_168] : memref<1x1x6x256xbf16, #tpu.memory_space<vmem>>, vector<1x1x4x256xbf16>
    %308 = vector.shape_cast %307 : vector<1x1x4x256xbf16> to vector<4x256xbf16>
    %309 = vector.extract_strided_slice %0 {offsets = [8, 0], sizes = [1, 256], strides = [1, 1]} : vector<9x256xf32> to vector<1x256xf32>
    %310 = arith.extf %308 : vector<4x256xbf16> to vector<4x256xf32>
    %311 = vector.broadcast %309 : vector<1x256xf32> to vector<4x256xf32>
    %312 = arith.mulf %310, %311 : vector<4x256xf32>
    %313 = arith.addf %306, %312 : vector<4x256xf32>
    %314 = vector.broadcast %1 : vector<1x256xf32> to vector<4x256xf32>
    %315 = arith.mulf %313, %314 : vector<4x256xf32>
    %316 = vector.broadcast %2 : vector<1x256xf32> to vector<4x256xf32>
    %317 = arith.addf %315, %316 : vector<4x256xf32>
    %318 = arith.negf %317 : vector<4x256xf32>
    %319 = math.exp %318 : vector<4x256xf32>
    %cst_169 = arith.constant 1.000000e+00 : f32
    %320 = vector.broadcast %cst_169 : f32 to vector<4x256xf32>
    %321 = arith.addf %320, %319 : vector<4x256xf32>
    %322 = arith.divf %320, %321 : vector<4x256xf32>
    %323 = arith.mulf %317, %322 : vector<4x256xf32>
    %324 = arith.truncf %323 : vector<4x256xf32> to vector<4x256xbf16>
    %c0_170 = arith.constant 0 : index
    %c3_171 = arith.constant 3 : index
    %c0_172 = arith.constant 0 : index
    %c0_173 = arith.constant 0 : index
    %325 = vector.load %arg10[%c0_170, %c3_171, %c0_172, %c0_173] : memref<1x4x4x256xbf16, #tpu.memory_space<vmem>>, vector<1x1x4x256xbf16>
    %326 = vector.shape_cast %325 : vector<1x1x4x256xbf16> to vector<4x256xbf16>
    %327 = vector.shape_cast %324 : vector<4x256xbf16> to vector<1x1x4x256xbf16>
    tpu.vector_store %arg10[%c0_170, %c3_171, %c0_172, %c0_173], %327 {strides = array<i32>} : memref<1x4x4x256xbf16, #tpu.memory_space<vmem>>, vector<1x1x4x256xbf16>,
    %cst_174 = arith.constant dense<0.000000e+00> : vector<256xf32>
    %328 = vector.multi_reduction <add>, %323, %cst_174 [0] : vector<4x256xf32> to vector<256xf32>
    %329 = vector.shape_cast %328 : vector<256xf32> to vector<1x256xf32>
    %330 = arith.addf %249, %329 : vector<1x256xf32>
    %c0_175 = arith.constant 0 : index
    %c0_176 = arith.constant 0 : index
    %331 = vector.load %arg12[%c0_175, %c0_176] : memref<1x256xf32, #tpu.memory_space<vmem>>, vector<1x256xf32>
    %332 = arith.addf %331, %330 : vector<1x256xf32>
    %c0_177 = arith.constant 0 : index
    %c0_178 = arith.constant 0 : index
    %333 = vector.load %arg12[%c0_177, %c0_178] : memref<1x256xf32, #tpu.memory_space<vmem>>, vector<1x256xf32>
    tpu.vector_store %arg12[%c0_177, %c0_178], %332 {strides = array<i32>} : memref<1x256xf32, #tpu.memory_space<vmem>>, vector<1x256xf32>,
    %c0_i32_179 = arith.constant 0 : i32
    %334 = arith.cmpi eq, %arg1, %c0_i32_179 : i32
    %335 = arith.extui %334 : i1 to i32
    %c0_i32_180 = arith.constant 0 : i32
    %336 = arith.cmpi ne, %335, %c0_i32_180 : i32
    scf.if %336 {
      %c0_181 = arith.constant 0 : index
      %c0_182 = arith.constant 0 : index
      %337 = vector.load %arg12[%c0_181, %c0_182] : memref<1x256xf32, #tpu.memory_space<vmem>>, vector<1x256xf32>
      %cst_183 = arith.constant 6.250000e-02 : f32
      %338 = vector.broadcast %cst_183 : f32 to vector<1x256xf32>
      %339 = arith.mulf %337, %338 : vector<1x256xf32>
      %c0_184 = arith.constant 0 : index
      %c0_185 = arith.constant 0 : index
      %340 = vector.load %arg8[%c0_184, %c0_185] : memref<8x256xf32, #tpu.memory_space<vmem>>, vector<8x256xf32>
      %341 = vector.broadcast %339 : vector<1x256xf32> to vector<8x256xf32>
      %342 = arith.mulf %341, %340 : vector<8x256xf32>
      %cst_186 = arith.constant dense<0.000000e+00> : vector<8xf32>
      %343 = vector.multi_reduction <add>, %342, %cst_186 [1] : vector<8x256xf32> to vector<8xf32>
      %344 = vector.shape_cast %343 : vector<8xf32> to vector<8x1xf32>
      %345 = arith.negf %344 : vector<8x1xf32>
      %346 = math.exp %345 : vector<8x1xf32>
      %cst_187 = arith.constant 1.000000e+00 : f32
      %347 = vector.broadcast %cst_187 : f32 to vector<8x1xf32>
      %348 = arith.addf %347, %346 : vector<8x1xf32>
      %349 = arith.divf %347, %348 : vector<8x1xf32>
      %350 = arith.mulf %344, %349 : vector<8x1xf32>
      %c0_188 = arith.constant 0 : index
      %c0_189 = arith.constant 0 : index
      %351 = vector.load %arg9[%c0_188, %c0_189] : memref<8x256xf32, #tpu.memory_space<vmem>>, vector<8x256xf32>
      %352 = vector.broadcast %350 : vector<8x1xf32> to vector<8x256xf32>
      %353 = arith.mulf %352, %351 : vector<8x256xf32>
      %cst_190 = arith.constant dense<0.000000e+00> : vector<256xf32>
      %354 = vector.multi_reduction <add>, %353, %cst_190 [0] : vector<8x256xf32> to vector<256xf32>
      %355 = vector.shape_cast %354 : vector<256xf32> to vector<1x256xf32>
      %356 = arith.negf %355 : vector<1x256xf32>
      %357 = math.exp %356 : vector<1x256xf32>
      %cst_191 = arith.constant 1.000000e+00 : f32
      %358 = vector.broadcast %cst_191 : f32 to vector<1x256xf32>
      %359 = arith.addf %358, %357 : vector<1x256xf32>
      %360 = arith.divf %358, %359 : vector<1x256xf32>
      %361 = vector.shape_cast %360 : vector<1x256xf32> to vector<1x1x256xf32>
      %c0_192 = arith.constant 0 : index
      %c0_193 = arith.constant 0 : index
      %c0_194 = arith.constant 0 : index
      %362 = vector.load %arg11[%c0_192, %c0_193, %c0_194] : memref<1x1x256xf32, #tpu.memory_space<vmem>>, vector<1x1x256xf32>
      tpu.vector_store %arg11[%c0_192, %c0_193, %c0_194], %361 {strides = array<i32>} : memref<1x1x256xf32, #tpu.memory_space<vmem>>, vector<1x1x256xf32>,
    } else {
    }
    return
  }
  func.func @transform_0(%arg0: i32, %arg1: i32) -> (i32, i32, i32, i32) {
    %c0_i32 = arith.constant 0 : i32
    %c0_i32_0 = arith.constant 0 : i32
    %c0_i32_1 = arith.constant 0 : i32
    return %arg0, %arg1, %c0_i32, %c0_i32_0 : i32, i32, i32, i32
  }
  func.func @transform_1(%arg0: i32, %arg1: i32) -> (i32, i32, i32, i32) {
    %c1_i32 = arith.constant 1 : i32
    %0 = arith.addi %arg1, %c1_i32 : i32
    %c4_i32 = arith.constant 4 : i32
    %1 = arith.muli %0, %c4_i32 : i32
    %c0_i32 = arith.constant 0 : i32
    %2 = arith.addi %1, %c0_i32 : i32
    %c0_i32_0 = arith.constant 0 : i32
    %c0_i32_1 = arith.constant 0 : i32
    %c0_i32_2 = arith.constant 0 : i32
    return %arg0, %2, %c0_i32_0, %c0_i32_1 : i32, i32, i32, i32
  }
  func.func @transform_2(%arg0: i32, %arg1: i32) -> (i32, i32, i32, i32) {
    %c1_i32 = arith.constant 1 : i32
    %0 = arith.addi %arg1, %c1_i32 : i32
    %c4_i32 = arith.constant 4 : i32
    %1 = arith.muli %0, %c4_i32 : i32
    %c1_i32_0 = arith.constant 1 : i32
    %2 = arith.addi %1, %c1_i32_0 : i32
    %c0_i32 = arith.constant 0 : i32
    %c0_i32_1 = arith.constant 0 : i32
    %c0_i32_2 = arith.constant 0 : i32
    return %arg0, %2, %c0_i32, %c0_i32_1 : i32, i32, i32, i32
  }
  func.func @transform_3(%arg0: i32, %arg1: i32) -> (i32, i32) {
    %c0_i32 = arith.constant 0 : i32
    %c0_i32_0 = arith.constant 0 : i32
    %c0_i32_1 = arith.constant 0 : i32
    return %c0_i32, %c0_i32_0 : i32, i32
  }
  func.func @transform_4(%arg0: i32, %arg1: i32) -> (i32, i32) {
    %c0_i32 = arith.constant 0 : i32
    %c0_i32_0 = arith.constant 0 : i32
    %c0_i32_1 = arith.constant 0 : i32
    return %c0_i32, %c0_i32_0 : i32, i32
  }
  func.func @transform_5(%arg0: i32, %arg1: i32) -> (i32, i32) {
    %c0_i32 = arith.constant 0 : i32
    %c0_i32_0 = arith.constant 0 : i32
    %c0_i32_1 = arith.constant 0 : i32
    return %c0_i32, %c0_i32_0 : i32, i32
  }
  func.func @transform_6(%arg0: i32, %arg1: i32) -> (i32, i32) {
    %c0_i32 = arith.constant 0 : i32
    %c0_i32_0 = arith.constant 0 : i32
    %c0_i32_1 = arith.constant 0 : i32
    return %c0_i32, %c0_i32_0 : i32, i32
  }
  func.func @transform_7(%arg0: i32, %arg1: i32) -> (i32, i32) {
    %c0_i32 = arith.constant 0 : i32
    %c0_i32_0 = arith.constant 0 : i32
    %c0_i32_1 = arith.constant 0 : i32
    return %c0_i32, %c0_i32_0 : i32, i32
  }
  func.func @transform_8(%arg0: i32, %arg1: i32) -> (i32, i32, i32, i32) {
    %c0_i32 = arith.constant 0 : i32
    %c0_i32_0 = arith.constant 0 : i32
    %c0_i32_1 = arith.constant 0 : i32
    return %arg0, %arg1, %c0_i32, %c0_i32_0 : i32, i32, i32, i32
  }
  func.func @transform_9(%arg0: i32, %arg1: i32) -> (i32, i32, i32) {
    %c0_i32 = arith.constant 0 : i32
    %c0_i32_0 = arith.constant 0 : i32
    %c0_i32_1 = arith.constant 0 : i32
    return %arg0, %c0_i32, %c0_i32_0 : i32, i32, i32
  }
}

module attributes {stable_mosaic.version = 11 : i64} {
  func.func @_avgpool_kernel(%arg0: i32, %arg1: memref<1x16x128xbf16, #tpu.memory_space<vmem>>, %arg2: memref<1x1x128xbf16, #tpu.memory_space<vmem>>) attributes {dimension_semantics = [#tpu.dimension_semantics<parallel>], iteration_bounds = array<i64: 2>, scalar_prefetch = 0 : i64, scratch_operands = 0 : i64, tpu.core_type = #tpu.core_type<tc>, window_params = [{transform_indices = @transform_0, window_bounds = array<i64: 1, 16, 128>}, {transform_indices = @transform_1, window_bounds = array<i64: 1, 1, 128>}]} {
    %c0 = arith.constant 0 : index
    %c0_0 = arith.constant 0 : index
    %c0_1 = arith.constant 0 : index
    %0 = vector.load %arg1[%c0, %c0_0, %c0_1] : memref<1x16x128xbf16, #tpu.memory_space<vmem>>, vector<1x16x128xbf16>
    %1 = arith.extf %0 : vector<1x16x128xbf16> to vector<1x16x128xf32>
    %cst = arith.constant dense<0.000000e+00> : vector<1x128xf32>
    %2 = vector.multi_reduction <add>, %1, %cst [1] : vector<1x16x128xf32> to vector<1x128xf32>
    %3 = vector.shape_cast %2 : vector<1x128xf32> to vector<1x1x128xf32>
    %cst_2 = arith.constant 1.600000e+01 : f32
    %4 = vector.broadcast %cst_2 : f32 to vector<1x1x128xf32>
    %5 = arith.divf %3, %4 : vector<1x1x128xf32>
    %6 = arith.truncf %5 : vector<1x1x128xf32> to vector<1x1x128xbf16>
    %c0_3 = arith.constant 0 : index
    %c0_4 = arith.constant 0 : index
    %c0_5 = arith.constant 0 : index
    %7 = vector.load %arg2[%c0_3, %c0_4, %c0_5] : memref<1x1x128xbf16, #tpu.memory_space<vmem>>, vector<1x1x128xbf16>
    tpu.vector_store %arg2[%c0_3, %c0_4, %c0_5], %6 {strides = array<i32>} : memref<1x1x128xbf16, #tpu.memory_space<vmem>>, vector<1x1x128xbf16>,
    return
  }
  func.func @transform_0(%arg0: i32) -> (i32, i32, i32) {
    %c0_i32 = arith.constant 0 : i32
    %c0_i32_0 = arith.constant 0 : i32
    %c0_i32_1 = arith.constant 0 : i32
    return %arg0, %c0_i32, %c0_i32_0 : i32, i32, i32
  }
  func.func @transform_1(%arg0: i32) -> (i32, i32, i32) {
    %c0_i32 = arith.constant 0 : i32
    %c0_i32_0 = arith.constant 0 : i32
    %c0_i32_1 = arith.constant 0 : i32
    return %arg0, %c0_i32, %c0_i32_0 : i32, i32, i32
  }
}

module attributes {stable_mosaic.version = 11 : i64} {
  func.func @_mm_bn_act_kernel(%arg0: i32, %arg1: memref<32x128xbf16, #tpu.memory_space<vmem>>, %arg2: memref<128x128xbf16, #tpu.memory_space<vmem>>, %arg3: memref<1x128xf32, #tpu.memory_space<vmem>>, %arg4: memref<1x128xf32, #tpu.memory_space<vmem>>, %arg5: memref<32x128xbf16, #tpu.memory_space<vmem>>) attributes {dimension_semantics = [#tpu.dimension_semantics<parallel>], iteration_bounds = array<i64: 1>, scalar_prefetch = 0 : i64, scratch_operands = 0 : i64, tpu.core_type = #tpu.core_type<tc>, window_params = [{transform_indices = @transform_0, window_bounds = array<i64: 32, 128>}, {pipeline_mode = #tpu.pipeline_mode<synchronous>, transform_indices = @transform_1, window_bounds = array<i64: 128, 128>}, {pipeline_mode = #tpu.pipeline_mode<synchronous>, transform_indices = @transform_2, window_bounds = array<i64: 1, 128>}, {pipeline_mode = #tpu.pipeline_mode<synchronous>, transform_indices = @transform_3, window_bounds = array<i64: 1, 128>}, {transform_indices = @transform_4, window_bounds = array<i64: 32, 128>}]} {
    %c0 = arith.constant 0 : index
    %c0_0 = arith.constant 0 : index
    %0 = vector.load %arg1[%c0, %c0_0] : memref<32x128xbf16, #tpu.memory_space<vmem>>, vector<32x128xbf16>
    %c0_1 = arith.constant 0 : index
    %c0_2 = arith.constant 0 : index
    %1 = vector.load %arg2[%c0_1, %c0_2] : memref<128x128xbf16, #tpu.memory_space<vmem>>, vector<128x128xbf16>
    %cst = arith.constant dense<0.000000e+00> : vector<32x128xf32>
    %2 = tpu.matmul %0, %1, %cst {dimension_numbers = #tpu.dot_dimension_numbers<[1], [0], [0], [1], [0, 0, 1, 1], [], []>} : vector<32x128xbf16>, vector<128x128xbf16>, vector<32x128xf32> -> vector<32x128xf32>
    %c0_3 = arith.constant 0 : index
    %c0_4 = arith.constant 0 : index
    %3 = vector.load %arg3[%c0_3, %c0_4] : memref<1x128xf32, #tpu.memory_space<vmem>>, vector<1x128xf32>
    %4 = vector.broadcast %3 : vector<1x128xf32> to vector<32x128xf32>
    %5 = arith.mulf %2, %4 : vector<32x128xf32>
    %c0_5 = arith.constant 0 : index
    %c0_6 = arith.constant 0 : index
    %6 = vector.load %arg4[%c0_5, %c0_6] : memref<1x128xf32, #tpu.memory_space<vmem>>, vector<1x128xf32>
    %7 = vector.broadcast %6 : vector<1x128xf32> to vector<32x128xf32>
    %8 = arith.addf %5, %7 : vector<32x128xf32>
    %9 = arith.truncf %8 : vector<32x128xf32> to vector<32x128xbf16>
    %c0_7 = arith.constant 0 : index
    %c0_8 = arith.constant 0 : index
    %10 = vector.load %arg5[%c0_7, %c0_8] : memref<32x128xbf16, #tpu.memory_space<vmem>>, vector<32x128xbf16>
    tpu.vector_store %arg5[%c0_7, %c0_8], %9 {strides = array<i32>} : memref<32x128xbf16, #tpu.memory_space<vmem>>, vector<32x128xbf16>,
    return
  }
  func.func @transform_0(%arg0: i32) -> (i32, i32) {
    %c0_i32 = arith.constant 0 : i32
    %c0_i32_0 = arith.constant 0 : i32
    return %arg0, %c0_i32 : i32, i32
  }
  func.func @transform_1(%arg0: i32) -> (i32, i32) {
    %c0_i32 = arith.constant 0 : i32
    %c0_i32_0 = arith.constant 0 : i32
    %c0_i32_1 = arith.constant 0 : i32
    return %c0_i32, %c0_i32_0 : i32, i32
  }
  func.func @transform_2(%arg0: i32) -> (i32, i32) {
    %c0_i32 = arith.constant 0 : i32
    %c0_i32_0 = arith.constant 0 : i32
    %c0_i32_1 = arith.constant 0 : i32
    return %c0_i32, %c0_i32_0 : i32, i32
  }
  func.func @transform_3(%arg0: i32) -> (i32, i32) {
    %c0_i32 = arith.constant 0 : i32
    %c0_i32_0 = arith.constant 0 : i32
    %c0_i32_1 = arith.constant 0 : i32
    return %c0_i32, %c0_i32_0 : i32, i32
  }
  func.func @transform_4(%arg0: i32) -> (i32, i32) {
    %c0_i32 = arith.constant 0 : i32
    %c0_i32_0 = arith.constant 0 : i32
    return %arg0, %c0_i32 : i32, i32
  }
}

module attributes {stable_mosaic.version = 11 : i64} {
  func.func @_mm_bn_act_kernel(%arg0: i32, %arg1: memref<2x128xbf16, #tpu.memory_space<vmem>>, %arg2: memref<128x128xbf16, #tpu.memory_space<vmem>>, %arg3: memref<1x128xf32, #tpu.memory_space<vmem>>, %arg4: memref<1x128xf32, #tpu.memory_space<vmem>>, %arg5: memref<2x128xf32, #tpu.memory_space<vmem>>) attributes {dimension_semantics = [#tpu.dimension_semantics<parallel>], iteration_bounds = array<i64: 1>, scalar_prefetch = 0 : i64, scratch_operands = 0 : i64, tpu.core_type = #tpu.core_type<tc>, window_params = [{transform_indices = @transform_0, window_bounds = array<i64: 2, 128>}, {pipeline_mode = #tpu.pipeline_mode<synchronous>, transform_indices = @transform_1, window_bounds = array<i64: 128, 128>}, {pipeline_mode = #tpu.pipeline_mode<synchronous>, transform_indices = @transform_2, window_bounds = array<i64: 1, 128>}, {pipeline_mode = #tpu.pipeline_mode<synchronous>, transform_indices = @transform_3, window_bounds = array<i64: 1, 128>}, {transform_indices = @transform_4, window_bounds = array<i64: 2, 128>}]} {
    %c0 = arith.constant 0 : index
    %c0_0 = arith.constant 0 : index
    %0 = vector.load %arg1[%c0, %c0_0] : memref<2x128xbf16, #tpu.memory_space<vmem>>, vector<2x128xbf16>
    %c0_1 = arith.constant 0 : index
    %c0_2 = arith.constant 0 : index
    %1 = vector.load %arg2[%c0_1, %c0_2] : memref<128x128xbf16, #tpu.memory_space<vmem>>, vector<128x128xbf16>
    %cst = arith.constant dense<0.000000e+00> : vector<2x128xf32>
    %2 = tpu.matmul %0, %1, %cst {dimension_numbers = #tpu.dot_dimension_numbers<[1], [0], [0], [1], [0, 0, 1, 1], [], []>} : vector<2x128xbf16>, vector<128x128xbf16>, vector<2x128xf32> -> vector<2x128xf32>
    %c0_3 = arith.constant 0 : index
    %c0_4 = arith.constant 0 : index
    %3 = vector.load %arg3[%c0_3, %c0_4] : memref<1x128xf32, #tpu.memory_space<vmem>>, vector<1x128xf32>
    %4 = vector.broadcast %3 : vector<1x128xf32> to vector<2x128xf32>
    %5 = arith.mulf %2, %4 : vector<2x128xf32>
    %c0_5 = arith.constant 0 : index
    %c0_6 = arith.constant 0 : index
    %6 = vector.load %arg4[%c0_5, %c0_6] : memref<1x128xf32, #tpu.memory_space<vmem>>, vector<1x128xf32>
    %7 = vector.broadcast %6 : vector<1x128xf32> to vector<2x128xf32>
    %8 = arith.addf %5, %7 : vector<2x128xf32>
    %c0_7 = arith.constant 0 : index
    %c0_8 = arith.constant 0 : index
    %9 = vector.load %arg5[%c0_7, %c0_8] : memref<2x128xf32, #tpu.memory_space<vmem>>, vector<2x128xf32>
    tpu.vector_store %arg5[%c0_7, %c0_8], %8 {strides = array<i32>} : memref<2x128xf32, #tpu.memory_space<vmem>>, vector<2x128xf32>,
    return
  }
  func.func @transform_0(%arg0: i32) -> (i32, i32) {
    %c0_i32 = arith.constant 0 : i32
    %c0_i32_0 = arith.constant 0 : i32
    return %arg0, %c0_i32 : i32, i32
  }
  func.func @transform_1(%arg0: i32) -> (i32, i32) {
    %c0_i32 = arith.constant 0 : i32
    %c0_i32_0 = arith.constant 0 : i32
    %c0_i32_1 = arith.constant 0 : i32
    return %c0_i32, %c0_i32_0 : i32, i32
  }
  func.func @transform_2(%arg0: i32) -> (i32, i32) {
    %c0_i32 = arith.constant 0 : i32
    %c0_i32_0 = arith.constant 0 : i32
    %c0_i32_1 = arith.constant 0 : i32
    return %c0_i32, %c0_i32_0 : i32, i32
  }
  func.func @transform_3(%arg0: i32) -> (i32, i32) {
    %c0_i32 = arith.constant 0 : i32
    %c0_i32_0 = arith.constant 0 : i32
    %c0_i32_1 = arith.constant 0 : i32
    return %c0_i32, %c0_i32_0 : i32, i32
  }
  func.func @transform_4(%arg0: i32) -> (i32, i32) {
    %c0_i32 = arith.constant 0 : i32
    %c0_i32_0 = arith.constant 0 : i32
    return %arg0, %c0_i32 : i32, i32
  }
}

</mosaic_0001>

<llo_original>
// kernel: _lambda_.14
$region0: #{_lambda_.14}
  #allocation0 [shape = 'u32[]', space=smem, size = 0x4, offset = 0x4, fixed_abs, tag = 'smem constant byte address 0x4 - core index']
  #allocation1 [shape = 'u32[144,128]{1,0:T(1,128)}', space=vmem, size = 0x12000, scoped, tag = 'internal scratch']
  %s0 = inlined_call_operand.vmem [shape: bf16[2,64,128], index: 0, kind: input, shape index: {}]
  %s1 = inlined_call_operand.vmem [shape: f32[2,1,128], index: 1, kind: input, shape index: {}]
  %s2 = inlined_call_operand.vmem [shape: bf16[128,128], index: 2, kind: input, shape index: {}]
  %s3 = inlined_call_operand.vmem [shape: f32[1,128], index: 3, kind: input, shape index: {}]
  %s4 = inlined_call_operand.vmem [shape: f32[1,128], index: 4, kind: input, shape index: {}]
  %s5 = inlined_call_operand.vmem [shape: bf16[2,64,128], index: 5, kind: output, shape index: {}]
  %s6 = sld [smem:[#allocation0]]
  $region53: #{_lambda_.14} parent=0
    _
  %s8 = ssub.s32 1, %s6
  %s9 = scalar_select 0, %s8, %s6
  loop: start=0, step=1, limit=4
  $region2: #{_lambda_.14} parent=0 // loop_pre_header
    _
  $region3: #{_lambda_.14} parent=0 // loop_header
    %s11 = sphi 0, %s15
    %p12 = scmp.ge.s32.totalorder %s11, 4
    %s18 = sphi 0, %s30
    %s19 = sphi 0, %s26
    %s20 = sphi 0, %s18
    %s21 = sphi 0, %s19
    %s22 = sphi 0, %s20
    %s23 = sphi 0, %s21
    %s35 = sphi 0, %s37
    %s38 = sphi 0, %s35
    %s39 = sphi 0, %s38
    %s55 = sphi 0, %s39
    %s61 = sphi 0, %s63
    %s64 = sphi 0, %s61
    %s65 = sphi 0, %s64
    %s81 = sphi 0, %s65
    %s85 = sphi 0, %s85
    %s87 = sphi 0, %s85
    %s88 = sphi 0, %s87
    %s102 = sphi 0, %s88
    %s106 = sphi 0, %s106
    %s108 = sphi 0, %s106
    %s109 = sphi 0, %s108
    %s123 = sphi 0, %s109
    %s127 = sphi 0, %s127
    %s129 = sphi 0, %s127
    %s130 = sphi 0, %s129
    %s144 = sphi 0, %s130
    %s152 = sphi 0, %s154
    %s155 = sphi 0, %s152
    %s156 = sphi 0, %s155
    %s172 = sphi 0, %s156
  $region4: #{_lambda_.14} parent=0 // loop_header_branch
    %14 = sbr.rel (%p12) target = $region8
  $region5: #{_lambda_.14} parent=0 // loop_body
    %s16 = ssub.s32 %s11, 1
    %s17 = ssub.s32 %s11, 2
    %s24 = sadd.s32 1, %s19
    %p25 = scmp.ge.s32.totalorder %s24, 1
    %s26 = scalar_select %p25, 0, %s24
    %s27 = sadd.s32 1, %s18
    %s28 = scalar_select %p25, %s27, %s18
    %p29 = scmp.ge.s32.totalorder %s28, 2
    %s30 = scalar_select %p29, 0, %s28
    %s31 = ssub.s32 %s18, %s30
    %s32 = ssub.s32 %s19, %s26
    %s33 = sor.u32 %s31, %s32
    %p34 = scmp.eq.s32.totalorder %s33, 0
    %s36 = sadd.s32 %s35, 1
    %s37 = scalar_select %p34, %s35, %s36
    %p40 = pneg %p34
    %p41 = scmp.eq.s32.totalorder %s11, 1
    %p42 = por %p40, %p41
    %p43 = scmp.ne.s32.totalorder %s35, %s38
    %p44 = scmp.eq.s32.totalorder %s11, 0
    %p45 = por %p43, %p44
    %p46 = scmp.ne.s32.totalorder %s35, %s38
    %p47 = scmp.eq.s32.totalorder %s16, 1
    %p48 = por %p46, %p47
    %p49 = scmp.ne.s32.totalorder %s38, %s39
    %p50 = scmp.eq.s32.totalorder %s16, 0
    %p51 = por %p49, %p50
    %p52 = scmp.ne.s32.totalorder %s38, %s39
    %p53 = scmp.eq.s32.totalorder %s17, 1
    %p54 = por %p52, %p53
    %p56 = scmp.ne.s32.totalorder %s39, %s55
    %p57 = scmp.eq.s32.totalorder %s17, 0
    %p58 = por %p56, %p57
    %s59 = ssub.s32 %s18, %s30
    %p60 = scmp.eq.s32.totalorder %s59, 0
    %s62 = sadd.s32 %s61, 1
    %s63 = scalar_select %p60, %s61, %s62
    %p66 = pneg %p60
    %p67 = scmp.eq.s32.totalorder %s11, 1
    %p68 = por %p66, %p67
    %p69 = scmp.ne.s32.totalorder %s61, %s64
    %p70 = scmp.eq.s32.totalorder %s11, 0
    %p71 = por %p69, %p70
    %p72 = scmp.ne.s32.totalorder %s61, %s64
    %p73 = scmp.eq.s32.totalorder %s16, 1
    %p74 = por %p72, %p73
    %p75 = scmp.ne.s32.totalorder %s64, %s65
    %p76 = scmp.eq.s32.totalorder %s16, 0
    %p77 = por %p75, %p76
    %p78 = scmp.ne.s32.totalorder %s64, %s65
    %p79 = scmp.eq.s32.totalorder %s17, 1
    %p80 = por %p78, %p79
    %p82 = scmp.ne.s32.totalorder %s65, %s81
    %p83 = scmp.eq.s32.totalorder %s17, 0
    %p84 = por %p82, %p83
    %s86 = sadd.s32 %s85, 1
    %p89 = scmp.eq.s32.totalorder %s11, 1
    %p90 = scmp.ne.s32.totalorder %s85, %s87
    %p91 = scmp.eq.s32.totalorder %s11, 0
    %p92 = por %p90, %p91
    %p93 = scmp.ne.s32.totalorder %s85, %s87
    %p94 = scmp.eq.s32.totalorder %s16, 1
    %p95 = por %p93, %p94
    %p96 = scmp.ne.s32.totalorder %s87, %s88
    %p97 = scmp.eq.s32.totalorder %s16, 0
    %p98 = por %p96, %p97
    %p99 = scmp.ne.s32.totalorder %s87, %s88
    %p100 = scmp.eq.s32.totalorder %s17, 1
    %p101 = por %p99, %p100
    %p103 = scmp.ne.s32.totalorder %s88, %s102
    %p104 = scmp.eq.s32.totalorder %s17, 0
    %p105 = por %p103, %p104
    %s107 = sadd.s32 %s106, 1
    %p110 = scmp.eq.s32.totalorder %s11, 1
    %p111 = scmp.ne.s32.totalorder %s106, %s108
    %p112 = scmp.eq.s32.totalorder %s11, 0
    %p113 = por %p111, %p112
    %p114 = scmp.ne.s32.totalorder %s106, %s108
    %p115 = scmp.eq.s32.totalorder %s16, 1
    %p116 = por %p114, %p115
    %p117 = scmp.ne.s32.totalorder %s108, %s109
    %p118 = scmp.eq.s32.totalorder %s16, 0
    %p119 = por %p117, %p118
    %p120 = scmp.ne.s32.totalorder %s108, %s109
    %p121 = scmp.eq.s32.totalorder %s17, 1
    %p122 = por %p120, %p121
    %p124 = scmp.ne.s32.totalorder %s109, %s123
    %p125 = scmp.eq.s32.totalorder %s17, 0
    %p126 = por %p124, %p125
    %s128 = sadd.s32 %s127, 1
    %p131 = scmp.eq.s32.totalorder %s11, 1
    %p132 = scmp.ne.s32.totalorder %s127, %s129
    %p133 = scmp.eq.s32.totalorder %s11, 0
    %p134 = por %p132, %p133
    %p135 = scmp.ne.s32.totalorder %s127, %s129
    %p136 = scmp.eq.s32.totalorder %s16, 1
    %p137 = por %p135, %p136
    %p138 = scmp.ne.s32.totalorder %s129, %s130
    %p139 = scmp.eq.s32.totalorder %s16, 0
    %p140 = por %p138, %p139
    %p141 = scmp.ne.s32.totalorder %s129, %s130
    %p142 = scmp.eq.s32.totalorder %s17, 1
    %p143 = por %p141, %p142
    %p145 = scmp.ne.s32.totalorder %s130, %s144
    %p146 = scmp.eq.s32.totalorder %s17, 0
    %p147 = por %p145, %p146
    %s148 = ssub.s32 %s18, %s30
    %s149 = ssub.s32 %s19, %s26
    %s150 = sor.u32 %s148, %s149
    %p151 = scmp.eq.s32.totalorder %s150, 0
    %s153 = sadd.s32 %s152, 1
    %s154 = scalar_select %p151, %s152, %s153
    %p157 = pneg %p151
    %p158 = scmp.eq.s32.totalorder %s11, 1
    %p159 = por %p157, %p158
    %p160 = scmp.ne.s32.totalorder %s152, %s155
    %p161 = scmp.eq.s32.totalorder %s11, 0
    %p162 = por %p160, %p161
    %p163 = scmp.ne.s32.totalorder %s152, %s155
    %p164 = scmp.eq.s32.totalorder %s16, 1
    %p165 = por %p163, %p164
    %p166 = scmp.ne.s32.totalorder %s155, %s156
    %p167 = scmp.eq.s32.totalorder %s16, 0
    %p168 = por %p166, %p167
    %p169 = scmp.ne.s32.totalorder %s155, %s156
    %p170 = scmp.eq.s32.totalorder %s17, 1
    %p171 = por %p169, %p170
    %p173 = scmp.ne.s32.totalorder %s156, %s172
    %p174 = scmp.eq.s32.totalorder %s17, 0
    %p175 = por %p173, %p174
    %p176 = scmp.le.s32.totalorder 1, %s11
    %p177 = scmp.lt.s32.totalorder %s11, 3
    %p178 = pnand %p176, %p177
    %p179 = pneg %p178
    // Predicated region
    $region9: #{_lambda_.14} parent=5 // pred_check
      _
    $region10: #{_lambda_.14} parent=5 // pred_check_branch
      %181 = sbr.rel (%p178) target = $region12
    $region11: #{_lambda_.14} parent=5 // pred_region
      %s182 = ssub.s32 %s11, 1
      // Predicated region
      $region13: #{_lambda_.14} parent=11 // pred_check
        %p183 = pneg %p98
      $region14: #{_lambda_.14} parent=11 // pred_check_branch
        %185 = sbr.rel (%p183) target = $region16
      $region15: #{_lambda_.14} parent=11 // pred_region
        _
      $region16: #{_lambda_.14} parent=11 // pred_fallthru
        _
      // Predicated region
      $region17: #{_lambda_.14} parent=11 // pred_check
        %p186 = pneg %p119
      $region18: #{_lambda_.14} parent=11 // pred_check_branch
        %188 = sbr.rel (%p186) target = $region20
      $region19: #{_lambda_.14} parent=11 // pred_region
        _
      $region20: #{_lambda_.14} parent=11 // pred_fallthru
        _
      // Predicated region
      $region21: #{_lambda_.14} parent=11 // pred_check
        %p189 = pneg %p140
      $region22: #{_lambda_.14} parent=11 // pred_check_branch
        %191 = sbr.rel (%p189) target = $region24
      $region23: #{_lambda_.14} parent=11 // pred_region
        _
      $region24: #{_lambda_.14} parent=11 // pred_fallthru
        _
    $region12: #{_lambda_.14} parent=5 // pred_fallthru
      _
    %p192 = scmp.lt.s32.totalorder %s11, 2
    // Predicated region
    $region25: #{_lambda_.14} parent=5 // pred_check
      %p193 = pneg %p192
    $region26: #{_lambda_.14} parent=5 // pred_check_branch
      %195 = sbr.rel (%p193) target = $region28
    $region27: #{_lambda_.14} parent=5 // pred_region
      // Predicated region
      $region29: #{_lambda_.14} parent=27 // pred_check
        %p196 = pneg %p45
      $region30: #{_lambda_.14} parent=27 // pred_check_branch
        %198 = sbr.rel (%p196) target = $region32
      $region31: #{_lambda_.14} parent=27 // pred_region
        %s199 = smul.u32 8, %s19
        %p200 = scmp.lt.s32.totalorder %s18, 1
        %s201 = scalar_select %p200, %s18, 1
        %p202 = scmp.lt.s32.totalorder %s199, 7
        %s203 = scalar_select %p202, %s199, 7
        %s204 = smul.addr %s201, 8
        %s205 = sadd.s32 %s203, %s204
        %s206 = smul.addr %s205, 4
        %s207 = scalar_lea.vmem %s0, %s206
        %s208 = smul.u32 8, %s19
      $region32: #{_lambda_.14} parent=27 // pred_fallthru
        _
      // Predicated region
      $region33: #{_lambda_.14} parent=27 // pred_check
        %p209 = pneg %p71
      $region34: #{_lambda_.14} parent=27 // pred_check_branch
        %211 = sbr.rel (%p209) target = $region36
      $region35: #{_lambda_.14} parent=27 // pred_region
        %p212 = scmp.lt.s32.totalorder %s18, 1
        %s213 = scalar_select %p212, %s18, 1
        %s214 = scalar_lea.vmem %s1, %s213
      $region36: #{_lambda_.14} parent=27 // pred_fallthru
        _
    $region28: #{_lambda_.14} parent=5 // pred_fallthru
      _
    %p215 = scmp.le.s32.totalorder 1, %s11
    %p216 = scmp.lt.s32.totalorder %s11, 3
    %p217 = pnand %p215, %p216
    %p218 = pneg %p217
    // Predicated region
    $region37: #{_lambda_.14} parent=5 // pred_check
      _
    $region38: #{_lambda_.14} parent=5 // pred_check_branch
      %220 = sbr.rel (%p217) target = $region40
    $region39: #{_lambda_.14} parent=5 // pred_region
      %s221 = ssub.s32 %s11, 1
      %s222 = smul.u32 8, %s21
      %p223 = scmp.lt.s32.totalorder %s20, 1
      %s224 = scalar_select %p223, %s20, 1
      %p225 = scmp.lt.s32.totalorder %s222, 7
      %s226 = scalar_select %p225, %s222, 7
      %s227 = smul.addr %s224, 8
      %s228 = sadd.s32 %s226, %s227
      %s229 = smul.addr %s228, 4
      %s230 = scalar_lea.vmem %s0, %s229
      %p231 = pneg %p51
      %p232 = pneg %p48
      %p233 = scmp.lt.s32.totalorder %s20, 1
      %s234 = scalar_select %p233, %s20, 1
      %s235 = scalar_lea.vmem %s1, %s234
      %p236 = pneg %p77
      %p237 = pneg %p74
      %p238 = pneg %p98
      %p239 = pneg %p95
      %p240 = pneg %p119
      %p241 = pneg %p116
      %p242 = pneg %p140
      %p243 = pneg %p137
      %p244 = pneg %p168
      %p245 = pneg %p165
      %s246 = smul.u32 8, %s21
      %p247 = scmp.lt.s32.totalorder %s20, 1
      %s248 = scalar_select %p247, %s20, 1
      %p249 = scmp.lt.s32.totalorder %s246, 7
      %s250 = scalar_select %p249, %s246, 7
      %s251 = smul.addr %s248, 8
      %s252 = sadd.s32 %s250, %s251
      %s253 = smul.addr %s252, 4
      %s254 = scalar_lea.vmem %s5, %s253
      %s255 = smul.u32 8, %s21
      %p256 = scmp.lt.s32.totalorder %s20, 1
      %s257 = scalar_select %p256, %s20, 1
      %p258 = scmp.lt.s32.totalorder %s255, 7
      %s259 = scalar_select %p258, %s255, 7
      %s260 = smul.addr %s257, 8
      %s261 = sadd.s32 %s259, %s260
      %s262 = smul.addr %s261, 4
      %s263 = scalar_lea.vmem %s0, %s262
      %s264 = smul.u32 8, %s21
      %p265 = scmp.lt.s32.totalorder %s20, 1
      %s266 = scalar_select %p265, %s20, 1
      %s267 = scalar_lea.vmem %s1, %s266
      %s268 = smul.u32 8, %s21
      %p269 = scmp.lt.s32.totalorder %s20, 1
      %s270 = scalar_select %p269, %s20, 1
      %p271 = scmp.lt.s32.totalorder %s268, 7
      %s272 = scalar_select %p271, %s268, 7
      %s273 = smul.addr %s270, 8
      %s274 = sadd.s32 %s272, %s273
      %s275 = smul.addr %s274, 4
      %s276 = scalar_lea.vmem %s5, %s275
      %s277 = smul.u32 8, %s21
      %v279 = vld [vmem:[%s263] sm:$0xf]
      %v280 = vld [vmem:[%s263 + $0x4] sm:$0xf]
      %v281 = vld [vmem:[%s263 + $0x8] sm:$0xf]
      %v282 = vld [vmem:[%s263 + $0xc] sm:$0xf]
      %v283 = vld [vmem:[%s263 + $0x10] sm:$0xf]
      %v284 = vld [vmem:[%s263 + $0x14] sm:$0xf]
      %v285 = vld [vmem:[%s263 + $0x18] sm:$0xf]
      %v286 = vld [vmem:[%s263 + $0x1c] sm:$0xf]
      %v287 = vld [vmem:[%s267] sm:$0x1]
      %v288 = vpack.c.bf16 %v287, %v287
      %v290 = vpack.i.b16 %v288, %v288
      %v292 = vlaneseq
      %v293 = vshrl.u32 %v292, 7
      %v294 = vsub.s32 0, %v293
      %v295 = vrot.slane %v290, %v294
      %v297 = vunpack.c.l.b16 %v295
      %v298 = vpack.c.b16 %v297, %v297
      %v300 = vmul.bf16 %v279, %v298
      %v301 = vmul.bf16 %v280, %v298
      %v302 = vmul.bf16 %v281, %v298
      %v303 = vmul.bf16 %v282, %v298
      %v304 = vmul.bf16 %v283, %v298
      %v305 = vmul.bf16 %v284, %v298
      %v306 = vmul.bf16 %v285, %v298
      %v307 = vmul.bf16 %v286, %v298
      %v308 = vld [vmem:[%s2] sm:$0xf]
      %v309 = vld [vmem:[%s2 + $0x4] sm:$0xf]
      %v310 = vld [vmem:[%s2 + $0x8] sm:$0xf]
      %v311 = vld [vmem:[%s2 + $0xc] sm:$0xf]
      %v312 = vld [vmem:[%s2 + $0x10] sm:$0xf]
      %v313 = vld [vmem:[%s2 + $0x14] sm:$0xf]
      %v314 = vld [vmem:[%s2 + $0x18] sm:$0xf]
      %v315 = vld [vmem:[%s2 + $0x1c] sm:$0xf]
      %v316 = vld [vmem:[%s2 + $0x20] sm:$0xf]
      %v317 = vld [vmem:[%s2 + $0x24] sm:$0xf]
      %v318 = vld [vmem:[%s2 + $0x28] sm:$0xf]
      %v319 = vld [vmem:[%s2 + $0x2c] sm:$0xf]
      %v320 = vld [vmem:[%s2 + $0x30] sm:$0xf]
      %v321 = vld [vmem:[%s2 + $0x34] sm:$0xf]
      %v322 = vld [vmem:[%s2 + $0x38] sm:$0xf]
      %v323 = vld [vmem:[%s2 + $0x3c] sm:$0xf]
      %v332 = vunpack.c.l.b16 %v300
      %v333 = vunpack.c.l.b16 %v301
      %v334 = vunpack.c.l.b16 %v302
      %v335 = vunpack.c.l.b16 %v303
      %v336 = vunpack.c.l.b16 %v304
      %v337 = vunpack.c.l.b16 %v305
      %v338 = vunpack.c.l.b16 %v306
      %v339 = vunpack.c.l.b16 %v307
      %v340 = vpack.c.b16 %v333, %v332
      %v341 = vpack.c.b16 %v335, %v334
      %v342 = vpack.c.b16 %v337, %v336
      %v343 = vpack.c.b16 %v339, %v338
      %v364 = vunpack.c.l.b16 %v308
      %v365 = vunpack.c.l.b16 %v309
      %v366 = vunpack.c.l.b16 %v310
      %v367 = vunpack.c.l.b16 %v311
      %v368 = vunpack.c.l.b16 %v312
      %v369 = vunpack.c.l.b16 %v313
      %v370 = vunpack.c.l.b16 %v314
      %v371 = vunpack.c.l.b16 %v315
      %v372 = vunpack.c.l.b16 %v316
      %v373 = vunpack.c.l.b16 %v317
      %v374 = vunpack.c.l.b16 %v318
      %v375 = vunpack.c.l.b16 %v319
      %v376 = vunpack.c.l.b16 %v320
      %v377 = vunpack.c.l.b16 %v321
      %v378 = vunpack.c.l.b16 %v322
      %v379 = vunpack.c.l.b16 %v323
      %v380 = vpack.c.b16 %v365, %v364
      %v381 = vpack.c.b16 %v367, %v366
      %v382 = vpack.c.b16 %v369, %v368
      %v383 = vpack.c.b16 %v371, %v370
      %v384 = vpack.c.b16 %v373, %v372
      %v385 = vpack.c.b16 %v375, %v374
      %v386 = vpack.c.b16 %v377, %v376
      %v387 = vpack.c.b16 %v379, %v378
      %396 = vmatprep.subr.bf16.mxu0 0
      %397 = vmatpush1.bf16.msra.mxu0 %v380
      %398 = vmatprep.subr.bf16.mxu0 0
      %399 = vmatpush1.bf16.msra.mxu0 %v381
      %400 = vmatprep.subr.bf16.mxu0 0
      %401 = vmatpush1.bf16.msra.mxu0 %v382
      %402 = vmatprep.subr.bf16.mxu0 0
      %403 = vmatpush1.bf16.msra.mxu0 %v383
      %404 = vmatprep.subr.bf16.mxu0 0
      %405 = vmatpush1.bf16.msra.mxu0 %v384
      %406 = vmatprep.subr.bf16.mxu0 0
      %407 = vmatpush1.bf16.msra.mxu0 %v385
      %408 = vmatprep.subr.bf16.mxu0 0
      %409 = vmatpush1.bf16.msra.mxu0 %v386
      %410 = vmatprep.subr.bf16.mxu0 0
      %411 = vmatpush1.bf16.msra.mxu0 %v387
      %412 = vmatprep.subr.bf16.mxu0 0
      %413 = vmatpush1.bf16.msra.mxu0 0
      %414 = vmatprep.subr.bf16.mxu0 0
      %415 = vmatpush1.bf16.msra.mxu0 0
      %416 = vmatprep.subr.bf16.mxu0 0
      %417 = vmatpush1.bf16.msra.mxu0 0
      %418 = vmatprep.subr.bf16.mxu0 0
      %419 = vmatpush1.bf16.msra.mxu0 0
      %420 = vmatprep.subr.bf16.mxu0 0
      %421 = vmatpush1.bf16.msra.mxu0 0
      %422 = vmatprep.subr.bf16.mxu0 0
      %423 = vmatpush1.bf16.msra.mxu0 0
      %424 = vmatprep.subr.bf16.mxu0 0
      %425 = vmatpush1.bf16.msra.mxu0 0
      %426 = vmatprep.subr.bf16.mxu0 0
      %427 = vmatpush1.bf16.msra.mxu0 0
      %428 = vmatprep.mubr.bf16.mxu0 0
      %429 = vmatmul.mubr.bf16.gmra.mrb[0].mxu0 %v340
      %v430 = vpop.f32.mrb[0].mxu0
      %v431 = vadd.f32 0.0, %v430
      %v432 = vpop.f32.mrb[0].mxu0
      %v433 = vpop.f32.mrb[0].mxu0
      %v434 = vadd.f32 0.0, %v433
      %v435 = vpop.f32.mrb[0].mxu0
      %436 = vmatprep.mubr.bf16.mxu0 0
      %437 = vmatmul.mubr.bf16.gmra.mrb[0].mxu0 %v341
      %v438 = vpop.f32.mrb[0].mxu0
      %v439 = vadd.f32 0.0, %v438
      %v440 = vpop.f32.mrb[0].mxu0
      %v441 = vpop.f32.mrb[0].mxu0
      %v442 = vadd.f32 0.0, %v441
      %v443 = vpop.f32.mrb[0].mxu0
      %444 = vmatprep.mubr.bf16.mxu0 0
      %445 = vmatmul.mubr.bf16.gmra.mrb[0].mxu0 %v342
      %v446 = vpop.f32.mrb[0].mxu0
      %v447 = vadd.f32 0.0, %v446
      %v448 = vpop.f32.mrb[0].mxu0
      %v449 = vpop.f32.mrb[0].mxu0
      %v450 = vadd.f32 0.0, %v449
      %v451 = vpop.f32.mrb[0].mxu0
      %452 = vmatprep.mubr.bf16.mxu0 0
      %453 = vmatmul.mubr.bf16.gmra.mrb[0].mxu0 %v343
      %v454 = vpop.f32.mrb[0].mxu0
      %v455 = vadd.f32 0.0, %v454
      %v456 = vpop.f32.mrb[0].mxu0
      %v457 = vpop.f32.mrb[0].mxu0
      %v458 = vadd.f32 0.0, %v457
      %v459 = vpop.f32.mrb[0].mxu0
      %460 = vdwg.mxu0
      %v461 = vld [vmem:[%s3] sm:$0x1]
      %v463 = vlaneseq
      %v464 = vshrl.u32 %v463, 7
      %v465 = vsub.s32 0, %v464
      %v466 = vrot.slane %v461, %v465
      %v468 = vmul.f32 %v431, %v466
      %v469 = vmul.f32 %v434, %v466
      %v470 = vmul.f32 %v439, %v466
      %v471 = vmul.f32 %v442, %v466
      %v472 = vmul.f32 %v447, %v466
      %v473 = vmul.f32 %v450, %v466
      %v474 = vmul.f32 %v455, %v466
      %v475 = vmul.f32 %v458, %v466
      %v476 = vld [vmem:[%s4] sm:$0x1]
      %v478 = vlaneseq
      %v479 = vshrl.u32 %v478, 7
      %v480 = vsub.s32 0, %v479
      %v481 = vrot.slane %v476, %v480
      %v483 = vadd.f32 %v468, %v481
      %v484 = vadd.f32 %v469, %v481
      %v485 = vadd.f32 %v470, %v481
      %v486 = vadd.f32 %v471, %v481
      %v487 = vadd.f32 %v472, %v481
      %v488 = vadd.f32 %v473, %v481
      %v489 = vadd.f32 %v474, %v481
      %v490 = vadd.f32 %v475, %v481
      %v491 = vpack.c.bf16 %v484, %v483
      %v492 = vpack.c.bf16 %v486, %v485
      %v493 = vpack.c.bf16 %v488, %v487
      %v494 = vpack.c.bf16 %v490, %v489
      %v499 = vunpack.c.l.b16 %v491
      %v500 = vunpack.c.h.b16 %v491
      %v501 = vunpack.c.l.b16 %v492
      %v502 = vunpack.c.h.b16 %v492
      %v503 = vunpack.c.l.b16 %v493
      %v504 = vunpack.c.h.b16 %v493
      %v505 = vunpack.c.l.b16 %v494
      %v506 = vunpack.c.h.b16 %v494
      %v507 = vpack.c.b16 %v499, %v499
      %v508 = vpack.c.b16 %v500, %v500
      %v509 = vpack.c.b16 %v501, %v501
      %v510 = vpack.c.b16 %v502, %v502
      %v511 = vpack.c.b16 %v503, %v503
      %v512 = vpack.c.b16 %v504, %v504
      %v513 = vpack.c.b16 %v505, %v505
      %v514 = vpack.c.b16 %v506, %v506
      %523 = vst [vmem:[%s276] sm:$0xf] %v507
      %524 = vst [vmem:[%s276 + $0x4] sm:$0xf] %v508
      %525 = vst [vmem:[%s276 + $0x8] sm:$0xf] %v509
      %526 = vst [vmem:[%s276 + $0xc] sm:$0xf] %v510
      %527 = vst [vmem:[%s276 + $0x10] sm:$0xf] %v511
      %528 = vst [vmem:[%s276 + $0x14] sm:$0xf] %v512
      %529 = vst [vmem:[%s276 + $0x18] sm:$0xf] %v513
      %530 = vst [vmem:[%s276 + $0x1c] sm:$0xf] %v514
      %s531 = smul.u32 8, %s21
      %p532 = scmp.lt.s32.totalorder %s20, 1
      %s533 = scalar_select %p532, %s20, 1
      %p534 = scmp.lt.s32.totalorder %s531, 7
      %s535 = scalar_select %p534, %s531, 7
      %s536 = smul.addr %s533, 8
      %s537 = sadd.s32 %s535, %s536
      %s538 = smul.addr %s537, 4
      %s539 = scalar_lea.vmem %s5, %s538
      // Predicated region
      $region41: #{_lambda_.14} parent=39 // pred_check
        %p540 = pneg %p165
      $region42: #{_lambda_.14} parent=39 // pred_check_branch
        %542 = sbr.rel (%p540) target = $region44
      $region43: #{_lambda_.14} parent=39 // pred_region
        %s543 = smul.u32 8, %s21
      $region44: #{_lambda_.14} parent=39 // pred_fallthru
        _
    $region40: #{_lambda_.14} parent=5 // pred_fallthru
      _
    %p544 = scmp.le.s32.totalorder 2, %s11
    // Predicated region
    $region45: #{_lambda_.14} parent=5 // pred_check
      %p545 = pneg %p544
    $region46: #{_lambda_.14} parent=5 // pred_check_branch
      %547 = sbr.rel (%p545) target = $region48
    $region47: #{_lambda_.14} parent=5 // pred_region
      %s548 = ssub.s32 %s11, 2
      // Predicated region
      $region49: #{_lambda_.14} parent=47 // pred_check
        %p549 = pneg %p171
      $region50: #{_lambda_.14} parent=47 // pred_check_branch
        %551 = sbr.rel (%p549) target = $region52
      $region51: #{_lambda_.14} parent=47 // pred_region
        %s552 = smul.u32 8, %s23
        %p553 = scmp.lt.s32.totalorder %s22, 1
        %s554 = scalar_select %p553, %s22, 1
        %p555 = scmp.lt.s32.totalorder %s552, 7
        %s556 = scalar_select %p555, %s552, 7
        %s557 = smul.addr %s554, 8
        %s558 = sadd.s32 %s556, %s557
        %s559 = smul.addr %s558, 4
        %s560 = scalar_lea.vmem %s5, %s559
      $region52: #{_lambda_.14} parent=47 // pred_fallthru
        _
    $region48: #{_lambda_.14} parent=5 // pred_fallthru
      _
  $region6: #{_lambda_.14} parent=0 // loop_footer
    %s15 = sadd.s32 1, %s11
  $region7: #{_lambda_.14} parent=0 // loop_footer_branch
    %10 = sbr.rel target = $region3
  $region8: #{_lambda_.14} parent=0 // loop_exit
    _

// kernel: _lambda_.12
$region0: #{_lambda_.12}
  #allocation0 [shape = 'u32[]', space=smem, size = 0x4, offset = 0x4, fixed_abs, tag = 'smem constant byte address 0x4 - core index']
  #allocation1 [shape = 'u32[144,128]{1,0:T(1,128)}', space=vmem, size = 0x12000, scoped, tag = 'internal scratch']
  %s0 = inlined_call_operand.vmem [shape: bf16[128,128], index: 0, kind: input, shape index: {}]
  %s1 = inlined_call_operand.vmem [shape: bf16[128,128], index: 1, kind: input, shape index: {}]
  %s2 = inlined_call_operand.vmem [shape: f32[1,128], index: 2, kind: input, shape index: {}]
  %s3 = inlined_call_operand.vmem [shape: f32[1,128], index: 3, kind: input, shape index: {}]
  %s4 = inlined_call_operand.vmem [shape: bf16[128,128], index: 4, kind: output, shape index: {}]
  %s5 = sld [smem:[#allocation0]]
  $region26: #{_lambda_.12} parent=0
    _
  %s7 = ssub.s32 1, %s5
  %s8 = scalar_select 0, %s7, %s5
  // Predicated region
  $region2: #{_lambda_.12} parent=0 // pred_check
    _
  $region3: #{_lambda_.12} parent=0 // pred_check_branch
    %10 = sbr.rel (0) target = $region5
  $region4: #{_lambda_.12} parent=0 // pred_region
    _
  $region5: #{_lambda_.12} parent=0 // pred_fallthru
    _
  // Predicated region
  $region6: #{_lambda_.12} parent=0 // pred_check
    _
  $region7: #{_lambda_.12} parent=0 // pred_check_branch
    %12 = sbr.rel (0) target = $region9
  $region8: #{_lambda_.12} parent=0 // pred_region
    _
  $region9: #{_lambda_.12} parent=0 // pred_fallthru
    _
  // Predicated region
  $region10: #{_lambda_.12} parent=0 // pred_check
    _
  $region11: #{_lambda_.12} parent=0 // pred_check_branch
    %14 = sbr.rel (0) target = $region13
  $region12: #{_lambda_.12} parent=0 // pred_region
    _
  $region13: #{_lambda_.12} parent=0 // pred_fallthru
    _
  // Predicated region
  $region14: #{_lambda_.12} parent=0 // pred_check
    _
  $region15: #{_lambda_.12} parent=0 // pred_check_branch
    %16 = sbr.rel (0) target = $region17
  $region16: #{_lambda_.12} parent=0 // pred_region
    _
  $region17: #{_lambda_.12} parent=0 // pred_fallthru
    _
  %v18 = vld [vmem:[%s0] sm:$0xf]
  %v19 = vld [vmem:[%s0 + $0x4] sm:$0xf]
  %v20 = vld [vmem:[%s0 + $0x8] sm:$0xf]
  %v21 = vld [vmem:[%s0 + $0xc] sm:$0xf]
  %v22 = vld [vmem:[%s0 + $0x10] sm:$0xf]
  %v23 = vld [vmem:[%s0 + $0x14] sm:$0xf]
  %v24 = vld [vmem:[%s0 + $0x18] sm:$0xf]
  %v25 = vld [vmem:[%s0 + $0x1c] sm:$0xf]
  %v26 = vld [vmem:[%s0 + $0x20] sm:$0xf]
  %v27 = vld [vmem:[%s0 + $0x24] sm:$0xf]
  %v28 = vld [vmem:[%s0 + $0x28] sm:$0xf]
  %v29 = vld [vmem:[%s0 + $0x2c] sm:$0xf]
  %v30 = vld [vmem:[%s0 + $0x30] sm:$0xf]
  %v31 = vld [vmem:[%s0 + $0x34] sm:$0xf]
  %v32 = vld [vmem:[%s0 + $0x38] sm:$0xf]
  %v33 = vld [vmem:[%s0 + $0x3c] sm:$0xf]
  %v34 = vld [vmem:[%s1] sm:$0xf]
  %v35 = vld [vmem:[%s1 + $0x4] sm:$0xf]
  %v36 = vld [vmem:[%s1 + $0x8] sm:$0xf]
  %v37 = vld [vmem:[%s1 + $0xc] sm:$0xf]
  %v38 = vld [vmem:[%s1 + $0x10] sm:$0xf]
  %v39 = vld [vmem:[%s1 + $0x14] sm:$0xf]
  %v40 = vld [vmem:[%s1 + $0x18] sm:$0xf]
  %v41 = vld [vmem:[%s1 + $0x1c] sm:$0xf]
  %v42 = vld [vmem:[%s1 + $0x20] sm:$0xf]
  %v43 = vld [vmem:[%s1 + $0x24] sm:$0xf]
  %v44 = vld [vmem:[%s1 + $0x28] sm:$0xf]
  %v45 = vld [vmem:[%s1 + $0x2c] sm:$0xf]
  %v46 = vld [vmem:[%s1 + $0x30] sm:$0xf]
  %v47 = vld [vmem:[%s1 + $0x34] sm:$0xf]
  %v48 = vld [vmem:[%s1 + $0x38] sm:$0xf]
  %v49 = vld [vmem:[%s1 + $0x3c] sm:$0xf]
  %v66 = vunpack.c.l.b16 %v18
  %v67 = vunpack.c.l.b16 %v19
  %v68 = vunpack.c.l.b16 %v20
  %v69 = vunpack.c.l.b16 %v21
  %v70 = vunpack.c.l.b16 %v22
  %v71 = vunpack.c.l.b16 %v23
  %v72 = vunpack.c.l.b16 %v24
  %v73 = vunpack.c.l.b16 %v25
  %v74 = vunpack.c.l.b16 %v26
  %v75 = vunpack.c.l.b16 %v27
  %v76 = vunpack.c.l.b16 %v28
  %v77 = vunpack.c.l.b16 %v29
  %v78 = vunpack.c.l.b16 %v30
  %v79 = vunpack.c.l.b16 %v31
  %v80 = vunpack.c.l.b16 %v32
  %v81 = vunpack.c.l.b16 %v33
  %v82 = vpack.c.b16 %v67, %v66
  %v83 = vpack.c.b16 %v69, %v68
  %v84 = vpack.c.b16 %v71, %v70
  %v85 = vpack.c.b16 %v73, %v72
  %v86 = vpack.c.b16 %v75, %v74
  %v87 = vpack.c.b16 %v77, %v76
  %v88 = vpack.c.b16 %v79, %v78
  %v89 = vpack.c.b16 %v81, %v80
  %v114 = vunpack.c.l.b16 %v34
  %v115 = vunpack.c.l.b16 %v35
  %v116 = vunpack.c.l.b16 %v36
  %v117 = vunpack.c.l.b16 %v37
  %v118 = vunpack.c.l.b16 %v38
  %v119 = vunpack.c.l.b16 %v39
  %v120 = vunpack.c.l.b16 %v40
  %v121 = vunpack.c.l.b16 %v41
  %v122 = vunpack.c.l.b16 %v42
  %v123 = vunpack.c.l.b16 %v43
  %v124 = vunpack.c.l.b16 %v44
  %v125 = vunpack.c.l.b16 %v45
  %v126 = vunpack.c.l.b16 %v46
  %v127 = vunpack.c.l.b16 %v47
  %v128 = vunpack.c.l.b16 %v48
  %v129 = vunpack.c.l.b16 %v49
  %v130 = vpack.c.b16 %v115, %v114
  %v131 = vpack.c.b16 %v117, %v116
  %v132 = vpack.c.b16 %v119, %v118
  %v133 = vpack.c.b16 %v121, %v120
  %v134 = vpack.c.b16 %v123, %v122
  %v135 = vpack.c.b16 %v125, %v124
  %v136 = vpack.c.b16 %v127, %v126
  %v137 = vpack.c.b16 %v129, %v128
  %146 = vmatprep.subr.bf16.mxu0 0
  %147 = vmatpush1.bf16.msra.mxu0 %v130
  %148 = vmatprep.subr.bf16.mxu0 0
  %149 = vmatpush1.bf16.msra.mxu0 %v131
  %150 = vmatprep.subr.bf16.mxu0 0
  %151 = vmatpush1.bf16.msra.mxu0 %v132
  %152 = vmatprep.subr.bf16.mxu0 0
  %153 = vmatpush1.bf16.msra.mxu0 %v133
  %154 = vmatprep.subr.bf16.mxu0 0
  %155 = vmatpush1.bf16.msra.mxu0 %v134
  %156 = vmatprep.subr.bf16.mxu0 0
  %157 = vmatpush1.bf16.msra.mxu0 %v135
  %158 = vmatprep.subr.bf16.mxu0 0
  %159 = vmatpush1.bf16.msra.mxu0 %v136
  %160 = vmatprep.subr.bf16.mxu0 0
  %161 = vmatpush1.bf16.msra.mxu0 %v137
  %162 = vmatprep.subr.bf16.mxu0 0
  %163 = vmatpush1.bf16.msra.mxu0 0
  %164 = vmatprep.subr.bf16.mxu0 0
  %165 = vmatpush1.bf16.msra.mxu0 0
  %166 = vmatprep.subr.bf16.mxu0 0
  %167 = vmatpush1.bf16.msra.mxu0 0
  %168 = vmatprep.subr.bf16.mxu0 0
  %169 = vmatpush1.bf16.msra.mxu0 0
  %170 = vmatprep.subr.bf16.mxu0 0
  %171 = vmatpush1.bf16.msra.mxu0 0
  %172 = vmatprep.subr.bf16.mxu0 0
  %173 = vmatpush1.bf16.msra.mxu0 0
  %174 = vmatprep.subr.bf16.mxu0 0
  %175 = vmatpush1.bf16.msra.mxu0 0
  %176 = vmatprep.subr.bf16.mxu0 0
  %177 = vmatpush1.bf16.msra.mxu0 0
  %178 = vmatprep.mubr.bf16.mxu0 0
  %179 = vmatmul.mubr.bf16.gmra.mrb[0].mxu0 %v82
  %v180 = vpop.f32.mrb[0].mxu0
  %v181 = vadd.f32 0.0, %v180
  %v182 = vpop.f32.mrb[0].mxu0
  %v183 = vpop.f32.mrb[0].mxu0
  %v184 = vadd.f32 0.0, %v183
  %v185 = vpop.f32.mrb[0].mxu0
  %186 = vmatprep.mubr.bf16.mxu0 0
  %187 = vmatmul.mubr.bf16.gmra.mrb[0].mxu0 %v83
  %v188 = vpop.f32.mrb[0].mxu0
  %v189 = vadd.f32 0.0, %v188
  %v190 = vpop.f32.mrb[0].mxu0
  %v191 = vpop.f32.mrb[0].mxu0
  %v192 = vadd.f32 0.0, %v191
  %v193 = vpop.f32.mrb[0].mxu0
  %194 = vmatprep.mubr.bf16.mxu0 0
  %195 = vmatmul.mubr.bf16.gmra.mrb[0].mxu0 %v84
  %v196 = vpop.f32.mrb[0].mxu0
  %v197 = vadd.f32 0.0, %v196
  %v198 = vpop.f32.mrb[0].mxu0
  %v199 = vpop.f32.mrb[0].mxu0
  %v200 = vadd.f32 0.0, %v199
  %v201 = vpop.f32.mrb[0].mxu0
  %202 = vmatprep.mubr.bf16.mxu0 0
  %203 = vmatmul.mubr.bf16.gmra.mrb[0].mxu0 %v85
  %v204 = vpop.f32.mrb[0].mxu0
  %v205 = vadd.f32 0.0, %v204
  %v206 = vpop.f32.mrb[0].mxu0
  %v207 = vpop.f32.mrb[0].mxu0
  %v208 = vadd.f32 0.0, %v207
  %v209 = vpop.f32.mrb[0].mxu0
  %210 = vmatprep.mubr.bf16.mxu0 0
  %211 = vmatmul.mubr.bf16.gmra.mrb[0].mxu0 %v86
  %v212 = vpop.f32.mrb[0].mxu0
  %v213 = vadd.f32 0.0, %v212
  %v214 = vpop.f32.mrb[0].mxu0
  %v215 = vpop.f32.mrb[0].mxu0
  %v216 = vadd.f32 0.0, %v215
  %v217 = vpop.f32.mrb[0].mxu0
  %218 = vmatprep.mubr.bf16.mxu0 0
  %219 = vmatmul.mubr.bf16.gmra.mrb[0].mxu0 %v87
  %v220 = vpop.f32.mrb[0].mxu0
  %v221 = vadd.f32 0.0, %v220
  %v222 = vpop.f32.mrb[0].mxu0
  %v223 = vpop.f32.mrb[0].mxu0
  %v224 = vadd.f32 0.0, %v223
  %v225 = vpop.f32.mrb[0].mxu0
  %226 = vmatprep.mubr.bf16.mxu0 0
  %227 = vmatmul.mubr.bf16.gmra.mrb[0].mxu0 %v88
  %v228 = vpop.f32.mrb[0].mxu0
  %v229 = vadd.f32 0.0, %v228
  %v230 = vpop.f32.mrb[0].mxu0
  %v231 = vpop.f32.mrb[0].mxu0
  %v232 = vadd.f32 0.0, %v231
  %v233 = vpop.f32.mrb[0].mxu0
  %234 = vmatprep.mubr.bf16.mxu0 0
  %235 = vmatmul.mubr.bf16.gmra.mrb[0].mxu0 %v89
  %v236 = vpop.f32.mrb[0].mxu0
  %v237 = vadd.f32 0.0, %v236
  %v238 = vpop.f32.mrb[0].mxu0
  %v239 = vpop.f32.mrb[0].mxu0
  %v240 = vadd.f32 0.0, %v239
  %v241 = vpop.f32.mrb[0].mxu0
  %242 = vdwg.mxu0
  %v243 = vld [vmem:[%s2] sm:$0x1]
  %v245 = vlaneseq
  %v246 = vshrl.u32 %v245, 7
  %v247 = vsub.s32 0, %v246
  %v248 = vrot.slane %v243, %v247
  %v250 = vmul.f32 %v181, %v248
  %v251 = vmul.f32 %v184, %v248
  %v252 = vmul.f32 %v189, %v248
  %v253 = vmul.f32 %v192, %v248
  %v254 = vmul.f32 %v197, %v248
  %v255 = vmul.f32 %v200, %v248
  %v256 = vmul.f32 %v205, %v248
  %v257 = vmul.f32 %v208, %v248
  %v258 = vmul.f32 %v213, %v248
  %v259 = vmul.f32 %v216, %v248
  %v260 = vmul.f32 %v221, %v248
  %v261 = vmul.f32 %v224, %v248
  %v262 = vmul.f32 %v229, %v248
  %v263 = vmul.f32 %v232, %v248
  %v264 = vmul.f32 %v237, %v248
  %v265 = vmul.f32 %v240, %v248
  %v266 = vld [vmem:[%s3] sm:$0x1]
  %v268 = vlaneseq
  %v269 = vshrl.u32 %v268, 7
  %v270 = vsub.s32 0, %v269
  %v271 = vrot.slane %v266, %v270
  %v273 = vadd.f32 %v250, %v271
  %v274 = vadd.f32 %v251, %v271
  %v275 = vadd.f32 %v252, %v271
  %v276 = vadd.f32 %v253, %v271
  %v277 = vadd.f32 %v254, %v271
  %v278 = vadd.f32 %v255, %v271
  %v279 = vadd.f32 %v256, %v271
  %v280 = vadd.f32 %v257, %v271
  %v281 = vadd.f32 %v258, %v271
  %v282 = vadd.f32 %v259, %v271
  %v283 = vadd.f32 %v260, %v271
  %v284 = vadd.f32 %v261, %v271
  %v285 = vadd.f32 %v262, %v271
  %v286 = vadd.f32 %v263, %v271
  %v287 = vadd.f32 %v264, %v271
  %v288 = vadd.f32 %v265, %v271
  %v289 = vxor.u32 %v273, 2147483648
  %v290 = vxor.u32 %v274, 2147483648
  %v291 = vxor.u32 %v275, 2147483648
  %v292 = vxor.u32 %v276, 2147483648
  %v293 = vxor.u32 %v277, 2147483648
  %v294 = vxor.u32 %v278, 2147483648
  %v295 = vxor.u32 %v279, 2147483648
  %v296 = vxor.u32 %v280, 2147483648
  %v297 = vxor.u32 %v281, 2147483648
  %v298 = vxor.u32 %v282, 2147483648
  %v299 = vxor.u32 %v283, 2147483648
  %v300 = vxor.u32 %v284, 2147483648
  %v301 = vxor.u32 %v285, 2147483648
  %v302 = vxor.u32 %v286, 2147483648
  %v303 = vxor.u32 %v287, 2147483648
  %v304 = vxor.u32 %v288, 2147483648
  %v305 = vmul.f32 %v289, 1.442695
  %v306 = vpow.pop %v305
  %v307 = vmul.f32 %v290, 1.442695
  %v308 = vpow.pop %v307
  %v309 = vmul.f32 %v291, 1.442695
  %v310 = vpow.pop %v309
  %v311 = vmul.f32 %v292, 1.442695
  %v312 = vpow.pop %v311
  %v313 = vmul.f32 %v293, 1.442695
  %v314 = vpow.pop %v313
  %v315 = vmul.f32 %v294, 1.442695
  %v316 = vpow.pop %v315
  %v317 = vmul.f32 %v295, 1.442695
  %v318 = vpow.pop %v317
  %v319 = vmul.f32 %v296, 1.442695
  %v320 = vpow.pop %v319
  %v321 = vmul.f32 %v297, 1.442695
  %v322 = vpow.pop %v321
  %v323 = vmul.f32 %v298, 1.442695
  %v324 = vpow.pop %v323
  %v325 = vmul.f32 %v299, 1.442695
  %v326 = vpow.pop %v325
  %v327 = vmul.f32 %v300, 1.442695
  %v328 = vpow.pop %v327
  %v329 = vmul.f32 %v301, 1.442695
  %v330 = vpow.pop %v329
  %v331 = vmul.f32 %v302, 1.442695
  %v332 = vpow.pop %v331
  %v333 = vmul.f32 %v303, 1.442695
  %v334 = vpow.pop %v333
  %v335 = vmul.f32 %v304, 1.442695
  %v336 = vpow.pop %v335
  %v337 = vadd.f32 %v306, 1.0
  %v338 = vadd.f32 %v308, 1.0
  %v339 = vadd.f32 %v310, 1.0
  %v340 = vadd.f32 %v312, 1.0
  %v341 = vadd.f32 %v314, 1.0
  %v342 = vadd.f32 %v316, 1.0
  %v343 = vadd.f32 %v318, 1.0
  %v344 = vadd.f32 %v320, 1.0
  %v345 = vadd.f32 %v322, 1.0
  %v346 = vadd.f32 %v324, 1.0
  %v347 = vadd.f32 %v326, 1.0
  %v348 = vadd.f32 %v328, 1.0
  %v349 = vadd.f32 %v330, 1.0
  %v350 = vadd.f32 %v332, 1.0
  %v351 = vadd.f32 %v334, 1.0
  %v352 = vadd.f32 %v336, 1.0
  %v353 = vrcp.pop %v337
  %v354 = vmul.f32 1.0, %v353
  %v355 = vrcp.pop %v338
  %v356 = vmul.f32 1.0, %v355
  %v357 = vrcp.pop %v339
  %v358 = vmul.f32 1.0, %v357
  %v359 = vrcp.pop %v340
  %v360 = vmul.f32 1.0, %v359
  %v361 = vrcp.pop %v341
  %v362 = vmul.f32 1.0, %v361
  %v363 = vrcp.pop %v342
  %v364 = vmul.f32 1.0, %v363
  %v365 = vrcp.pop %v343
  %v366 = vmul.f32 1.0, %v365
  %v367 = vrcp.pop %v344
  %v368 = vmul.f32 1.0, %v367
  %v369 = vrcp.pop %v345
  %v370 = vmul.f32 1.0, %v369
  %v371 = vrcp.pop %v346
  %v372 = vmul.f32 1.0, %v371
  %v373 = vrcp.pop %v347
  %v374 = vmul.f32 1.0, %v373
  %v375 = vrcp.pop %v348
  %v376 = vmul.f32 1.0, %v375
  %v377 = vrcp.pop %v349
  %v378 = vmul.f32 1.0, %v377
  %v379 = vrcp.pop %v350
  %v380 = vmul.f32 1.0, %v379
  %v381 = vrcp.pop %v351
  %v382 = vmul.f32 1.0, %v381
  %v383 = vrcp.pop %v352
  %v384 = vmul.f32 1.0, %v383
  %v385 = vmul.f32 %v273, %v354
  %v386 = vmul.f32 %v274, %v356
  %v387 = vmul.f32 %v275, %v358
  %v388 = vmul.f32 %v276, %v360
  %v389 = vmul.f32 %v277, %v362
  %v390 = vmul.f32 %v278, %v364
  %v391 = vmul.f32 %v279, %v366
  %v392 = vmul.f32 %v280, %v368
  %v393 = vmul.f32 %v281, %v370
  %v394 = vmul.f32 %v282, %v372
  %v395 = vmul.f32 %v283, %v374
  %v396 = vmul.f32 %v284, %v376
  %v397 = vmul.f32 %v285, %v378
  %v398 = vmul.f32 %v286, %v380
  %v399 = vmul.f32 %v287, %v382
  %v400 = vmul.f32 %v288, %v384
  %v401 = vpack.c.bf16 %v386, %v385
  %v402 = vpack.c.bf16 %v388, %v387
  %v403 = vpack.c.bf16 %v390, %v389
  %v404 = vpack.c.bf16 %v392, %v391
  %v405 = vpack.c.bf16 %v394, %v393
  %v406 = vpack.c.bf16 %v396, %v395
  %v407 = vpack.c.bf16 %v398, %v397
  %v408 = vpack.c.bf16 %v400, %v399
  %v417 = vunpack.c.l.b16 %v401
  %v418 = vunpack.c.h.b16 %v401
  %v419 = vunpack.c.l.b16 %v402
  %v420 = vunpack.c.h.b16 %v402
  %v421 = vunpack.c.l.b16 %v403
  %v422 = vunpack.c.h.b16 %v403
  %v423 = vunpack.c.l.b16 %v404
  %v424 = vunpack.c.h.b16 %v404
  %v425 = vunpack.c.l.b16 %v405
  %v426 = vunpack.c.h.b16 %v405
  %v427 = vunpack.c.l.b16 %v406
  %v428 = vunpack.c.h.b16 %v406
  %v429 = vunpack.c.l.b16 %v407
  %v430 = vunpack.c.h.b16 %v407
  %v431 = vunpack.c.l.b16 %v408
  %v432 = vunpack.c.h.b16 %v408
  %v433 = vpack.c.b16 %v417, %v417
  %v434 = vpack.c.b16 %v418, %v418
  %v435 = vpack.c.b16 %v419, %v419
  %v436 = vpack.c.b16 %v420, %v420
  %v437 = vpack.c.b16 %v421, %v421
  %v438 = vpack.c.b16 %v422, %v422
  %v439 = vpack.c.b16 %v423, %v423
  %v440 = vpack.c.b16 %v424, %v424
  %v441 = vpack.c.b16 %v425, %v425
  %v442 = vpack.c.b16 %v426, %v426
  %v443 = vpack.c.b16 %v427, %v427
  %v444 = vpack.c.b16 %v428, %v428
  %v445 = vpack.c.b16 %v429, %v429
  %v446 = vpack.c.b16 %v430, %v430
  %v447 = vpack.c.b16 %v431, %v431
  %v448 = vpack.c.b16 %v432, %v432
  %465 = vst [vmem:[%s4] sm:$0xf] %v433
  %466 = vst [vmem:[%s4 + $0x4] sm:$0xf] %v434
  %467 = vst [vmem:[%s4 + $0x8] sm:$0xf] %v435
  %468 = vst [vmem:[%s4 + $0xc] sm:$0xf] %v436
  %469 = vst [vmem:[%s4 + $0x10] sm:$0xf] %v437
  %470 = vst [vmem:[%s4 + $0x14] sm:$0xf] %v438
  %471 = vst [vmem:[%s4 + $0x18] sm:$0xf] %v439
  %472 = vst [vmem:[%s4 + $0x1c] sm:$0xf] %v440
  %473 = vst [vmem:[%s4 + $0x20] sm:$0xf] %v441
  %474 = vst [vmem:[%s4 + $0x24] sm:$0xf] %v442
  %475 = vst [vmem:[%s4 + $0x28] sm:$0xf] %v443
  %476 = vst [vmem:[%s4 + $0x2c] sm:$0xf] %v444
  %477 = vst [vmem:[%s4 + $0x30] sm:$0xf] %v445
  %478 = vst [vmem:[%s4 + $0x34] sm:$0xf] %v446
  %479 = vst [vmem:[%s4 + $0x38] sm:$0xf] %v447
  %480 = vst [vmem:[%s4 + $0x3c] sm:$0xf] %v448
  // Predicated region
  $region18: #{_lambda_.12} parent=0 // pred_check
    _
  $region19: #{_lambda_.12} parent=0 // pred_check_branch
    %482 = sbr.rel (0) target = $region21
  $region20: #{_lambda_.12} parent=0 // pred_region
    _
  $region21: #{_lambda_.12} parent=0 // pred_fallthru
    _
  // Predicated region
  $region22: #{_lambda_.12} parent=0 // pred_check
    _
  $region23: #{_lambda_.12} parent=0 // pred_check_branch
    %484 = sbr.rel (0) target = $region25
  $region24: #{_lambda_.12} parent=0 // pred_region
    _
  $region25: #{_lambda_.12} parent=0 // pred_fallthru
    _

// kernel: _lambda_.17
$region0: #{_lambda_.17}
  #allocation0 [shape = 'u32[]', space=smem, size = 0x4, offset = 0x4, fixed_abs, tag = 'smem constant byte address 0x4 - core index']
  #allocation1 [shape = 'u32[144,128]{1,0:T(1,128)}', space=vmem, size = 0x12000, scoped, tag = 'internal scratch']
  %s0 = inlined_call_operand.vmem [shape: bf16[2,16,128], index: 0, kind: input, shape index: {}]
  %s1 = inlined_call_operand.vmem [shape: f32[2,1,128], index: 1, kind: input, shape index: {}]
  %s2 = inlined_call_operand.vmem [shape: bf16[128,128], index: 2, kind: input, shape index: {}]
  %s3 = inlined_call_operand.vmem [shape: f32[1,128], index: 3, kind: input, shape index: {}]
  %s4 = inlined_call_operand.vmem [shape: f32[1,128], index: 4, kind: input, shape index: {}]
  %s5 = inlined_call_operand.vmem [shape: bf16[2,16,128], index: 5, kind: output, shape index: {}]
  %s6 = sld [smem:[#allocation0]]
  $region53: #{_lambda_.17} parent=0
    _
  %s8 = ssub.s32 1, %s6
  %s9 = scalar_select 0, %s8, %s6
  loop: start=0, step=1, limit=4
  $region2: #{_lambda_.17} parent=0 // loop_pre_header
    _
  $region3: #{_lambda_.17} parent=0 // loop_header
    %s11 = sphi 0, %s15
    %p12 = scmp.ge.s32.totalorder %s11, 4
    %s18 = sphi 0, %s30
    %s19 = sphi 0, %s26
    %s20 = sphi 0, %s18
    %s21 = sphi 0, %s19
    %s22 = sphi 0, %s20
    %s23 = sphi 0, %s21
    %s35 = sphi 0, %s37
    %s38 = sphi 0, %s35
    %s39 = sphi 0, %s38
    %s55 = sphi 0, %s39
    %s61 = sphi 0, %s63
    %s64 = sphi 0, %s61
    %s65 = sphi 0, %s64
    %s81 = sphi 0, %s65
    %s85 = sphi 0, %s85
    %s87 = sphi 0, %s85
    %s88 = sphi 0, %s87
    %s102 = sphi 0, %s88
    %s106 = sphi 0, %s106
    %s108 = sphi 0, %s106
    %s109 = sphi 0, %s108
    %s123 = sphi 0, %s109
    %s127 = sphi 0, %s127
    %s129 = sphi 0, %s127
    %s130 = sphi 0, %s129
    %s144 = sphi 0, %s130
    %s152 = sphi 0, %s154
    %s155 = sphi 0, %s152
    %s156 = sphi 0, %s155
    %s172 = sphi 0, %s156
  $region4: #{_lambda_.17} parent=0 // loop_header_branch
    %14 = sbr.rel (%p12) target = $region8
  $region5: #{_lambda_.17} parent=0 // loop_body
    %s16 = ssub.s32 %s11, 1
    %s17 = ssub.s32 %s11, 2
    %s24 = sadd.s32 1, %s19
    %p25 = scmp.ge.s32.totalorder %s24, 1
    %s26 = scalar_select %p25, 0, %s24
    %s27 = sadd.s32 1, %s18
    %s28 = scalar_select %p25, %s27, %s18
    %p29 = scmp.ge.s32.totalorder %s28, 2
    %s30 = scalar_select %p29, 0, %s28
    %s31 = ssub.s32 %s18, %s30
    %s32 = ssub.s32 %s19, %s26
    %s33 = sor.u32 %s31, %s32
    %p34 = scmp.eq.s32.totalorder %s33, 0
    %s36 = sadd.s32 %s35, 1
    %s37 = scalar_select %p34, %s35, %s36
    %p40 = pneg %p34
    %p41 = scmp.eq.s32.totalorder %s11, 1
    %p42 = por %p40, %p41
    %p43 = scmp.ne.s32.totalorder %s35, %s38
    %p44 = scmp.eq.s32.totalorder %s11, 0
    %p45 = por %p43, %p44
    %p46 = scmp.ne.s32.totalorder %s35, %s38
    %p47 = scmp.eq.s32.totalorder %s16, 1
    %p48 = por %p46, %p47
    %p49 = scmp.ne.s32.totalorder %s38, %s39
    %p50 = scmp.eq.s32.totalorder %s16, 0
    %p51 = por %p49, %p50
    %p52 = scmp.ne.s32.totalorder %s38, %s39
    %p53 = scmp.eq.s32.totalorder %s17, 1
    %p54 = por %p52, %p53
    %p56 = scmp.ne.s32.totalorder %s39, %s55
    %p57 = scmp.eq.s32.totalorder %s17, 0
    %p58 = por %p56, %p57
    %s59 = ssub.s32 %s18, %s30
    %p60 = scmp.eq.s32.totalorder %s59, 0
    %s62 = sadd.s32 %s61, 1
    %s63 = scalar_select %p60, %s61, %s62
    %p66 = pneg %p60
    %p67 = scmp.eq.s32.totalorder %s11, 1
    %p68 = por %p66, %p67
    %p69 = scmp.ne.s32.totalorder %s61, %s64
    %p70 = scmp.eq.s32.totalorder %s11, 0
    %p71 = por %p69, %p70
    %p72 = scmp.ne.s32.totalorder %s61, %s64
    %p73 = scmp.eq.s32.totalorder %s16, 1
    %p74 = por %p72, %p73
    %p75 = scmp.ne.s32.totalorder %s64, %s65
    %p76 = scmp.eq.s32.totalorder %s16, 0
    %p77 = por %p75, %p76
    %p78 = scmp.ne.s32.totalorder %s64, %s65
    %p79 = scmp.eq.s32.totalorder %s17, 1
    %p80 = por %p78, %p79
    %p82 = scmp.ne.s32.totalorder %s65, %s81
    %p83 = scmp.eq.s32.totalorder %s17, 0
    %p84 = por %p82, %p83
    %s86 = sadd.s32 %s85, 1
    %p89 = scmp.eq.s32.totalorder %s11, 1
    %p90 = scmp.ne.s32.totalorder %s85, %s87
    %p91 = scmp.eq.s32.totalorder %s11, 0
    %p92 = por %p90, %p91
    %p93 = scmp.ne.s32.totalorder %s85, %s87
    %p94 = scmp.eq.s32.totalorder %s16, 1
    %p95 = por %p93, %p94
    %p96 = scmp.ne.s32.totalorder %s87, %s88
    %p97 = scmp.eq.s32.totalorder %s16, 0
    %p98 = por %p96, %p97
    %p99 = scmp.ne.s32.totalorder %s87, %s88
    %p100 = scmp.eq.s32.totalorder %s17, 1
    %p101 = por %p99, %p100
    %p103 = scmp.ne.s32.totalorder %s88, %s102
    %p104 = scmp.eq.s32.totalorder %s17, 0
    %p105 = por %p103, %p104
    %s107 = sadd.s32 %s106, 1
    %p110 = scmp.eq.s32.totalorder %s11, 1
    %p111 = scmp.ne.s32.totalorder %s106, %s108
    %p112 = scmp.eq.s32.totalorder %s11, 0
    %p113 = por %p111, %p112
    %p114 = scmp.ne.s32.totalorder %s106, %s108
    %p115 = scmp.eq.s32.totalorder %s16, 1
    %p116 = por %p114, %p115
    %p117 = scmp.ne.s32.totalorder %s108, %s109
    %p118 = scmp.eq.s32.totalorder %s16, 0
    %p119 = por %p117, %p118
    %p120 = scmp.ne.s32.totalorder %s108, %s109
    %p121 = scmp.eq.s32.totalorder %s17, 1
    %p122 = por %p120, %p121
    %p124 = scmp.ne.s32.totalorder %s109, %s123
    %p125 = scmp.eq.s32.totalorder %s17, 0
    %p126 = por %p124, %p125
    %s128 = sadd.s32 %s127, 1
    %p131 = scmp.eq.s32.totalorder %s11, 1
    %p132 = scmp.ne.s32.totalorder %s127, %s129
    %p133 = scmp.eq.s32.totalorder %s11, 0
    %p134 = por %p132, %p133
    %p135 = scmp.ne.s32.totalorder %s127, %s129
    %p136 = scmp.eq.s32.totalorder %s16, 1
    %p137 = por %p135, %p136
    %p138 = scmp.ne.s32.totalorder %s129, %s130
    %p139 = scmp.eq.s32.totalorder %s16, 0
    %p140 = por %p138, %p139
    %p141 = scmp.ne.s32.totalorder %s129, %s130
    %p142 = scmp.eq.s32.totalorder %s17, 1
    %p143 = por %p141, %p142
    %p145 = scmp.ne.s32.totalorder %s130, %s144
    %p146 = scmp.eq.s32.totalorder %s17, 0
    %p147 = por %p145, %p146
    %s148 = ssub.s32 %s18, %s30
    %s149 = ssub.s32 %s19, %s26
    %s150 = sor.u32 %s148, %s149
    %p151 = scmp.eq.s32.totalorder %s150, 0
    %s153 = sadd.s32 %s152, 1
    %s154 = scalar_select %p151, %s152, %s153
    %p157 = pneg %p151
    %p158 = scmp.eq.s32.totalorder %s11, 1
    %p159 = por %p157, %p158
    %p160 = scmp.ne.s32.totalorder %s152, %s155
    %p161 = scmp.eq.s32.totalorder %s11, 0
    %p162 = por %p160, %p161
    %p163 = scmp.ne.s32.totalorder %s152, %s155
    %p164 = scmp.eq.s32.totalorder %s16, 1
    %p165 = por %p163, %p164
    %p166 = scmp.ne.s32.totalorder %s155, %s156
    %p167 = scmp.eq.s32.totalorder %s16, 0
    %p168 = por %p166, %p167
    %p169 = scmp.ne.s32.totalorder %s155, %s156
    %p170 = scmp.eq.s32.totalorder %s17, 1
    %p171 = por %p169, %p170
    %p173 = scmp.ne.s32.totalorder %s156, %s172
    %p174 = scmp.eq.s32.totalorder %s17, 0
    %p175 = por %p173, %p174
    %p176 = scmp.le.s32.totalorder 1, %s11
    %p177 = scmp.lt.s32.totalorder %s11, 3
    %p178 = pnand %p176, %p177
    %p179 = pneg %p178
    // Predicated region
    $region9: #{_lambda_.17} parent=5 // pred_check
      _
    $region10: #{_lambda_.17} parent=5 // pred_check_branch
      %181 = sbr.rel (%p178) target = $region12
    $region11: #{_lambda_.17} parent=5 // pred_region
      %s182 = ssub.s32 %s11, 1
      // Predicated region
      $region13: #{_lambda_.17} parent=11 // pred_check
        %p183 = pneg %p98
      $region14: #{_lambda_.17} parent=11 // pred_check_branch
        %185 = sbr.rel (%p183) target = $region16
      $region15: #{_lambda_.17} parent=11 // pred_region
        _
      $region16: #{_lambda_.17} parent=11 // pred_fallthru
        _
      // Predicated region
      $region17: #{_lambda_.17} parent=11 // pred_check
        %p186 = pneg %p119
      $region18: #{_lambda_.17} parent=11 // pred_check_branch
        %188 = sbr.rel (%p186) target = $region20
      $region19: #{_lambda_.17} parent=11 // pred_region
        _
      $region20: #{_lambda_.17} parent=11 // pred_fallthru
        _
      // Predicated region
      $region21: #{_lambda_.17} parent=11 // pred_check
        %p189 = pneg %p140
      $region22: #{_lambda_.17} parent=11 // pred_check_branch
        %191 = sbr.rel (%p189) target = $region24
      $region23: #{_lambda_.17} parent=11 // pred_region
        _
      $region24: #{_lambda_.17} parent=11 // pred_fallthru
        _
    $region12: #{_lambda_.17} parent=5 // pred_fallthru
      _
    %p192 = scmp.lt.s32.totalorder %s11, 2
    // Predicated region
    $region25: #{_lambda_.17} parent=5 // pred_check
      %p193 = pneg %p192
    $region26: #{_lambda_.17} parent=5 // pred_check_branch
      %195 = sbr.rel (%p193) target = $region28
    $region27: #{_lambda_.17} parent=5 // pred_region
      // Predicated region
      $region29: #{_lambda_.17} parent=27 // pred_check
        %p196 = pneg %p45
      $region30: #{_lambda_.17} parent=27 // pred_check_branch
        %198 = sbr.rel (%p196) target = $region32
      $region31: #{_lambda_.17} parent=27 // pred_region
        %s199 = smul.u32 2, %s19
        %p200 = scmp.lt.s32.totalorder %s18, 1
        %s201 = scalar_select %p200, %s18, 1
        %p202 = scmp.lt.s32.totalorder %s199, 1
        %s203 = scalar_select %p202, %s199, 1
        %s204 = smul.addr %s201, 2
        %s205 = sadd.s32 %s203, %s204
        %s206 = smul.addr %s205, 4
        %s207 = scalar_lea.vmem %s0, %s206
        %s208 = smul.u32 2, %s19
      $region32: #{_lambda_.17} parent=27 // pred_fallthru
        _
      // Predicated region
      $region33: #{_lambda_.17} parent=27 // pred_check
        %p209 = pneg %p71
      $region34: #{_lambda_.17} parent=27 // pred_check_branch
        %211 = sbr.rel (%p209) target = $region36
      $region35: #{_lambda_.17} parent=27 // pred_region
        %p212 = scmp.lt.s32.totalorder %s18, 1
        %s213 = scalar_select %p212, %s18, 1
        %s214 = scalar_lea.vmem %s1, %s213
      $region36: #{_lambda_.17} parent=27 // pred_fallthru
        _
    $region28: #{_lambda_.17} parent=5 // pred_fallthru
      _
    %p215 = scmp.le.s32.totalorder 1, %s11
    %p216 = scmp.lt.s32.totalorder %s11, 3
    %p217 = pnand %p215, %p216
    %p218 = pneg %p217
    // Predicated region
    $region37: #{_lambda_.17} parent=5 // pred_check
      _
    $region38: #{_lambda_.17} parent=5 // pred_check_branch
      %220 = sbr.rel (%p217) target = $region40
    $region39: #{_lambda_.17} parent=5 // pred_region
      %s221 = ssub.s32 %s11, 1
      %s222 = smul.u32 2, %s21
      %p223 = scmp.lt.s32.totalorder %s20, 1
      %s224 = scalar_select %p223, %s20, 1
      %p225 = scmp.lt.s32.totalorder %s222, 1
      %s226 = scalar_select %p225, %s222, 1
      %s227 = smul.addr %s224, 2
      %s228 = sadd.s32 %s226, %s227
      %s229 = smul.addr %s228, 4
      %s230 = scalar_lea.vmem %s0, %s229
      %p231 = pneg %p51
      %p232 = pneg %p48
      %p233 = scmp.lt.s32.totalorder %s20, 1
      %s234 = scalar_select %p233, %s20, 1
      %s235 = scalar_lea.vmem %s1, %s234
      %p236 = pneg %p77
      %p237 = pneg %p74
      %p238 = pneg %p98
      %p239 = pneg %p95
      %p240 = pneg %p119
      %p241 = pneg %p116
      %p242 = pneg %p140
      %p243 = pneg %p137
      %p244 = pneg %p168
      %p245 = pneg %p165
      %s246 = smul.u32 2, %s21
      %p247 = scmp.lt.s32.totalorder %s20, 1
      %s248 = scalar_select %p247, %s20, 1
      %p249 = scmp.lt.s32.totalorder %s246, 1
      %s250 = scalar_select %p249, %s246, 1
      %s251 = smul.addr %s248, 2
      %s252 = sadd.s32 %s250, %s251
      %s253 = smul.addr %s252, 4
      %s254 = scalar_lea.vmem %s5, %s253
      %s255 = smul.u32 2, %s21
      %p256 = scmp.lt.s32.totalorder %s20, 1
      %s257 = scalar_select %p256, %s20, 1
      %p258 = scmp.lt.s32.totalorder %s255, 1
      %s259 = scalar_select %p258, %s255, 1
      %s260 = smul.addr %s257, 2
      %s261 = sadd.s32 %s259, %s260
      %s262 = smul.addr %s261, 4
      %s263 = scalar_lea.vmem %s0, %s262
      %s264 = smul.u32 2, %s21
      %p265 = scmp.lt.s32.totalorder %s20, 1
      %s266 = scalar_select %p265, %s20, 1
      %s267 = scalar_lea.vmem %s1, %s266
      %s268 = smul.u32 2, %s21
      %p269 = scmp.lt.s32.totalorder %s20, 1
      %s270 = scalar_select %p269, %s20, 1
      %p271 = scmp.lt.s32.totalorder %s268, 1
      %s272 = scalar_select %p271, %s268, 1
      %s273 = smul.addr %s270, 2
      %s274 = sadd.s32 %s272, %s273
      %s275 = smul.addr %s274, 4
      %s276 = scalar_lea.vmem %s5, %s275
      %s277 = smul.u32 2, %s21
      %v279 = vld [vmem:[%s263] sm:$0xf]
      %v280 = vld [vmem:[%s263 + $0x4] sm:$0xf]
      %v281 = vld [vmem:[%s267] sm:$0x1]
      %v282 = vpack.c.bf16 %v281, %v281
      %v284 = vpack.i.b16 %v282, %v282
      %v286 = vlaneseq
      %v287 = vshrl.u32 %v286, 7
      %v288 = vsub.s32 0, %v287
      %v289 = vrot.slane %v284, %v288
      %v291 = vunpack.c.l.b16 %v289
      %v292 = vpack.c.b16 %v291, %v291
      %v294 = vmul.bf16 %v279, %v292
      %v295 = vmul.bf16 %v280, %v292
      %v296 = vld [vmem:[%s2] sm:$0xf]
      %v297 = vld [vmem:[%s2 + $0x4] sm:$0xf]
      %v298 = vld [vmem:[%s2 + $0x8] sm:$0xf]
      %v299 = vld [vmem:[%s2 + $0xc] sm:$0xf]
      %v300 = vld [vmem:[%s2 + $0x10] sm:$0xf]
      %v301 = vld [vmem:[%s2 + $0x14] sm:$0xf]
      %v302 = vld [vmem:[%s2 + $0x18] sm:$0xf]
      %v303 = vld [vmem:[%s2 + $0x1c] sm:$0xf]
      %v304 = vld [vmem:[%s2 + $0x20] sm:$0xf]
      %v305 = vld [vmem:[%s2 + $0x24] sm:$0xf]
      %v306 = vld [vmem:[%s2 + $0x28] sm:$0xf]
      %v307 = vld [vmem:[%s2 + $0x2c] sm:$0xf]
      %v308 = vld [vmem:[%s2 + $0x30] sm:$0xf]
      %v309 = vld [vmem:[%s2 + $0x34] sm:$0xf]
      %v310 = vld [vmem:[%s2 + $0x38] sm:$0xf]
      %v311 = vld [vmem:[%s2 + $0x3c] sm:$0xf]
      %v314 = vunpack.c.l.b16 %v294
      %v315 = vunpack.c.l.b16 %v295
      %v316 = vpack.c.b16 %v315, %v314
      %v334 = vunpack.c.l.b16 %v296
      %v335 = vunpack.c.l.b16 %v297
      %v336 = vunpack.c.l.b16 %v298
      %v337 = vunpack.c.l.b16 %v299
      %v338 = vunpack.c.l.b16 %v300
      %v339 = vunpack.c.l.b16 %v301
      %v340 = vunpack.c.l.b16 %v302
      %v341 = vunpack.c.l.b16 %v303
      %v342 = vunpack.c.l.b16 %v304
      %v343 = vunpack.c.l.b16 %v305
      %v344 = vunpack.c.l.b16 %v306
      %v345 = vunpack.c.l.b16 %v307
      %v346 = vunpack.c.l.b16 %v308
      %v347 = vunpack.c.l.b16 %v309
      %v348 = vunpack.c.l.b16 %v310
      %v349 = vunpack.c.l.b16 %v311
      %v350 = vpack.c.b16 %v335, %v334
      %v351 = vpack.c.b16 %v337, %v336
      %v352 = vpack.c.b16 %v339, %v338
      %v353 = vpack.c.b16 %v341, %v340
      %v354 = vpack.c.b16 %v343, %v342
      %v355 = vpack.c.b16 %v345, %v344
      %v356 = vpack.c.b16 %v347, %v346
      %v357 = vpack.c.b16 %v349, %v348
      %366 = vmatprep.subr.bf16.mxu0 0
      %367 = vmatpush1.bf16.msra.mxu0 %v350
      %368 = vmatprep.subr.bf16.mxu0 0
      %369 = vmatpush1.bf16.msra.mxu0 %v351
      %370 = vmatprep.subr.bf16.mxu0 0
      %371 = vmatpush1.bf16.msra.mxu0 %v352
      %372 = vmatprep.subr.bf16.mxu0 0
      %373 = vmatpush1.bf16.msra.mxu0 %v353
      %374 = vmatprep.subr.bf16.mxu0 0
      %375 = vmatpush1.bf16.msra.mxu0 %v354
      %376 = vmatprep.subr.bf16.mxu0 0
      %377 = vmatpush1.bf16.msra.mxu0 %v355
      %378 = vmatprep.subr.bf16.mxu0 0
      %379 = vmatpush1.bf16.msra.mxu0 %v356
      %380 = vmatprep.subr.bf16.mxu0 0
      %381 = vmatpush1.bf16.msra.mxu0 %v357
      %382 = vmatprep.subr.bf16.mxu0 0
      %383 = vmatpush1.bf16.msra.mxu0 0
      %384 = vmatprep.subr.bf16.mxu0 0
      %385 = vmatpush1.bf16.msra.mxu0 0
      %386 = vmatprep.subr.bf16.mxu0 0
      %387 = vmatpush1.bf16.msra.mxu0 0
      %388 = vmatprep.subr.bf16.mxu0 0
      %389 = vmatpush1.bf16.msra.mxu0 0
      %390 = vmatprep.subr.bf16.mxu0 0
      %391 = vmatpush1.bf16.msra.mxu0 0
      %392 = vmatprep.subr.bf16.mxu0 0
      %393 = vmatpush1.bf16.msra.mxu0 0
      %394 = vmatprep.subr.bf16.mxu0 0
      %395 = vmatpush1.bf16.msra.mxu0 0
      %396 = vmatprep.subr.bf16.mxu0 0
      %397 = vmatpush1.bf16.msra.mxu0 0
      %398 = vmatprep.mubr.bf16.mxu0 0
      %399 = vmatmul.mubr.bf16.gmra.mrb[0].mxu0 %v316
      %v400 = vpop.f32.mrb[0].mxu0
      %v401 = vadd.f32 0.0, %v400
      %v402 = vpop.f32.mrb[0].mxu0
      %v403 = vpop.f32.mrb[0].mxu0
      %v404 = vadd.f32 0.0, %v403
      %v405 = vpop.f32.mrb[0].mxu0
      %406 = vdwg.mxu0
      %v407 = vld [vmem:[%s3] sm:$0x1]
      %v409 = vlaneseq
      %v410 = vshrl.u32 %v409, 7
      %v411 = vsub.s32 0, %v410
      %v412 = vrot.slane %v407, %v411
      %v414 = vmul.f32 %v401, %v412
      %v415 = vmul.f32 %v404, %v412
      %v416 = vld [vmem:[%s4] sm:$0x1]
      %v418 = vlaneseq
      %v419 = vshrl.u32 %v418, 7
      %v420 = vsub.s32 0, %v419
      %v421 = vrot.slane %v416, %v420
      %v423 = vadd.f32 %v414, %v421
      %v424 = vadd.f32 %v415, %v421
      %v425 = vpack.c.bf16 %v424, %v423
      %v427 = vunpack.c.l.b16 %v425
      %v428 = vunpack.c.h.b16 %v425
      %v429 = vpack.c.b16 %v427, %v427
      %v430 = vpack.c.b16 %v428, %v428
      %433 = vst [vmem:[%s276] sm:$0xf] %v429
      %434 = vst [vmem:[%s276 + $0x4] sm:$0xf] %v430
      %s435 = smul.u32 2, %s21
      %p436 = scmp.lt.s32.totalorder %s20, 1
      %s437 = scalar_select %p436, %s20, 1
      %p438 = scmp.lt.s32.totalorder %s435, 1
      %s439 = scalar_select %p438, %s435, 1
      %s440 = smul.addr %s437, 2
      %s441 = sadd.s32 %s439, %s440
      %s442 = smul.addr %s441, 4
      %s443 = scalar_lea.vmem %s5, %s442
      // Predicated region
      $region41: #{_lambda_.17} parent=39 // pred_check
        %p444 = pneg %p165
      $region42: #{_lambda_.17} parent=39 // pred_check_branch
        %446 = sbr.rel (%p444) target = $region44
      $region43: #{_lambda_.17} parent=39 // pred_region
        %s447 = smul.u32 2, %s21
      $region44: #{_lambda_.17} parent=39 // pred_fallthru
        _
    $region40: #{_lambda_.17} parent=5 // pred_fallthru
      _
    %p448 = scmp.le.s32.totalorder 2, %s11
    // Predicated region
    $region45: #{_lambda_.17} parent=5 // pred_check
      %p449 = pneg %p448
    $region46: #{_lambda_.17} parent=5 // pred_check_branch
      %451 = sbr.rel (%p449) target = $region48
    $region47: #{_lambda_.17} parent=5 // pred_region
      %s452 = ssub.s32 %s11, 2
      // Predicated region
      $region49: #{_lambda_.17} parent=47 // pred_check
        %p453 = pneg %p171
      $region50: #{_lambda_.17} parent=47 // pred_check_branch
        %455 = sbr.rel (%p453) target = $region52
      $region51: #{_lambda_.17} parent=47 // pred_region
        %s456 = smul.u32 2, %s23
        %p457 = scmp.lt.s32.totalorder %s22, 1
        %s458 = scalar_select %p457, %s22, 1
        %p459 = scmp.lt.s32.totalorder %s456, 1
        %s460 = scalar_select %p459, %s456, 1
        %s461 = smul.addr %s458, 2
        %s462 = sadd.s32 %s460, %s461
        %s463 = smul.addr %s462, 4
        %s464 = scalar_lea.vmem %s5, %s463
      $region52: #{_lambda_.17} parent=47 // pred_fallthru
        _
    $region48: #{_lambda_.17} parent=5 // pred_fallthru
      _
  $region6: #{_lambda_.17} parent=0 // loop_footer
    %s15 = sadd.s32 1, %s11
  $region7: #{_lambda_.17} parent=0 // loop_footer_branch
    %10 = sbr.rel target = $region3
  $region8: #{_lambda_.17} parent=0 // loop_exit
    _

// kernel: _lambda_.13
$region0: #{_lambda_.13}
  #allocation0 [shape = 'u32[]', space=smem, size = 0x4, offset = 0x4, fixed_abs, tag = 'smem constant byte address 0x4 - core index']
  #allocation1 [shape = 'u32[144,128]{1,0:T(1,128)}', space=vmem, size = 0x12000, scoped, tag = 'internal scratch']
  #allocation2 [shape = 'f32[1,128]{1,0:T(1,128)}', space=vmem, size = 0x200, scoped, tag = 'scratch operand']
  %s0 = inlined_call_operand.vmem [shape: bf16[2,10,10,128], index: 0, kind: input, shape index: {}, may-alias: {0,1,2}]
  %s1 = inlined_call_operand.vmem [shape: bf16[2,10,10,128], index: 1, kind: input, shape index: {}, may-alias: {0,1,2}]
  %s2 = inlined_call_operand.vmem [shape: bf16[2,10,10,128], index: 2, kind: input, shape index: {}, may-alias: {0,1,2}]
  %s3 = inlined_call_operand.vmem [shape: f32[9,128], index: 3, kind: input, shape index: {}]
  %s4 = inlined_call_operand.vmem [shape: f32[1,128], index: 4, kind: input, shape index: {}]
  %s5 = inlined_call_operand.vmem [shape: f32[1,128], index: 5, kind: input, shape index: {}]
  %s6 = inlined_call_operand.vmem [shape: f32[8,128], index: 6, kind: input, shape index: {}]
  %s7 = inlined_call_operand.vmem [shape: f32[8,128], index: 7, kind: input, shape index: {}]
  %s8 = inlined_call_operand.vmem [shape: bf16[2,8,8,128], index: 8, kind: output, shape index: {0}]
  %s9 = inlined_call_operand.vmem [shape: f32[2,1,128], index: 9, kind: output, shape index: {1}]
  %10 = xla_tuple %s8, %s9
  %s11 = sld [smem:[#allocation0]]
  $region81: #{_lambda_.13} parent=0
    _
  %s13 = ssub.s32 1, %s11
  %s14 = scalar_select 0, %s13, %s11
  loop: start=0, step=1, limit=4
  $region2: #{_lambda_.13} parent=0 // loop_pre_header
    _
  $region3: #{_lambda_.13} parent=0 // loop_header
    %s16 = sphi 0, %s20
    %p17 = scmp.ge.s32.totalorder %s16, 4
    %s23 = sphi 0, %s35
    %s24 = sphi 0, %s31
    %s25 = sphi 0, %s23
    %s26 = sphi 0, %s24
    %s27 = sphi 0, %s25
    %s28 = sphi 0, %s26
    %s40 = sphi 0, %s42
    %s43 = sphi 0, %s40
    %s44 = sphi 0, %s43
    %s60 = sphi 0, %s44
    %s72 = sphi 0, %s74
    %s75 = sphi 0, %s72
    %s76 = sphi 0, %s75
    %s92 = sphi 0, %s76
    %s106 = sphi 0, %s108
    %s109 = sphi 0, %s106
    %s110 = sphi 0, %s109
    %s126 = sphi 0, %s110
    %s130 = sphi 0, %s130
    %s132 = sphi 0, %s130
    %s133 = sphi 0, %s132
    %s147 = sphi 0, %s133
    %s151 = sphi 0, %s151
    %s153 = sphi 0, %s151
    %s154 = sphi 0, %s153
    %s168 = sphi 0, %s154
    %s172 = sphi 0, %s172
    %s174 = sphi 0, %s172
    %s175 = sphi 0, %s174
    %s189 = sphi 0, %s175
    %s193 = sphi 0, %s193
    %s195 = sphi 0, %s193
    %s196 = sphi 0, %s195
    %s210 = sphi 0, %s196
    %s214 = sphi 0, %s214
    %s216 = sphi 0, %s214
    %s217 = sphi 0, %s216
    %s231 = sphi 0, %s217
    %s239 = sphi 0, %s241
    %s242 = sphi 0, %s239
    %s243 = sphi 0, %s242
    %s259 = sphi 0, %s243
    %s265 = sphi 0, %s267
    %s268 = sphi 0, %s265
    %s269 = sphi 0, %s268
    %s285 = sphi 0, %s269
  $region4: #{_lambda_.13} parent=0 // loop_header_branch
    %19 = sbr.rel (%p17) target = $region8
  $region5: #{_lambda_.13} parent=0 // loop_body
    %s21 = ssub.s32 %s16, 1
    %s22 = ssub.s32 %s16, 2
    %s29 = sadd.s32 1, %s24
    %p30 = scmp.ge.s32.totalorder %s29, 1
    %s31 = scalar_select %p30, 0, %s29
    %s32 = sadd.s32 1, %s23
    %s33 = scalar_select %p30, %s32, %s23
    %p34 = scmp.ge.s32.totalorder %s33, 2
    %s35 = scalar_select %p34, 0, %s33
    %s36 = ssub.s32 %s23, %s35
    %s37 = ssub.s32 %s24, %s31
    %s38 = sor.u32 %s36, %s37
    %p39 = scmp.eq.s32.totalorder %s38, 0
    %s41 = sadd.s32 %s40, 1
    %s42 = scalar_select %p39, %s40, %s41
    %p45 = pneg %p39
    %p46 = scmp.eq.s32.totalorder %s16, 1
    %p47 = por %p45, %p46
    %p48 = scmp.ne.s32.totalorder %s40, %s43
    %p49 = scmp.eq.s32.totalorder %s16, 0
    %p50 = por %p48, %p49
    %p51 = scmp.ne.s32.totalorder %s40, %s43
    %p52 = scmp.eq.s32.totalorder %s21, 1
    %p53 = por %p51, %p52
    %p54 = scmp.ne.s32.totalorder %s43, %s44
    %p55 = scmp.eq.s32.totalorder %s21, 0
    %p56 = por %p54, %p55
    %p57 = scmp.ne.s32.totalorder %s43, %s44
    %p58 = scmp.eq.s32.totalorder %s22, 1
    %p59 = por %p57, %p58
    %p61 = scmp.ne.s32.totalorder %s44, %s60
    %p62 = scmp.eq.s32.totalorder %s22, 0
    %p63 = por %p61, %p62
    %s64 = sadd.s32 %s24, 1
    %s65 = smul.u32 %s64, 8
    %s66 = sadd.s32 %s31, 1
    %s67 = smul.u32 %s66, 8
    %s68 = ssub.s32 %s23, %s35
    %s69 = ssub.s32 %s65, %s67
    %s70 = sor.u32 %s68, %s69
    %p71 = scmp.eq.s32.totalorder %s70, 0
    %s73 = sadd.s32 %s72, 1
    %s74 = scalar_select %p71, %s72, %s73
    %p77 = pneg %p71
    %p78 = scmp.eq.s32.totalorder %s16, 1
    %p79 = por %p77, %p78
    %p80 = scmp.ne.s32.totalorder %s72, %s75
    %p81 = scmp.eq.s32.totalorder %s16, 0
    %p82 = por %p80, %p81
    %p83 = scmp.ne.s32.totalorder %s72, %s75
    %p84 = scmp.eq.s32.totalorder %s21, 1
    %p85 = por %p83, %p84
    %p86 = scmp.ne.s32.totalorder %s75, %s76
    %p87 = scmp.eq.s32.totalorder %s21, 0
    %p88 = por %p86, %p87
    %p89 = scmp.ne.s32.totalorder %s75, %s76
    %p90 = scmp.eq.s32.totalorder %s22, 1
    %p91 = por %p89, %p90
    %p93 = scmp.ne.s32.totalorder %s76, %s92
    %p94 = scmp.eq.s32.totalorder %s22, 0
    %p95 = por %p93, %p94
    %s96 = sadd.s32 %s24, 1
    %s97 = smul.u32 %s96, 8
    %s98 = sadd.s32 %s97, 1
    %s99 = sadd.s32 %s31, 1
    %s100 = smul.u32 %s99, 8
    %s101 = sadd.s32 %s100, 1
    %s102 = ssub.s32 %s23, %s35
    %s103 = ssub.s32 %s98, %s101
    %s104 = sor.u32 %s102, %s103
    %p105 = scmp.eq.s32.totalorder %s104, 0
    %s107 = sadd.s32 %s106, 1
    %s108 = scalar_select %p105, %s106, %s107
    %p111 = pneg %p105
    %p112 = scmp.eq.s32.totalorder %s16, 1
    %p113 = por %p111, %p112
    %p114 = scmp.ne.s32.totalorder %s106, %s109
    %p115 = scmp.eq.s32.totalorder %s16, 0
    %p116 = por %p114, %p115
    %p117 = scmp.ne.s32.totalorder %s106, %s109
    %p118 = scmp.eq.s32.totalorder %s21, 1
    %p119 = por %p117, %p118
    %p120 = scmp.ne.s32.totalorder %s109, %s110
    %p121 = scmp.eq.s32.totalorder %s21, 0
    %p122 = por %p120, %p121
    %p123 = scmp.ne.s32.totalorder %s109, %s110
    %p124 = scmp.eq.s32.totalorder %s22, 1
    %p125 = por %p123, %p124
    %p127 = scmp.ne.s32.totalorder %s110, %s126
    %p128 = scmp.eq.s32.totalorder %s22, 0
    %p129 = por %p127, %p128
    %s131 = sadd.s32 %s130, 1
    %p134 = scmp.eq.s32.totalorder %s16, 1
    %p135 = scmp.ne.s32.totalorder %s130, %s132
    %p136 = scmp.eq.s32.totalorder %s16, 0
    %p137 = por %p135, %p136
    %p138 = scmp.ne.s32.totalorder %s130, %s132
    %p139 = scmp.eq.s32.totalorder %s21, 1
    %p140 = por %p138, %p139
    %p141 = scmp.ne.s32.totalorder %s132, %s133
    %p142 = scmp.eq.s32.totalorder %s21, 0
    %p143 = por %p141, %p142
    %p144 = scmp.ne.s32.totalorder %s132, %s133
    %p145 = scmp.eq.s32.totalorder %s22, 1
    %p146 = por %p144, %p145
    %p148 = scmp.ne.s32.totalorder %s133, %s147
    %p149 = scmp.eq.s32.totalorder %s22, 0
    %p150 = por %p148, %p149
    %s152 = sadd.s32 %s151, 1
    %p155 = scmp.eq.s32.totalorder %s16, 1
    %p156 = scmp.ne.s32.totalorder %s151, %s153
    %p157 = scmp.eq.s32.totalorder %s16, 0
    %p158 = por %p156, %p157
    %p159 = scmp.ne.s32.totalorder %s151, %s153
    %p160 = scmp.eq.s32.totalorder %s21, 1
    %p161 = por %p159, %p160
    %p162 = scmp.ne.s32.totalorder %s153, %s154
    %p163 = scmp.eq.s32.totalorder %s21, 0
    %p164 = por %p162, %p163
    %p165 = scmp.ne.s32.totalorder %s153, %s154
    %p166 = scmp.eq.s32.totalorder %s22, 1
    %p167 = por %p165, %p166
    %p169 = scmp.ne.s32.totalorder %s154, %s168
    %p170 = scmp.eq.s32.totalorder %s22, 0
    %p171 = por %p169, %p170
    %s173 = sadd.s32 %s172, 1
    %p176 = scmp.eq.s32.totalorder %s16, 1
    %p177 = scmp.ne.s32.totalorder %s172, %s174
    %p178 = scmp.eq.s32.totalorder %s16, 0
    %p179 = por %p177, %p178
    %p180 = scmp.ne.s32.totalorder %s172, %s174
    %p181 = scmp.eq.s32.totalorder %s21, 1
    %p182 = por %p180, %p181
    %p183 = scmp.ne.s32.totalorder %s174, %s175
    %p184 = scmp.eq.s32.totalorder %s21, 0
    %p185 = por %p183, %p184
    %p186 = scmp.ne.s32.totalorder %s174, %s175
    %p187 = scmp.eq.s32.totalorder %s22, 1
    %p188 = por %p186, %p187
    %p190 = scmp.ne.s32.totalorder %s175, %s189
    %p191 = scmp.eq.s32.totalorder %s22, 0
    %p192 = por %p190, %p191
    %s194 = sadd.s32 %s193, 1
    %p197 = scmp.eq.s32.totalorder %s16, 1
    %p198 = scmp.ne.s32.totalorder %s193, %s195
    %p199 = scmp.eq.s32.totalorder %s16, 0
    %p200 = por %p198, %p199
    %p201 = scmp.ne.s32.totalorder %s193, %s195
    %p202 = scmp.eq.s32.totalorder %s21, 1
    %p203 = por %p201, %p202
    %p204 = scmp.ne.s32.totalorder %s195, %s196
    %p205 = scmp.eq.s32.totalorder %s21, 0
    %p206 = por %p204, %p205
    %p207 = scmp.ne.s32.totalorder %s195, %s196
    %p208 = scmp.eq.s32.totalorder %s22, 1
    %p209 = por %p207, %p208
    %p211 = scmp.ne.s32.totalorder %s196, %s210
    %p212 = scmp.eq.s32.totalorder %s22, 0
    %p213 = por %p211, %p212
    %s215 = sadd.s32 %s214, 1
    %p218 = scmp.eq.s32.totalorder %s16, 1
    %p219 = scmp.ne.s32.totalorder %s214, %s216
    %p220 = scmp.eq.s32.totalorder %s16, 0
    %p221 = por %p219, %p220
    %p222 = scmp.ne.s32.totalorder %s214, %s216
    %p223 = scmp.eq.s32.totalorder %s21, 1
    %p224 = por %p222, %p223
    %p225 = scmp.ne.s32.totalorder %s216, %s217
    %p226 = scmp.eq.s32.totalorder %s21, 0
    %p227 = por %p225, %p226
    %p228 = scmp.ne.s32.totalorder %s216, %s217
    %p229 = scmp.eq.s32.totalorder %s22, 1
    %p230 = por %p228, %p229
    %p232 = scmp.ne.s32.totalorder %s217, %s231
    %p233 = scmp.eq.s32.totalorder %s22, 0
    %p234 = por %p232, %p233
    %s235 = ssub.s32 %s23, %s35
    %s236 = ssub.s32 %s24, %s31
    %s237 = sor.u32 %s235, %s236
    %p238 = scmp.eq.s32.totalorder %s237, 0
    %s240 = sadd.s32 %s239, 1
    %s241 = scalar_select %p238, %s239, %s240
    %p244 = pneg %p238
    %p245 = scmp.eq.s32.totalorder %s16, 1
    %p246 = por %p244, %p245
    %p247 = scmp.ne.s32.totalorder %s239, %s242
    %p248 = scmp.eq.s32.totalorder %s16, 0
    %p249 = por %p247, %p248
    %p250 = scmp.ne.s32.totalorder %s239, %s242
    %p251 = scmp.eq.s32.totalorder %s21, 1
    %p252 = por %p250, %p251
    %p253 = scmp.ne.s32.totalorder %s242, %s243
    %p254 = scmp.eq.s32.totalorder %s21, 0
    %p255 = por %p253, %p254
    %p256 = scmp.ne.s32.totalorder %s242, %s243
    %p257 = scmp.eq.s32.totalorder %s22, 1
    %p258 = por %p256, %p257
    %p260 = scmp.ne.s32.totalorder %s243, %s259
    %p261 = scmp.eq.s32.totalorder %s22, 0
    %p262 = por %p260, %p261
    %s263 = ssub.s32 %s23, %s35
    %p264 = scmp.eq.s32.totalorder %s263, 0
    %s266 = sadd.s32 %s265, 1
    %s267 = scalar_select %p264, %s265, %s266
    %p270 = pneg %p264
    %p271 = scmp.eq.s32.totalorder %s16, 1
    %p272 = por %p270, %p271
    %p273 = scmp.ne.s32.totalorder %s265, %s268
    %p274 = scmp.eq.s32.totalorder %s16, 0
    %p275 = por %p273, %p274
    %p276 = scmp.ne.s32.totalorder %s265, %s268
    %p277 = scmp.eq.s32.totalorder %s21, 1
    %p278 = por %p276, %p277
    %p279 = scmp.ne.s32.totalorder %s268, %s269
    %p280 = scmp.eq.s32.totalorder %s21, 0
    %p281 = por %p279, %p280
    %p282 = scmp.ne.s32.totalorder %s268, %s269
    %p283 = scmp.eq.s32.totalorder %s22, 1
    %p284 = por %p282, %p283
    %p286 = scmp.ne.s32.totalorder %s269, %s285
    %p287 = scmp.eq.s32.totalorder %s22, 0
    %p288 = por %p286, %p287
    %p289 = scmp.le.s32.totalorder 1, %s16
    %p290 = scmp.lt.s32.totalorder %s16, 3
    %p291 = pnand %p289, %p290
    %p292 = pneg %p291
    // Predicated region
    $region9: #{_lambda_.13} parent=5 // pred_check
      _
    $region10: #{_lambda_.13} parent=5 // pred_check_branch
      %294 = sbr.rel (%p291) target = $region12
    $region11: #{_lambda_.13} parent=5 // pred_region
      %s295 = ssub.s32 %s16, 1
      // Predicated region
      $region13: #{_lambda_.13} parent=11 // pred_check
        %p296 = pneg %p143
      $region14: #{_lambda_.13} parent=11 // pred_check_branch
        %298 = sbr.rel (%p296) target = $region16
      $region15: #{_lambda_.13} parent=11 // pred_region
        _
      $region16: #{_lambda_.13} parent=11 // pred_fallthru
        _
      // Predicated region
      $region17: #{_lambda_.13} parent=11 // pred_check
        %p299 = pneg %p164
      $region18: #{_lambda_.13} parent=11 // pred_check_branch
        %301 = sbr.rel (%p299) target = $region20
      $region19: #{_lambda_.13} parent=11 // pred_region
        _
      $region20: #{_lambda_.13} parent=11 // pred_fallthru
        _
      // Predicated region
      $region21: #{_lambda_.13} parent=11 // pred_check
        %p302 = pneg %p185
      $region22: #{_lambda_.13} parent=11 // pred_check_branch
        %304 = sbr.rel (%p302) target = $region24
      $region23: #{_lambda_.13} parent=11 // pred_region
        _
      $region24: #{_lambda_.13} parent=11 // pred_fallthru
        _
      // Predicated region
      $region25: #{_lambda_.13} parent=11 // pred_check
        %p305 = pneg %p206
      $region26: #{_lambda_.13} parent=11 // pred_check_branch
        %307 = sbr.rel (%p305) target = $region28
      $region27: #{_lambda_.13} parent=11 // pred_region
        _
      $region28: #{_lambda_.13} parent=11 // pred_fallthru
        _
      // Predicated region
      $region29: #{_lambda_.13} parent=11 // pred_check
        %p308 = pneg %p227
      $region30: #{_lambda_.13} parent=11 // pred_check_branch
        %310 = sbr.rel (%p308) target = $region32
      $region31: #{_lambda_.13} parent=11 // pred_region
        _
      $region32: #{_lambda_.13} parent=11 // pred_fallthru
        _
    $region12: #{_lambda_.13} parent=5 // pred_fallthru
      _
    %p311 = scmp.lt.s32.totalorder %s16, 2
    // Predicated region
    $region33: #{_lambda_.13} parent=5 // pred_check
      %p312 = pneg %p311
    $region34: #{_lambda_.13} parent=5 // pred_check_branch
      %314 = sbr.rel (%p312) target = $region36
    $region35: #{_lambda_.13} parent=5 // pred_region
      // Predicated region
      $region37: #{_lambda_.13} parent=35 // pred_check
        %p315 = pneg %p50
      $region38: #{_lambda_.13} parent=35 // pred_check_branch
        %317 = sbr.rel (%p315) target = $region40
      $region39: #{_lambda_.13} parent=35 // pred_region
        %s318 = smul.u32 8, %s24
        %s319 = ssub.s32 10, %s318
        %p320 = scmp.lt.s32.totalorder %s319, 8
        %s321 = scalar_select %p320, %s319, 8
        %s322 = smul.u32 64, %s321
        %s323 = smul.u32 %s322, 2
        %p324 = scmp.lt.s32.totalorder %s23, 1
        %s325 = scalar_select %p324, %s23, 1
        %p326 = scmp.lt.s32.totalorder %s318, 9
        %s327 = scalar_select %p326, %s318, 9
        %s328 = smul.addr %s327, 2
        %s329 = smul.addr %s325, 20
        %s330 = sadd.s32 %s328, %s329
        %s331 = smul.addr %s330, 4
        %s332 = scalar_lea.vmem %s0, %s331
        %s333 = smul.u32 8, %s24
        %s334 = ssub.s32 10, %s333
        %p335 = scmp.lt.s32.totalorder %s334, 8
        %s336 = scalar_select %p335, %s334, 8
        %s337 = smul.u32 64, %s336
        %s338 = smul.u32 %s337, 2
      $region40: #{_lambda_.13} parent=35 // pred_fallthru
        _
      // Predicated region
      $region41: #{_lambda_.13} parent=35 // pred_check
        %p339 = pneg %p82
      $region42: #{_lambda_.13} parent=35 // pred_check_branch
        %341 = sbr.rel (%p339) target = $region44
      $region43: #{_lambda_.13} parent=35 // pred_region
        %s342 = sadd.s32 %s24, 1
        %s343 = smul.u32 %s342, 8
        %p344 = scmp.lt.s32.totalorder %s23, 1
        %s345 = scalar_select %p344, %s23, 1
        %p346 = scmp.lt.s32.totalorder %s343, 9
        %s347 = scalar_select %p346, %s343, 9
        %s348 = smul.addr %s347, 2
        %s349 = smul.addr %s345, 20
        %s350 = sadd.s32 %s348, %s349
        %s351 = smul.addr %s350, 4
        %s352 = scalar_lea.vmem %s1, %s351
        %s353 = sadd.s32 %s24, 1
        %s354 = smul.u32 %s353, 8
      $region44: #{_lambda_.13} parent=35 // pred_fallthru
        _
      // Predicated region
      $region45: #{_lambda_.13} parent=35 // pred_check
        %p355 = pneg %p116
      $region46: #{_lambda_.13} parent=35 // pred_check_branch
        %357 = sbr.rel (%p355) target = $region48
      $region47: #{_lambda_.13} parent=35 // pred_region
        %s358 = sadd.s32 %s24, 1
        %s359 = smul.u32 %s358, 8
        %s360 = sadd.s32 %s359, 1
        %p361 = scmp.lt.s32.totalorder %s23, 1
        %s362 = scalar_select %p361, %s23, 1
        %p363 = scmp.lt.s32.totalorder %s360, 9
        %s364 = scalar_select %p363, %s360, 9
        %s365 = smul.addr %s364, 2
        %s366 = smul.addr %s362, 20
        %s367 = sadd.s32 %s365, %s366
        %s368 = smul.addr %s367, 4
        %s369 = scalar_lea.vmem %s2, %s368
        %s370 = sadd.s32 %s24, 1
        %s371 = smul.u32 %s370, 8
        %s372 = sadd.s32 %s371, 1
      $region48: #{_lambda_.13} parent=35 // pred_fallthru
        _
    $region36: #{_lambda_.13} parent=5 // pred_fallthru
      _
    %p373 = scmp.le.s32.totalorder 1, %s16
    %p374 = scmp.lt.s32.totalorder %s16, 3
    %p375 = pnand %p373, %p374
    %p376 = pneg %p375
    // Predicated region
    $region49: #{_lambda_.13} parent=5 // pred_check
      _
    $region50: #{_lambda_.13} parent=5 // pred_check_branch
      %378 = sbr.rel (%p375) target = $region52
    $region51: #{_lambda_.13} parent=5 // pred_region
      %s379 = ssub.s32 %s16, 1
      %s380 = smul.u32 8, %s26
      %s381 = ssub.s32 10, %s380
      %p382 = scmp.lt.s32.totalorder %s381, 8
      %s383 = scalar_select %p382, %s381, 8
      %s384 = smul.u32 64, %s383
      %s385 = smul.u32 %s384, 2
      %p386 = scmp.lt.s32.totalorder %s25, 1
      %s387 = scalar_select %p386, %s25, 1
      %p388 = scmp.lt.s32.totalorder %s380, 9
      %s389 = scalar_select %p388, %s380, 9
      %s390 = smul.addr %s389, 2
      %s391 = smul.addr %s387, 20
      %s392 = sadd.s32 %s390, %s391
      %s393 = smul.addr %s392, 4
      %s394 = scalar_lea.vmem %s0, %s393
      %p395 = pneg %p56
      %p396 = pneg %p53
      %s397 = sadd.s32 %s26, 1
      %s398 = smul.u32 %s397, 8
      %p399 = scmp.lt.s32.totalorder %s25, 1
      %s400 = scalar_select %p399, %s25, 1
      %p401 = scmp.lt.s32.totalorder %s398, 9
      %s402 = scalar_select %p401, %s398, 9
      %s403 = smul.addr %s402, 2
      %s404 = smul.addr %s400, 20
      %s405 = sadd.s32 %s403, %s404
      %s406 = smul.addr %s405, 4
      %s407 = scalar_lea.vmem %s1, %s406
      %p408 = pneg %p88
      %p409 = pneg %p85
      %s410 = sadd.s32 %s26, 1
      %s411 = smul.u32 %s410, 8
      %s412 = sadd.s32 %s411, 1
      %p413 = scmp.lt.s32.totalorder %s25, 1
      %s414 = scalar_select %p413, %s25, 1
      %p415 = scmp.lt.s32.totalorder %s412, 9
      %s416 = scalar_select %p415, %s412, 9
      %s417 = smul.addr %s416, 2
      %s418 = smul.addr %s414, 20
      %s419 = sadd.s32 %s417, %s418
      %s420 = smul.addr %s419, 4
      %s421 = scalar_lea.vmem %s2, %s420
      %p422 = pneg %p122
      %p423 = pneg %p119
      %p424 = pneg %p143
      %p425 = pneg %p140
      %p426 = pneg %p164
      %p427 = pneg %p161
      %p428 = pneg %p185
      %p429 = pneg %p182
      %p430 = pneg %p206
      %p431 = pneg %p203
      %p432 = pneg %p227
      %p433 = pneg %p224
      %p434 = pneg %p255
      %p435 = pneg %p252
      %s436 = smul.u32 8, %s26
      %p437 = scmp.lt.s32.totalorder %s25, 1
      %s438 = scalar_select %p437, %s25, 1
      %p439 = scmp.lt.s32.totalorder %s436, 7
      %s440 = scalar_select %p439, %s436, 7
      %s441 = smul.addr %s438, 8
      %s442 = sadd.s32 %s440, %s441
      %s443 = smul.addr %s442, 4
      %s444 = scalar_lea.vmem %s8, %s443
      %p445 = pneg %p281
      %p446 = pneg %p278
      %p447 = scmp.lt.s32.totalorder %s25, 1
      %s448 = scalar_select %p447, %s25, 1
      %s449 = scalar_lea.vmem %s9, %s448
      %s450 = smul.u32 8, %s26
      %s451 = ssub.s32 10, %s450
      %p452 = scmp.lt.s32.totalorder %s451, 8
      %s453 = scalar_select %p452, %s451, 8
      %s454 = smul.u32 64, %s453
      %s455 = smul.u32 %s454, 2
      %p456 = scmp.lt.s32.totalorder %s25, 1
      %s457 = scalar_select %p456, %s25, 1
      %p458 = scmp.lt.s32.totalorder %s450, 9
      %s459 = scalar_select %p458, %s450, 9
      %s460 = smul.addr %s459, 2
      %s461 = smul.addr %s457, 20
      %s462 = sadd.s32 %s460, %s461
      %s463 = smul.addr %s462, 4
      %s464 = scalar_lea.vmem %s0, %s463
      %s465 = smul.u32 8, %s26
      %s466 = ssub.s32 10, %s465
      %p467 = scmp.lt.s32.totalorder %s466, 8
      %s468 = scalar_select %p467, %s466, 8
      %s469 = smul.u32 64, %s468
      %s470 = smul.u32 %s469, 2
      %s471 = sadd.s32 %s26, 1
      %s472 = smul.u32 %s471, 8
      %p473 = scmp.lt.s32.totalorder %s25, 1
      %s474 = scalar_select %p473, %s25, 1
      %p475 = scmp.lt.s32.totalorder %s472, 9
      %s476 = scalar_select %p475, %s472, 9
      %s477 = smul.addr %s476, 2
      %s478 = smul.addr %s474, 20
      %s479 = sadd.s32 %s477, %s478
      %s480 = smul.addr %s479, 4
      %s481 = scalar_lea.vmem %s1, %s480
      %s482 = sadd.s32 %s26, 1
      %s483 = smul.u32 %s482, 8
      %s484 = sadd.s32 %s26, 1
      %s485 = smul.u32 %s484, 8
      %s486 = sadd.s32 %s485, 1
      %p487 = scmp.lt.s32.totalorder %s25, 1
      %s488 = scalar_select %p487, %s25, 1
      %p489 = scmp.lt.s32.totalorder %s486, 9
      %s490 = scalar_select %p489, %s486, 9
      %s491 = smul.addr %s490, 2
      %s492 = smul.addr %s488, 20
      %s493 = sadd.s32 %s491, %s492
      %s494 = smul.addr %s493, 4
      %s495 = scalar_lea.vmem %s2, %s494
      %s496 = sadd.s32 %s26, 1
      %s497 = smul.u32 %s496, 8
      %s498 = sadd.s32 %s497, 1
      %s499 = smul.u32 8, %s26
      %p500 = scmp.lt.s32.totalorder %s25, 1
      %s501 = scalar_select %p500, %s25, 1
      %p502 = scmp.lt.s32.totalorder %s499, 7
      %s503 = scalar_select %p502, %s499, 7
      %s504 = smul.addr %s501, 8
      %s505 = sadd.s32 %s503, %s504
      %s506 = smul.addr %s505, 4
      %s507 = scalar_lea.vmem %s8, %s506
      %s508 = smul.u32 8, %s26
      %p509 = scmp.lt.s32.totalorder %s25, 1
      %s510 = scalar_select %p509, %s25, 1
      %s511 = scalar_lea.vmem %s9, %s510
      %v512 = vld [vmem:[%s3] sm:$0xff]
      %v513 = vld [vmem:[%s3 + $0x8] sm:$0x1]
      %v514 = vld [vmem:[%s4] sm:$0x1]
      %v515 = vld [vmem:[%s5] sm:$0x1]
      %p516 = scmp.eq.s32.totalorder %s26, 0
      // Predicated region
      $region53: #{_lambda_.13} parent=51 // pred_check
        %p517 = pneg %p516
      $region54: #{_lambda_.13} parent=51 // pred_check_branch
        %519 = sbr.rel (%p517) target = $region56
      $region55: #{_lambda_.13} parent=51 // pred_region
        %520 = vst [vmem:[#allocation2] sm:$0x1] 0.0
      $region56: #{_lambda_.13} parent=51 // pred_fallthru
        _
      %v521 = vld [vmem:[%s464] sm:$0xf]
      %v522 = vunpack.c.l.bf16 %v521
      %v523 = vlaneseq
      %v524 = vshrl.u32 %v523, 7
      %v525 = vsub.s32 0, %v524
      %v526 = vrot.slane %v512, %v525
      %v527 = vmul.f32 %v522, %v526
      %v528 = vadd.f32 %v527, 0.0
      %v529 = vld [vmem:[%s464 + $0x4] sm:$0x1]
      %v530 = vunpack.c.l.bf16 %v529
      %v531 = vlaneseq
      %v532 = vshrl.u32 %v531, 7
      %v533 = vsub.s32 1, %v532
      %v534 = vrot.slane %v512, %v533
      %v535 = vmul.f32 %v522, %v534
      %v536 = vmul.f32 %v530, %v534
      %vm539 = vcmask 1046528
      %v540 = vrot.slane %v535, 1
      %v541 = vrot.slane %v536, 1
      %v542 = vsel %vm539, %v540, %v541
      %v544 = vadd.f32 %v528, %v542
      %v545 = vld [vmem:[%s464] sm:$0xe]
      %v546 = vunpack.c.l.bf16 %v545
      %v547 = vlaneseq
      %v548 = vshrl.u32 %v547, 7
      %v549 = vsub.s32 2, %v548
      %v550 = vrot.slane %v512, %v549
      %v551 = vmul.f32 %v546, %v550
      %v552 = vmul.f32 %v530, %v550
      %vm555 = vcmask 1045504
      %v556 = vrot.slane %v551, 2
      %v557 = vrot.slane %v552, 2
      %v558 = vsel %vm555, %v556, %v557
      %v560 = vadd.f32 %v544, %v558
      %s561 = scalar_lea.vmem %s464, 8
      %v562 = vld [vmem:[%s561] sm:$0xf]
      %v563 = vunpack.c.l.bf16 %v562
      %v564 = vlaneseq
      %v565 = vshrl.u32 %v564, 7
      %v566 = vsub.s32 3, %v565
      %v567 = vrot.slane %v512, %v566
      %v568 = vmul.f32 %v563, %v567
      %v569 = vadd.f32 %v560, %v568
      %v570 = vld [vmem:[%s561 + $0x4] sm:$0x1]
      %v571 = vunpack.c.l.bf16 %v570
      %v572 = vlaneseq
      %v573 = vshrl.u32 %v572, 7
      %v574 = vsub.s32 4, %v573
      %v575 = vrot.slane %v512, %v574
      %v576 = vmul.f32 %v563, %v575
      %v577 = vmul.f32 %v571, %v575
      %v580 = vrot.slane %v576, 1
      %v581 = vrot.slane %v577, 1
      %v582 = vsel %vm539, %v580, %v581
      %v584 = vadd.f32 %v569, %v582
      %v585 = vld [vmem:[%s561] sm:$0xe]
      %v586 = vunpack.c.l.bf16 %v585
      %v587 = vlaneseq
      %v588 = vshrl.u32 %v587, 7
      %v589 = vsub.s32 5, %v588
      %v590 = vrot.slane %v512, %v589
      %v591 = vmul.f32 %v586, %v590
      %v592 = vmul.f32 %v571, %v590
      %v595 = vrot.slane %v591, 2
      %v596 = vrot.slane %v592, 2
      %v597 = vsel %vm555, %v595, %v596
      %v599 = vadd.f32 %v584, %v597
      %s600 = scalar_lea.vmem %s464, 16
      %v601 = vld [vmem:[%s600] sm:$0xf]
      %v602 = vunpack.c.l.bf16 %v601
      %v603 = vlaneseq
      %v604 = vshrl.u32 %v603, 7
      %v605 = vsub.s32 6, %v604
      %v606 = vrot.slane %v512, %v605
      %v607 = vmul.f32 %v602, %v606
      %v608 = vadd.f32 %v599, %v607
      %v609 = vld [vmem:[%s600 + $0x4] sm:$0x1]
      %v610 = vunpack.c.l.bf16 %v609
      %v611 = vlaneseq
      %v612 = vshrl.u32 %v611, 7
      %v613 = vsub.s32 7, %v612
      %v614 = vrot.slane %v512, %v613
      %v615 = vmul.f32 %v602, %v614
      %v616 = vmul.f32 %v610, %v614
      %v619 = vrot.slane %v615, 1
      %v620 = vrot.slane %v616, 1
      %v621 = vsel %vm539, %v619, %v620
      %v623 = vadd.f32 %v608, %v621
      %v624 = vld [vmem:[%s600] sm:$0xe]
      %v625 = vunpack.c.l.bf16 %v624
      %v626 = vlaneseq
      %v627 = vshrl.u32 %v626, 7
      %v628 = vsub.s32 0, %v627
      %v629 = vrot.slane %v513, %v628
      %v630 = vmul.f32 %v625, %v629
      %v631 = vmul.f32 %v610, %v629
      %v634 = vrot.slane %v630, 2
      %v635 = vrot.slane %v631, 2
      %v636 = vsel %vm555, %v634, %v635
      %v638 = vadd.f32 %v623, %v636
      %v640 = vlaneseq
      %v641 = vshrl.u32 %v640, 7
      %v642 = vsub.s32 0, %v641
      %v643 = vrot.slane %v514, %v642
      %v645 = vmul.f32 %v638, %v643
      %v647 = vlaneseq
      %v648 = vshrl.u32 %v647, 7
      %v649 = vsub.s32 0, %v648
      %v650 = vrot.slane %v515, %v649
      %v652 = vadd.f32 %v645, %v650
      %v653 = vxor.u32 %v652, 2147483648
      %v654 = vmul.f32 %v653, 1.442695
      %v655 = vpow.pop %v654
      %v656 = vadd.f32 %v655, 1.0
      %v657 = vrcp.pop %v656
      %v658 = vmul.f32 1.0, %v657
      %v659 = vmul.f32 %v652, %v658
      %v660 = vpack.c.bf16 %v659, %v659
      %661 = vst [vmem:[%s507] sm:$0xf] %v660
      %v662 = vrot.slane %v659, 4
      %v663 = vadd.f32 %v659, %v662
      %v664 = vrot.slane %v663, 2
      %v665 = vadd.f32 %v663, %v664
      %v666 = vrot.slane %v665, 1
      %v667 = vadd.f32 %v665, %v666
      %v668 = vadd.f32 %v667, 0.0
      %v669 = vld [vmem:[%s561] sm:$0xf]
      %v670 = vunpack.c.l.bf16 %v669
      %v671 = vmul.f32 %v670, %v526
      %v672 = vadd.f32 %v671, 0.0
      %v673 = vld [vmem:[%s561 + $0x4] sm:$0x1]
      %v674 = vunpack.c.l.bf16 %v673
      %v675 = vmul.f32 %v670, %v534
      %v676 = vmul.f32 %v674, %v534
      %v679 = vrot.slane %v675, 1
      %v680 = vrot.slane %v676, 1
      %v681 = vsel %vm539, %v679, %v680
      %v683 = vadd.f32 %v672, %v681
      %v684 = vld [vmem:[%s561] sm:$0xe]
      %v685 = vunpack.c.l.bf16 %v684
      %v686 = vmul.f32 %v685, %v550
      %v687 = vmul.f32 %v674, %v550
      %v690 = vrot.slane %v686, 2
      %v691 = vrot.slane %v687, 2
      %v692 = vsel %vm555, %v690, %v691
      %v694 = vadd.f32 %v683, %v692
      %v695 = vld [vmem:[%s600] sm:$0xf]
      %v696 = vunpack.c.l.bf16 %v695
      %v697 = vmul.f32 %v696, %v567
      %v698 = vadd.f32 %v694, %v697
      %v699 = vld [vmem:[%s600 + $0x4] sm:$0x1]
      %v700 = vunpack.c.l.bf16 %v699
      %v701 = vmul.f32 %v696, %v575
      %v702 = vmul.f32 %v700, %v575
      %v705 = vrot.slane %v701, 1
      %v706 = vrot.slane %v702, 1
      %v707 = vsel %vm539, %v705, %v706
      %v709 = vadd.f32 %v698, %v707
      %v710 = vld [vmem:[%s600] sm:$0xe]
      %v711 = vunpack.c.l.bf16 %v710
      %v712 = vmul.f32 %v711, %v590
      %v713 = vmul.f32 %v700, %v590
      %v716 = vrot.slane %v712, 2
      %v717 = vrot.slane %v713, 2
      %v718 = vsel %vm555, %v716, %v717
      %v720 = vadd.f32 %v709, %v718
      %s721 = scalar_lea.vmem %s464, 24
      %v722 = vld [vmem:[%s721] sm:$0xf]
      %v723 = vunpack.c.l.bf16 %v722
      %v724 = vmul.f32 %v723, %v606
      %v725 = vadd.f32 %v720, %v724
      %v726 = vld [vmem:[%s721 + $0x4] sm:$0x1]
      %v727 = vunpack.c.l.bf16 %v726
      %v728 = vmul.f32 %v723, %v614
      %v729 = vmul.f32 %v727, %v614
      %v732 = vrot.slane %v728, 1
      %v733 = vrot.slane %v729, 1
      %v734 = vsel %vm539, %v732, %v733
      %v736 = vadd.f32 %v725, %v734
      %v737 = vld [vmem:[%s721] sm:$0xe]
      %v738 = vunpack.c.l.bf16 %v737
      %v739 = vmul.f32 %v738, %v629
      %v740 = vmul.f32 %v727, %v629
      %v743 = vrot.slane %v739, 2
      %v744 = vrot.slane %v740, 2
      %v745 = vsel %vm555, %v743, %v744
      %v747 = vadd.f32 %v736, %v745
      %v748 = vmul.f32 %v747, %v643
      %v749 = vadd.f32 %v748, %v650
      %v750 = vxor.u32 %v749, 2147483648
      %v751 = vmul.f32 %v750, 1.442695
      %v752 = vpow.pop %v751
      %v753 = vadd.f32 %v752, 1.0
      %v754 = vrcp.pop %v753
      %v755 = vmul.f32 1.0, %v754
      %v756 = vmul.f32 %v749, %v755
      %v757 = vpack.c.bf16 %v756, %v756
      %s758 = scalar_lea.vmem %s507, 4
      %759 = vst [vmem:[%s758] sm:$0xf] %v757
      %v760 = vrot.slane %v756, 4
      %v761 = vadd.f32 %v756, %v760
      %v762 = vrot.slane %v761, 2
      %v763 = vadd.f32 %v761, %v762
      %v764 = vrot.slane %v763, 1
      %v765 = vadd.f32 %v763, %v764
      %v766 = vadd.f32 %v668, %v765
      %v767 = vld [vmem:[%s600] sm:$0xf]
      %v768 = vunpack.c.l.bf16 %v767
      %v769 = vmul.f32 %v768, %v526
      %v770 = vadd.f32 %v769, 0.0
      %v771 = vld [vmem:[%s600 + $0x4] sm:$0x1]
      %v772 = vunpack.c.l.bf16 %v771
      %v773 = vmul.f32 %v768, %v534
      %v774 = vmul.f32 %v772, %v534
      %v777 = vrot.slane %v773, 1
      %v778 = vrot.slane %v774, 1
      %v779 = vsel %vm539, %v777, %v778
      %v781 = vadd.f32 %v770, %v779
      %v782 = vld [vmem:[%s600] sm:$0xe]
      %v783 = vunpack.c.l.bf16 %v782
      %v784 = vmul.f32 %v783, %v550
      %v785 = vmul.f32 %v772, %v550
      %v788 = vrot.slane %v784, 2
      %v789 = vrot.slane %v785, 2
      %v790 = vsel %vm555, %v788, %v789
      %v792 = vadd.f32 %v781, %v790
      %v793 = vld [vmem:[%s721] sm:$0xf]
      %v794 = vunpack.c.l.bf16 %v793
      %v795 = vmul.f32 %v794, %v567
      %v796 = vadd.f32 %v792, %v795
      %v797 = vld [vmem:[%s721 + $0x4] sm:$0x1]
      %v798 = vunpack.c.l.bf16 %v797
      %v799 = vmul.f32 %v794, %v575
      %v800 = vmul.f32 %v798, %v575
      %v803 = vrot.slane %v799, 1
      %v804 = vrot.slane %v800, 1
      %v805 = vsel %vm539, %v803, %v804
      %v807 = vadd.f32 %v796, %v805
      %v808 = vld [vmem:[%s721] sm:$0xe]
      %v809 = vunpack.c.l.bf16 %v808
      %v810 = vmul.f32 %v809, %v590
      %v811 = vmul.f32 %v798, %v590
      %v814 = vrot.slane %v810, 2
      %v815 = vrot.slane %v811, 2
      %v816 = vsel %vm555, %v814, %v815
      %v818 = vadd.f32 %v807, %v816
      %s819 = scalar_lea.vmem %s464, 32
      %v820 = vld [vmem:[%s819] sm:$0xf]
      %v821 = vunpack.c.l.bf16 %v820
      %v822 = vmul.f32 %v821, %v606
      %v823 = vadd.f32 %v818, %v822
      %v824 = vld [vmem:[%s819 + $0x4] sm:$0x1]
      %v825 = vunpack.c.l.bf16 %v824
      %v826 = vmul.f32 %v821, %v614
      %v827 = vmul.f32 %v825, %v614
      %v830 = vrot.slane %v826, 1
      %v831 = vrot.slane %v827, 1
      %v832 = vsel %vm539, %v830, %v831
      %v834 = vadd.f32 %v823, %v832
      %v835 = vld [vmem:[%s819] sm:$0xe]
      %v836 = vunpack.c.l.bf16 %v835
      %v837 = vmul.f32 %v836, %v629
      %v838 = vmul.f32 %v825, %v629
      %v841 = vrot.slane %v837, 2
      %v842 = vrot.slane %v838, 2
      %v843 = vsel %vm555, %v841, %v842
      %v845 = vadd.f32 %v834, %v843
      %v846 = vmul.f32 %v845, %v643
      %v847 = vadd.f32 %v846, %v650
      %v848 = vxor.u32 %v847, 2147483648
      %v849 = vmul.f32 %v848, 1.442695
      %v850 = vpow.pop %v849
      %v851 = vadd.f32 %v850, 1.0
      %v852 = vrcp.pop %v851
      %v853 = vmul.f32 1.0, %v852
      %v854 = vmul.f32 %v847, %v853
      %v855 = vpack.c.bf16 %v854, %v854
      %s856 = scalar_lea.vmem %s507, 8
      %857 = vst [vmem:[%s856] sm:$0xf] %v855
      %v858 = vrot.slane %v854, 4
      %v859 = vadd.f32 %v854, %v858
      %v860 = vrot.slane %v859, 2
      %v861 = vadd.f32 %v859, %v860
      %v862 = vrot.slane %v861, 1
      %v863 = vadd.f32 %v861, %v862
      %v864 = vadd.f32 %v766, %v863
      %v865 = vld [vmem:[%s721] sm:$0xf]
      %v866 = vunpack.c.l.bf16 %v865
      %v867 = vmul.f32 %v866, %v526
      %v868 = vadd.f32 %v867, 0.0
      %v869 = vld [vmem:[%s721 + $0x4] sm:$0x1]
      %v870 = vunpack.c.l.bf16 %v869
      %v871 = vmul.f32 %v866, %v534
      %v872 = vmul.f32 %v870, %v534
      %v875 = vrot.slane %v871, 1
      %v876 = vrot.slane %v872, 1
      %v877 = vsel %vm539, %v875, %v876
      %v879 = vadd.f32 %v868, %v877
      %v880 = vld [vmem:[%s721] sm:$0xe]
      %v881 = vunpack.c.l.bf16 %v880
      %v882 = vmul.f32 %v881, %v550
      %v883 = vmul.f32 %v870, %v550
      %v886 = vrot.slane %v882, 2
      %v887 = vrot.slane %v883, 2
      %v888 = vsel %vm555, %v886, %v887
      %v890 = vadd.f32 %v879, %v888
      %v891 = vld [vmem:[%s819] sm:$0xf]
      %v892 = vunpack.c.l.bf16 %v891
      %v893 = vmul.f32 %v892, %v567
      %v894 = vadd.f32 %v890, %v893
      %v895 = vld [vmem:[%s819 + $0x4] sm:$0x1]
      %v896 = vunpack.c.l.bf16 %v895
      %v897 = vmul.f32 %v892, %v575
      %v898 = vmul.f32 %v896, %v575
      %v901 = vrot.slane %v897, 1
      %v902 = vrot.slane %v898, 1
      %v903 = vsel %vm539, %v901, %v902
      %v905 = vadd.f32 %v894, %v903
      %v906 = vld [vmem:[%s819] sm:$0xe]
      %v907 = vunpack.c.l.bf16 %v906
      %v908 = vmul.f32 %v907, %v590
      %v909 = vmul.f32 %v896, %v590
      %v912 = vrot.slane %v908, 2
      %v913 = vrot.slane %v909, 2
      %v914 = vsel %vm555, %v912, %v913
      %v916 = vadd.f32 %v905, %v914
      %s917 = scalar_lea.vmem %s464, 40
      %v918 = vld [vmem:[%s917] sm:$0xf]
      %v919 = vunpack.c.l.bf16 %v918
      %v920 = vmul.f32 %v919, %v606
      %v921 = vadd.f32 %v916, %v920
      %v922 = vld [vmem:[%s917 + $0x4] sm:$0x1]
      %v923 = vunpack.c.l.bf16 %v922
      %v924 = vmul.f32 %v919, %v614
      %v925 = vmul.f32 %v923, %v614
      %v928 = vrot.slane %v924, 1
      %v929 = vrot.slane %v925, 1
      %v930 = vsel %vm539, %v928, %v929
      %v932 = vadd.f32 %v921, %v930
      %v933 = vld [vmem:[%s917] sm:$0xe]
      %v934 = vunpack.c.l.bf16 %v933
      %v935 = vmul.f32 %v934, %v629
      %v936 = vmul.f32 %v923, %v629
      %v939 = vrot.slane %v935, 2
      %v940 = vrot.slane %v936, 2
      %v941 = vsel %vm555, %v939, %v940
      %v943 = vadd.f32 %v932, %v941
      %v944 = vmul.f32 %v943, %v643
      %v945 = vadd.f32 %v944, %v650
      %v946 = vxor.u32 %v945, 2147483648
      %v947 = vmul.f32 %v946, 1.442695
      %v948 = vpow.pop %v947
      %v949 = vadd.f32 %v948, 1.0
      %v950 = vrcp.pop %v949
      %v951 = vmul.f32 1.0, %v950
      %v952 = vmul.f32 %v945, %v951
      %v953 = vpack.c.bf16 %v952, %v952
      %s954 = scalar_lea.vmem %s507, 12
      %955 = vst [vmem:[%s954] sm:$0xf] %v953
      %v956 = vrot.slane %v952, 4
      %v957 = vadd.f32 %v952, %v956
      %v958 = vrot.slane %v957, 2
      %v959 = vadd.f32 %v957, %v958
      %v960 = vrot.slane %v959, 1
      %v961 = vadd.f32 %v959, %v960
      %v962 = vadd.f32 %v864, %v961
      %v963 = vld [vmem:[%s819] sm:$0xf]
      %v964 = vunpack.c.l.bf16 %v963
      %v965 = vmul.f32 %v964, %v526
      %v966 = vadd.f32 %v965, 0.0
      %v967 = vld [vmem:[%s819 + $0x4] sm:$0x1]
      %v968 = vunpack.c.l.bf16 %v967
      %v969 = vmul.f32 %v964, %v534
      %v970 = vmul.f32 %v968, %v534
      %v973 = vrot.slane %v969, 1
      %v974 = vrot.slane %v970, 1
      %v975 = vsel %vm539, %v973, %v974
      %v977 = vadd.f32 %v966, %v975
      %v978 = vld [vmem:[%s819] sm:$0xe]
      %v979 = vunpack.c.l.bf16 %v978
      %v980 = vmul.f32 %v979, %v550
      %v981 = vmul.f32 %v968, %v550
      %v984 = vrot.slane %v980, 2
      %v985 = vrot.slane %v981, 2
      %v986 = vsel %vm555, %v984, %v985
      %v988 = vadd.f32 %v977, %v986
      %v989 = vld [vmem:[%s917] sm:$0xf]
      %v990 = vunpack.c.l.bf16 %v989
      %v991 = vmul.f32 %v990, %v567
      %v992 = vadd.f32 %v988, %v991
      %v993 = vld [vmem:[%s917 + $0x4] sm:$0x1]
      %v994 = vunpack.c.l.bf16 %v993
      %v995 = vmul.f32 %v990, %v575
      %v996 = vmul.f32 %v994, %v575
      %v999 = vrot.slane %v995, 1
      %v1000 = vrot.slane %v996, 1
      %v1001 = vsel %vm539, %v999, %v1000
      %v1003 = vadd.f32 %v992, %v1001
      %v1004 = vld [vmem:[%s917] sm:$0xe]
      %v1005 = vunpack.c.l.bf16 %v1004
      %v1006 = vmul.f32 %v1005, %v590
      %v1007 = vmul.f32 %v994, %v590
      %v1010 = vrot.slane %v1006, 2
      %v1011 = vrot.slane %v1007, 2
      %v1012 = vsel %vm555, %v1010, %v1011
      %v1014 = vadd.f32 %v1003, %v1012
      %s1015 = scalar_lea.vmem %s464, 48
      %v1016 = vld [vmem:[%s1015] sm:$0xf]
      %v1017 = vunpack.c.l.bf16 %v1016
      %v1018 = vmul.f32 %v1017, %v606
      %v1019 = vadd.f32 %v1014, %v1018
      %v1020 = vld [vmem:[%s1015 + $0x4] sm:$0x1]
      %v1021 = vunpack.c.l.bf16 %v1020
      %v1022 = vmul.f32 %v1017, %v614
      %v1023 = vmul.f32 %v1021, %v614
      %v1026 = vrot.slane %v1022, 1
      %v1027 = vrot.slane %v1023, 1
      %v1028 = vsel %vm539, %v1026, %v1027
      %v1030 = vadd.f32 %v1019, %v1028
      %v1031 = vld [vmem:[%s1015] sm:$0xe]
      %v1032 = vunpack.c.l.bf16 %v1031
      %v1033 = vmul.f32 %v1032, %v629
      %v1034 = vmul.f32 %v1021, %v629
      %v1037 = vrot.slane %v1033, 2
      %v1038 = vrot.slane %v1034, 2
      %v1039 = vsel %vm555, %v1037, %v1038
      %v1041 = vadd.f32 %v1030, %v1039
      %v1042 = vmul.f32 %v1041, %v643
      %v1043 = vadd.f32 %v1042, %v650
      %v1044 = vxor.u32 %v1043, 2147483648
      %v1045 = vmul.f32 %v1044, 1.442695
      %v1046 = vpow.pop %v1045
      %v1047 = vadd.f32 %v1046, 1.0
      %v1048 = vrcp.pop %v1047
      %v1049 = vmul.f32 1.0, %v1048
      %v1050 = vmul.f32 %v1043, %v1049
      %v1051 = vpack.c.bf16 %v1050, %v1050
      %s1052 = scalar_lea.vmem %s507, 16
      %1053 = vst [vmem:[%s1052] sm:$0xf] %v1051
      %v1054 = vrot.slane %v1050, 4
      %v1055 = vadd.f32 %v1050, %v1054
      %v1056 = vrot.slane %v1055, 2
      %v1057 = vadd.f32 %v1055, %v1056
      %v1058 = vrot.slane %v1057, 1
      %v1059 = vadd.f32 %v1057, %v1058
      %v1060 = vadd.f32 %v962, %v1059
      %v1061 = vld [vmem:[%s917] sm:$0xf]
      %v1062 = vunpack.c.l.bf16 %v1061
      %v1063 = vmul.f32 %v1062, %v526
      %v1064 = vadd.f32 %v1063, 0.0
      %v1065 = vld [vmem:[%s917 + $0x4] sm:$0x1]
      %v1066 = vunpack.c.l.bf16 %v1065
      %v1067 = vmul.f32 %v1062, %v534
      %v1068 = vmul.f32 %v1066, %v534
      %v1071 = vrot.slane %v1067, 1
      %v1072 = vrot.slane %v1068, 1
      %v1073 = vsel %vm539, %v1071, %v1072
      %v1075 = vadd.f32 %v1064, %v1073
      %v1076 = vld [vmem:[%s917] sm:$0xe]
      %v1077 = vunpack.c.l.bf16 %v1076
      %v1078 = vmul.f32 %v1077, %v550
      %v1079 = vmul.f32 %v1066, %v550
      %v1082 = vrot.slane %v1078, 2
      %v1083 = vrot.slane %v1079, 2
      %v1084 = vsel %vm555, %v1082, %v1083
      %v1086 = vadd.f32 %v1075, %v1084
      %v1087 = vld [vmem:[%s1015] sm:$0xf]
      %v1088 = vunpack.c.l.bf16 %v1087
      %v1089 = vmul.f32 %v1088, %v567
      %v1090 = vadd.f32 %v1086, %v1089
      %v1091 = vld [vmem:[%s1015 + $0x4] sm:$0x1]
      %v1092 = vunpack.c.l.bf16 %v1091
      %v1093 = vmul.f32 %v1088, %v575
      %v1094 = vmul.f32 %v1092, %v575
      %v1097 = vrot.slane %v1093, 1
      %v1098 = vrot.slane %v1094, 1
      %v1099 = vsel %vm539, %v1097, %v1098
      %v1101 = vadd.f32 %v1090, %v1099
      %v1102 = vld [vmem:[%s1015] sm:$0xe]
      %v1103 = vunpack.c.l.bf16 %v1102
      %v1104 = vmul.f32 %v1103, %v590
      %v1105 = vmul.f32 %v1092, %v590
      %v1108 = vrot.slane %v1104, 2
      %v1109 = vrot.slane %v1105, 2
      %v1110 = vsel %vm555, %v1108, %v1109
      %v1112 = vadd.f32 %v1101, %v1110
      %s1113 = scalar_lea.vmem %s464, 56
      %v1114 = vld [vmem:[%s1113] sm:$0xf]
      %v1115 = vunpack.c.l.bf16 %v1114
      %v1116 = vmul.f32 %v1115, %v606
      %v1117 = vadd.f32 %v1112, %v1116
      %v1118 = vld [vmem:[%s1113 + $0x4] sm:$0x1]
      %v1119 = vunpack.c.l.bf16 %v1118
      %v1120 = vmul.f32 %v1115, %v614
      %v1121 = vmul.f32 %v1119, %v614
      %v1124 = vrot.slane %v1120, 1
      %v1125 = vrot.slane %v1121, 1
      %v1126 = vsel %vm539, %v1124, %v1125
      %v1128 = vadd.f32 %v1117, %v1126
      %v1129 = vld [vmem:[%s1113] sm:$0xe]
      %v1130 = vunpack.c.l.bf16 %v1129
      %v1131 = vmul.f32 %v1130, %v629
      %v1132 = vmul.f32 %v1119, %v629
      %v1135 = vrot.slane %v1131, 2
      %v1136 = vrot.slane %v1132, 2
      %v1137 = vsel %vm555, %v1135, %v1136
      %v1139 = vadd.f32 %v1128, %v1137
      %v1140 = vmul.f32 %v1139, %v643
      %v1141 = vadd.f32 %v1140, %v650
      %v1142 = vxor.u32 %v1141, 2147483648
      %v1143 = vmul.f32 %v1142, 1.442695
      %v1144 = vpow.pop %v1143
      %v1145 = vadd.f32 %v1144, 1.0
      %v1146 = vrcp.pop %v1145
      %v1147 = vmul.f32 1.0, %v1146
      %v1148 = vmul.f32 %v1141, %v1147
      %v1149 = vpack.c.bf16 %v1148, %v1148
      %s1150 = scalar_lea.vmem %s507, 20
      %1151 = vst [vmem:[%s1150] sm:$0xf] %v1149
      %v1152 = vrot.slane %v1148, 4
      %v1153 = vadd.f32 %v1148, %v1152
      %v1154 = vrot.slane %v1153, 2
      %v1155 = vadd.f32 %v1153, %v1154
      %v1156 = vrot.slane %v1155, 1
      %v1157 = vadd.f32 %v1155, %v1156
      %v1158 = vadd.f32 %v1060, %v1157
      %v1159 = vld [vmem:[%s1015] sm:$0xf]
      %v1160 = vunpack.c.l.bf16 %v1159
      %v1161 = vmul.f32 %v1160, %v526
      %v1162 = vadd.f32 %v1161, 0.0
      %v1163 = vld [vmem:[%s1015 + $0x4] sm:$0x1]
      %v1164 = vunpack.c.l.bf16 %v1163
      %v1165 = vmul.f32 %v1160, %v534
      %v1166 = vmul.f32 %v1164, %v534
      %v1169 = vrot.slane %v1165, 1
      %v1170 = vrot.slane %v1166, 1
      %v1171 = vsel %vm539, %v1169, %v1170
      %v1173 = vadd.f32 %v1162, %v1171
      %v1174 = vld [vmem:[%s1015] sm:$0xe]
      %v1175 = vunpack.c.l.bf16 %v1174
      %v1176 = vmul.f32 %v1175, %v550
      %v1177 = vmul.f32 %v1164, %v550
      %v1180 = vrot.slane %v1176, 2
      %v1181 = vrot.slane %v1177, 2
      %v1182 = vsel %vm555, %v1180, %v1181
      %v1184 = vadd.f32 %v1173, %v1182
      %v1185 = vld [vmem:[%s1113] sm:$0xf]
      %v1186 = vunpack.c.l.bf16 %v1185
      %v1187 = vmul.f32 %v1186, %v567
      %v1188 = vadd.f32 %v1184, %v1187
      %v1189 = vld [vmem:[%s1113 + $0x4] sm:$0x1]
      %v1190 = vunpack.c.l.bf16 %v1189
      %v1191 = vmul.f32 %v1186, %v575
      %v1192 = vmul.f32 %v1190, %v575
      %v1195 = vrot.slane %v1191, 1
      %v1196 = vrot.slane %v1192, 1
      %v1197 = vsel %vm539, %v1195, %v1196
      %v1199 = vadd.f32 %v1188, %v1197
      %v1200 = vld [vmem:[%s1113] sm:$0xe]
      %v1201 = vunpack.c.l.bf16 %v1200
      %v1202 = vmul.f32 %v1201, %v590
      %v1203 = vmul.f32 %v1190, %v590
      %v1206 = vrot.slane %v1202, 2
      %v1207 = vrot.slane %v1203, 2
      %v1208 = vsel %vm555, %v1206, %v1207
      %v1210 = vadd.f32 %v1199, %v1208
      %v1211 = vld [vmem:[%s481] sm:$0xf]
      %v1212 = vunpack.c.l.bf16 %v1211
      %v1213 = vmul.f32 %v1212, %v606
      %v1214 = vadd.f32 %v1210, %v1213
      %v1215 = vld [vmem:[%s481 + $0x4] sm:$0x1]
      %v1216 = vunpack.c.l.bf16 %v1215
      %v1217 = vmul.f32 %v1212, %v614
      %v1218 = vmul.f32 %v1216, %v614
      %v1221 = vrot.slane %v1217, 1
      %v1222 = vrot.slane %v1218, 1
      %v1223 = vsel %vm539, %v1221, %v1222
      %v1225 = vadd.f32 %v1214, %v1223
      %v1226 = vld [vmem:[%s481] sm:$0xe]
      %v1227 = vunpack.c.l.bf16 %v1226
      %v1228 = vmul.f32 %v1227, %v629
      %v1229 = vmul.f32 %v1216, %v629
      %v1232 = vrot.slane %v1228, 2
      %v1233 = vrot.slane %v1229, 2
      %v1234 = vsel %vm555, %v1232, %v1233
      %v1236 = vadd.f32 %v1225, %v1234
      %v1237 = vmul.f32 %v1236, %v643
      %v1238 = vadd.f32 %v1237, %v650
      %v1239 = vxor.u32 %v1238, 2147483648
      %v1240 = vmul.f32 %v1239, 1.442695
      %v1241 = vpow.pop %v1240
      %v1242 = vadd.f32 %v1241, 1.0
      %v1243 = vrcp.pop %v1242
      %v1244 = vmul.f32 1.0, %v1243
      %v1245 = vmul.f32 %v1238, %v1244
      %v1246 = vpack.c.bf16 %v1245, %v1245
      %s1247 = scalar_lea.vmem %s507, 24
      %1248 = vst [vmem:[%s1247] sm:$0xf] %v1246
      %v1249 = vrot.slane %v1245, 4
      %v1250 = vadd.f32 %v1245, %v1249
      %v1251 = vrot.slane %v1250, 2
      %v1252 = vadd.f32 %v1250, %v1251
      %v1253 = vrot.slane %v1252, 1
      %v1254 = vadd.f32 %v1252, %v1253
      %v1255 = vadd.f32 %v1158, %v1254
      %v1256 = vld [vmem:[%s1113] sm:$0xf]
      %v1257 = vunpack.c.l.bf16 %v1256
      %v1258 = vmul.f32 %v1257, %v526
      %v1259 = vadd.f32 %v1258, 0.0
      %v1260 = vld [vmem:[%s1113 + $0x4] sm:$0x1]
      %v1261 = vunpack.c.l.bf16 %v1260
      %v1262 = vmul.f32 %v1257, %v534
      %v1263 = vmul.f32 %v1261, %v534
      %v1266 = vrot.slane %v1262, 1
      %v1267 = vrot.slane %v1263, 1
      %v1268 = vsel %vm539, %v1266, %v1267
      %v1270 = vadd.f32 %v1259, %v1268
      %v1271 = vld [vmem:[%s1113] sm:$0xe]
      %v1272 = vunpack.c.l.bf16 %v1271
      %v1273 = vmul.f32 %v1272, %v550
      %v1274 = vmul.f32 %v1261, %v550
      %v1277 = vrot.slane %v1273, 2
      %v1278 = vrot.slane %v1274, 2
      %v1279 = vsel %vm555, %v1277, %v1278
      %v1281 = vadd.f32 %v1270, %v1279
      %v1282 = vld [vmem:[%s481] sm:$0xf]
      %v1283 = vunpack.c.l.bf16 %v1282
      %v1284 = vmul.f32 %v1283, %v567
      %v1285 = vadd.f32 %v1281, %v1284
      %v1286 = vld [vmem:[%s481 + $0x4] sm:$0x1]
      %v1287 = vunpack.c.l.bf16 %v1286
      %v1288 = vmul.f32 %v1283, %v575
      %v1289 = vmul.f32 %v1287, %v575
      %v1292 = vrot.slane %v1288, 1
      %v1293 = vrot.slane %v1289, 1
      %v1294 = vsel %vm539, %v1292, %v1293
      %v1296 = vadd.f32 %v1285, %v1294
      %v1297 = vld [vmem:[%s481] sm:$0xe]
      %v1298 = vunpack.c.l.bf16 %v1297
      %v1299 = vmul.f32 %v1298, %v590
      %v1300 = vmul.f32 %v1287, %v590
      %v1303 = vrot.slane %v1299, 2
      %v1304 = vrot.slane %v1300, 2
      %v1305 = vsel %vm555, %v1303, %v1304
      %v1307 = vadd.f32 %v1296, %v1305
      %v1308 = vld [vmem:[%s495] sm:$0xf]
      %v1309 = vunpack.c.l.bf16 %v1308
      %v1310 = vmul.f32 %v1309, %v606
      %v1311 = vadd.f32 %v1307, %v1310
      %v1312 = vld [vmem:[%s495 + $0x4] sm:$0x1]
      %v1313 = vunpack.c.l.bf16 %v1312
      %v1314 = vmul.f32 %v1309, %v614
      %v1315 = vmul.f32 %v1313, %v614
      %v1318 = vrot.slane %v1314, 1
      %v1319 = vrot.slane %v1315, 1
      %v1320 = vsel %vm539, %v1318, %v1319
      %v1322 = vadd.f32 %v1311, %v1320
      %v1323 = vld [vmem:[%s495] sm:$0xe]
      %v1324 = vunpack.c.l.bf16 %v1323
      %v1325 = vmul.f32 %v1324, %v629
      %v1326 = vmul.f32 %v1313, %v629
      %v1329 = vrot.slane %v1325, 2
      %v1330 = vrot.slane %v1326, 2
      %v1331 = vsel %vm555, %v1329, %v1330
      %v1333 = vadd.f32 %v1322, %v1331
      %v1334 = vmul.f32 %v1333, %v643
      %v1335 = vadd.f32 %v1334, %v650
      %v1336 = vxor.u32 %v1335, 2147483648
      %v1337 = vmul.f32 %v1336, 1.442695
      %v1338 = vpow.pop %v1337
      %v1339 = vadd.f32 %v1338, 1.0
      %v1340 = vrcp.pop %v1339
      %v1341 = vmul.f32 1.0, %v1340
      %v1342 = vmul.f32 %v1335, %v1341
      %v1343 = vpack.c.bf16 %v1342, %v1342
      %s1344 = scalar_lea.vmem %s507, 28
      %1345 = vst [vmem:[%s1344] sm:$0xf] %v1343
      %v1346 = vrot.slane %v1342, 4
      %v1347 = vadd.f32 %v1342, %v1346
      %v1348 = vrot.slane %v1347, 2
      %v1349 = vadd.f32 %v1347, %v1348
      %v1350 = vrot.slane %v1349, 1
      %v1351 = vadd.f32 %v1349, %v1350
      %v1352 = vadd.f32 %v1255, %v1351
      %v1353 = vld [vmem:[#allocation2] sm:$0x1]
      %v1354 = vadd.f32 %v1353, %v1352
      %1355 = vst [vmem:[#allocation2] sm:$0x1] %v1354
      // Predicated region
      $region57: #{_lambda_.13} parent=51 // pred_check
        %p1356 = pneg %p516
      $region58: #{_lambda_.13} parent=51 // pred_check_branch
        %1358 = sbr.rel (%p1356) target = $region60
      $region59: #{_lambda_.13} parent=51 // pred_region
        %v1359 = vld [vmem:[#allocation2] sm:$0x1]
        %v1360 = vmul.f32 %v1359, 0.015625
        %v1361 = vld [vmem:[%s6] sm:$0xff]
        %v1363 = vlaneseq
        %v1364 = vshrl.u32 %v1363, 7
        %v1365 = vsub.s32 0, %v1364
        %v1366 = vrot.slane %v1360, %v1365
        %v1368 = vmul.f32 %v1366, %v1361
        %1369 = vadd.xlane.f32.xlu0 %v1368
        %v1370 = vpop.xlane.xlu0 %1369
        %v1371 = vxor.u32 %v1370, 2147483648
        %v1372 = vmul.f32 %v1371, 1.442695
        %v1373 = vpow.pop %v1372
        %v1374 = vadd.f32 %v1373, 1.0
        %v1375 = vrcp.pop %v1374
        %v1376 = vmul.f32 1.0, %v1375
        %v1377 = vmul.f32 %v1370, %v1376
        %v1378 = vld [vmem:[%s7] sm:$0xff]
        %v1379 = vmul.f32 %v1377, %v1378
        %v1380 = vrot.slane %v1379, 4
        %v1381 = vadd.f32 %v1379, %v1380
        %v1382 = vrot.slane %v1381, 2
        %v1383 = vadd.f32 %v1381, %v1382
        %v1384 = vrot.slane %v1383, 1
        %v1385 = vadd.f32 %v1383, %v1384
        %v1386 = vxor.u32 %v1385, 2147483648
        %v1387 = vmul.f32 %v1386, 1.442695
        %v1388 = vpow.pop %v1387
        %v1389 = vadd.f32 %v1388, 1.0
        %v1390 = vrcp.pop %v1389
        %v1391 = vmul.f32 1.0, %v1390
        %1392 = vst [vmem:[%s511] sm:$0x1] %v1391
      $region60: #{_lambda_.13} parent=51 // pred_fallthru
        _
      %s1393 = smul.u32 8, %s26
      %p1394 = scmp.lt.s32.totalorder %s25, 1
      %s1395 = scalar_select %p1394, %s25, 1
      %p1396 = scmp.lt.s32.totalorder %s1393, 7
      %s1397 = scalar_select %p1396, %s1393, 7
      %s1398 = smul.addr %s1395, 8
      %s1399 = sadd.s32 %s1397, %s1398
      %s1400 = smul.addr %s1399, 4
      %s1401 = scalar_lea.vmem %s8, %s1400
      %p1402 = scmp.lt.s32.totalorder %s25, 1
      %s1403 = scalar_select %p1402, %s25, 1
      %s1404 = scalar_lea.vmem %s9, %s1403
      // Predicated region
      $region61: #{_lambda_.13} parent=51 // pred_check
        %p1405 = pneg %p252
      $region62: #{_lambda_.13} parent=51 // pred_check_branch
        %1407 = sbr.rel (%p1405) target = $region64
      $region63: #{_lambda_.13} parent=51 // pred_region
        %s1408 = smul.u32 8, %s26
      $region64: #{_lambda_.13} parent=51 // pred_fallthru
        _
      // Predicated region
      $region65: #{_lambda_.13} parent=51 // pred_check
        %p1409 = pneg %p278
      $region66: #{_lambda_.13} parent=51 // pred_check_branch
        %1411 = sbr.rel (%p1409) target = $region68
      $region67: #{_lambda_.13} parent=51 // pred_region
        _
      $region68: #{_lambda_.13} parent=51 // pred_fallthru
        _
    $region52: #{_lambda_.13} parent=5 // pred_fallthru
      _
    %p1412 = scmp.le.s32.totalorder 2, %s16
    // Predicated region
    $region69: #{_lambda_.13} parent=5 // pred_check
      %p1413 = pneg %p1412
    $region70: #{_lambda_.13} parent=5 // pred_check_branch
      %1415 = sbr.rel (%p1413) target = $region72
    $region71: #{_lambda_.13} parent=5 // pred_region
      %s1416 = ssub.s32 %s16, 2
      // Predicated region
      $region73: #{_lambda_.13} parent=71 // pred_check
        %p1417 = pneg %p258
      $region74: #{_lambda_.13} parent=71 // pred_check_branch
        %1419 = sbr.rel (%p1417) target = $region76
      $region75: #{_lambda_.13} parent=71 // pred_region
        %s1420 = smul.u32 8, %s28
        %p1421 = scmp.lt.s32.totalorder %s27, 1
        %s1422 = scalar_select %p1421, %s27, 1
        %p1423 = scmp.lt.s32.totalorder %s1420, 7
        %s1424 = scalar_select %p1423, %s1420, 7
        %s1425 = smul.addr %s1422, 8
        %s1426 = sadd.s32 %s1424, %s1425
        %s1427 = smul.addr %s1426, 4
        %s1428 = scalar_lea.vmem %s8, %s1427
      $region76: #{_lambda_.13} parent=71 // pred_fallthru
        _
      // Predicated region
      $region77: #{_lambda_.13} parent=71 // pred_check
        %p1429 = pneg %p284
      $region78: #{_lambda_.13} parent=71 // pred_check_branch
        %1431 = sbr.rel (%p1429) target = $region80
      $region79: #{_lambda_.13} parent=71 // pred_region
        %p1432 = scmp.lt.s32.totalorder %s27, 1
        %s1433 = scalar_select %p1432, %s27, 1
        %s1434 = scalar_lea.vmem %s9, %s1433
      $region80: #{_lambda_.13} parent=71 // pred_fallthru
        _
    $region72: #{_lambda_.13} parent=5 // pred_fallthru
      _
  $region6: #{_lambda_.13} parent=0 // loop_footer
    %s20 = sadd.s32 1, %s16
  $region7: #{_lambda_.13} parent=0 // loop_footer_branch
    %15 = sbr.rel target = $region3
  $region8: #{_lambda_.13} parent=0 // loop_exit
    _

// kernel: _lambda_.16
$region0: #{_lambda_.16}
  #allocation0 [shape = 'u32[]', space=smem, size = 0x4, offset = 0x4, fixed_abs, tag = 'smem constant byte address 0x4 - core index']
  #allocation1 [shape = 'u32[144,128]{1,0:T(1,128)}', space=vmem, size = 0x12000, scoped, tag = 'internal scratch']
  #allocation2 [shape = 'f32[1,128]{1,0:T(1,128)}', space=vmem, size = 0x200, scoped, tag = 'scratch operand']
  %s0 = inlined_call_operand.vmem [shape: bf16[8,5,5,128], index: 0, kind: input, shape index: {}, may-alias: {0,1}]
  %s1 = inlined_call_operand.vmem [shape: bf16[8,5,5,128], index: 1, kind: input, shape index: {}, may-alias: {0,1}]
  %s2 = inlined_call_operand.vmem [shape: f32[9,128], index: 2, kind: input, shape index: {}]
  %s3 = inlined_call_operand.vmem [shape: f32[1,128], index: 3, kind: input, shape index: {}]
  %s4 = inlined_call_operand.vmem [shape: f32[1,128], index: 4, kind: input, shape index: {}]
  %s5 = inlined_call_operand.vmem [shape: f32[8,128], index: 5, kind: input, shape index: {}]
  %s6 = inlined_call_operand.vmem [shape: f32[8,128], index: 6, kind: input, shape index: {}]
  %s7 = inlined_call_operand.vmem [shape: bf16[2,4,4,128], index: 7, kind: output, shape index: {0}]
  %s8 = inlined_call_operand.vmem [shape: f32[2,1,128], index: 8, kind: output, shape index: {1}]
  %9 = xla_tuple %s7, %s8
  %s10 = sld [smem:[#allocation0]]
  $region180: #{_lambda_.16} parent=0
    _
  %s12 = ssub.s32 1, %s10
  %s13 = scalar_select 0, %s12, %s10
  $region1: #{_lambda_.16} parent=0
    #allocation3 [shape = 'u8[65536]{0}', space=vmem, size = 0x10000, scoped, tag = 'input window, operand 0']
    #allocation4 [shape = 'u8[16384]{0}', space=vmem, size = 0x4000, scoped, tag = 'input window, operand 1']
    loop: start=0, step=1, limit=4
    $region2: #{_lambda_.16} parent=1 // loop_pre_header
      _
    $region3: #{_lambda_.16} parent=1 // loop_header
      %s15 = sphi 0, %s19
      %p16 = scmp.ge.s32.totalorder %s15, 4
      %s22 = sphi 0, %s34
      %s23 = sphi 0, %s30
      %s24 = sphi 0, %s22
      %s25 = sphi 0, %s23
      %s26 = sphi 0, %s24
      %s27 = sphi 0, %s25
      %s39 = sphi 0, %s41
      %s42 = sphi 0, %s39
      %s43 = sphi 0, %s42
      %s59 = sphi 0, %s43
      %s71 = sphi 0, %s73
      %s74 = sphi 0, %s71
      %s75 = sphi 0, %s74
      %s91 = sphi 0, %s75
      %s95 = sphi 0, %s95
      %s97 = sphi 0, %s95
      %s98 = sphi 0, %s97
      %s112 = sphi 0, %s98
      %s116 = sphi 0, %s116
      %s118 = sphi 0, %s116
      %s119 = sphi 0, %s118
      %s133 = sphi 0, %s119
      %s137 = sphi 0, %s137
      %s139 = sphi 0, %s137
      %s140 = sphi 0, %s139
      %s154 = sphi 0, %s140
      %s158 = sphi 0, %s158
      %s160 = sphi 0, %s158
      %s161 = sphi 0, %s160
      %s175 = sphi 0, %s161
      %s179 = sphi 0, %s179
      %s181 = sphi 0, %s179
      %s182 = sphi 0, %s181
      %s196 = sphi 0, %s182
      %s204 = sphi 0, %s206
      %s207 = sphi 0, %s204
      %s208 = sphi 0, %s207
      %s224 = sphi 0, %s208
      %s230 = sphi 0, %s232
      %s233 = sphi 0, %s230
      %s234 = sphi 0, %s233
      %s250 = sphi 0, %s234
    $region4: #{_lambda_.16} parent=1 // loop_header_branch
      %18 = sbr.rel (%p16) target = $region8
    $region5: #{_lambda_.16} parent=1 // loop_body
      %s20 = ssub.s32 %s15, 1
      %s21 = ssub.s32 %s15, 2
      %s28 = sadd.s32 1, %s23
      %p29 = scmp.ge.s32.totalorder %s28, 1
      %s30 = scalar_select %p29, 0, %s28
      %s31 = sadd.s32 1, %s22
      %s32 = scalar_select %p29, %s31, %s22
      %p33 = scmp.ge.s32.totalorder %s32, 2
      %s34 = scalar_select %p33, 0, %s32
      %s35 = ssub.s32 %s22, %s34
      %s36 = ssub.s32 %s23, %s30
      %s37 = sor.u32 %s35, %s36
      %p38 = scmp.eq.s32.totalorder %s37, 0
      %s40 = sadd.s32 %s39, 1
      %s41 = scalar_select %p38, %s39, %s40
      %p44 = pneg %p38
      %p45 = scmp.eq.s32.totalorder %s15, 1
      %p46 = por %p44, %p45
      %p47 = scmp.ne.s32.totalorder %s39, %s42
      %p48 = scmp.eq.s32.totalorder %s15, 0
      %p49 = por %p47, %p48
      %p50 = scmp.ne.s32.totalorder %s39, %s42
      %p51 = scmp.eq.s32.totalorder %s20, 1
      %p52 = por %p50, %p51
      %p53 = scmp.ne.s32.totalorder %s42, %s43
      %p54 = scmp.eq.s32.totalorder %s20, 0
      %p55 = por %p53, %p54
      %p56 = scmp.ne.s32.totalorder %s42, %s43
      %p57 = scmp.eq.s32.totalorder %s21, 1
      %p58 = por %p56, %p57
      %p60 = scmp.ne.s32.totalorder %s43, %s59
      %p61 = scmp.eq.s32.totalorder %s21, 0
      %p62 = por %p60, %p61
      %s63 = sadd.s32 %s23, 1
      %s64 = smul.u32 %s63, 4
      %s65 = sadd.s32 %s30, 1
      %s66 = smul.u32 %s65, 4
      %s67 = ssub.s32 %s22, %s34
      %s68 = ssub.s32 %s64, %s66
      %s69 = sor.u32 %s67, %s68
      %p70 = scmp.eq.s32.totalorder %s69, 0
      %s72 = sadd.s32 %s71, 1
      %s73 = scalar_select %p70, %s71, %s72
      %p76 = pneg %p70
      %p77 = scmp.eq.s32.totalorder %s15, 1
      %p78 = por %p76, %p77
      %p79 = scmp.ne.s32.totalorder %s71, %s74
      %p80 = scmp.eq.s32.totalorder %s15, 0
      %p81 = por %p79, %p80
      %p82 = scmp.ne.s32.totalorder %s71, %s74
      %p83 = scmp.eq.s32.totalorder %s20, 1
      %p84 = por %p82, %p83
      %p85 = scmp.ne.s32.totalorder %s74, %s75
      %p86 = scmp.eq.s32.totalorder %s20, 0
      %p87 = por %p85, %p86
      %p88 = scmp.ne.s32.totalorder %s74, %s75
      %p89 = scmp.eq.s32.totalorder %s21, 1
      %p90 = por %p88, %p89
      %p92 = scmp.ne.s32.totalorder %s75, %s91
      %p93 = scmp.eq.s32.totalorder %s21, 0
      %p94 = por %p92, %p93
      %s96 = sadd.s32 %s95, 1
      %p99 = scmp.eq.s32.totalorder %s15, 1
      %p100 = scmp.ne.s32.totalorder %s95, %s97
      %p101 = scmp.eq.s32.totalorder %s15, 0
      %p102 = por %p100, %p101
      %p103 = scmp.ne.s32.totalorder %s95, %s97
      %p104 = scmp.eq.s32.totalorder %s20, 1
      %p105 = por %p103, %p104
      %p106 = scmp.ne.s32.totalorder %s97, %s98
      %p107 = scmp.eq.s32.totalorder %s20, 0
      %p108 = por %p106, %p107
      %p109 = scmp.ne.s32.totalorder %s97, %s98
      %p110 = scmp.eq.s32.totalorder %s21, 1
      %p111 = por %p109, %p110
      %p113 = scmp.ne.s32.totalorder %s98, %s112
      %p114 = scmp.eq.s32.totalorder %s21, 0
      %p115 = por %p113, %p114
      %s117 = sadd.s32 %s116, 1
      %p120 = scmp.eq.s32.totalorder %s15, 1
      %p121 = scmp.ne.s32.totalorder %s116, %s118
      %p122 = scmp.eq.s32.totalorder %s15, 0
      %p123 = por %p121, %p122
      %p124 = scmp.ne.s32.totalorder %s116, %s118
      %p125 = scmp.eq.s32.totalorder %s20, 1
      %p126 = por %p124, %p125
      %p127 = scmp.ne.s32.totalorder %s118, %s119
      %p128 = scmp.eq.s32.totalorder %s20, 0
      %p129 = por %p127, %p128
      %p130 = scmp.ne.s32.totalorder %s118, %s119
      %p131 = scmp.eq.s32.totalorder %s21, 1
      %p132 = por %p130, %p131
      %p134 = scmp.ne.s32.totalorder %s119, %s133
      %p135 = scmp.eq.s32.totalorder %s21, 0
      %p136 = por %p134, %p135
      %s138 = sadd.s32 %s137, 1
      %p141 = scmp.eq.s32.totalorder %s15, 1
      %p142 = scmp.ne.s32.totalorder %s137, %s139
      %p143 = scmp.eq.s32.totalorder %s15, 0
      %p144 = por %p142, %p143
      %p145 = scmp.ne.s32.totalorder %s137, %s139
      %p146 = scmp.eq.s32.totalorder %s20, 1
      %p147 = por %p145, %p146
      %p148 = scmp.ne.s32.totalorder %s139, %s140
      %p149 = scmp.eq.s32.totalorder %s20, 0
      %p150 = por %p148, %p149
      %p151 = scmp.ne.s32.totalorder %s139, %s140
      %p152 = scmp.eq.s32.totalorder %s21, 1
      %p153 = por %p151, %p152
      %p155 = scmp.ne.s32.totalorder %s140, %s154
      %p156 = scmp.eq.s32.totalorder %s21, 0
      %p157 = por %p155, %p156
      %s159 = sadd.s32 %s158, 1
      %p162 = scmp.eq.s32.totalorder %s15, 1
      %p163 = scmp.ne.s32.totalorder %s158, %s160
      %p164 = scmp.eq.s32.totalorder %s15, 0
      %p165 = por %p163, %p164
      %p166 = scmp.ne.s32.totalorder %s158, %s160
      %p167 = scmp.eq.s32.totalorder %s20, 1
      %p168 = por %p166, %p167
      %p169 = scmp.ne.s32.totalorder %s160, %s161
      %p170 = scmp.eq.s32.totalorder %s20, 0
      %p171 = por %p169, %p170
      %p172 = scmp.ne.s32.totalorder %s160, %s161
      %p173 = scmp.eq.s32.totalorder %s21, 1
      %p174 = por %p172, %p173
      %p176 = scmp.ne.s32.totalorder %s161, %s175
      %p177 = scmp.eq.s32.totalorder %s21, 0
      %p178 = por %p176, %p177
      %s180 = sadd.s32 %s179, 1
      %p183 = scmp.eq.s32.totalorder %s15, 1
      %p184 = scmp.ne.s32.totalorder %s179, %s181
      %p185 = scmp.eq.s32.totalorder %s15, 0
      %p186 = por %p184, %p185
      %p187 = scmp.ne.s32.totalorder %s179, %s181
      %p188 = scmp.eq.s32.totalorder %s20, 1
      %p189 = por %p187, %p188
      %p190 = scmp.ne.s32.totalorder %s181, %s182
      %p191 = scmp.eq.s32.totalorder %s20, 0
      %p192 = por %p190, %p191
      %p193 = scmp.ne.s32.totalorder %s181, %s182
      %p194 = scmp.eq.s32.totalorder %s21, 1
      %p195 = por %p193, %p194
      %p197 = scmp.ne.s32.totalorder %s182, %s196
      %p198 = scmp.eq.s32.totalorder %s21, 0
      %p199 = por %p197, %p198
      %s200 = ssub.s32 %s22, %s34
      %s201 = ssub.s32 %s23, %s30
      %s202 = sor.u32 %s200, %s201
      %p203 = scmp.eq.s32.totalorder %s202, 0
      %s205 = sadd.s32 %s204, 1
      %s206 = scalar_select %p203, %s204, %s205
      %p209 = pneg %p203
      %p210 = scmp.eq.s32.totalorder %s15, 1
      %p211 = por %p209, %p210
      %p212 = scmp.ne.s32.totalorder %s204, %s207
      %p213 = scmp.eq.s32.totalorder %s15, 0
      %p214 = por %p212, %p213
      %p215 = scmp.ne.s32.totalorder %s204, %s207
      %p216 = scmp.eq.s32.totalorder %s20, 1
      %p217 = por %p215, %p216
      %p218 = scmp.ne.s32.totalorder %s207, %s208
      %p219 = scmp.eq.s32.totalorder %s20, 0
      %p220 = por %p218, %p219
      %p221 = scmp.ne.s32.totalorder %s207, %s208
      %p222 = scmp.eq.s32.totalorder %s21, 1
      %p223 = por %p221, %p222
      %p225 = scmp.ne.s32.totalorder %s208, %s224
      %p226 = scmp.eq.s32.totalorder %s21, 0
      %p227 = por %p225, %p226
      %s228 = ssub.s32 %s22, %s34
      %p229 = scmp.eq.s32.totalorder %s228, 0
      %s231 = sadd.s32 %s230, 1
      %s232 = scalar_select %p229, %s230, %s231
      %p235 = pneg %p229
      %p236 = scmp.eq.s32.totalorder %s15, 1
      %p237 = por %p235, %p236
      %p238 = scmp.ne.s32.totalorder %s230, %s233
      %p239 = scmp.eq.s32.totalorder %s15, 0
      %p240 = por %p238, %p239
      %p241 = scmp.ne.s32.totalorder %s230, %s233
      %p242 = scmp.eq.s32.totalorder %s20, 1
      %p243 = por %p241, %p242
      %p244 = scmp.ne.s32.totalorder %s233, %s234
      %p245 = scmp.eq.s32.totalorder %s20, 0
      %p246 = por %p244, %p245
      %p247 = scmp.ne.s32.totalorder %s233, %s234
      %p248 = scmp.eq.s32.totalorder %s21, 1
      %p249 = por %p247, %p248
      %p251 = scmp.ne.s32.totalorder %s234, %s250
      %p252 = scmp.eq.s32.totalorder %s21, 0
      %p253 = por %p251, %p252
      %p254 = scmp.le.s32.totalorder 1, %s15
      %p255 = scmp.lt.s32.totalorder %s15, 3
      %p256 = pnand %p254, %p255
      %p257 = pneg %p256
      // Predicated region
      $region9: #{_lambda_.16} parent=5 // pred_check
        _
      $region10: #{_lambda_.16} parent=5 // pred_check_branch
        %259 = sbr.rel (%p256) target = $region12
      $region11: #{_lambda_.16} parent=5 // pred_region
        %s260 = ssub.s32 %s15, 1
        // Predicated region
        $region13: #{_lambda_.16} parent=11 // pred_check
          %p261 = pneg %p108
        $region14: #{_lambda_.16} parent=11 // pred_check_branch
          %263 = sbr.rel (%p261) target = $region16
        $region15: #{_lambda_.16} parent=11 // pred_region
          _
        $region16: #{_lambda_.16} parent=11 // pred_fallthru
          _
        // Predicated region
        $region17: #{_lambda_.16} parent=11 // pred_check
          %p264 = pneg %p129
        $region18: #{_lambda_.16} parent=11 // pred_check_branch
          %266 = sbr.rel (%p264) target = $region20
        $region19: #{_lambda_.16} parent=11 // pred_region
          _
        $region20: #{_lambda_.16} parent=11 // pred_fallthru
          _
        // Predicated region
        $region21: #{_lambda_.16} parent=11 // pred_check
          %p267 = pneg %p150
        $region22: #{_lambda_.16} parent=11 // pred_check_branch
          %269 = sbr.rel (%p267) target = $region24
        $region23: #{_lambda_.16} parent=11 // pred_region
          _
        $region24: #{_lambda_.16} parent=11 // pred_fallthru
          _
        // Predicated region
        $region25: #{_lambda_.16} parent=11 // pred_check
          %p270 = pneg %p171
        $region26: #{_lambda_.16} parent=11 // pred_check_branch
          %272 = sbr.rel (%p270) target = $region28
        $region27: #{_lambda_.16} parent=11 // pred_region
          _
        $region28: #{_lambda_.16} parent=11 // pred_fallthru
          _
        // Predicated region
        $region29: #{_lambda_.16} parent=11 // pred_check
          %p273 = pneg %p192
        $region30: #{_lambda_.16} parent=11 // pred_check_branch
          %275 = sbr.rel (%p273) target = $region32
        $region31: #{_lambda_.16} parent=11 // pred_region
          _
        $region32: #{_lambda_.16} parent=11 // pred_fallthru
          _
      $region12: #{_lambda_.16} parent=5 // pred_fallthru
        _
      %p276 = scmp.lt.s32.totalorder %s15, 2
      // Predicated region
      $region33: #{_lambda_.16} parent=5 // pred_check
        %p277 = pneg %p276
      $region34: #{_lambda_.16} parent=5 // pred_check_branch
        %279 = sbr.rel (%p277) target = $region36
      $region35: #{_lambda_.16} parent=5 // pred_region
        // Predicated region
        $region37: #{_lambda_.16} parent=35 // pred_check
          %p280 = pneg %p49
        $region38: #{_lambda_.16} parent=35 // pred_check_branch
          %282 = sbr.rel (%p280) target = $region40
        $region39: #{_lambda_.16} parent=35 // pred_region
          %s283 = sand.u32 %s39, 1
          %s284 = sand.u32 %s39, 1
          %s285 = smul.addr %s284, 64
          %s286 = scalar_lea.vmem [#allocation3], %s285
          %s287 = smul.u32 4, %s22
          %s288 = smul.u32 4, %s23
          %s289 = ssub.s32 5, %s288
          %p290 = scmp.lt.s32.totalorder %s289, 4
          %s291 = scalar_select %p290, %s289, 4
          %s292 = smul.u32 256, %s291
          %p293 = scmp.ne.s32.totalorder 0, %s292
          %s294 = smul.addr %s287, 5
          %s295 = sadd.s32 %s288, %s294
          %s296 = smul.addr %s295, 4
          %s297 = scalar_lea.vmem %s0, %s296
          // Predicated region
          $region41: #{_lambda_.16} parent=39 // pred_check
            %p298 = pneg %p293
          $region42: #{_lambda_.16} parent=39 // pred_check_branch
            %300 = sbr.rel (%p298) target = $region44
          $region43: #{_lambda_.16} parent=39 // pred_region
            // Predicated region
            $region45: #{_lambda_.16} parent=43 // pred_check
              _
            $region46: #{_lambda_.16} parent=43 // pred_check_branch
              %302 = sbr.rel target = $region48
            $region47: #{_lambda_.16} parent=43 // pred_region
              // Predicated region
              $region67: #{_lambda_.16} parent=47 // pred_check
                _
              $region68: #{_lambda_.16} parent=47 // pred_check_branch
                %387 = sbr.rel (0) target = $region70
              $region69: #{_lambda_.16} parent=47 // pred_region
                %s388 = sshrl.u32 %s291, 2
                // While loop
                $region71: #{_lambda_.16} parent=69 // loop_pre_header
                  _
                $region72: #{_lambda_.16} parent=69 // loop_header
                  %s390 = sphi 0, %s392
                  %p391 = scmp.ge.s32.totalorder %s390, %s388
                  %s395 = sphi 0, %s400
                  %s396 = sphi %s297, %s403
                  %s397 = sphi %s286, %s404
                $region73: #{_lambda_.16} parent=69 // loop_header_branch
                  %394 = sbr.rel (%p391) target = $region77
                $region74: #{_lambda_.16} parent=69 // loop_body
                  %s398 = sadd.s32 1, %s395
                  %p399 = scmp.ge.s32.totalorder %s398, %s388
                  %s400 = scalar_select %p399, 0, %s398
                  %s401 = smul.u32 %s400, 16
                  %s402 = smul.u32 %s400, 16
                  %s403 = scalar_lea.vmem %s297, %s401
                  %s404 = scalar_lea.vmem %s286, %s402 [#allocation3]
                $region75: #{_lambda_.16} parent=69 // loop_footer
                  %s392 = sadd.s32 %s390, 1
                $region76: #{_lambda_.16} parent=69 // loop_footer_branch
                  %389 = sbr.rel target = $region72
                $region77: #{_lambda_.16} parent=69 // loop_exit
                  _
                %s405 = sshrl.u32 %s291, 2
                %s406 = sand.u32 %s291, 3
                %s407 = smul.u32 %s405, 4
                %s408 = smul.u32 4, %s407
                %s409 = scalar_lea.vmem %s297, %s408
                %s410 = smul.u32 4, %s407
                %s411 = scalar_lea.vmem %s286, %s410 [#allocation3]
                // While loop
                $region78: #{_lambda_.16} parent=69 // loop_pre_header
                  _
                $region79: #{_lambda_.16} parent=69 // loop_header
                  %s413 = sphi 0, %s415
                  %p414 = scmp.ge.s32.totalorder %s413, %s406
                  %s418 = sphi 0, %s423
                  %s419 = sphi %s409, %s426
                  %s420 = sphi %s411, %s427
                $region80: #{_lambda_.16} parent=69 // loop_header_branch
                  %417 = sbr.rel (%p414) target = $region84
                $region81: #{_lambda_.16} parent=69 // loop_body
                  %s421 = sadd.s32 1, %s418
                  %p422 = scmp.ge.s32.totalorder %s421, %s406
                  %s423 = scalar_select %p422, 0, %s421
                  %s424 = smul.u32 %s423, 4
                  %s425 = smul.u32 %s423, 4
                  %s426 = scalar_lea.vmem %s409, %s424
                  %s427 = scalar_lea.vmem %s411, %s425 [#allocation3]
                $region82: #{_lambda_.16} parent=69 // loop_footer
                  %s415 = sadd.s32 %s413, 1
                $region83: #{_lambda_.16} parent=69 // loop_footer_branch
                  %412 = sbr.rel target = $region79
                $region84: #{_lambda_.16} parent=69 // loop_exit
                  _
                %s429 = sshrl.u32 %s291, 2
                // While loop
                $region85: #{_lambda_.16} parent=69 // loop_pre_header
                  _
                $region86: #{_lambda_.16} parent=69 // loop_header
                  %s431 = sphi 0, %s433
                  %p432 = scmp.ge.s32.totalorder %s431, %s429
                  %s436 = sphi 0, %s473
                  %s437 = sphi %s297, %s476
                  %s438 = sphi %s286, %s477
                $region87: #{_lambda_.16} parent=69 // loop_header_branch
                  %435 = sbr.rel (%p432) target = $region91
                $region88: #{_lambda_.16} parent=69 // loop_body
                  %v439 = vld [vmem:[%s437] sm:$0xf]
                  %440 = vst [vmem:[%s438] sm:$0xf] %v439
                  %v441 = vld [vmem:[%s437 + $0x4] sm:$0xf]
                  %442 = vst [vmem:[%s438 + $0x4] sm:$0xf] %v441
                  %v443 = vld [vmem:[%s437 + $0x8] sm:$0xf]
                  %444 = vst [vmem:[%s438 + $0x8] sm:$0xf] %v443
                  %v445 = vld [vmem:[%s437 + $0xc] sm:$0xf]
                  %446 = vst [vmem:[%s438 + $0xc] sm:$0xf] %v445
                  %v447 = vld [vmem:[%s437 + $0x14] sm:$0xf]
                  %448 = vst [vmem:[%s438 + $0x10] sm:$0xf] %v447
                  %v449 = vld [vmem:[%s437 + $0x18] sm:$0xf]
                  %450 = vst [vmem:[%s438 + $0x14] sm:$0xf] %v449
                  %v451 = vld [vmem:[%s437 + $0x1c] sm:$0xf]
                  %452 = vst [vmem:[%s438 + $0x18] sm:$0xf] %v451
                  %v453 = vld [vmem:[%s437 + $0x20] sm:$0xf]
                  %454 = vst [vmem:[%s438 + $0x1c] sm:$0xf] %v453
                  %v455 = vld [vmem:[%s437 + $0x28] sm:$0xf]
                  %456 = vst [vmem:[%s438 + $0x20] sm:$0xf] %v455
                  %v457 = vld [vmem:[%s437 + $0x2c] sm:$0xf]
                  %458 = vst [vmem:[%s438 + $0x24] sm:$0xf] %v457
                  %v459 = vld [vmem:[%s437 + $0x30] sm:$0xf]
                  %460 = vst [vmem:[%s438 + $0x28] sm:$0xf] %v459
                  %v461 = vld [vmem:[%s437 + $0x34] sm:$0xf]
                  %462 = vst [vmem:[%s438 + $0x2c] sm:$0xf] %v461
                  %v463 = vld [vmem:[%s437 + $0x3c] sm:$0xf]
                  %464 = vst [vmem:[%s438 + $0x30] sm:$0xf] %v463
                  %v465 = vld [vmem:[%s437 + $0x40] sm:$0xf]
                  %466 = vst [vmem:[%s438 + $0x34] sm:$0xf] %v465
                  %v467 = vld [vmem:[%s437 + $0x44] sm:$0xf]
                  %468 = vst [vmem:[%s438 + $0x38] sm:$0xf] %v467
                  %v469 = vld [vmem:[%s437 + $0x48] sm:$0xf]
                  %470 = vst [vmem:[%s438 + $0x3c] sm:$0xf] %v469
                  %s471 = sadd.s32 1, %s436
                  %p472 = scmp.ge.s32.totalorder %s471, %s429
                  %s473 = scalar_select %p472, 0, %s471
                  %s474 = smul.u32 %s473, 16
                  %s475 = smul.u32 %s473, 16
                  %s476 = scalar_lea.vmem %s297, %s474
                  %s477 = scalar_lea.vmem %s286, %s475 [#allocation3]
                $region89: #{_lambda_.16} parent=69 // loop_footer
                  %s433 = sadd.s32 %s431, 1
                $region90: #{_lambda_.16} parent=69 // loop_footer_branch
                  %430 = sbr.rel target = $region86
                $region91: #{_lambda_.16} parent=69 // loop_exit
                  _
                %s478 = sshrl.u32 %s291, 2
                %s479 = sand.u32 %s291, 3
                %s480 = smul.u32 %s478, 4
                %s481 = smul.u32 4, %s480
                %s482 = scalar_lea.vmem %s297, %s481
                %s483 = smul.u32 4, %s480
                %s484 = scalar_lea.vmem %s286, %s483 [#allocation3]
                // While loop
                $region92: #{_lambda_.16} parent=69 // loop_pre_header
                  _
                $region93: #{_lambda_.16} parent=69 // loop_header
                  %s486 = sphi 0, %s488
                  %p487 = scmp.ge.s32.totalorder %s486, %s479
                  %s491 = sphi 0, %s504
                  %s492 = sphi %s482, %s507
                  %s493 = sphi %s484, %s508
                $region94: #{_lambda_.16} parent=69 // loop_header_branch
                  %490 = sbr.rel (%p487) target = $region98
                $region95: #{_lambda_.16} parent=69 // loop_body
                  %v494 = vld [vmem:[%s492] sm:$0xf]
                  %495 = vst [vmem:[%s493] sm:$0xf] %v494
                  %v496 = vld [vmem:[%s492 + $0x14] sm:$0xf]
                  %497 = vst [vmem:[%s493 + $0x10] sm:$0xf] %v496
                  %v498 = vld [vmem:[%s492 + $0x28] sm:$0xf]
                  %499 = vst [vmem:[%s493 + $0x20] sm:$0xf] %v498
                  %v500 = vld [vmem:[%s492 + $0x3c] sm:$0xf]
                  %501 = vst [vmem:[%s493 + $0x30] sm:$0xf] %v500
                  %s502 = sadd.s32 1, %s491
                  %p503 = scmp.ge.s32.totalorder %s502, %s479
                  %s504 = scalar_select %p503, 0, %s502
                  %s505 = smul.u32 %s504, 4
                  %s506 = smul.u32 %s504, 4
                  %s507 = scalar_lea.vmem %s482, %s505
                  %s508 = scalar_lea.vmem %s484, %s506 [#allocation3]
                $region96: #{_lambda_.16} parent=69 // loop_footer
                  %s488 = sadd.s32 %s486, 1
                $region97: #{_lambda_.16} parent=69 // loop_footer_branch
                  %485 = sbr.rel target = $region93
                $region98: #{_lambda_.16} parent=69 // loop_exit
                  _
              $region70: #{_lambda_.16} parent=47 // pred_fallthru
                _
            $region48: #{_lambda_.16} parent=43 // pred_fallthru
              _
            // Predicated region
            $region49: #{_lambda_.16} parent=43 // pred_check
              _
            $region50: #{_lambda_.16} parent=43 // pred_check_branch
              %304 = sbr.rel (0) target = $region52
            $region51: #{_lambda_.16} parent=43 // pred_region
              %s306 = sshrl.u32 %s291, 2
              // While loop
              $region53: #{_lambda_.16} parent=51 // loop_pre_header
                _
              $region54: #{_lambda_.16} parent=51 // loop_header
                %s308 = sphi 0, %s310
                %p309 = scmp.ge.s32.totalorder %s308, %s306
                %s313 = sphi 0, %s350
                %s314 = sphi %s297, %s353
                %s315 = sphi %s286, %s354
              $region55: #{_lambda_.16} parent=51 // loop_header_branch
                %312 = sbr.rel (%p309) target = $region59
              $region56: #{_lambda_.16} parent=51 // loop_body
                %v316 = vld [vmem:[%s314] sm:$0xf]
                %317 = vst [vmem:[%s315] sm:$0xf] %v316
                %v318 = vld [vmem:[%s314 + $0x4] sm:$0xf]
                %319 = vst [vmem:[%s315 + $0x4] sm:$0xf] %v318
                %v320 = vld [vmem:[%s314 + $0x8] sm:$0xf]
                %321 = vst [vmem:[%s315 + $0x8] sm:$0xf] %v320
                %v322 = vld [vmem:[%s314 + $0xc] sm:$0xf]
                %323 = vst [vmem:[%s315 + $0xc] sm:$0xf] %v322
                %v324 = vld [vmem:[%s314 + $0x14] sm:$0xf]
                %325 = vst [vmem:[%s315 + $0x10] sm:$0xf] %v324
                %v326 = vld [vmem:[%s314 + $0x18] sm:$0xf]
                %327 = vst [vmem:[%s315 + $0x14] sm:$0xf] %v326
                %v328 = vld [vmem:[%s314 + $0x1c] sm:$0xf]
                %329 = vst [vmem:[%s315 + $0x18] sm:$0xf] %v328
                %v330 = vld [vmem:[%s314 + $0x20] sm:$0xf]
                %331 = vst [vmem:[%s315 + $0x1c] sm:$0xf] %v330
                %v332 = vld [vmem:[%s314 + $0x28] sm:$0xf]
                %333 = vst [vmem:[%s315 + $0x20] sm:$0xf] %v332
                %v334 = vld [vmem:[%s314 + $0x2c] sm:$0xf]
                %335 = vst [vmem:[%s315 + $0x24] sm:$0xf] %v334
                %v336 = vld [vmem:[%s314 + $0x30] sm:$0xf]
                %337 = vst [vmem:[%s315 + $0x28] sm:$0xf] %v336
                %v338 = vld [vmem:[%s314 + $0x34] sm:$0xf]
                %339 = vst [vmem:[%s315 + $0x2c] sm:$0xf] %v338
                %v340 = vld [vmem:[%s314 + $0x3c] sm:$0xf]
                %341 = vst [vmem:[%s315 + $0x30] sm:$0xf] %v340
                %v342 = vld [vmem:[%s314 + $0x40] sm:$0xf]
                %343 = vst [vmem:[%s315 + $0x34] sm:$0xf] %v342
                %v344 = vld [vmem:[%s314 + $0x44] sm:$0xf]
                %345 = vst [vmem:[%s315 + $0x38] sm:$0xf] %v344
                %v346 = vld [vmem:[%s314 + $0x48] sm:$0xf]
                %347 = vst [vmem:[%s315 + $0x3c] sm:$0xf] %v346
                %s348 = sadd.s32 1, %s313
                %p349 = scmp.ge.s32.totalorder %s348, %s306
                %s350 = scalar_select %p349, 0, %s348
                %s351 = smul.u32 %s350, 16
                %s352 = smul.u32 %s350, 16
                %s353 = scalar_lea.vmem %s297, %s351
                %s354 = scalar_lea.vmem %s286, %s352 [#allocation3]
              $region57: #{_lambda_.16} parent=51 // loop_footer
                %s310 = sadd.s32 %s308, 1
              $region58: #{_lambda_.16} parent=51 // loop_footer_branch
                %307 = sbr.rel target = $region54
              $region59: #{_lambda_.16} parent=51 // loop_exit
                _
              %s355 = sshrl.u32 %s291, 2
              %s356 = sand.u32 %s291, 3
              %s357 = smul.u32 %s355, 4
              %s358 = smul.u32 4, %s357
              %s359 = scalar_lea.vmem %s297, %s358
              %s360 = smul.u32 4, %s357
              %s361 = scalar_lea.vmem %s286, %s360 [#allocation3]
              // While loop
              $region60: #{_lambda_.16} parent=51 // loop_pre_header
                _
              $region61: #{_lambda_.16} parent=51 // loop_header
                %s363 = sphi 0, %s365
                %p364 = scmp.ge.s32.totalorder %s363, %s356
                %s368 = sphi 0, %s381
                %s369 = sphi %s359, %s384
                %s370 = sphi %s361, %s385
              $region62: #{_lambda_.16} parent=51 // loop_header_branch
                %367 = sbr.rel (%p364) target = $region66
              $region63: #{_lambda_.16} parent=51 // loop_body
                %v371 = vld [vmem:[%s369] sm:$0xf]
                %372 = vst [vmem:[%s370] sm:$0xf] %v371
                %v373 = vld [vmem:[%s369 + $0x14] sm:$0xf]
                %374 = vst [vmem:[%s370 + $0x10] sm:$0xf] %v373
                %v375 = vld [vmem:[%s369 + $0x28] sm:$0xf]
                %376 = vst [vmem:[%s370 + $0x20] sm:$0xf] %v375
                %v377 = vld [vmem:[%s369 + $0x3c] sm:$0xf]
                %378 = vst [vmem:[%s370 + $0x30] sm:$0xf] %v377
                %s379 = sadd.s32 1, %s368
                %p380 = scmp.ge.s32.totalorder %s379, %s356
                %s381 = scalar_select %p380, 0, %s379
                %s382 = smul.u32 %s381, 4
                %s383 = smul.u32 %s381, 4
                %s384 = scalar_lea.vmem %s359, %s382
                %s385 = scalar_lea.vmem %s361, %s383 [#allocation3]
              $region64: #{_lambda_.16} parent=51 // loop_footer
                %s365 = sadd.s32 %s363, 1
              $region65: #{_lambda_.16} parent=51 // loop_footer_branch
                %362 = sbr.rel target = $region61
              $region66: #{_lambda_.16} parent=51 // loop_exit
                _
            $region52: #{_lambda_.16} parent=43 // pred_fallthru
              _
          $region44: #{_lambda_.16} parent=39 // pred_fallthru
            _
          %509 = vnop
        $region40: #{_lambda_.16} parent=35 // pred_fallthru
          _
        // Predicated region
        $region99: #{_lambda_.16} parent=35 // pred_check
          %p510 = pneg %p81
        $region100: #{_lambda_.16} parent=35 // pred_check_branch
          %512 = sbr.rel (%p510) target = $region102
        $region101: #{_lambda_.16} parent=35 // pred_region
          %s513 = sand.u32 %s71, 1
          %s514 = sand.u32 %s71, 1
          %s515 = smul.addr %s514, 16
          %s516 = scalar_lea.vmem [#allocation4], %s515
          %s517 = sadd.s32 %s23, 1
          %s518 = smul.u32 %s517, 4
          %s519 = smul.u32 4, %s22
          %s520 = smul.addr %s519, 5
          %s521 = sadd.s32 %s518, %s520
          %s522 = smul.addr %s521, 4
          %s523 = scalar_lea.vmem %s1, %s522
          // Predicated region
          $region103: #{_lambda_.16} parent=101 // pred_check
            _
          $region104: #{_lambda_.16} parent=101 // pred_check_branch
            %525 = sbr.rel (0) target = $region106
          $region105: #{_lambda_.16} parent=101 // pred_region
            // Predicated region
            $region107: #{_lambda_.16} parent=105 // pred_check
              _
            $region108: #{_lambda_.16} parent=105 // pred_check_branch
              %527 = sbr.rel target = $region110
            $region109: #{_lambda_.16} parent=105 // pred_region
              // Predicated region
              $region122: #{_lambda_.16} parent=109 // pred_check
                _
              $region123: #{_lambda_.16} parent=109 // pred_check_branch
                %548 = sbr.rel (0) target = $region125
              $region124: #{_lambda_.16} parent=109 // pred_region
                loop: start=0, step=1, limit=1
                $region126: #{_lambda_.16} parent=124 // loop_pre_header
                  _
                $region127: #{_lambda_.16} parent=124 // loop_header
                  %s550 = sphi 0, %s554
                  %p551 = scmp.ge.s32.totalorder %s550, 1
                  %s555 = sphi %s523, %s523
                  %s556 = sphi %s516, %s516
                $region128: #{_lambda_.16} parent=124 // loop_header_branch
                  %553 = sbr.rel (%p551) target = $region132
                $region129: #{_lambda_.16} parent=124 // loop_body
                  _
                $region130: #{_lambda_.16} parent=124 // loop_footer
                  %s554 = sadd.s32 1, %s550
                $region131: #{_lambda_.16} parent=124 // loop_footer_branch
                  %549 = sbr.rel target = $region127
                $region132: #{_lambda_.16} parent=124 // loop_exit
                  _
                loop: start=0, step=1, limit=1
                $region133: #{_lambda_.16} parent=124 // loop_pre_header
                  _
                $region134: #{_lambda_.16} parent=124 // loop_header
                  %s559 = sphi 0, %s563
                  %p560 = scmp.ge.s32.totalorder %s559, 1
                  %s564 = sphi %s523, %s523
                  %s565 = sphi %s516, %s516
                $region135: #{_lambda_.16} parent=124 // loop_header_branch
                  %562 = sbr.rel (%p560) target = $region139
                $region136: #{_lambda_.16} parent=124 // loop_body
                  %v566 = vld [vmem:[%s564] sm:$0xf]
                  %567 = vst [vmem:[%s565] sm:$0xf] %v566
                  %v568 = vld [vmem:[%s564 + $0x14] sm:$0xf]
                  %569 = vst [vmem:[%s565 + $0x4] sm:$0xf] %v568
                  %v570 = vld [vmem:[%s564 + $0x28] sm:$0xf]
                  %571 = vst [vmem:[%s565 + $0x8] sm:$0xf] %v570
                  %v572 = vld [vmem:[%s564 + $0x3c] sm:$0xf]
                  %573 = vst [vmem:[%s565 + $0xc] sm:$0xf] %v572
                $region137: #{_lambda_.16} parent=124 // loop_footer
                  %s563 = sadd.s32 1, %s559
                $region138: #{_lambda_.16} parent=124 // loop_footer_branch
                  %558 = sbr.rel target = $region134
                $region139: #{_lambda_.16} parent=124 // loop_exit
                  _
              $region125: #{_lambda_.16} parent=109 // pred_fallthru
                _
            $region110: #{_lambda_.16} parent=105 // pred_fallthru
              _
            // Predicated region
            $region111: #{_lambda_.16} parent=105 // pred_check
              _
            $region112: #{_lambda_.16} parent=105 // pred_check_branch
              %529 = sbr.rel (0) target = $region114
            $region113: #{_lambda_.16} parent=105 // pred_region
              loop: start=0, step=1, limit=1
              $region115: #{_lambda_.16} parent=113 // loop_pre_header
                _
              $region116: #{_lambda_.16} parent=113 // loop_header
                %s532 = sphi 0, %s536
                %p533 = scmp.ge.s32.totalorder %s532, 1
                %s537 = sphi %s523, %s523
                %s538 = sphi %s516, %s516
              $region117: #{_lambda_.16} parent=113 // loop_header_branch
                %535 = sbr.rel (%p533) target = $region121
              $region118: #{_lambda_.16} parent=113 // loop_body
                %v539 = vld [vmem:[%s537] sm:$0xf]
                %540 = vst [vmem:[%s538] sm:$0xf] %v539
                %v541 = vld [vmem:[%s537 + $0x14] sm:$0xf]
                %542 = vst [vmem:[%s538 + $0x4] sm:$0xf] %v541
                %v543 = vld [vmem:[%s537 + $0x28] sm:$0xf]
                %544 = vst [vmem:[%s538 + $0x8] sm:$0xf] %v543
                %v545 = vld [vmem:[%s537 + $0x3c] sm:$0xf]
                %546 = vst [vmem:[%s538 + $0xc] sm:$0xf] %v545
              $region119: #{_lambda_.16} parent=113 // loop_footer
                %s536 = sadd.s32 1, %s532
              $region120: #{_lambda_.16} parent=113 // loop_footer_branch
                %531 = sbr.rel target = $region116
              $region121: #{_lambda_.16} parent=113 // loop_exit
                _
            $region114: #{_lambda_.16} parent=105 // pred_fallthru
              _
          $region106: #{_lambda_.16} parent=101 // pred_fallthru
            _
          %574 = vnop
        $region102: #{_lambda_.16} parent=35 // pred_fallthru
          _
      $region36: #{_lambda_.16} parent=5 // pred_fallthru
        _
      %p575 = scmp.le.s32.totalorder 1, %s15
      %p576 = scmp.lt.s32.totalorder %s15, 3
      %p577 = pnand %p575, %p576
      %p578 = pneg %p577
      // Predicated region
      $region140: #{_lambda_.16} parent=5 // pred_check
        _
      $region141: #{_lambda_.16} parent=5 // pred_check_branch
        %580 = sbr.rel (%p577) target = $region143
      $region142: #{_lambda_.16} parent=5 // pred_region
        %s581 = ssub.s32 %s15, 1
        %s582 = sand.u32 %s42, 1
        %s583 = sand.u32 %s42, 1
        %s584 = smul.addr %s583, 64
        %s585 = scalar_lea.vmem [#allocation3], %s584
        // Predicated region
        $region144: #{_lambda_.16} parent=142 // pred_check
          %p586 = pneg %p55
        $region145: #{_lambda_.16} parent=142 // pred_check_branch
          %588 = sbr.rel (%p586) target = $region147
        $region146: #{_lambda_.16} parent=142 // pred_region
          _
        $region147: #{_lambda_.16} parent=142 // pred_fallthru
          _
        %s589 = sand.u32 %s74, 1
        %s590 = sand.u32 %s74, 1
        %s591 = smul.addr %s590, 16
        %s592 = scalar_lea.vmem [#allocation4], %s591
        // Predicated region
        $region148: #{_lambda_.16} parent=142 // pred_check
          %p593 = pneg %p87
        $region149: #{_lambda_.16} parent=142 // pred_check_branch
          %595 = sbr.rel (%p593) target = $region151
        $region150: #{_lambda_.16} parent=142 // pred_region
          _
        $region151: #{_lambda_.16} parent=142 // pred_fallthru
          _
        %s596 = sand.u32 %s42, 1
        %s597 = sand.u32 %s42, 1
        %s598 = smul.addr %s597, 64
        %s599 = scalar_lea.vmem [#allocation3], %s598
        %p600 = pneg %p55
        %p601 = pneg %p52
        %s602 = sand.u32 %s74, 1
        %s603 = sand.u32 %s74, 1
        %s604 = smul.addr %s603, 16
        %s605 = scalar_lea.vmem [#allocation4], %s604
        %p606 = pneg %p87
        %p607 = pneg %p84
        %p608 = pneg %p108
        %p609 = pneg %p105
        %p610 = pneg %p129
        %p611 = pneg %p126
        %p612 = pneg %p150
        %p613 = pneg %p147
        %p614 = pneg %p171
        %p615 = pneg %p168
        %p616 = pneg %p192
        %p617 = pneg %p189
        %p618 = pneg %p220
        %p619 = pneg %p217
        %s620 = smul.u32 4, %s25
        %p621 = scmp.lt.s32.totalorder %s24, 1
        %s622 = scalar_select %p621, %s24, 1
        %p623 = scmp.lt.s32.totalorder %s620, 3
        %s624 = scalar_select %p623, %s620, 3
        %s625 = smul.addr %s622, 4
        %s626 = sadd.s32 %s624, %s625
        %s627 = smul.addr %s626, 2
        %s628 = scalar_lea.vmem %s7, %s627
        %p629 = pneg %p246
        %p630 = pneg %p243
        %p631 = scmp.lt.s32.totalorder %s24, 1
        %s632 = scalar_select %p631, %s24, 1
        %s633 = scalar_lea.vmem %s8, %s632
        %s634 = smul.u32 4, %s24
        %s635 = smul.u32 4, %s25
        %s636 = ssub.s32 5, %s635
        %p637 = scmp.lt.s32.totalorder %s636, 4
        %s638 = scalar_select %p637, %s636, 4
        %s639 = smul.u32 256, %s638
        %s640 = sadd.s32 %s25, 1
        %s641 = smul.u32 %s640, 4
        %s642 = smul.u32 4, %s24
        %s643 = smul.u32 4, %s25
        %p644 = scmp.lt.s32.totalorder %s24, 1
        %s645 = scalar_select %p644, %s24, 1
        %p646 = scmp.lt.s32.totalorder %s643, 3
        %s647 = scalar_select %p646, %s643, 3
        %s648 = smul.addr %s645, 4
        %s649 = sadd.s32 %s647, %s648
        %s650 = smul.addr %s649, 2
        %s651 = scalar_lea.vmem %s7, %s650
        %s652 = smul.u32 4, %s25
        %p653 = scmp.lt.s32.totalorder %s24, 1
        %s654 = scalar_select %p653, %s24, 1
        %s655 = scalar_lea.vmem %s8, %s654
        %v656 = vld [vmem:[%s2] sm:$0xff]
        %v657 = vld [vmem:[%s2 + $0x8] sm:$0x1]
        %v658 = vld [vmem:[%s3] sm:$0x1]
        %v659 = vld [vmem:[%s4] sm:$0x1]
        %p660 = scmp.eq.s32.totalorder %s25, 0
        // Predicated region
        $region152: #{_lambda_.16} parent=142 // pred_check
          %p661 = pneg %p660
        $region153: #{_lambda_.16} parent=142 // pred_check_branch
          %663 = sbr.rel (%p661) target = $region155
        $region154: #{_lambda_.16} parent=142 // pred_region
          %664 = vst [vmem:[#allocation2] sm:$0x1] 0.0
        $region155: #{_lambda_.16} parent=142 // pred_fallthru
          _
        %v665 = vld [vmem:[%s585] sm:$0x3]
        %v666 = vunpack.c.l.bf16 %v665
        %v667 = vlaneseq
        %v668 = vshrl.u32 %v667, 7
        %v669 = vsub.s32 0, %v668
        %v670 = vrot.slane %v656, %v669
        %v671 = vmul.f32 %v666, %v670
        %v672 = vadd.f32 %v671, 0.0
        %s673 = scalar_lea.vmem %s585, 16 [#allocation3]
        %v674 = vld [vmem:[%s673] sm:$0x3]
        %v675 = vunpack.c.l.bf16 %v674
        %v676 = vlaneseq
        %v677 = vshrl.u32 %v676, 7
        %v678 = vsub.s32 1, %v677
        %v679 = vrot.slane %v656, %v678
        %v680 = vmul.f32 %v675, %v679
        %v681 = vadd.f32 %v672, %v680
        %v682 = vld [vmem:[%s585] sm:$0x7]
        %v683 = vunpack.c.l.bf16 %v682
        %v684 = vlaneseq
        %v685 = vshrl.u32 %v684, 7
        %v686 = vsub.s32 2, %v685
        %v687 = vrot.slane %v656, %v686
        %v688 = vmul.f32 %v683, %v687
        %v690 = vrot.slane %v688, 1
        %v692 = vadd.f32 %v681, %v690
        %s693 = scalar_lea.vmem %s585, 32 [#allocation3]
        %v694 = vld [vmem:[%s693] sm:$0x3]
        %v695 = vunpack.c.l.bf16 %v694
        %v696 = vlaneseq
        %v697 = vshrl.u32 %v696, 7
        %v698 = vsub.s32 3, %v697
        %v699 = vrot.slane %v656, %v698
        %v700 = vmul.f32 %v695, %v699
        %v701 = vadd.f32 %v692, %v700
        %s702 = scalar_lea.vmem %s585, 48 [#allocation3]
        %v703 = vld [vmem:[%s702] sm:$0x3]
        %v704 = vunpack.c.l.bf16 %v703
        %v705 = vlaneseq
        %v706 = vshrl.u32 %v705, 7
        %v707 = vsub.s32 4, %v706
        %v708 = vrot.slane %v656, %v707
        %v709 = vmul.f32 %v704, %v708
        %v710 = vadd.f32 %v701, %v709
        %v711 = vld [vmem:[%s693] sm:$0x7]
        %v712 = vunpack.c.l.bf16 %v711
        %v713 = vlaneseq
        %v714 = vshrl.u32 %v713, 7
        %v715 = vsub.s32 5, %v714
        %v716 = vrot.slane %v656, %v715
        %v717 = vmul.f32 %v712, %v716
        %v719 = vrot.slane %v717, 1
        %v721 = vadd.f32 %v710, %v719
        %s722 = scalar_lea.vmem %s585, 4 [#allocation3]
        %v723 = vld [vmem:[%s722] sm:$0x3]
        %v724 = vunpack.c.l.bf16 %v723
        %v725 = vlaneseq
        %v726 = vshrl.u32 %v725, 7
        %v727 = vsub.s32 6, %v726
        %v728 = vrot.slane %v656, %v727
        %v729 = vmul.f32 %v724, %v728
        %v730 = vadd.f32 %v721, %v729
        %s731 = scalar_lea.vmem %s585, 20 [#allocation3]
        %v732 = vld [vmem:[%s731] sm:$0x3]
        %v733 = vunpack.c.l.bf16 %v732
        %v734 = vlaneseq
        %v735 = vshrl.u32 %v734, 7
        %v736 = vsub.s32 7, %v735
        %v737 = vrot.slane %v656, %v736
        %v738 = vmul.f32 %v733, %v737
        %v739 = vadd.f32 %v730, %v738
        %v740 = vld [vmem:[%s722] sm:$0x7]
        %v741 = vunpack.c.l.bf16 %v740
        %v742 = vlaneseq
        %v743 = vshrl.u32 %v742, 7
        %v744 = vsub.s32 0, %v743
        %v745 = vrot.slane %v657, %v744
        %v746 = vmul.f32 %v741, %v745
        %v748 = vrot.slane %v746, 1
        %v750 = vadd.f32 %v739, %v748
        %v752 = vlaneseq
        %v753 = vshrl.u32 %v752, 7
        %v754 = vsub.s32 0, %v753
        %v755 = vrot.slane %v658, %v754
        %v757 = vmul.f32 %v750, %v755
        %v759 = vlaneseq
        %v760 = vshrl.u32 %v759, 7
        %v761 = vsub.s32 0, %v760
        %v762 = vrot.slane %v659, %v761
        %v764 = vadd.f32 %v757, %v762
        %v765 = vxor.u32 %v764, 2147483648
        %v766 = vmul.f32 %v765, 1.442695
        %v767 = vpow.pop %v766
        %v768 = vadd.f32 %v767, 1.0
        %v769 = vrcp.pop %v768
        %v770 = vmul.f32 1.0, %v769
        %v771 = vmul.f32 %v764, %v770
        %v772 = vpack.c.bf16 %v771, %v771
        %773 = vst [vmem:[%s651] sm:$0x3] %v772
        %vm774 = vcmask 1043456
        %v775 = vsel %vm774, %v771, 0.0
        %v776 = vrot.slane %v775, 4
        %v777 = vadd.f32 %v775, %v776
        %v778 = vrot.slane %v777, 2
        %v779 = vadd.f32 %v777, %v778
        %v780 = vrot.slane %v779, 1
        %v781 = vadd.f32 %v779, %v780
        %v782 = vadd.f32 %v781, 0.0
        %v783 = vld [vmem:[%s722] sm:$0x3]
        %v784 = vunpack.c.l.bf16 %v783
        %v785 = vmul.f32 %v784, %v670
        %v786 = vadd.f32 %v785, 0.0
        %v787 = vld [vmem:[%s731] sm:$0x3]
        %v788 = vunpack.c.l.bf16 %v787
        %v789 = vmul.f32 %v788, %v679
        %v790 = vadd.f32 %v786, %v789
        %v791 = vld [vmem:[%s722] sm:$0x7]
        %v792 = vunpack.c.l.bf16 %v791
        %v793 = vmul.f32 %v792, %v687
        %v795 = vrot.slane %v793, 1
        %v797 = vadd.f32 %v790, %v795
        %s798 = scalar_lea.vmem %s585, 36 [#allocation3]
        %v799 = vld [vmem:[%s798] sm:$0x3]
        %v800 = vunpack.c.l.bf16 %v799
        %v801 = vmul.f32 %v800, %v699
        %v802 = vadd.f32 %v797, %v801
        %s803 = scalar_lea.vmem %s585, 52 [#allocation3]
        %v804 = vld [vmem:[%s803] sm:$0x3]
        %v805 = vunpack.c.l.bf16 %v804
        %v806 = vmul.f32 %v805, %v708
        %v807 = vadd.f32 %v802, %v806
        %v808 = vld [vmem:[%s798] sm:$0x7]
        %v809 = vunpack.c.l.bf16 %v808
        %v810 = vmul.f32 %v809, %v716
        %v812 = vrot.slane %v810, 1
        %v814 = vadd.f32 %v807, %v812
        %s815 = scalar_lea.vmem %s585, 8 [#allocation3]
        %v816 = vld [vmem:[%s815] sm:$0x3]
        %v817 = vunpack.c.l.bf16 %v816
        %v818 = vmul.f32 %v817, %v728
        %v819 = vadd.f32 %v814, %v818
        %s820 = scalar_lea.vmem %s585, 24 [#allocation3]
        %v821 = vld [vmem:[%s820] sm:$0x3]
        %v822 = vunpack.c.l.bf16 %v821
        %v823 = vmul.f32 %v822, %v737
        %v824 = vadd.f32 %v819, %v823
        %v825 = vld [vmem:[%s815] sm:$0x7]
        %v826 = vunpack.c.l.bf16 %v825
        %v827 = vmul.f32 %v826, %v745
        %v829 = vrot.slane %v827, 1
        %v831 = vadd.f32 %v824, %v829
        %v832 = vmul.f32 %v831, %v755
        %v833 = vadd.f32 %v832, %v762
        %v834 = vxor.u32 %v833, 2147483648
        %v835 = vmul.f32 %v834, 1.442695
        %v836 = vpow.pop %v835
        %v837 = vadd.f32 %v836, 1.0
        %v838 = vrcp.pop %v837
        %v839 = vmul.f32 1.0, %v838
        %v840 = vmul.f32 %v833, %v839
        %v841 = vpack.c.bf16 %v840, %v840
        %s842 = scalar_lea.vmem %s651, 2
        %843 = vst [vmem:[%s842] sm:$0x3] %v841
        %v844 = vsel %vm774, %v840, 0.0
        %v845 = vrot.slane %v844, 4
        %v846 = vadd.f32 %v844, %v845
        %v847 = vrot.slane %v846, 2
        %v848 = vadd.f32 %v846, %v847
        %v849 = vrot.slane %v848, 1
        %v850 = vadd.f32 %v848, %v849
        %v851 = vadd.f32 %v782, %v850
        %v852 = vld [vmem:[%s815] sm:$0x3]
        %v853 = vunpack.c.l.bf16 %v852
        %v854 = vmul.f32 %v853, %v670
        %v855 = vadd.f32 %v854, 0.0
        %v856 = vld [vmem:[%s820] sm:$0x3]
        %v857 = vunpack.c.l.bf16 %v856
        %v858 = vmul.f32 %v857, %v679
        %v859 = vadd.f32 %v855, %v858
        %v860 = vld [vmem:[%s815] sm:$0x7]
        %v861 = vunpack.c.l.bf16 %v860
        %v862 = vmul.f32 %v861, %v687
        %v864 = vrot.slane %v862, 1
        %v866 = vadd.f32 %v859, %v864
        %s867 = scalar_lea.vmem %s585, 40 [#allocation3]
        %v868 = vld [vmem:[%s867] sm:$0x3]
        %v869 = vunpack.c.l.bf16 %v868
        %v870 = vmul.f32 %v869, %v699
        %v871 = vadd.f32 %v866, %v870
        %s872 = scalar_lea.vmem %s585, 56 [#allocation3]
        %v873 = vld [vmem:[%s872] sm:$0x3]
        %v874 = vunpack.c.l.bf16 %v873
        %v875 = vmul.f32 %v874, %v708
        %v876 = vadd.f32 %v871, %v875
        %v877 = vld [vmem:[%s867] sm:$0x7]
        %v878 = vunpack.c.l.bf16 %v877
        %v879 = vmul.f32 %v878, %v716
        %v881 = vrot.slane %v879, 1
        %v883 = vadd.f32 %v876, %v881
        %s884 = scalar_lea.vmem %s585, 12 [#allocation3]
        %v885 = vld [vmem:[%s884] sm:$0x3]
        %v886 = vunpack.c.l.bf16 %v885
        %v887 = vmul.f32 %v886, %v728
        %v888 = vadd.f32 %v883, %v887
        %s889 = scalar_lea.vmem %s585, 28 [#allocation3]
        %v890 = vld [vmem:[%s889] sm:$0x3]
        %v891 = vunpack.c.l.bf16 %v890
        %v892 = vmul.f32 %v891, %v737
        %v893 = vadd.f32 %v888, %v892
        %v894 = vld [vmem:[%s884] sm:$0x7]
        %v895 = vunpack.c.l.bf16 %v894
        %v896 = vmul.f32 %v895, %v745
        %v898 = vrot.slane %v896, 1
        %v900 = vadd.f32 %v893, %v898
        %v901 = vmul.f32 %v900, %v755
        %v902 = vadd.f32 %v901, %v762
        %v903 = vxor.u32 %v902, 2147483648
        %v904 = vmul.f32 %v903, 1.442695
        %v905 = vpow.pop %v904
        %v906 = vadd.f32 %v905, 1.0
        %v907 = vrcp.pop %v906
        %v908 = vmul.f32 1.0, %v907
        %v909 = vmul.f32 %v902, %v908
        %v910 = vpack.c.bf16 %v909, %v909
        %s911 = scalar_lea.vmem %s651, 4
        %912 = vst [vmem:[%s911] sm:$0x3] %v910
        %v913 = vsel %vm774, %v909, 0.0
        %v914 = vrot.slane %v913, 4
        %v915 = vadd.f32 %v913, %v914
        %v916 = vrot.slane %v915, 2
        %v917 = vadd.f32 %v915, %v916
        %v918 = vrot.slane %v917, 1
        %v919 = vadd.f32 %v917, %v918
        %v920 = vadd.f32 %v851, %v919
        %v921 = vld [vmem:[%s884] sm:$0x3]
        %v922 = vunpack.c.l.bf16 %v921
        %v923 = vmul.f32 %v922, %v670
        %v924 = vadd.f32 %v923, 0.0
        %v925 = vld [vmem:[%s889] sm:$0x3]
        %v926 = vunpack.c.l.bf16 %v925
        %v927 = vmul.f32 %v926, %v679
        %v928 = vadd.f32 %v924, %v927
        %v929 = vld [vmem:[%s884] sm:$0x7]
        %v930 = vunpack.c.l.bf16 %v929
        %v931 = vmul.f32 %v930, %v687
        %v933 = vrot.slane %v931, 1
        %v935 = vadd.f32 %v928, %v933
        %s936 = scalar_lea.vmem %s585, 44 [#allocation3]
        %v937 = vld [vmem:[%s936] sm:$0x3]
        %v938 = vunpack.c.l.bf16 %v937
        %v939 = vmul.f32 %v938, %v699
        %v940 = vadd.f32 %v935, %v939
        %s941 = scalar_lea.vmem %s585, 60 [#allocation3]
        %v942 = vld [vmem:[%s941] sm:$0x3]
        %v943 = vunpack.c.l.bf16 %v942
        %v944 = vmul.f32 %v943, %v708
        %v945 = vadd.f32 %v940, %v944
        %v946 = vld [vmem:[%s936] sm:$0x7]
        %v947 = vunpack.c.l.bf16 %v946
        %v948 = vmul.f32 %v947, %v716
        %v950 = vrot.slane %v948, 1
        %v952 = vadd.f32 %v945, %v950
        %v953 = vld [vmem:[%s592] sm:$0x3]
        %v954 = vunpack.c.l.bf16 %v953
        %v955 = vmul.f32 %v954, %v728
        %v956 = vadd.f32 %v952, %v955
        %s957 = scalar_lea.vmem %s592, 4 [#allocation4]
        %v958 = vld [vmem:[%s957] sm:$0x3]
        %v959 = vunpack.c.l.bf16 %v958
        %v960 = vmul.f32 %v959, %v737
        %v961 = vadd.f32 %v956, %v960
        %v962 = vld [vmem:[%s592] sm:$0x7]
        %v963 = vunpack.c.l.bf16 %v962
        %v964 = vmul.f32 %v963, %v745
        %v966 = vrot.slane %v964, 1
        %v968 = vadd.f32 %v961, %v966
        %v969 = vmul.f32 %v968, %v755
        %v970 = vadd.f32 %v969, %v762
        %v971 = vxor.u32 %v970, 2147483648
        %v972 = vmul.f32 %v971, 1.442695
        %v973 = vpow.pop %v972
        %v974 = vadd.f32 %v973, 1.0
        %v975 = vrcp.pop %v974
        %v976 = vmul.f32 1.0, %v975
        %v977 = vmul.f32 %v970, %v976
        %v978 = vpack.c.bf16 %v977, %v977
        %s979 = scalar_lea.vmem %s651, 6
        %980 = vst [vmem:[%s979] sm:$0x3] %v978
        %v981 = vsel %vm774, %v977, 0.0
        %v982 = vrot.slane %v981, 4
        %v983 = vadd.f32 %v981, %v982
        %v984 = vrot.slane %v983, 2
        %v985 = vadd.f32 %v983, %v984
        %v986 = vrot.slane %v985, 1
        %v987 = vadd.f32 %v985, %v986
        %v988 = vadd.f32 %v920, %v987
        %v989 = vld [vmem:[#allocation2] sm:$0x1]
        %v990 = vadd.f32 %v989, %v988
        %991 = vst [vmem:[#allocation2] sm:$0x1] %v990
        // Predicated region
        $region156: #{_lambda_.16} parent=142 // pred_check
          %p992 = pneg %p660
        $region157: #{_lambda_.16} parent=142 // pred_check_branch
          %994 = sbr.rel (%p992) target = $region159
        $region158: #{_lambda_.16} parent=142 // pred_region
          %v995 = vld [vmem:[#allocation2] sm:$0x1]
          %v996 = vmul.f32 %v995, 0.0625
          %v997 = vld [vmem:[%s5] sm:$0xff]
          %v999 = vlaneseq
          %v1000 = vshrl.u32 %v999, 7
          %v1001 = vsub.s32 0, %v1000
          %v1002 = vrot.slane %v996, %v1001
          %v1004 = vmul.f32 %v1002, %v997
          %1005 = vadd.xlane.f32.xlu0 %v1004
          %v1006 = vpop.xlane.xlu0 %1005
          %v1007 = vxor.u32 %v1006, 2147483648
          %v1008 = vmul.f32 %v1007, 1.442695
          %v1009 = vpow.pop %v1008
          %v1010 = vadd.f32 %v1009, 1.0
          %v1011 = vrcp.pop %v1010
          %v1012 = vmul.f32 1.0, %v1011
          %v1013 = vmul.f32 %v1006, %v1012
          %v1014 = vld [vmem:[%s6] sm:$0xff]
          %v1015 = vmul.f32 %v1013, %v1014
          %v1016 = vrot.slane %v1015, 4
          %v1017 = vadd.f32 %v1015, %v1016
          %v1018 = vrot.slane %v1017, 2
          %v1019 = vadd.f32 %v1017, %v1018
          %v1020 = vrot.slane %v1019, 1
          %v1021 = vadd.f32 %v1019, %v1020
          %v1022 = vxor.u32 %v1021, 2147483648
          %v1023 = vmul.f32 %v1022, 1.442695
          %v1024 = vpow.pop %v1023
          %v1025 = vadd.f32 %v1024, 1.0
          %v1026 = vrcp.pop %v1025
          %v1027 = vmul.f32 1.0, %v1026
          %1028 = vst [vmem:[%s655] sm:$0x1] %v1027
        $region159: #{_lambda_.16} parent=142 // pred_fallthru
          _
        %s1029 = smul.u32 4, %s25
        %p1030 = scmp.lt.s32.totalorder %s24, 1
        %s1031 = scalar_select %p1030, %s24, 1
        %p1032 = scmp.lt.s32.totalorder %s1029, 3
        %s1033 = scalar_select %p1032, %s1029, 3
        %s1034 = smul.addr %s1031, 4
        %s1035 = sadd.s32 %s1033, %s1034
        %s1036 = smul.addr %s1035, 2
        %s1037 = scalar_lea.vmem %s7, %s1036
        %p1038 = scmp.lt.s32.totalorder %s24, 1
        %s1039 = scalar_select %p1038, %s24, 1
        %s1040 = scalar_lea.vmem %s8, %s1039
        // Predicated region
        $region160: #{_lambda_.16} parent=142 // pred_check
          %p1041 = pneg %p217
        $region161: #{_lambda_.16} parent=142 // pred_check_branch
          %1043 = sbr.rel (%p1041) target = $region163
        $region162: #{_lambda_.16} parent=142 // pred_region
          %s1044 = smul.u32 4, %s25
        $region163: #{_lambda_.16} parent=142 // pred_fallthru
          _
        // Predicated region
        $region164: #{_lambda_.16} parent=142 // pred_check
          %p1045 = pneg %p243
        $region165: #{_lambda_.16} parent=142 // pred_check_branch
          %1047 = sbr.rel (%p1045) target = $region167
        $region166: #{_lambda_.16} parent=142 // pred_region
          _
        $region167: #{_lambda_.16} parent=142 // pred_fallthru
          _
      $region143: #{_lambda_.16} parent=5 // pred_fallthru
        _
      %p1048 = scmp.le.s32.totalorder 2, %s15
      // Predicated region
      $region168: #{_lambda_.16} parent=5 // pred_check
        %p1049 = pneg %p1048
      $region169: #{_lambda_.16} parent=5 // pred_check_branch
        %1051 = sbr.rel (%p1049) target = $region171
      $region170: #{_lambda_.16} parent=5 // pred_region
        %s1052 = ssub.s32 %s15, 2
        // Predicated region
        $region172: #{_lambda_.16} parent=170 // pred_check
          %p1053 = pneg %p223
        $region173: #{_lambda_.16} parent=170 // pred_check_branch
          %1055 = sbr.rel (%p1053) target = $region175
        $region174: #{_lambda_.16} parent=170 // pred_region
          %s1056 = smul.u32 4, %s27
          %p1057 = scmp.lt.s32.totalorder %s26, 1
          %s1058 = scalar_select %p1057, %s26, 1
          %p1059 = scmp.lt.s32.totalorder %s1056, 3
          %s1060 = scalar_select %p1059, %s1056, 3
          %s1061 = smul.addr %s1058, 4
          %s1062 = sadd.s32 %s1060, %s1061
          %s1063 = smul.addr %s1062, 2
          %s1064 = scalar_lea.vmem %s7, %s1063
        $region175: #{_lambda_.16} parent=170 // pred_fallthru
          _
        // Predicated region
        $region176: #{_lambda_.16} parent=170 // pred_check
          %p1065 = pneg %p249
        $region177: #{_lambda_.16} parent=170 // pred_check_branch
          %1067 = sbr.rel (%p1065) target = $region179
        $region178: #{_lambda_.16} parent=170 // pred_region
          %p1068 = scmp.lt.s32.totalorder %s26, 1
          %s1069 = scalar_select %p1068, %s26, 1
          %s1070 = scalar_lea.vmem %s8, %s1069
        $region179: #{_lambda_.16} parent=170 // pred_fallthru
          _
      $region171: #{_lambda_.16} parent=5 // pred_fallthru
        _
    $region6: #{_lambda_.16} parent=1 // loop_footer
      %s19 = sadd.s32 1, %s15
    $region7: #{_lambda_.16} parent=1 // loop_footer_branch
      %14 = sbr.rel target = $region3
    $region8: #{_lambda_.16} parent=1 // loop_exit
      _

// kernel: _lambda_.18
$region0: #{_lambda_.18}
  #allocation0 [shape = 'u32[]', space=smem, size = 0x4, offset = 0x4, fixed_abs, tag = 'smem constant byte address 0x4 - core index']
  #allocation1 [shape = 'u32[144,128]{1,0:T(1,128)}', space=vmem, size = 0x12000, scoped, tag = 'internal scratch']
  %s0 = inlined_call_operand.vmem [shape: bf16[32,128], index: 0, kind: input, shape index: {}]
  %s1 = inlined_call_operand.vmem [shape: bf16[128,256], index: 1, kind: input, shape index: {}]
  %s2 = inlined_call_operand.vmem [shape: f32[1,256], index: 2, kind: input, shape index: {}]
  %s3 = inlined_call_operand.vmem [shape: f32[1,256], index: 3, kind: input, shape index: {}]
  %s4 = inlined_call_operand.vmem [shape: bf16[32,256], index: 4, kind: output, shape index: {}]
  %s5 = sld [smem:[#allocation0]]
  $region26: #{_lambda_.18} parent=0
    _
  %s7 = ssub.s32 1, %s5
  %s8 = scalar_select 0, %s7, %s5
  // Predicated region
  $region2: #{_lambda_.18} parent=0 // pred_check
    _
  $region3: #{_lambda_.18} parent=0 // pred_check_branch
    %10 = sbr.rel (0) target = $region5
  $region4: #{_lambda_.18} parent=0 // pred_region
    _
  $region5: #{_lambda_.18} parent=0 // pred_fallthru
    _
  // Predicated region
  $region6: #{_lambda_.18} parent=0 // pred_check
    _
  $region7: #{_lambda_.18} parent=0 // pred_check_branch
    %12 = sbr.rel (0) target = $region9
  $region8: #{_lambda_.18} parent=0 // pred_region
    _
  $region9: #{_lambda_.18} parent=0 // pred_fallthru
    _
  // Predicated region
  $region10: #{_lambda_.18} parent=0 // pred_check
    _
  $region11: #{_lambda_.18} parent=0 // pred_check_branch
    %14 = sbr.rel (0) target = $region13
  $region12: #{_lambda_.18} parent=0 // pred_region
    _
  $region13: #{_lambda_.18} parent=0 // pred_fallthru
    _
  // Predicated region
  $region14: #{_lambda_.18} parent=0 // pred_check
    _
  $region15: #{_lambda_.18} parent=0 // pred_check_branch
    %16 = sbr.rel (0) target = $region17
  $region16: #{_lambda_.18} parent=0 // pred_region
    _
  $region17: #{_lambda_.18} parent=0 // pred_fallthru
    _
  %v18 = vld [vmem:[%s0] sm:$0xf]
  %v19 = vld [vmem:[%s0 + $0x4] sm:$0xf]
  %v20 = vld [vmem:[%s0 + $0x8] sm:$0xf]
  %v21 = vld [vmem:[%s0 + $0xc] sm:$0xf]
  %v22 = vld [vmem:[%s1] sm:$0xff]
  %v23 = vld [vmem:[%s1 + $0x8] sm:$0xff]
  %v24 = vld [vmem:[%s1 + $0x10] sm:$0xff]
  %v25 = vld [vmem:[%s1 + $0x18] sm:$0xff]
  %v26 = vld [vmem:[%s1 + $0x20] sm:$0xff]
  %v27 = vld [vmem:[%s1 + $0x28] sm:$0xff]
  %v28 = vld [vmem:[%s1 + $0x30] sm:$0xff]
  %v29 = vld [vmem:[%s1 + $0x38] sm:$0xff]
  %v30 = vld [vmem:[%s1 + $0x40] sm:$0xff]
  %v31 = vld [vmem:[%s1 + $0x48] sm:$0xff]
  %v32 = vld [vmem:[%s1 + $0x50] sm:$0xff]
  %v33 = vld [vmem:[%s1 + $0x58] sm:$0xff]
  %v34 = vld [vmem:[%s1 + $0x60] sm:$0xff]
  %v35 = vld [vmem:[%s1 + $0x68] sm:$0xff]
  %v36 = vld [vmem:[%s1 + $0x70] sm:$0xff]
  %v37 = vld [vmem:[%s1 + $0x78] sm:$0xff]
  %v42 = vunpack.c.l.b16 %v18
  %v43 = vunpack.c.l.b16 %v19
  %v44 = vunpack.c.l.b16 %v20
  %v45 = vunpack.c.l.b16 %v21
  %v46 = vpack.c.b16 %v43, %v42
  %v47 = vpack.c.b16 %v45, %v44
  %v66 = vunpack.c.l.b16 %v22
  %v67 = vunpack.c.h.b16 %v22
  %v68 = vunpack.c.l.b16 %v23
  %v69 = vunpack.c.h.b16 %v23
  %v70 = vunpack.c.l.b16 %v24
  %v71 = vunpack.c.h.b16 %v24
  %v72 = vunpack.c.l.b16 %v25
  %v73 = vunpack.c.h.b16 %v25
  %v74 = vunpack.c.l.b16 %v26
  %v75 = vunpack.c.h.b16 %v26
  %v76 = vunpack.c.l.b16 %v27
  %v77 = vunpack.c.h.b16 %v27
  %v78 = vunpack.c.l.b16 %v28
  %v79 = vunpack.c.h.b16 %v28
  %v80 = vunpack.c.l.b16 %v29
  %v81 = vunpack.c.h.b16 %v29
  %v82 = vunpack.c.l.b16 %v30
  %v83 = vunpack.c.h.b16 %v30
  %v84 = vunpack.c.l.b16 %v31
  %v85 = vunpack.c.h.b16 %v31
  %v86 = vunpack.c.l.b16 %v32
  %v87 = vunpack.c.h.b16 %v32
  %v88 = vunpack.c.l.b16 %v33
  %v89 = vunpack.c.h.b16 %v33
  %v90 = vunpack.c.l.b16 %v34
  %v91 = vunpack.c.h.b16 %v34
  %v92 = vunpack.c.l.b16 %v35
  %v93 = vunpack.c.h.b16 %v35
  %v94 = vunpack.c.l.b16 %v36
  %v95 = vunpack.c.h.b16 %v36
  %v96 = vunpack.c.l.b16 %v37
  %v97 = vunpack.c.h.b16 %v37
  %v98 = vpack.c.b16 %v68, %v66
  %v99 = vpack.c.b16 %v69, %v67
  %v100 = vpack.c.b16 %v72, %v70
  %v101 = vpack.c.b16 %v73, %v71
  %v102 = vpack.c.b16 %v76, %v74
  %v103 = vpack.c.b16 %v77, %v75
  %v104 = vpack.c.b16 %v80, %v78
  %v105 = vpack.c.b16 %v81, %v79
  %v106 = vpack.c.b16 %v84, %v82
  %v107 = vpack.c.b16 %v85, %v83
  %v108 = vpack.c.b16 %v88, %v86
  %v109 = vpack.c.b16 %v89, %v87
  %v110 = vpack.c.b16 %v92, %v90
  %v111 = vpack.c.b16 %v93, %v91
  %v112 = vpack.c.b16 %v96, %v94
  %v113 = vpack.c.b16 %v97, %v95
  %130 = vmatprep.subr.bf16.mxu0 %v99
  %131 = vmatpush1.bf16.msra.mxu0 %v98
  %132 = vmatprep.subr.bf16.mxu0 %v101
  %133 = vmatpush1.bf16.msra.mxu0 %v100
  %134 = vmatprep.subr.bf16.mxu0 %v103
  %135 = vmatpush1.bf16.msra.mxu0 %v102
  %136 = vmatprep.subr.bf16.mxu0 %v105
  %137 = vmatpush1.bf16.msra.mxu0 %v104
  %138 = vmatprep.subr.bf16.mxu0 %v107
  %139 = vmatpush1.bf16.msra.mxu0 %v106
  %140 = vmatprep.subr.bf16.mxu0 %v109
  %141 = vmatpush1.bf16.msra.mxu0 %v108
  %142 = vmatprep.subr.bf16.mxu0 %v111
  %143 = vmatpush1.bf16.msra.mxu0 %v110
  %144 = vmatprep.subr.bf16.mxu0 %v113
  %145 = vmatpush1.bf16.msra.mxu0 %v112
  %146 = vmatprep.subr.bf16.mxu0 0
  %147 = vmatpush1.bf16.msra.mxu0 0
  %148 = vmatprep.subr.bf16.mxu0 0
  %149 = vmatpush1.bf16.msra.mxu0 0
  %150 = vmatprep.subr.bf16.mxu0 0
  %151 = vmatpush1.bf16.msra.mxu0 0
  %152 = vmatprep.subr.bf16.mxu0 0
  %153 = vmatpush1.bf16.msra.mxu0 0
  %154 = vmatprep.subr.bf16.mxu0 0
  %155 = vmatpush1.bf16.msra.mxu0 0
  %156 = vmatprep.subr.bf16.mxu0 0
  %157 = vmatpush1.bf16.msra.mxu0 0
  %158 = vmatprep.subr.bf16.mxu0 0
  %159 = vmatpush1.bf16.msra.mxu0 0
  %160 = vmatprep.subr.bf16.mxu0 0
  %161 = vmatpush1.bf16.msra.mxu0 0
  %162 = vmatprep.mubr.bf16.mxu0 0
  %163 = vmatmul.mubr.bf16.gmra.mrb[0].mxu0 %v46
  %v164 = vpop.f32.mrb[0].mxu0
  %v165 = vadd.f32 0.0, %v164
  %v166 = vpop.f32.mrb[0].mxu0
  %v167 = vadd.f32 0.0, %v166
  %v168 = vpop.f32.mrb[0].mxu0
  %v169 = vadd.f32 0.0, %v168
  %v170 = vpop.f32.mrb[0].mxu0
  %v171 = vadd.f32 0.0, %v170
  %172 = vmatprep.mubr.bf16.mxu0 0
  %173 = vmatmul.mubr.bf16.gmra.mrb[0].mxu0 %v47
  %v174 = vpop.f32.mrb[0].mxu0
  %v175 = vadd.f32 0.0, %v174
  %v176 = vpop.f32.mrb[0].mxu0
  %v177 = vadd.f32 0.0, %v176
  %v178 = vpop.f32.mrb[0].mxu0
  %v179 = vadd.f32 0.0, %v178
  %v180 = vpop.f32.mrb[0].mxu0
  %v181 = vadd.f32 0.0, %v180
  %182 = vdwg.mxu0
  %v183 = vld [vmem:[%s2] sm:$0x3]
  %v185 = vlaneseq
  %v186 = vshrl.u32 %v185, 7
  %v187 = vsub.s32 0, %v186
  %v188 = vrot.slane %v183, %v187
  %v189 = vlaneseq
  %v190 = vshrl.u32 %v189, 7
  %v191 = vsub.s32 1, %v190
  %v192 = vrot.slane %v183, %v191
  %v195 = vmul.f32 %v165, %v188
  %v196 = vmul.f32 %v167, %v192
  %v197 = vmul.f32 %v169, %v188
  %v198 = vmul.f32 %v171, %v192
  %v199 = vmul.f32 %v175, %v188
  %v200 = vmul.f32 %v177, %v192
  %v201 = vmul.f32 %v179, %v188
  %v202 = vmul.f32 %v181, %v192
  %v203 = vld [vmem:[%s3] sm:$0x3]
  %v205 = vlaneseq
  %v206 = vshrl.u32 %v205, 7
  %v207 = vsub.s32 0, %v206
  %v208 = vrot.slane %v203, %v207
  %v209 = vlaneseq
  %v210 = vshrl.u32 %v209, 7
  %v211 = vsub.s32 1, %v210
  %v212 = vrot.slane %v203, %v211
  %v215 = vadd.f32 %v195, %v208
  %v216 = vadd.f32 %v196, %v212
  %v217 = vadd.f32 %v197, %v208
  %v218 = vadd.f32 %v198, %v212
  %v219 = vadd.f32 %v199, %v208
  %v220 = vadd.f32 %v200, %v212
  %v221 = vadd.f32 %v201, %v208
  %v222 = vadd.f32 %v202, %v212
  %v223 = vxor.u32 %v215, 2147483648
  %v224 = vxor.u32 %v216, 2147483648
  %v225 = vxor.u32 %v217, 2147483648
  %v226 = vxor.u32 %v218, 2147483648
  %v227 = vxor.u32 %v219, 2147483648
  %v228 = vxor.u32 %v220, 2147483648
  %v229 = vxor.u32 %v221, 2147483648
  %v230 = vxor.u32 %v222, 2147483648
  %v231 = vmul.f32 %v223, 1.442695
  %v232 = vpow.pop %v231
  %v233 = vmul.f32 %v224, 1.442695
  %v234 = vpow.pop %v233
  %v235 = vmul.f32 %v225, 1.442695
  %v236 = vpow.pop %v235
  %v237 = vmul.f32 %v226, 1.442695
  %v238 = vpow.pop %v237
  %v239 = vmul.f32 %v227, 1.442695
  %v240 = vpow.pop %v239
  %v241 = vmul.f32 %v228, 1.442695
  %v242 = vpow.pop %v241
  %v243 = vmul.f32 %v229, 1.442695
  %v244 = vpow.pop %v243
  %v245 = vmul.f32 %v230, 1.442695
  %v246 = vpow.pop %v245
  %v247 = vadd.f32 %v232, 1.0
  %v248 = vadd.f32 %v234, 1.0
  %v249 = vadd.f32 %v236, 1.0
  %v250 = vadd.f32 %v238, 1.0
  %v251 = vadd.f32 %v240, 1.0
  %v252 = vadd.f32 %v242, 1.0
  %v253 = vadd.f32 %v244, 1.0
  %v254 = vadd.f32 %v246, 1.0
  %v255 = vrcp.pop %v247
  %v256 = vmul.f32 1.0, %v255
  %v257 = vrcp.pop %v248
  %v258 = vmul.f32 1.0, %v257
  %v259 = vrcp.pop %v249
  %v260 = vmul.f32 1.0, %v259
  %v261 = vrcp.pop %v250
  %v262 = vmul.f32 1.0, %v261
  %v263 = vrcp.pop %v251
  %v264 = vmul.f32 1.0, %v263
  %v265 = vrcp.pop %v252
  %v266 = vmul.f32 1.0, %v265
  %v267 = vrcp.pop %v253
  %v268 = vmul.f32 1.0, %v267
  %v269 = vrcp.pop %v254
  %v270 = vmul.f32 1.0, %v269
  %v271 = vmul.f32 %v215, %v256
  %v272 = vmul.f32 %v216, %v258
  %v273 = vmul.f32 %v217, %v260
  %v274 = vmul.f32 %v218, %v262
  %v275 = vmul.f32 %v219, %v264
  %v276 = vmul.f32 %v220, %v266
  %v277 = vmul.f32 %v221, %v268
  %v278 = vmul.f32 %v222, %v270
  %v279 = vpack.c.bf16 %v273, %v271
  %v280 = vpack.c.bf16 %v274, %v272
  %v281 = vpack.c.bf16 %v277, %v275
  %v282 = vpack.c.bf16 %v278, %v276
  %v287 = vunpack.c.l.b16 %v279
  %v288 = vunpack.c.l.b16 %v280
  %v289 = vunpack.c.h.b16 %v279
  %v290 = vunpack.c.h.b16 %v280
  %v291 = vunpack.c.l.b16 %v281
  %v292 = vunpack.c.l.b16 %v282
  %v293 = vunpack.c.h.b16 %v281
  %v294 = vunpack.c.h.b16 %v282
  %v295 = vpack.c.b16 %v288, %v287
  %v296 = vpack.c.b16 %v290, %v289
  %v297 = vpack.c.b16 %v292, %v291
  %v298 = vpack.c.b16 %v294, %v293
  %303 = vst [vmem:[%s4] sm:$0xff] %v295
  %304 = vst [vmem:[%s4 + $0x8] sm:$0xff] %v296
  %305 = vst [vmem:[%s4 + $0x10] sm:$0xff] %v297
  %306 = vst [vmem:[%s4 + $0x18] sm:$0xff] %v298
  // Predicated region
  $region18: #{_lambda_.18} parent=0 // pred_check
    _
  $region19: #{_lambda_.18} parent=0 // pred_check_branch
    %308 = sbr.rel (0) target = $region21
  $region20: #{_lambda_.18} parent=0 // pred_region
    _
  $region21: #{_lambda_.18} parent=0 // pred_fallthru
    _
  // Predicated region
  $region22: #{_lambda_.18} parent=0 // pred_check
    _
  $region23: #{_lambda_.18} parent=0 // pred_check_branch
    %310 = sbr.rel (0) target = $region25
  $region24: #{_lambda_.18} parent=0 // pred_region
    _
  $region25: #{_lambda_.18} parent=0 // pred_fallthru
    _

// kernel: _lambda_.22
$region0: #{_lambda_.22}
  #allocation0 [shape = 'u32[]', space=smem, size = 0x4, offset = 0x4, fixed_abs, tag = 'smem constant byte address 0x4 - core index']
  #allocation1 [shape = 'u32[144,128]{1,0:T(1,128)}', space=vmem, size = 0x12000, scoped, tag = 'internal scratch']
  %s0 = inlined_call_operand.vmem [shape: bf16[2,16,128], index: 0, kind: input, shape index: {}]
  %s1 = inlined_call_operand.vmem [shape: bf16[2,1,128], index: 1, kind: output, shape index: {}]
  %s2 = sld [smem:[#allocation0]]
  $region37: #{_lambda_.22} parent=0
    _
  %s4 = ssub.s32 1, %s2
  %s5 = scalar_select 0, %s4, %s2
  loop: start=0, step=1, limit=4
  $region2: #{_lambda_.22} parent=0 // loop_pre_header
    _
  $region3: #{_lambda_.22} parent=0 // loop_header
    %s7 = sphi 0, %s11
    %p8 = scmp.ge.s32.totalorder %s7, 4
    %s17 = sphi 0, %s19
    %s20 = sphi 0, %s17
    %s21 = sphi 0, %s20
    %s37 = sphi 0, %s21
    %s43 = sphi 0, %s45
    %s46 = sphi 0, %s43
    %s47 = sphi 0, %s46
    %s63 = sphi 0, %s47
  $region4: #{_lambda_.22} parent=0 // loop_header_branch
    %10 = sbr.rel (%p8) target = $region8
  $region5: #{_lambda_.22} parent=0 // loop_body
    %s12 = ssub.s32 %s7, 1
    %s13 = ssub.s32 %s7, 2
    %s14 = sadd.s32 %s7, 1
    %s15 = ssub.s32 %s7, %s14
    %p16 = scmp.eq.s32.totalorder %s15, 0
    %s18 = sadd.s32 %s17, 1
    %s19 = scalar_select %p16, %s17, %s18
    %p22 = pneg %p16
    %p23 = scmp.eq.s32.totalorder %s7, 1
    %p24 = por %p22, %p23
    %p25 = scmp.ne.s32.totalorder %s17, %s20
    %p26 = scmp.eq.s32.totalorder %s7, 0
    %p27 = por %p25, %p26
    %p28 = scmp.ne.s32.totalorder %s17, %s20
    %p29 = scmp.eq.s32.totalorder %s12, 1
    %p30 = por %p28, %p29
    %p31 = scmp.ne.s32.totalorder %s20, %s21
    %p32 = scmp.eq.s32.totalorder %s12, 0
    %p33 = por %p31, %p32
    %p34 = scmp.ne.s32.totalorder %s20, %s21
    %p35 = scmp.eq.s32.totalorder %s13, 1
    %p36 = por %p34, %p35
    %p38 = scmp.ne.s32.totalorder %s21, %s37
    %p39 = scmp.eq.s32.totalorder %s13, 0
    %p40 = por %p38, %p39
    %s41 = ssub.s32 %s7, %s14
    %p42 = scmp.eq.s32.totalorder %s41, 0
    %s44 = sadd.s32 %s43, 1
    %s45 = scalar_select %p42, %s43, %s44
    %p48 = pneg %p42
    %p49 = scmp.eq.s32.totalorder %s7, 1
    %p50 = por %p48, %p49
    %p51 = scmp.ne.s32.totalorder %s43, %s46
    %p52 = scmp.eq.s32.totalorder %s7, 0
    %p53 = por %p51, %p52
    %p54 = scmp.ne.s32.totalorder %s43, %s46
    %p55 = scmp.eq.s32.totalorder %s12, 1
    %p56 = por %p54, %p55
    %p57 = scmp.ne.s32.totalorder %s46, %s47
    %p58 = scmp.eq.s32.totalorder %s12, 0
    %p59 = por %p57, %p58
    %p60 = scmp.ne.s32.totalorder %s46, %s47
    %p61 = scmp.eq.s32.totalorder %s13, 1
    %p62 = por %p60, %p61
    %p64 = scmp.ne.s32.totalorder %s47, %s63
    %p65 = scmp.eq.s32.totalorder %s13, 0
    %p66 = por %p64, %p65
    %p67 = scmp.le.s32.totalorder 1, %s7
    %p68 = scmp.lt.s32.totalorder %s7, 3
    %p69 = pnand %p67, %p68
    %p70 = pneg %p69
    // Predicated region
    $region9: #{_lambda_.22} parent=5 // pred_check
      _
    $region10: #{_lambda_.22} parent=5 // pred_check_branch
      %72 = sbr.rel (%p69) target = $region12
    $region11: #{_lambda_.22} parent=5 // pred_region
      %s73 = ssub.s32 %s7, 1
    $region12: #{_lambda_.22} parent=5 // pred_fallthru
      _
    %p74 = scmp.lt.s32.totalorder %s7, 2
    // Predicated region
    $region13: #{_lambda_.22} parent=5 // pred_check
      %p75 = pneg %p74
    $region14: #{_lambda_.22} parent=5 // pred_check_branch
      %77 = sbr.rel (%p75) target = $region16
    $region15: #{_lambda_.22} parent=5 // pred_region
      // Predicated region
      $region17: #{_lambda_.22} parent=15 // pred_check
        %p78 = pneg %p27
      $region18: #{_lambda_.22} parent=15 // pred_check_branch
        %80 = sbr.rel (%p78) target = $region20
      $region19: #{_lambda_.22} parent=15 // pred_region
        %p81 = scmp.lt.s32.totalorder %s7, 1
        %s82 = scalar_select %p81, %s7, 1
        %s83 = smul.addr %s82, 2
        %s84 = smul.addr %s83, 4
        %s85 = scalar_lea.vmem %s0, %s84
      $region20: #{_lambda_.22} parent=15 // pred_fallthru
        _
    $region16: #{_lambda_.22} parent=5 // pred_fallthru
      _
    %p86 = scmp.le.s32.totalorder 1, %s7
    %p87 = scmp.lt.s32.totalorder %s7, 3
    %p88 = pnand %p86, %p87
    %p89 = pneg %p88
    // Predicated region
    $region21: #{_lambda_.22} parent=5 // pred_check
      _
    $region22: #{_lambda_.22} parent=5 // pred_check_branch
      %91 = sbr.rel (%p88) target = $region24
    $region23: #{_lambda_.22} parent=5 // pred_region
      %s92 = ssub.s32 %s7, 1
      %p93 = scmp.lt.s32.totalorder %s12, 1
      %s94 = scalar_select %p93, %s12, 1
      %s95 = smul.addr %s94, 2
      %s96 = smul.addr %s95, 4
      %s97 = scalar_lea.vmem %s0, %s96
      %p98 = pneg %p33
      %p99 = pneg %p30
      %p100 = pneg %p59
      %p101 = pneg %p56
      %p102 = scmp.lt.s32.totalorder %s12, 1
      %s103 = scalar_select %p102, %s12, 1
      %s104 = scalar_lea.vmem %s1, %s103
      %p105 = scmp.lt.s32.totalorder %s12, 1
      %s106 = scalar_select %p105, %s12, 1
      %s107 = smul.addr %s106, 2
      %s108 = smul.addr %s107, 4
      %s109 = scalar_lea.vmem %s0, %s108
      %p110 = scmp.lt.s32.totalorder %s12, 1
      %s111 = scalar_select %p110, %s12, 1
      %s112 = scalar_lea.vmem %s1, %s111
      %v113 = vld [vmem:[%s109] sm:$0xf]
      %v114 = vld [vmem:[%s109 + $0x4] sm:$0xf]
      %v115 = vunpack.c.l.bf16 %v113
      %v116 = vunpack.c.l.bf16 %v114
      %v117 = vadd.f32 %v115, %v116
      %v118 = vrot.slane %v117, 4
      %v119 = vadd.f32 %v117, %v118
      %v120 = vrot.slane %v119, 2
      %v121 = vadd.f32 %v119, %v120
      %v122 = vrot.slane %v121, 1
      %v123 = vadd.f32 %v121, %v122
      %v124 = vrcp.pop 16.0
      %v125 = vmul.f32 %v123, %v124
      %v126 = vpack.c.bf16 %v125, %v125
      %vm127 = vcmask 1040384
      %vm128 = vsmask.f32 256
      %vm129 = vmand %vm127, %vm128
      %v130 = vld [vmem:[%s112] sm:$0x1]
      %v131 = vsel %vm129, %v126, %v130
      %132 = vst [vmem:[%s112] sm:$0x1] %v131
      %p133 = scmp.lt.s32.totalorder %s12, 1
      %s134 = scalar_select %p133, %s12, 1
      %s135 = scalar_lea.vmem %s1, %s134
      // Predicated region
      $region25: #{_lambda_.22} parent=23 // pred_check
        %p136 = pneg %p56
      $region26: #{_lambda_.22} parent=23 // pred_check_branch
        %138 = sbr.rel (%p136) target = $region28
      $region27: #{_lambda_.22} parent=23 // pred_region
        _
      $region28: #{_lambda_.22} parent=23 // pred_fallthru
        _
    $region24: #{_lambda_.22} parent=5 // pred_fallthru
      _
    %p139 = scmp.le.s32.totalorder 2, %s7
    // Predicated region
    $region29: #{_lambda_.22} parent=5 // pred_check
      %p140 = pneg %p139
    $region30: #{_lambda_.22} parent=5 // pred_check_branch
      %142 = sbr.rel (%p140) target = $region32
    $region31: #{_lambda_.22} parent=5 // pred_region
      %s143 = ssub.s32 %s7, 2
      // Predicated region
      $region33: #{_lambda_.22} parent=31 // pred_check
        %p144 = pneg %p62
      $region34: #{_lambda_.22} parent=31 // pred_check_branch
        %146 = sbr.rel (%p144) target = $region36
      $region35: #{_lambda_.22} parent=31 // pred_region
        %p147 = scmp.lt.s32.totalorder %s13, 1
        %s148 = scalar_select %p147, %s13, 1
        %s149 = scalar_lea.vmem %s1, %s148
      $region36: #{_lambda_.22} parent=31 // pred_fallthru
        _
    $region32: #{_lambda_.22} parent=5 // pred_fallthru
      _
  $region6: #{_lambda_.22} parent=0 // loop_footer
    %s11 = sadd.s32 1, %s7
  $region7: #{_lambda_.22} parent=0 // loop_footer_branch
    %6 = sbr.rel target = $region3
  $region8: #{_lambda_.22} parent=0 // loop_exit
    _

// kernel: _lambda_.20
$region0: #{_lambda_.20}
  #allocation0 [shape = 'u32[]', space=smem, size = 0x4, offset = 0x4, fixed_abs, tag = 'smem constant byte address 0x4 - core index']
  #allocation1 [shape = 'u32[144,128]{1,0:T(1,128)}', space=vmem, size = 0x12000, scoped, tag = 'internal scratch']
  %s0 = inlined_call_operand.vmem [shape: bf16[2,16,256], index: 0, kind: input, shape index: {}]
  %s1 = inlined_call_operand.vmem [shape: f32[2,1,256], index: 1, kind: input, shape index: {}]
  %s2 = inlined_call_operand.vmem [shape: bf16[256,128], index: 2, kind: input, shape index: {}]
  %s3 = inlined_call_operand.vmem [shape: f32[1,128], index: 3, kind: input, shape index: {}]
  %s4 = inlined_call_operand.vmem [shape: f32[1,128], index: 4, kind: input, shape index: {}]
  %s5 = inlined_call_operand.vmem [shape: bf16[2,16,128], index: 5, kind: output, shape index: {}]
  %s6 = sld [smem:[#allocation0]]
  $region53: #{_lambda_.20} parent=0
    _
  %s8 = ssub.s32 1, %s6
  %s9 = scalar_select 0, %s8, %s6
  loop: start=0, step=1, limit=4
  $region2: #{_lambda_.20} parent=0 // loop_pre_header
    _
  $region3: #{_lambda_.20} parent=0 // loop_header
    %s11 = sphi 0, %s15
    %p12 = scmp.ge.s32.totalorder %s11, 4
    %s18 = sphi 0, %s30
    %s19 = sphi 0, %s26
    %s20 = sphi 0, %s18
    %s21 = sphi 0, %s19
    %s22 = sphi 0, %s20
    %s23 = sphi 0, %s21
    %s35 = sphi 0, %s37
    %s38 = sphi 0, %s35
    %s39 = sphi 0, %s38
    %s55 = sphi 0, %s39
    %s61 = sphi 0, %s63
    %s64 = sphi 0, %s61
    %s65 = sphi 0, %s64
    %s81 = sphi 0, %s65
    %s85 = sphi 0, %s85
    %s87 = sphi 0, %s85
    %s88 = sphi 0, %s87
    %s102 = sphi 0, %s88
    %s106 = sphi 0, %s106
    %s108 = sphi 0, %s106
    %s109 = sphi 0, %s108
    %s123 = sphi 0, %s109
    %s127 = sphi 0, %s127
    %s129 = sphi 0, %s127
    %s130 = sphi 0, %s129
    %s144 = sphi 0, %s130
    %s152 = sphi 0, %s154
    %s155 = sphi 0, %s152
    %s156 = sphi 0, %s155
    %s172 = sphi 0, %s156
  $region4: #{_lambda_.20} parent=0 // loop_header_branch
    %14 = sbr.rel (%p12) target = $region8
  $region5: #{_lambda_.20} parent=0 // loop_body
    %s16 = ssub.s32 %s11, 1
    %s17 = ssub.s32 %s11, 2
    %s24 = sadd.s32 1, %s19
    %p25 = scmp.ge.s32.totalorder %s24, 1
    %s26 = scalar_select %p25, 0, %s24
    %s27 = sadd.s32 1, %s18
    %s28 = scalar_select %p25, %s27, %s18
    %p29 = scmp.ge.s32.totalorder %s28, 2
    %s30 = scalar_select %p29, 0, %s28
    %s31 = ssub.s32 %s18, %s30
    %s32 = ssub.s32 %s19, %s26
    %s33 = sor.u32 %s31, %s32
    %p34 = scmp.eq.s32.totalorder %s33, 0
    %s36 = sadd.s32 %s35, 1
    %s37 = scalar_select %p34, %s35, %s36
    %p40 = pneg %p34
    %p41 = scmp.eq.s32.totalorder %s11, 1
    %p42 = por %p40, %p41
    %p43 = scmp.ne.s32.totalorder %s35, %s38
    %p44 = scmp.eq.s32.totalorder %s11, 0
    %p45 = por %p43, %p44
    %p46 = scmp.ne.s32.totalorder %s35, %s38
    %p47 = scmp.eq.s32.totalorder %s16, 1
    %p48 = por %p46, %p47
    %p49 = scmp.ne.s32.totalorder %s38, %s39
    %p50 = scmp.eq.s32.totalorder %s16, 0
    %p51 = por %p49, %p50
    %p52 = scmp.ne.s32.totalorder %s38, %s39
    %p53 = scmp.eq.s32.totalorder %s17, 1
    %p54 = por %p52, %p53
    %p56 = scmp.ne.s32.totalorder %s39, %s55
    %p57 = scmp.eq.s32.totalorder %s17, 0
    %p58 = por %p56, %p57
    %s59 = ssub.s32 %s18, %s30
    %p60 = scmp.eq.s32.totalorder %s59, 0
    %s62 = sadd.s32 %s61, 1
    %s63 = scalar_select %p60, %s61, %s62
    %p66 = pneg %p60
    %p67 = scmp.eq.s32.totalorder %s11, 1
    %p68 = por %p66, %p67
    %p69 = scmp.ne.s32.totalorder %s61, %s64
    %p70 = scmp.eq.s32.totalorder %s11, 0
    %p71 = por %p69, %p70
    %p72 = scmp.ne.s32.totalorder %s61, %s64
    %p73 = scmp.eq.s32.totalorder %s16, 1
    %p74 = por %p72, %p73
    %p75 = scmp.ne.s32.totalorder %s64, %s65
    %p76 = scmp.eq.s32.totalorder %s16, 0
    %p77 = por %p75, %p76
    %p78 = scmp.ne.s32.totalorder %s64, %s65
    %p79 = scmp.eq.s32.totalorder %s17, 1
    %p80 = por %p78, %p79
    %p82 = scmp.ne.s32.totalorder %s65, %s81
    %p83 = scmp.eq.s32.totalorder %s17, 0
    %p84 = por %p82, %p83
    %s86 = sadd.s32 %s85, 1
    %p89 = scmp.eq.s32.totalorder %s11, 1
    %p90 = scmp.ne.s32.totalorder %s85, %s87
    %p91 = scmp.eq.s32.totalorder %s11, 0
    %p92 = por %p90, %p91
    %p93 = scmp.ne.s32.totalorder %s85, %s87
    %p94 = scmp.eq.s32.totalorder %s16, 1
    %p95 = por %p93, %p94
    %p96 = scmp.ne.s32.totalorder %s87, %s88
    %p97 = scmp.eq.s32.totalorder %s16, 0
    %p98 = por %p96, %p97
    %p99 = scmp.ne.s32.totalorder %s87, %s88
    %p100 = scmp.eq.s32.totalorder %s17, 1
    %p101 = por %p99, %p100
    %p103 = scmp.ne.s32.totalorder %s88, %s102
    %p104 = scmp.eq.s32.totalorder %s17, 0
    %p105 = por %p103, %p104
    %s107 = sadd.s32 %s106, 1
    %p110 = scmp.eq.s32.totalorder %s11, 1
    %p111 = scmp.ne.s32.totalorder %s106, %s108
    %p112 = scmp.eq.s32.totalorder %s11, 0
    %p113 = por %p111, %p112
    %p114 = scmp.ne.s32.totalorder %s106, %s108
    %p115 = scmp.eq.s32.totalorder %s16, 1
    %p116 = por %p114, %p115
    %p117 = scmp.ne.s32.totalorder %s108, %s109
    %p118 = scmp.eq.s32.totalorder %s16, 0
    %p119 = por %p117, %p118
    %p120 = scmp.ne.s32.totalorder %s108, %s109
    %p121 = scmp.eq.s32.totalorder %s17, 1
    %p122 = por %p120, %p121
    %p124 = scmp.ne.s32.totalorder %s109, %s123
    %p125 = scmp.eq.s32.totalorder %s17, 0
    %p126 = por %p124, %p125
    %s128 = sadd.s32 %s127, 1
    %p131 = scmp.eq.s32.totalorder %s11, 1
    %p132 = scmp.ne.s32.totalorder %s127, %s129
    %p133 = scmp.eq.s32.totalorder %s11, 0
    %p134 = por %p132, %p133
    %p135 = scmp.ne.s32.totalorder %s127, %s129
    %p136 = scmp.eq.s32.totalorder %s16, 1
    %p137 = por %p135, %p136
    %p138 = scmp.ne.s32.totalorder %s129, %s130
    %p139 = scmp.eq.s32.totalorder %s16, 0
    %p140 = por %p138, %p139
    %p141 = scmp.ne.s32.totalorder %s129, %s130
    %p142 = scmp.eq.s32.totalorder %s17, 1
    %p143 = por %p141, %p142
    %p145 = scmp.ne.s32.totalorder %s130, %s144
    %p146 = scmp.eq.s32.totalorder %s17, 0
    %p147 = por %p145, %p146
    %s148 = ssub.s32 %s18, %s30
    %s149 = ssub.s32 %s19, %s26
    %s150 = sor.u32 %s148, %s149
    %p151 = scmp.eq.s32.totalorder %s150, 0
    %s153 = sadd.s32 %s152, 1
    %s154 = scalar_select %p151, %s152, %s153
    %p157 = pneg %p151
    %p158 = scmp.eq.s32.totalorder %s11, 1
    %p159 = por %p157, %p158
    %p160 = scmp.ne.s32.totalorder %s152, %s155
    %p161 = scmp.eq.s32.totalorder %s11, 0
    %p162 = por %p160, %p161
    %p163 = scmp.ne.s32.totalorder %s152, %s155
    %p164 = scmp.eq.s32.totalorder %s16, 1
    %p165 = por %p163, %p164
    %p166 = scmp.ne.s32.totalorder %s155, %s156
    %p167 = scmp.eq.s32.totalorder %s16, 0
    %p168 = por %p166, %p167
    %p169 = scmp.ne.s32.totalorder %s155, %s156
    %p170 = scmp.eq.s32.totalorder %s17, 1
    %p171 = por %p169, %p170
    %p173 = scmp.ne.s32.totalorder %s156, %s172
    %p174 = scmp.eq.s32.totalorder %s17, 0
    %p175 = por %p173, %p174
    %p176 = scmp.le.s32.totalorder 1, %s11
    %p177 = scmp.lt.s32.totalorder %s11, 3
    %p178 = pnand %p176, %p177
    %p179 = pneg %p178
    // Predicated region
    $region9: #{_lambda_.20} parent=5 // pred_check
      _
    $region10: #{_lambda_.20} parent=5 // pred_check_branch
      %181 = sbr.rel (%p178) target = $region12
    $region11: #{_lambda_.20} parent=5 // pred_region
      %s182 = ssub.s32 %s11, 1
      // Predicated region
      $region13: #{_lambda_.20} parent=11 // pred_check
        %p183 = pneg %p98
      $region14: #{_lambda_.20} parent=11 // pred_check_branch
        %185 = sbr.rel (%p183) target = $region16
      $region15: #{_lambda_.20} parent=11 // pred_region
        _
      $region16: #{_lambda_.20} parent=11 // pred_fallthru
        _
      // Predicated region
      $region17: #{_lambda_.20} parent=11 // pred_check
        %p186 = pneg %p119
      $region18: #{_lambda_.20} parent=11 // pred_check_branch
        %188 = sbr.rel (%p186) target = $region20
      $region19: #{_lambda_.20} parent=11 // pred_region
        _
      $region20: #{_lambda_.20} parent=11 // pred_fallthru
        _
      // Predicated region
      $region21: #{_lambda_.20} parent=11 // pred_check
        %p189 = pneg %p140
      $region22: #{_lambda_.20} parent=11 // pred_check_branch
        %191 = sbr.rel (%p189) target = $region24
      $region23: #{_lambda_.20} parent=11 // pred_region
        _
      $region24: #{_lambda_.20} parent=11 // pred_fallthru
        _
    $region12: #{_lambda_.20} parent=5 // pred_fallthru
      _
    %p192 = scmp.lt.s32.totalorder %s11, 2
    // Predicated region
    $region25: #{_lambda_.20} parent=5 // pred_check
      %p193 = pneg %p192
    $region26: #{_lambda_.20} parent=5 // pred_check_branch
      %195 = sbr.rel (%p193) target = $region28
    $region27: #{_lambda_.20} parent=5 // pred_region
      // Predicated region
      $region29: #{_lambda_.20} parent=27 // pred_check
        %p196 = pneg %p45
      $region30: #{_lambda_.20} parent=27 // pred_check_branch
        %198 = sbr.rel (%p196) target = $region32
      $region31: #{_lambda_.20} parent=27 // pred_region
        %s199 = smul.u32 2, %s19
        %p200 = scmp.lt.s32.totalorder %s18, 1
        %s201 = scalar_select %p200, %s18, 1
        %p202 = scmp.lt.s32.totalorder %s199, 1
        %s203 = scalar_select %p202, %s199, 1
        %s204 = smul.addr %s203, 2
        %s205 = smul.addr %s201, 4
        %s206 = sadd.s32 %s204, %s205
        %s207 = smul.addr %s206, 4
        %s208 = scalar_lea.vmem %s0, %s207
        %s209 = smul.u32 2, %s19
      $region32: #{_lambda_.20} parent=27 // pred_fallthru
        _
      // Predicated region
      $region33: #{_lambda_.20} parent=27 // pred_check
        %p210 = pneg %p71
      $region34: #{_lambda_.20} parent=27 // pred_check_branch
        %212 = sbr.rel (%p210) target = $region36
      $region35: #{_lambda_.20} parent=27 // pred_region
        %p213 = scmp.lt.s32.totalorder %s18, 1
        %s214 = scalar_select %p213, %s18, 1
        %s215 = smul.addr %s214, 2
        %s216 = scalar_lea.vmem %s1, %s215
      $region36: #{_lambda_.20} parent=27 // pred_fallthru
        _
    $region28: #{_lambda_.20} parent=5 // pred_fallthru
      _
    %p217 = scmp.le.s32.totalorder 1, %s11
    %p218 = scmp.lt.s32.totalorder %s11, 3
    %p219 = pnand %p217, %p218
    %p220 = pneg %p219
    // Predicated region
    $region37: #{_lambda_.20} parent=5 // pred_check
      _
    $region38: #{_lambda_.20} parent=5 // pred_check_branch
      %222 = sbr.rel (%p219) target = $region40
    $region39: #{_lambda_.20} parent=5 // pred_region
      %s223 = ssub.s32 %s11, 1
      %s224 = smul.u32 2, %s21
      %p225 = scmp.lt.s32.totalorder %s20, 1
      %s226 = scalar_select %p225, %s20, 1
      %p227 = scmp.lt.s32.totalorder %s224, 1
      %s228 = scalar_select %p227, %s224, 1
      %s229 = smul.addr %s228, 2
      %s230 = smul.addr %s226, 4
      %s231 = sadd.s32 %s229, %s230
      %s232 = smul.addr %s231, 4
      %s233 = scalar_lea.vmem %s0, %s232
      %p234 = pneg %p51
      %p235 = pneg %p48
      %p236 = scmp.lt.s32.totalorder %s20, 1
      %s237 = scalar_select %p236, %s20, 1
      %s238 = smul.addr %s237, 2
      %s239 = scalar_lea.vmem %s1, %s238
      %p240 = pneg %p77
      %p241 = pneg %p74
      %p242 = pneg %p98
      %p243 = pneg %p95
      %p244 = pneg %p119
      %p245 = pneg %p116
      %p246 = pneg %p140
      %p247 = pneg %p137
      %p248 = pneg %p168
      %p249 = pneg %p165
      %s250 = smul.u32 2, %s21
      %p251 = scmp.lt.s32.totalorder %s20, 1
      %s252 = scalar_select %p251, %s20, 1
      %p253 = scmp.lt.s32.totalorder %s250, 1
      %s254 = scalar_select %p253, %s250, 1
      %s255 = smul.addr %s252, 2
      %s256 = sadd.s32 %s254, %s255
      %s257 = smul.addr %s256, 4
      %s258 = scalar_lea.vmem %s5, %s257
      %s259 = smul.u32 2, %s21
      %p260 = scmp.lt.s32.totalorder %s20, 1
      %s261 = scalar_select %p260, %s20, 1
      %p262 = scmp.lt.s32.totalorder %s259, 1
      %s263 = scalar_select %p262, %s259, 1
      %s264 = smul.addr %s263, 2
      %s265 = smul.addr %s261, 4
      %s266 = sadd.s32 %s264, %s265
      %s267 = smul.addr %s266, 4
      %s268 = scalar_lea.vmem %s0, %s267
      %s269 = smul.u32 2, %s21
      %p270 = scmp.lt.s32.totalorder %s20, 1
      %s271 = scalar_select %p270, %s20, 1
      %s272 = smul.addr %s271, 2
      %s273 = scalar_lea.vmem %s1, %s272
      %s274 = smul.u32 2, %s21
      %p275 = scmp.lt.s32.totalorder %s20, 1
      %s276 = scalar_select %p275, %s20, 1
      %p277 = scmp.lt.s32.totalorder %s274, 1
      %s278 = scalar_select %p277, %s274, 1
      %s279 = smul.addr %s276, 2
      %s280 = sadd.s32 %s278, %s279
      %s281 = smul.addr %s280, 4
      %s282 = scalar_lea.vmem %s5, %s281
      %s283 = smul.u32 2, %s21
      %v285 = vld [vmem:[%s268] sm:$0xff]
      %v286 = vld [vmem:[%s268 + $0x8] sm:$0xff]
      %v287 = vld [vmem:[%s273] sm:$0x3]
      %v289 = vlaneseq
      %v290 = vshrl.u32 %v289, 7
      %v291 = vsub.s32 0, %v290
      %v292 = vrot.slane %v287, %v291
      %v293 = vlaneseq
      %v294 = vshrl.u32 %v293, 7
      %v295 = vsub.s32 1, %v294
      %v296 = vrot.slane %v287, %v295
      %v299 = vpack.c.bf16 %v292, %v292
      %v300 = vpack.c.bf16 %v296, %v296
      %v302 = vpack.i.b16 %v299, %v299
      %v304 = vlaneseq
      %v305 = vshrl.u32 %v304, 7
      %v306 = vsub.s32 0, %v305
      %v307 = vrot.slane %v302, %v306
      %v309 = vpack.i.b16 %v300, %v300
      %v311 = vlaneseq
      %v312 = vshrl.u32 %v311, 7
      %v313 = vsub.s32 0, %v312
      %v314 = vrot.slane %v309, %v313
      %v317 = vunpack.c.l.b16 %v307
      %v318 = vunpack.c.l.b16 %v314
      %v319 = vpack.c.b16 %v318, %v317
      %v321 = vmul.bf16 %v285, %v319
      %v322 = vmul.bf16 %v286, %v319
      %v323 = vld [vmem:[%s2] sm:$0xf]
      %v324 = vld [vmem:[%s2 + $0x4] sm:$0xf]
      %v325 = vld [vmem:[%s2 + $0x8] sm:$0xf]
      %v326 = vld [vmem:[%s2 + $0xc] sm:$0xf]
      %v327 = vld [vmem:[%s2 + $0x10] sm:$0xf]
      %v328 = vld [vmem:[%s2 + $0x14] sm:$0xf]
      %v329 = vld [vmem:[%s2 + $0x18] sm:$0xf]
      %v330 = vld [vmem:[%s2 + $0x1c] sm:$0xf]
      %v331 = vld [vmem:[%s2 + $0x20] sm:$0xf]
      %v332 = vld [vmem:[%s2 + $0x24] sm:$0xf]
      %v333 = vld [vmem:[%s2 + $0x28] sm:$0xf]
      %v334 = vld [vmem:[%s2 + $0x2c] sm:$0xf]
      %v335 = vld [vmem:[%s2 + $0x30] sm:$0xf]
      %v336 = vld [vmem:[%s2 + $0x34] sm:$0xf]
      %v337 = vld [vmem:[%s2 + $0x38] sm:$0xf]
      %v338 = vld [vmem:[%s2 + $0x3c] sm:$0xf]
      %v339 = vld [vmem:[%s2 + $0x40] sm:$0xf]
      %v340 = vld [vmem:[%s2 + $0x44] sm:$0xf]
      %v341 = vld [vmem:[%s2 + $0x48] sm:$0xf]
      %v342 = vld [vmem:[%s2 + $0x4c] sm:$0xf]
      %v343 = vld [vmem:[%s2 + $0x50] sm:$0xf]
      %v344 = vld [vmem:[%s2 + $0x54] sm:$0xf]
      %v345 = vld [vmem:[%s2 + $0x58] sm:$0xf]
      %v346 = vld [vmem:[%s2 + $0x5c] sm:$0xf]
      %v347 = vld [vmem:[%s2 + $0x60] sm:$0xf]
      %v348 = vld [vmem:[%s2 + $0x64] sm:$0xf]
      %v349 = vld [vmem:[%s2 + $0x68] sm:$0xf]
      %v350 = vld [vmem:[%s2 + $0x6c] sm:$0xf]
      %v351 = vld [vmem:[%s2 + $0x70] sm:$0xf]
      %v352 = vld [vmem:[%s2 + $0x74] sm:$0xf]
      %v353 = vld [vmem:[%s2 + $0x78] sm:$0xf]
      %v354 = vld [vmem:[%s2 + $0x7c] sm:$0xf]
      %v357 = vunpack.c.l.b16 %v321
      %v358 = vunpack.c.h.b16 %v321
      %v359 = vunpack.c.l.b16 %v322
      %v360 = vunpack.c.h.b16 %v322
      %v361 = vpack.c.b16 %v359, %v357
      %v362 = vpack.c.b16 %v360, %v358
      %v397 = vunpack.c.l.b16 %v323
      %v398 = vunpack.c.l.b16 %v324
      %v399 = vunpack.c.l.b16 %v325
      %v400 = vunpack.c.l.b16 %v326
      %v401 = vunpack.c.l.b16 %v327
      %v402 = vunpack.c.l.b16 %v328
      %v403 = vunpack.c.l.b16 %v329
      %v404 = vunpack.c.l.b16 %v330
      %v405 = vunpack.c.l.b16 %v331
      %v406 = vunpack.c.l.b16 %v332
      %v407 = vunpack.c.l.b16 %v333
      %v408 = vunpack.c.l.b16 %v334
      %v409 = vunpack.c.l.b16 %v335
      %v410 = vunpack.c.l.b16 %v336
      %v411 = vunpack.c.l.b16 %v337
      %v412 = vunpack.c.l.b16 %v338
      %v413 = vunpack.c.l.b16 %v339
      %v414 = vunpack.c.l.b16 %v340
      %v415 = vunpack.c.l.b16 %v341
      %v416 = vunpack.c.l.b16 %v342
      %v417 = vunpack.c.l.b16 %v343
      %v418 = vunpack.c.l.b16 %v344
      %v419 = vunpack.c.l.b16 %v345
      %v420 = vunpack.c.l.b16 %v346
      %v421 = vunpack.c.l.b16 %v347
      %v422 = vunpack.c.l.b16 %v348
      %v423 = vunpack.c.l.b16 %v349
      %v424 = vunpack.c.l.b16 %v350
      %v425 = vunpack.c.l.b16 %v351
      %v426 = vunpack.c.l.b16 %v352
      %v427 = vunpack.c.l.b16 %v353
      %v428 = vunpack.c.l.b16 %v354
      %v429 = vpack.c.b16 %v398, %v397
      %v430 = vpack.c.b16 %v400, %v399
      %v431 = vpack.c.b16 %v402, %v401
      %v432 = vpack.c.b16 %v404, %v403
      %v433 = vpack.c.b16 %v406, %v405
      %v434 = vpack.c.b16 %v408, %v407
      %v435 = vpack.c.b16 %v410, %v409
      %v436 = vpack.c.b16 %v412, %v411
      %v437 = vpack.c.b16 %v414, %v413
      %v438 = vpack.c.b16 %v416, %v415
      %v439 = vpack.c.b16 %v418, %v417
      %v440 = vpack.c.b16 %v420, %v419
      %v441 = vpack.c.b16 %v422, %v421
      %v442 = vpack.c.b16 %v424, %v423
      %v443 = vpack.c.b16 %v426, %v425
      %v444 = vpack.c.b16 %v428, %v427
      %461 = vmatprep.subr.bf16.mxu0 0
      %462 = vmatpush1.bf16.msra.mxu0 %v429
      %463 = vmatprep.subr.bf16.mxu0 0
      %464 = vmatpush1.bf16.msra.mxu0 %v430
      %465 = vmatprep.subr.bf16.mxu0 0
      %466 = vmatpush1.bf16.msra.mxu0 %v431
      %467 = vmatprep.subr.bf16.mxu0 0
      %468 = vmatpush1.bf16.msra.mxu0 %v432
      %469 = vmatprep.subr.bf16.mxu0 0
      %470 = vmatpush1.bf16.msra.mxu0 %v433
      %471 = vmatprep.subr.bf16.mxu0 0
      %472 = vmatpush1.bf16.msra.mxu0 %v434
      %473 = vmatprep.subr.bf16.mxu0 0
      %474 = vmatpush1.bf16.msra.mxu0 %v435
      %475 = vmatprep.subr.bf16.mxu0 0
      %476 = vmatpush1.bf16.msra.mxu0 %v436
      %477 = vmatprep.subr.bf16.mxu0 0
      %478 = vmatpush1.bf16.msra.mxu0 %v437
      %479 = vmatprep.subr.bf16.mxu0 0
      %480 = vmatpush1.bf16.msra.mxu0 %v438
      %481 = vmatprep.subr.bf16.mxu0 0
      %482 = vmatpush1.bf16.msra.mxu0 %v439
      %483 = vmatprep.subr.bf16.mxu0 0
      %484 = vmatpush1.bf16.msra.mxu0 %v440
      %485 = vmatprep.subr.bf16.mxu0 0
      %486 = vmatpush1.bf16.msra.mxu0 %v441
      %487 = vmatprep.subr.bf16.mxu0 0
      %488 = vmatpush1.bf16.msra.mxu0 %v442
      %489 = vmatprep.subr.bf16.mxu0 0
      %490 = vmatpush1.bf16.msra.mxu0 %v443
      %491 = vmatprep.subr.bf16.mxu0 0
      %492 = vmatpush1.bf16.msra.mxu0 %v444
      %493 = vmatprep.mubr.bf16.mxu0 %v362
      %494 = vmatmul.mubr.bf16.gmra.mrb[0].mxu0 %v361
      %v495 = vpop.f32.mrb[0].mxu0
      %v496 = vadd.f32 0.0, %v495
      %v497 = vpop.f32.mrb[0].mxu0
      %v498 = vpop.f32.mrb[0].mxu0
      %v499 = vadd.f32 0.0, %v498
      %v500 = vpop.f32.mrb[0].mxu0
      %501 = vdwg.mxu0
      %v502 = vld [vmem:[%s3] sm:$0x1]
      %v504 = vlaneseq
      %v505 = vshrl.u32 %v504, 7
      %v506 = vsub.s32 0, %v505
      %v507 = vrot.slane %v502, %v506
      %v509 = vmul.f32 %v496, %v507
      %v510 = vmul.f32 %v499, %v507
      %v511 = vld [vmem:[%s4] sm:$0x1]
      %v513 = vlaneseq
      %v514 = vshrl.u32 %v513, 7
      %v515 = vsub.s32 0, %v514
      %v516 = vrot.slane %v511, %v515
      %v518 = vadd.f32 %v509, %v516
      %v519 = vadd.f32 %v510, %v516
      %v520 = vpack.c.bf16 %v519, %v518
      %v522 = vunpack.c.l.b16 %v520
      %v523 = vunpack.c.h.b16 %v520
      %v524 = vpack.c.b16 %v522, %v522
      %v525 = vpack.c.b16 %v523, %v523
      %528 = vst [vmem:[%s282] sm:$0xf] %v524
      %529 = vst [vmem:[%s282 + $0x4] sm:$0xf] %v525
      %s530 = smul.u32 2, %s21
      %p531 = scmp.lt.s32.totalorder %s20, 1
      %s532 = scalar_select %p531, %s20, 1
      %p533 = scmp.lt.s32.totalorder %s530, 1
      %s534 = scalar_select %p533, %s530, 1
      %s535 = smul.addr %s532, 2
      %s536 = sadd.s32 %s534, %s535
      %s537 = smul.addr %s536, 4
      %s538 = scalar_lea.vmem %s5, %s537
      // Predicated region
      $region41: #{_lambda_.20} parent=39 // pred_check
        %p539 = pneg %p165
      $region42: #{_lambda_.20} parent=39 // pred_check_branch
        %541 = sbr.rel (%p539) target = $region44
      $region43: #{_lambda_.20} parent=39 // pred_region
        %s542 = smul.u32 2, %s21
      $region44: #{_lambda_.20} parent=39 // pred_fallthru
        _
    $region40: #{_lambda_.20} parent=5 // pred_fallthru
      _
    %p543 = scmp.le.s32.totalorder 2, %s11
    // Predicated region
    $region45: #{_lambda_.20} parent=5 // pred_check
      %p544 = pneg %p543
    $region46: #{_lambda_.20} parent=5 // pred_check_branch
      %546 = sbr.rel (%p544) target = $region48
    $region47: #{_lambda_.20} parent=5 // pred_region
      %s547 = ssub.s32 %s11, 2
      // Predicated region
      $region49: #{_lambda_.20} parent=47 // pred_check
        %p548 = pneg %p171
      $region50: #{_lambda_.20} parent=47 // pred_check_branch
        %550 = sbr.rel (%p548) target = $region52
      $region51: #{_lambda_.20} parent=47 // pred_region
        %s551 = smul.u32 2, %s23
        %p552 = scmp.lt.s32.totalorder %s22, 1
        %s553 = scalar_select %p552, %s22, 1
        %p554 = scmp.lt.s32.totalorder %s551, 1
        %s555 = scalar_select %p554, %s551, 1
        %s556 = smul.addr %s553, 2
        %s557 = sadd.s32 %s555, %s556
        %s558 = smul.addr %s557, 4
        %s559 = scalar_lea.vmem %s5, %s558
      $region52: #{_lambda_.20} parent=47 // pred_fallthru
        _
    $region48: #{_lambda_.20} parent=5 // pred_fallthru
      _
  $region6: #{_lambda_.20} parent=0 // loop_footer
    %s15 = sadd.s32 1, %s11
  $region7: #{_lambda_.20} parent=0 // loop_footer_branch
    %10 = sbr.rel target = $region3
  $region8: #{_lambda_.20} parent=0 // loop_exit
    _

// kernel: _lambda_.21
$region0: #{_lambda_.21}
  #allocation0 [shape = 'u32[]', space=smem, size = 0x4, offset = 0x4, fixed_abs, tag = 'smem constant byte address 0x4 - core index']
  #allocation1 [shape = 'u32[144,128]{1,0:T(1,128)}', space=vmem, size = 0x12000, scoped, tag = 'internal scratch']
  %s0 = inlined_call_operand.vmem [shape: bf16[32,128], index: 0, kind: input, shape index: {}]
  %s1 = inlined_call_operand.vmem [shape: bf16[128,128], index: 1, kind: input, shape index: {}]
  %s2 = inlined_call_operand.vmem [shape: f32[1,128], index: 2, kind: input, shape index: {}]
  %s3 = inlined_call_operand.vmem [shape: f32[1,128], index: 3, kind: input, shape index: {}]
  %s4 = inlined_call_operand.vmem [shape: bf16[32,128], index: 4, kind: output, shape index: {}]
  %s5 = sld [smem:[#allocation0]]
  $region26: #{_lambda_.21} parent=0
    _
  %s7 = ssub.s32 1, %s5
  %s8 = scalar_select 0, %s7, %s5
  // Predicated region
  $region2: #{_lambda_.21} parent=0 // pred_check
    _
  $region3: #{_lambda_.21} parent=0 // pred_check_branch
    %10 = sbr.rel (0) target = $region5
  $region4: #{_lambda_.21} parent=0 // pred_region
    _
  $region5: #{_lambda_.21} parent=0 // pred_fallthru
    _
  // Predicated region
  $region6: #{_lambda_.21} parent=0 // pred_check
    _
  $region7: #{_lambda_.21} parent=0 // pred_check_branch
    %12 = sbr.rel (0) target = $region9
  $region8: #{_lambda_.21} parent=0 // pred_region
    _
  $region9: #{_lambda_.21} parent=0 // pred_fallthru
    _
  // Predicated region
  $region10: #{_lambda_.21} parent=0 // pred_check
    _
  $region11: #{_lambda_.21} parent=0 // pred_check_branch
    %14 = sbr.rel (0) target = $region13
  $region12: #{_lambda_.21} parent=0 // pred_region
    _
  $region13: #{_lambda_.21} parent=0 // pred_fallthru
    _
  // Predicated region
  $region14: #{_lambda_.21} parent=0 // pred_check
    _
  $region15: #{_lambda_.21} parent=0 // pred_check_branch
    %16 = sbr.rel (0) target = $region17
  $region16: #{_lambda_.21} parent=0 // pred_region
    _
  $region17: #{_lambda_.21} parent=0 // pred_fallthru
    _
  %v18 = vld [vmem:[%s0] sm:$0xf]
  %v19 = vld [vmem:[%s0 + $0x4] sm:$0xf]
  %v20 = vld [vmem:[%s0 + $0x8] sm:$0xf]
  %v21 = vld [vmem:[%s0 + $0xc] sm:$0xf]
  %v22 = vld [vmem:[%s1] sm:$0xf]
  %v23 = vld [vmem:[%s1 + $0x4] sm:$0xf]
  %v24 = vld [vmem:[%s1 + $0x8] sm:$0xf]
  %v25 = vld [vmem:[%s1 + $0xc] sm:$0xf]
  %v26 = vld [vmem:[%s1 + $0x10] sm:$0xf]
  %v27 = vld [vmem:[%s1 + $0x14] sm:$0xf]
  %v28 = vld [vmem:[%s1 + $0x18] sm:$0xf]
  %v29 = vld [vmem:[%s1 + $0x1c] sm:$0xf]
  %v30 = vld [vmem:[%s1 + $0x20] sm:$0xf]
  %v31 = vld [vmem:[%s1 + $0x24] sm:$0xf]
  %v32 = vld [vmem:[%s1 + $0x28] sm:$0xf]
  %v33 = vld [vmem:[%s1 + $0x2c] sm:$0xf]
  %v34 = vld [vmem:[%s1 + $0x30] sm:$0xf]
  %v35 = vld [vmem:[%s1 + $0x34] sm:$0xf]
  %v36 = vld [vmem:[%s1 + $0x38] sm:$0xf]
  %v37 = vld [vmem:[%s1 + $0x3c] sm:$0xf]
  %v42 = vunpack.c.l.b16 %v18
  %v43 = vunpack.c.l.b16 %v19
  %v44 = vunpack.c.l.b16 %v20
  %v45 = vunpack.c.l.b16 %v21
  %v46 = vpack.c.b16 %v43, %v42
  %v47 = vpack.c.b16 %v45, %v44
  %v66 = vunpack.c.l.b16 %v22
  %v67 = vunpack.c.l.b16 %v23
  %v68 = vunpack.c.l.b16 %v24
  %v69 = vunpack.c.l.b16 %v25
  %v70 = vunpack.c.l.b16 %v26
  %v71 = vunpack.c.l.b16 %v27
  %v72 = vunpack.c.l.b16 %v28
  %v73 = vunpack.c.l.b16 %v29
  %v74 = vunpack.c.l.b16 %v30
  %v75 = vunpack.c.l.b16 %v31
  %v76 = vunpack.c.l.b16 %v32
  %v77 = vunpack.c.l.b16 %v33
  %v78 = vunpack.c.l.b16 %v34
  %v79 = vunpack.c.l.b16 %v35
  %v80 = vunpack.c.l.b16 %v36
  %v81 = vunpack.c.l.b16 %v37
  %v82 = vpack.c.b16 %v67, %v66
  %v83 = vpack.c.b16 %v69, %v68
  %v84 = vpack.c.b16 %v71, %v70
  %v85 = vpack.c.b16 %v73, %v72
  %v86 = vpack.c.b16 %v75, %v74
  %v87 = vpack.c.b16 %v77, %v76
  %v88 = vpack.c.b16 %v79, %v78
  %v89 = vpack.c.b16 %v81, %v80
  %98 = vmatprep.subr.bf16.mxu0 0
  %99 = vmatpush1.bf16.msra.mxu0 %v82
  %100 = vmatprep.subr.bf16.mxu0 0
  %101 = vmatpush1.bf16.msra.mxu0 %v83
  %102 = vmatprep.subr.bf16.mxu0 0
  %103 = vmatpush1.bf16.msra.mxu0 %v84
  %104 = vmatprep.subr.bf16.mxu0 0
  %105 = vmatpush1.bf16.msra.mxu0 %v85
  %106 = vmatprep.subr.bf16.mxu0 0
  %107 = vmatpush1.bf16.msra.mxu0 %v86
  %108 = vmatprep.subr.bf16.mxu0 0
  %109 = vmatpush1.bf16.msra.mxu0 %v87
  %110 = vmatprep.subr.bf16.mxu0 0
  %111 = vmatpush1.bf16.msra.mxu0 %v88
  %112 = vmatprep.subr.bf16.mxu0 0
  %113 = vmatpush1.bf16.msra.mxu0 %v89
  %114 = vmatprep.subr.bf16.mxu0 0
  %115 = vmatpush1.bf16.msra.mxu0 0
  %116 = vmatprep.subr.bf16.mxu0 0
  %117 = vmatpush1.bf16.msra.mxu0 0
  %118 = vmatprep.subr.bf16.mxu0 0
  %119 = vmatpush1.bf16.msra.mxu0 0
  %120 = vmatprep.subr.bf16.mxu0 0
  %121 = vmatpush1.bf16.msra.mxu0 0
  %122 = vmatprep.subr.bf16.mxu0 0
  %123 = vmatpush1.bf16.msra.mxu0 0
  %124 = vmatprep.subr.bf16.mxu0 0
  %125 = vmatpush1.bf16.msra.mxu0 0
  %126 = vmatprep.subr.bf16.mxu0 0
  %127 = vmatpush1.bf16.msra.mxu0 0
  %128 = vmatprep.subr.bf16.mxu0 0
  %129 = vmatpush1.bf16.msra.mxu0 0
  %130 = vmatprep.mubr.bf16.mxu0 0
  %131 = vmatmul.mubr.bf16.gmra.mrb[0].mxu0 %v46
  %v132 = vpop.f32.mrb[0].mxu0
  %v133 = vadd.f32 0.0, %v132
  %v134 = vpop.f32.mrb[0].mxu0
  %v135 = vpop.f32.mrb[0].mxu0
  %v136 = vadd.f32 0.0, %v135
  %v137 = vpop.f32.mrb[0].mxu0
  %138 = vmatprep.mubr.bf16.mxu0 0
  %139 = vmatmul.mubr.bf16.gmra.mrb[0].mxu0 %v47
  %v140 = vpop.f32.mrb[0].mxu0
  %v141 = vadd.f32 0.0, %v140
  %v142 = vpop.f32.mrb[0].mxu0
  %v143 = vpop.f32.mrb[0].mxu0
  %v144 = vadd.f32 0.0, %v143
  %v145 = vpop.f32.mrb[0].mxu0
  %146 = vdwg.mxu0
  %v147 = vld [vmem:[%s2] sm:$0x1]
  %v149 = vlaneseq
  %v150 = vshrl.u32 %v149, 7
  %v151 = vsub.s32 0, %v150
  %v152 = vrot.slane %v147, %v151
  %v154 = vmul.f32 %v133, %v152
  %v155 = vmul.f32 %v136, %v152
  %v156 = vmul.f32 %v141, %v152
  %v157 = vmul.f32 %v144, %v152
  %v158 = vld [vmem:[%s3] sm:$0x1]
  %v160 = vlaneseq
  %v161 = vshrl.u32 %v160, 7
  %v162 = vsub.s32 0, %v161
  %v163 = vrot.slane %v158, %v162
  %v165 = vadd.f32 %v154, %v163
  %v166 = vadd.f32 %v155, %v163
  %v167 = vadd.f32 %v156, %v163
  %v168 = vadd.f32 %v157, %v163
  %v169 = vpack.c.bf16 %v166, %v165
  %v170 = vpack.c.bf16 %v168, %v167
  %v173 = vunpack.c.l.b16 %v169
  %v174 = vunpack.c.h.b16 %v169
  %v175 = vunpack.c.l.b16 %v170
  %v176 = vunpack.c.h.b16 %v170
  %v177 = vpack.c.b16 %v173, %v173
  %v178 = vpack.c.b16 %v174, %v174
  %v179 = vpack.c.b16 %v175, %v175
  %v180 = vpack.c.b16 %v176, %v176
  %185 = vst [vmem:[%s4] sm:$0xf] %v177
  %186 = vst [vmem:[%s4 + $0x4] sm:$0xf] %v178
  %187 = vst [vmem:[%s4 + $0x8] sm:$0xf] %v179
  %188 = vst [vmem:[%s4 + $0xc] sm:$0xf] %v180
  // Predicated region
  $region18: #{_lambda_.21} parent=0 // pred_check
    _
  $region19: #{_lambda_.21} parent=0 // pred_check_branch
    %190 = sbr.rel (0) target = $region21
  $region20: #{_lambda_.21} parent=0 // pred_region
    _
  $region21: #{_lambda_.21} parent=0 // pred_fallthru
    _
  // Predicated region
  $region22: #{_lambda_.21} parent=0 // pred_check
    _
  $region23: #{_lambda_.21} parent=0 // pred_check_branch
    %192 = sbr.rel (0) target = $region25
  $region24: #{_lambda_.21} parent=0 // pred_region
    _
  $region25: #{_lambda_.21} parent=0 // pred_fallthru
    _

// kernel: _lambda_.23
$region0: #{_lambda_.23}
  #allocation0 [shape = 'u32[]', space=smem, size = 0x4, offset = 0x4, fixed_abs, tag = 'smem constant byte address 0x4 - core index']
  #allocation1 [shape = 'u32[144,128]{1,0:T(1,128)}', space=vmem, size = 0x12000, scoped, tag = 'internal scratch']
  %s0 = inlined_call_operand.vmem [shape: bf16[2,128], index: 0, kind: input, shape index: {}]
  %s1 = inlined_call_operand.vmem [shape: bf16[128,128], index: 1, kind: input, shape index: {}]
  %s2 = inlined_call_operand.vmem [shape: f32[1,128], index: 2, kind: input, shape index: {}]
  %s3 = inlined_call_operand.vmem [shape: f32[1,128], index: 3, kind: input, shape index: {}]
  %s4 = inlined_call_operand.hbm [shape: f32[2,128], index: 4, kind: output, shape index: {}]
  %s5 = sld [smem:[#allocation0]]
  $region26: #{_lambda_.23} parent=0
    _
  %s7 = ssub.s32 1, %s5
  %s8 = scalar_select 0, %s7, %s5
  $region1: #{_lambda_.23} parent=0
    #allocation2 [shape = 'u8[1024]{0}', space=vmem, size = 0x400, scoped, tag = 'output window, operand 0, single buffered']
    #allocation3 [shape = 's32[1]{0}', space=sflag, size = 0x4, scoped, tag = 'scoped memory for _lambda_.23']
    %9 = vsyncpa [#allocation3], 0
    // Predicated region
    $region2: #{_lambda_.23} parent=1 // pred_check
      _
    $region3: #{_lambda_.23} parent=1 // pred_check_branch
      %11 = sbr.rel (0) target = $region5
    $region4: #{_lambda_.23} parent=1 // pred_region
      _
    $region5: #{_lambda_.23} parent=1 // pred_fallthru
      _
    // Predicated region
    $region6: #{_lambda_.23} parent=1 // pred_check
      _
    $region7: #{_lambda_.23} parent=1 // pred_check_branch
      %13 = sbr.rel (0) target = $region9
    $region8: #{_lambda_.23} parent=1 // pred_region
      _
    $region9: #{_lambda_.23} parent=1 // pred_fallthru
      _
    // Predicated region
    $region10: #{_lambda_.23} parent=1 // pred_check
      _
    $region11: #{_lambda_.23} parent=1 // pred_check_branch
      %15 = sbr.rel (0) target = $region13
    $region12: #{_lambda_.23} parent=1 // pred_region
      _
    $region13: #{_lambda_.23} parent=1 // pred_fallthru
      _
    // Predicated region
    $region14: #{_lambda_.23} parent=1 // pred_check
      _
    $region15: #{_lambda_.23} parent=1 // pred_check_branch
      %17 = sbr.rel (0) target = $region17
    $region16: #{_lambda_.23} parent=1 // pred_region
      _
    $region17: #{_lambda_.23} parent=1 // pred_fallthru
      _
    %v19 = vld [vmem:[%s0] sm:$0x1]
    %v20 = vld [vmem:[%s1] sm:$0xf]
    %v21 = vld [vmem:[%s1 + $0x4] sm:$0xf]
    %v22 = vld [vmem:[%s1 + $0x8] sm:$0xf]
    %v23 = vld [vmem:[%s1 + $0xc] sm:$0xf]
    %v24 = vld [vmem:[%s1 + $0x10] sm:$0xf]
    %v25 = vld [vmem:[%s1 + $0x14] sm:$0xf]
    %v26 = vld [vmem:[%s1 + $0x18] sm:$0xf]
    %v27 = vld [vmem:[%s1 + $0x1c] sm:$0xf]
    %v28 = vld [vmem:[%s1 + $0x20] sm:$0xf]
    %v29 = vld [vmem:[%s1 + $0x24] sm:$0xf]
    %v30 = vld [vmem:[%s1 + $0x28] sm:$0xf]
    %v31 = vld [vmem:[%s1 + $0x2c] sm:$0xf]
    %v32 = vld [vmem:[%s1 + $0x30] sm:$0xf]
    %v33 = vld [vmem:[%s1 + $0x34] sm:$0xf]
    %v34 = vld [vmem:[%s1 + $0x38] sm:$0xf]
    %v35 = vld [vmem:[%s1 + $0x3c] sm:$0xf]
    %v52 = vunpack.c.l.b16 %v20
    %v53 = vunpack.c.l.b16 %v21
    %v54 = vunpack.c.l.b16 %v22
    %v55 = vunpack.c.l.b16 %v23
    %v56 = vunpack.c.l.b16 %v24
    %v57 = vunpack.c.l.b16 %v25
    %v58 = vunpack.c.l.b16 %v26
    %v59 = vunpack.c.l.b16 %v27
    %v60 = vunpack.c.l.b16 %v28
    %v61 = vunpack.c.l.b16 %v29
    %v62 = vunpack.c.l.b16 %v30
    %v63 = vunpack.c.l.b16 %v31
    %v64 = vunpack.c.l.b16 %v32
    %v65 = vunpack.c.l.b16 %v33
    %v66 = vunpack.c.l.b16 %v34
    %v67 = vunpack.c.l.b16 %v35
    %v68 = vpack.c.b16 %v53, %v52
    %v69 = vpack.c.b16 %v55, %v54
    %v70 = vpack.c.b16 %v57, %v56
    %v71 = vpack.c.b16 %v59, %v58
    %v72 = vpack.c.b16 %v61, %v60
    %v73 = vpack.c.b16 %v63, %v62
    %v74 = vpack.c.b16 %v65, %v64
    %v75 = vpack.c.b16 %v67, %v66
    %84 = vmatprep.subr.bf16.mxu0 0
    %85 = vmatpush1.bf16.msra.mxu0 %v68
    %86 = vmatprep.subr.bf16.mxu0 0
    %87 = vmatpush1.bf16.msra.mxu0 %v69
    %88 = vmatprep.subr.bf16.mxu0 0
    %89 = vmatpush1.bf16.msra.mxu0 %v70
    %90 = vmatprep.subr.bf16.mxu0 0
    %91 = vmatpush1.bf16.msra.mxu0 %v71
    %92 = vmatprep.subr.bf16.mxu0 0
    %93 = vmatpush1.bf16.msra.mxu0 %v72
    %94 = vmatprep.subr.bf16.mxu0 0
    %95 = vmatpush1.bf16.msra.mxu0 %v73
    %96 = vmatprep.subr.bf16.mxu0 0
    %97 = vmatpush1.bf16.msra.mxu0 %v74
    %98 = vmatprep.subr.bf16.mxu0 0
    %99 = vmatpush1.bf16.msra.mxu0 %v75
    %100 = vmatprep.subr.bf16.mxu0 0
    %101 = vmatpush1.bf16.msra.mxu0 0
    %102 = vmatprep.subr.bf16.mxu0 0
    %103 = vmatpush1.bf16.msra.mxu0 0
    %104 = vmatprep.subr.bf16.mxu0 0
    %105 = vmatpush1.bf16.msra.mxu0 0
    %106 = vmatprep.subr.bf16.mxu0 0
    %107 = vmatpush1.bf16.msra.mxu0 0
    %108 = vmatprep.subr.bf16.mxu0 0
    %109 = vmatpush1.bf16.msra.mxu0 0
    %110 = vmatprep.subr.bf16.mxu0 0
    %111 = vmatpush1.bf16.msra.mxu0 0
    %112 = vmatprep.subr.bf16.mxu0 0
    %113 = vmatpush1.bf16.msra.mxu0 0
    %114 = vmatprep.subr.bf16.mxu0 0
    %115 = vmatpush1.bf16.msra.mxu0 0
    %116 = vmatprep.mubr.bf16.mxu0 0
    %117 = vmatmul.mubr.bf16.gmra.mrb[0].mxu0 %v19
    %v118 = vpop.f32.mrb[0].mxu0
    %v119 = vadd.f32 0.0, %v118
    %v120 = vpop.f32.mrb[0].mxu0
    %v121 = vpop.f32.mrb[0].mxu0
    %v122 = vpop.f32.mrb[0].mxu0
    %123 = vdwg.mxu0
    %v124 = vld [vmem:[%s2] sm:$0x1]
    %v126 = vlaneseq
    %v127 = vshrl.u32 %v126, 7
    %v128 = vsub.s32 0, %v127
    %v129 = vrot.slane %v124, %v128
    %v131 = vmul.f32 %v119, %v129
    %v132 = vld [vmem:[%s3] sm:$0x1]
    %v134 = vlaneseq
    %v135 = vshrl.u32 %v134, 7
    %v136 = vsub.s32 0, %v135
    %v137 = vrot.slane %v132, %v136
    %v139 = vadd.f32 %v131, %v137
    %140 = vst [vmem:[#allocation2] sm:$0x3] %v139
    // Predicated region
    $region18: #{_lambda_.23} parent=1 // pred_check
      _
    $region19: #{_lambda_.23} parent=1 // pred_check_branch
      %142 = sbr.rel (0) target = $region21
    $region20: #{_lambda_.23} parent=1 // pred_region
      %s144 = ssub.s32 32, 32
      %145 = vsyncadd [#allocation3], %s144
      %s147 = sshll.u32 [#allocation2], 4
      %s148 = int_to_ptr.vmem [resolvable:$true] %s147
      %150 = dma.vmem_to_hbm [thread:$0]  %s148, 32, %s4, [#allocation3]
    $region21: #{_lambda_.23} parent=1 // pred_fallthru
      _
    // Predicated region
    $region22: #{_lambda_.23} parent=1 // pred_check
      _
    $region23: #{_lambda_.23} parent=1 // pred_check_branch
      %152 = sbr.rel (0) target = $region25
    $region24: #{_lambda_.23} parent=1 // pred_region
      %153 = dma.done [#allocation3], 32
    $region25: #{_lambda_.23} parent=1 // pred_fallthru
      _
    %154 = vsyncpa [#allocation3], 1

// kernel: _lambda_.19
$region0: #{_lambda_.19}
  #allocation0 [shape = 'u32[]', space=smem, size = 0x4, offset = 0x4, fixed_abs, tag = 'smem constant byte address 0x4 - core index']
  #allocation1 [shape = 'u32[144,128]{1,0:T(1,128)}', space=vmem, size = 0x12000, scoped, tag = 'internal scratch']
  #allocation2 [shape = 'f32[1,256]{1,0:T(1,128)}', space=vmem, size = 0x400, scoped, tag = 'scratch operand']
  %s0 = inlined_call_operand.vmem [shape: bf16[2,6,6,256], index: 0, kind: input, shape index: {}, may-alias: {0,1,2}]
  %s1 = inlined_call_operand.vmem [shape: bf16[2,6,6,256], index: 1, kind: input, shape index: {}, may-alias: {0,1,2}]
  %s2 = inlined_call_operand.vmem [shape: bf16[2,6,6,256], index: 2, kind: input, shape index: {}, may-alias: {0,1,2}]
  %s3 = inlined_call_operand.vmem [shape: f32[9,256], index: 3, kind: input, shape index: {}]
  %s4 = inlined_call_operand.vmem [shape: f32[1,256], index: 4, kind: input, shape index: {}]
  %s5 = inlined_call_operand.vmem [shape: f32[1,256], index: 5, kind: input, shape index: {}]
  %s6 = inlined_call_operand.vmem [shape: f32[8,256], index: 6, kind: input, shape index: {}]
  %s7 = inlined_call_operand.vmem [shape: f32[8,256], index: 7, kind: input, shape index: {}]
  %s8 = inlined_call_operand.vmem [shape: bf16[2,4,4,256], index: 8, kind: output, shape index: {0}]
  %s9 = inlined_call_operand.vmem [shape: f32[2,1,256], index: 9, kind: output, shape index: {1}]
  %10 = xla_tuple %s8, %s9
  %s11 = sld [smem:[#allocation0]]
  $region81: #{_lambda_.19} parent=0
    _
  %s13 = ssub.s32 1, %s11
  %s14 = scalar_select 0, %s13, %s11
  loop: start=0, step=1, limit=4
  $region2: #{_lambda_.19} parent=0 // loop_pre_header
    _
  $region3: #{_lambda_.19} parent=0 // loop_header
    %s16 = sphi 0, %s20
    %p17 = scmp.ge.s32.totalorder %s16, 4
    %s23 = sphi 0, %s35
    %s24 = sphi 0, %s31
    %s25 = sphi 0, %s23
    %s26 = sphi 0, %s24
    %s27 = sphi 0, %s25
    %s28 = sphi 0, %s26
    %s40 = sphi 0, %s42
    %s43 = sphi 0, %s40
    %s44 = sphi 0, %s43
    %s60 = sphi 0, %s44
    %s72 = sphi 0, %s74
    %s75 = sphi 0, %s72
    %s76 = sphi 0, %s75
    %s92 = sphi 0, %s76
    %s106 = sphi 0, %s108
    %s109 = sphi 0, %s106
    %s110 = sphi 0, %s109
    %s126 = sphi 0, %s110
    %s130 = sphi 0, %s130
    %s132 = sphi 0, %s130
    %s133 = sphi 0, %s132
    %s147 = sphi 0, %s133
    %s151 = sphi 0, %s151
    %s153 = sphi 0, %s151
    %s154 = sphi 0, %s153
    %s168 = sphi 0, %s154
    %s172 = sphi 0, %s172
    %s174 = sphi 0, %s172
    %s175 = sphi 0, %s174
    %s189 = sphi 0, %s175
    %s193 = sphi 0, %s193
    %s195 = sphi 0, %s193
    %s196 = sphi 0, %s195
    %s210 = sphi 0, %s196
    %s214 = sphi 0, %s214
    %s216 = sphi 0, %s214
    %s217 = sphi 0, %s216
    %s231 = sphi 0, %s217
    %s239 = sphi 0, %s241
    %s242 = sphi 0, %s239
    %s243 = sphi 0, %s242
    %s259 = sphi 0, %s243
    %s265 = sphi 0, %s267
    %s268 = sphi 0, %s265
    %s269 = sphi 0, %s268
    %s285 = sphi 0, %s269
  $region4: #{_lambda_.19} parent=0 // loop_header_branch
    %19 = sbr.rel (%p17) target = $region8
  $region5: #{_lambda_.19} parent=0 // loop_body
    %s21 = ssub.s32 %s16, 1
    %s22 = ssub.s32 %s16, 2
    %s29 = sadd.s32 1, %s24
    %p30 = scmp.ge.s32.totalorder %s29, 1
    %s31 = scalar_select %p30, 0, %s29
    %s32 = sadd.s32 1, %s23
    %s33 = scalar_select %p30, %s32, %s23
    %p34 = scmp.ge.s32.totalorder %s33, 2
    %s35 = scalar_select %p34, 0, %s33
    %s36 = ssub.s32 %s23, %s35
    %s37 = ssub.s32 %s24, %s31
    %s38 = sor.u32 %s36, %s37
    %p39 = scmp.eq.s32.totalorder %s38, 0
    %s41 = sadd.s32 %s40, 1
    %s42 = scalar_select %p39, %s40, %s41
    %p45 = pneg %p39
    %p46 = scmp.eq.s32.totalorder %s16, 1
    %p47 = por %p45, %p46
    %p48 = scmp.ne.s32.totalorder %s40, %s43
    %p49 = scmp.eq.s32.totalorder %s16, 0
    %p50 = por %p48, %p49
    %p51 = scmp.ne.s32.totalorder %s40, %s43
    %p52 = scmp.eq.s32.totalorder %s21, 1
    %p53 = por %p51, %p52
    %p54 = scmp.ne.s32.totalorder %s43, %s44
    %p55 = scmp.eq.s32.totalorder %s21, 0
    %p56 = por %p54, %p55
    %p57 = scmp.ne.s32.totalorder %s43, %s44
    %p58 = scmp.eq.s32.totalorder %s22, 1
    %p59 = por %p57, %p58
    %p61 = scmp.ne.s32.totalorder %s44, %s60
    %p62 = scmp.eq.s32.totalorder %s22, 0
    %p63 = por %p61, %p62
    %s64 = sadd.s32 %s24, 1
    %s65 = smul.u32 %s64, 4
    %s66 = sadd.s32 %s31, 1
    %s67 = smul.u32 %s66, 4
    %s68 = ssub.s32 %s23, %s35
    %s69 = ssub.s32 %s65, %s67
    %s70 = sor.u32 %s68, %s69
    %p71 = scmp.eq.s32.totalorder %s70, 0
    %s73 = sadd.s32 %s72, 1
    %s74 = scalar_select %p71, %s72, %s73
    %p77 = pneg %p71
    %p78 = scmp.eq.s32.totalorder %s16, 1
    %p79 = por %p77, %p78
    %p80 = scmp.ne.s32.totalorder %s72, %s75
    %p81 = scmp.eq.s32.totalorder %s16, 0
    %p82 = por %p80, %p81
    %p83 = scmp.ne.s32.totalorder %s72, %s75
    %p84 = scmp.eq.s32.totalorder %s21, 1
    %p85 = por %p83, %p84
    %p86 = scmp.ne.s32.totalorder %s75, %s76
    %p87 = scmp.eq.s32.totalorder %s21, 0
    %p88 = por %p86, %p87
    %p89 = scmp.ne.s32.totalorder %s75, %s76
    %p90 = scmp.eq.s32.totalorder %s22, 1
    %p91 = por %p89, %p90
    %p93 = scmp.ne.s32.totalorder %s76, %s92
    %p94 = scmp.eq.s32.totalorder %s22, 0
    %p95 = por %p93, %p94
    %s96 = sadd.s32 %s24, 1
    %s97 = smul.u32 %s96, 4
    %s98 = sadd.s32 %s97, 1
    %s99 = sadd.s32 %s31, 1
    %s100 = smul.u32 %s99, 4
    %s101 = sadd.s32 %s100, 1
    %s102 = ssub.s32 %s23, %s35
    %s103 = ssub.s32 %s98, %s101
    %s104 = sor.u32 %s102, %s103
    %p105 = scmp.eq.s32.totalorder %s104, 0
    %s107 = sadd.s32 %s106, 1
    %s108 = scalar_select %p105, %s106, %s107
    %p111 = pneg %p105
    %p112 = scmp.eq.s32.totalorder %s16, 1
    %p113 = por %p111, %p112
    %p114 = scmp.ne.s32.totalorder %s106, %s109
    %p115 = scmp.eq.s32.totalorder %s16, 0
    %p116 = por %p114, %p115
    %p117 = scmp.ne.s32.totalorder %s106, %s109
    %p118 = scmp.eq.s32.totalorder %s21, 1
    %p119 = por %p117, %p118
    %p120 = scmp.ne.s32.totalorder %s109, %s110
    %p121 = scmp.eq.s32.totalorder %s21, 0
    %p122 = por %p120, %p121
    %p123 = scmp.ne.s32.totalorder %s109, %s110
    %p124 = scmp.eq.s32.totalorder %s22, 1
    %p125 = por %p123, %p124
    %p127 = scmp.ne.s32.totalorder %s110, %s126
    %p128 = scmp.eq.s32.totalorder %s22, 0
    %p129 = por %p127, %p128
    %s131 = sadd.s32 %s130, 1
    %p134 = scmp.eq.s32.totalorder %s16, 1
    %p135 = scmp.ne.s32.totalorder %s130, %s132
    %p136 = scmp.eq.s32.totalorder %s16, 0
    %p137 = por %p135, %p136
    %p138 = scmp.ne.s32.totalorder %s130, %s132
    %p139 = scmp.eq.s32.totalorder %s21, 1
    %p140 = por %p138, %p139
    %p141 = scmp.ne.s32.totalorder %s132, %s133
    %p142 = scmp.eq.s32.totalorder %s21, 0
    %p143 = por %p141, %p142
    %p144 = scmp.ne.s32.totalorder %s132, %s133
    %p145 = scmp.eq.s32.totalorder %s22, 1
    %p146 = por %p144, %p145
    %p148 = scmp.ne.s32.totalorder %s133, %s147
    %p149 = scmp.eq.s32.totalorder %s22, 0
    %p150 = por %p148, %p149
    %s152 = sadd.s32 %s151, 1
    %p155 = scmp.eq.s32.totalorder %s16, 1
    %p156 = scmp.ne.s32.totalorder %s151, %s153
    %p157 = scmp.eq.s32.totalorder %s16, 0
    %p158 = por %p156, %p157
    %p159 = scmp.ne.s32.totalorder %s151, %s153
    %p160 = scmp.eq.s32.totalorder %s21, 1
    %p161 = por %p159, %p160
    %p162 = scmp.ne.s32.totalorder %s153, %s154
    %p163 = scmp.eq.s32.totalorder %s21, 0
    %p164 = por %p162, %p163
    %p165 = scmp.ne.s32.totalorder %s153, %s154
    %p166 = scmp.eq.s32.totalorder %s22, 1
    %p167 = por %p165, %p166
    %p169 = scmp.ne.s32.totalorder %s154, %s168
    %p170 = scmp.eq.s32.totalorder %s22, 0
    %p171 = por %p169, %p170
    %s173 = sadd.s32 %s172, 1
    %p176 = scmp.eq.s32.totalorder %s16, 1
    %p177 = scmp.ne.s32.totalorder %s172, %s174
    %p178 = scmp.eq.s32.totalorder %s16, 0
    %p179 = por %p177, %p178
    %p180 = scmp.ne.s32.totalorder %s172, %s174
    %p181 = scmp.eq.s32.totalorder %s21, 1
    %p182 = por %p180, %p181
    %p183 = scmp.ne.s32.totalorder %s174, %s175
    %p184 = scmp.eq.s32.totalorder %s21, 0
    %p185 = por %p183, %p184
    %p186 = scmp.ne.s32.totalorder %s174, %s175
    %p187 = scmp.eq.s32.totalorder %s22, 1
    %p188 = por %p186, %p187
    %p190 = scmp.ne.s32.totalorder %s175, %s189
    %p191 = scmp.eq.s32.totalorder %s22, 0
    %p192 = por %p190, %p191
    %s194 = sadd.s32 %s193, 1
    %p197 = scmp.eq.s32.totalorder %s16, 1
    %p198 = scmp.ne.s32.totalorder %s193, %s195
    %p199 = scmp.eq.s32.totalorder %s16, 0
    %p200 = por %p198, %p199
    %p201 = scmp.ne.s32.totalorder %s193, %s195
    %p202 = scmp.eq.s32.totalorder %s21, 1
    %p203 = por %p201, %p202
    %p204 = scmp.ne.s32.totalorder %s195, %s196
    %p205 = scmp.eq.s32.totalorder %s21, 0
    %p206 = por %p204, %p205
    %p207 = scmp.ne.s32.totalorder %s195, %s196
    %p208 = scmp.eq.s32.totalorder %s22, 1
    %p209 = por %p207, %p208
    %p211 = scmp.ne.s32.totalorder %s196, %s210
    %p212 = scmp.eq.s32.totalorder %s22, 0
    %p213 = por %p211, %p212
    %s215 = sadd.s32 %s214, 1
    %p218 = scmp.eq.s32.totalorder %s16, 1
    %p219 = scmp.ne.s32.totalorder %s214, %s216
    %p220 = scmp.eq.s32.totalorder %s16, 0
    %p221 = por %p219, %p220
    %p222 = scmp.ne.s32.totalorder %s214, %s216
    %p223 = scmp.eq.s32.totalorder %s21, 1
    %p224 = por %p222, %p223
    %p225 = scmp.ne.s32.totalorder %s216, %s217
    %p226 = scmp.eq.s32.totalorder %s21, 0
    %p227 = por %p225, %p226
    %p228 = scmp.ne.s32.totalorder %s216, %s217
    %p229 = scmp.eq.s32.totalorder %s22, 1
    %p230 = por %p228, %p229
    %p232 = scmp.ne.s32.totalorder %s217, %s231
    %p233 = scmp.eq.s32.totalorder %s22, 0
    %p234 = por %p232, %p233
    %s235 = ssub.s32 %s23, %s35
    %s236 = ssub.s32 %s24, %s31
    %s237 = sor.u32 %s235, %s236
    %p238 = scmp.eq.s32.totalorder %s237, 0
    %s240 = sadd.s32 %s239, 1
    %s241 = scalar_select %p238, %s239, %s240
    %p244 = pneg %p238
    %p245 = scmp.eq.s32.totalorder %s16, 1
    %p246 = por %p244, %p245
    %p247 = scmp.ne.s32.totalorder %s239, %s242
    %p248 = scmp.eq.s32.totalorder %s16, 0
    %p249 = por %p247, %p248
    %p250 = scmp.ne.s32.totalorder %s239, %s242
    %p251 = scmp.eq.s32.totalorder %s21, 1
    %p252 = por %p250, %p251
    %p253 = scmp.ne.s32.totalorder %s242, %s243
    %p254 = scmp.eq.s32.totalorder %s21, 0
    %p255 = por %p253, %p254
    %p256 = scmp.ne.s32.totalorder %s242, %s243
    %p257 = scmp.eq.s32.totalorder %s22, 1
    %p258 = por %p256, %p257
    %p260 = scmp.ne.s32.totalorder %s243, %s259
    %p261 = scmp.eq.s32.totalorder %s22, 0
    %p262 = por %p260, %p261
    %s263 = ssub.s32 %s23, %s35
    %p264 = scmp.eq.s32.totalorder %s263, 0
    %s266 = sadd.s32 %s265, 1
    %s267 = scalar_select %p264, %s265, %s266
    %p270 = pneg %p264
    %p271 = scmp.eq.s32.totalorder %s16, 1
    %p272 = por %p270, %p271
    %p273 = scmp.ne.s32.totalorder %s265, %s268
    %p274 = scmp.eq.s32.totalorder %s16, 0
    %p275 = por %p273, %p274
    %p276 = scmp.ne.s32.totalorder %s265, %s268
    %p277 = scmp.eq.s32.totalorder %s21, 1
    %p278 = por %p276, %p277
    %p279 = scmp.ne.s32.totalorder %s268, %s269
    %p280 = scmp.eq.s32.totalorder %s21, 0
    %p281 = por %p279, %p280
    %p282 = scmp.ne.s32.totalorder %s268, %s269
    %p283 = scmp.eq.s32.totalorder %s22, 1
    %p284 = por %p282, %p283
    %p286 = scmp.ne.s32.totalorder %s269, %s285
    %p287 = scmp.eq.s32.totalorder %s22, 0
    %p288 = por %p286, %p287
    %p289 = scmp.le.s32.totalorder 1, %s16
    %p290 = scmp.lt.s32.totalorder %s16, 3
    %p291 = pnand %p289, %p290
    %p292 = pneg %p291
    // Predicated region
    $region9: #{_lambda_.19} parent=5 // pred_check
      _
    $region10: #{_lambda_.19} parent=5 // pred_check_branch
      %294 = sbr.rel (%p291) target = $region12
    $region11: #{_lambda_.19} parent=5 // pred_region
      %s295 = ssub.s32 %s16, 1
      // Predicated region
      $region13: #{_lambda_.19} parent=11 // pred_check
        %p296 = pneg %p143
      $region14: #{_lambda_.19} parent=11 // pred_check_branch
        %298 = sbr.rel (%p296) target = $region16
      $region15: #{_lambda_.19} parent=11 // pred_region
        _
      $region16: #{_lambda_.19} parent=11 // pred_fallthru
        _
      // Predicated region
      $region17: #{_lambda_.19} parent=11 // pred_check
        %p299 = pneg %p164
      $region18: #{_lambda_.19} parent=11 // pred_check_branch
        %301 = sbr.rel (%p299) target = $region20
      $region19: #{_lambda_.19} parent=11 // pred_region
        _
      $region20: #{_lambda_.19} parent=11 // pred_fallthru
        _
      // Predicated region
      $region21: #{_lambda_.19} parent=11 // pred_check
        %p302 = pneg %p185
      $region22: #{_lambda_.19} parent=11 // pred_check_branch
        %304 = sbr.rel (%p302) target = $region24
      $region23: #{_lambda_.19} parent=11 // pred_region
        _
      $region24: #{_lambda_.19} parent=11 // pred_fallthru
        _
      // Predicated region
      $region25: #{_lambda_.19} parent=11 // pred_check
        %p305 = pneg %p206
      $region26: #{_lambda_.19} parent=11 // pred_check_branch
        %307 = sbr.rel (%p305) target = $region28
      $region27: #{_lambda_.19} parent=11 // pred_region
        _
      $region28: #{_lambda_.19} parent=11 // pred_fallthru
        _
      // Predicated region
      $region29: #{_lambda_.19} parent=11 // pred_check
        %p308 = pneg %p227
      $region30: #{_lambda_.19} parent=11 // pred_check_branch
        %310 = sbr.rel (%p308) target = $region32
      $region31: #{_lambda_.19} parent=11 // pred_region
        _
      $region32: #{_lambda_.19} parent=11 // pred_fallthru
        _
    $region12: #{_lambda_.19} parent=5 // pred_fallthru
      _
    %p311 = scmp.lt.s32.totalorder %s16, 2
    // Predicated region
    $region33: #{_lambda_.19} parent=5 // pred_check
      %p312 = pneg %p311
    $region34: #{_lambda_.19} parent=5 // pred_check_branch
      %314 = sbr.rel (%p312) target = $region36
    $region35: #{_lambda_.19} parent=5 // pred_region
      // Predicated region
      $region37: #{_lambda_.19} parent=35 // pred_check
        %p315 = pneg %p50
      $region38: #{_lambda_.19} parent=35 // pred_check_branch
        %317 = sbr.rel (%p315) target = $region40
      $region39: #{_lambda_.19} parent=35 // pred_region
        %s318 = smul.u32 4, %s24
        %s319 = ssub.s32 6, %s318
        %p320 = scmp.lt.s32.totalorder %s319, 4
        %s321 = scalar_select %p320, %s319, 4
        %s322 = smul.u32 64, %s321
        %s323 = smul.u32 %s322, 2
        %p324 = scmp.lt.s32.totalorder %s23, 1
        %s325 = scalar_select %p324, %s23, 1
        %p326 = scmp.lt.s32.totalorder %s318, 5
        %s327 = scalar_select %p326, %s318, 5
        %s328 = smul.addr %s327, 2
        %s329 = smul.addr %s325, 12
        %s330 = sadd.s32 %s328, %s329
        %s331 = smul.addr %s330, 4
        %s332 = scalar_lea.vmem %s0, %s331
        %s333 = smul.u32 4, %s24
        %s334 = ssub.s32 6, %s333
        %p335 = scmp.lt.s32.totalorder %s334, 4
        %s336 = scalar_select %p335, %s334, 4
        %s337 = smul.u32 64, %s336
        %s338 = smul.u32 %s337, 2
      $region40: #{_lambda_.19} parent=35 // pred_fallthru
        _
      // Predicated region
      $region41: #{_lambda_.19} parent=35 // pred_check
        %p339 = pneg %p82
      $region42: #{_lambda_.19} parent=35 // pred_check_branch
        %341 = sbr.rel (%p339) target = $region44
      $region43: #{_lambda_.19} parent=35 // pred_region
        %s342 = sadd.s32 %s24, 1
        %s343 = smul.u32 %s342, 4
        %p344 = scmp.lt.s32.totalorder %s23, 1
        %s345 = scalar_select %p344, %s23, 1
        %p346 = scmp.lt.s32.totalorder %s343, 5
        %s347 = scalar_select %p346, %s343, 5
        %s348 = smul.addr %s347, 2
        %s349 = smul.addr %s345, 12
        %s350 = sadd.s32 %s348, %s349
        %s351 = smul.addr %s350, 4
        %s352 = scalar_lea.vmem %s1, %s351
        %s353 = sadd.s32 %s24, 1
        %s354 = smul.u32 %s353, 4
      $region44: #{_lambda_.19} parent=35 // pred_fallthru
        _
      // Predicated region
      $region45: #{_lambda_.19} parent=35 // pred_check
        %p355 = pneg %p116
      $region46: #{_lambda_.19} parent=35 // pred_check_branch
        %357 = sbr.rel (%p355) target = $region48
      $region47: #{_lambda_.19} parent=35 // pred_region
        %s358 = sadd.s32 %s24, 1
        %s359 = smul.u32 %s358, 4
        %s360 = sadd.s32 %s359, 1
        %p361 = scmp.lt.s32.totalorder %s23, 1
        %s362 = scalar_select %p361, %s23, 1
        %p363 = scmp.lt.s32.totalorder %s360, 5
        %s364 = scalar_select %p363, %s360, 5
        %s365 = smul.addr %s364, 2
        %s366 = smul.addr %s362, 12
        %s367 = sadd.s32 %s365, %s366
        %s368 = smul.addr %s367, 4
        %s369 = scalar_lea.vmem %s2, %s368
        %s370 = sadd.s32 %s24, 1
        %s371 = smul.u32 %s370, 4
        %s372 = sadd.s32 %s371, 1
      $region48: #{_lambda_.19} parent=35 // pred_fallthru
        _
    $region36: #{_lambda_.19} parent=5 // pred_fallthru
      _
    %p373 = scmp.le.s32.totalorder 1, %s16
    %p374 = scmp.lt.s32.totalorder %s16, 3
    %p375 = pnand %p373, %p374
    %p376 = pneg %p375
    // Predicated region
    $region49: #{_lambda_.19} parent=5 // pred_check
      _
    $region50: #{_lambda_.19} parent=5 // pred_check_branch
      %378 = sbr.rel (%p375) target = $region52
    $region51: #{_lambda_.19} parent=5 // pred_region
      %s379 = ssub.s32 %s16, 1
      %s380 = smul.u32 4, %s26
      %s381 = ssub.s32 6, %s380
      %p382 = scmp.lt.s32.totalorder %s381, 4
      %s383 = scalar_select %p382, %s381, 4
      %s384 = smul.u32 64, %s383
      %s385 = smul.u32 %s384, 2
      %p386 = scmp.lt.s32.totalorder %s25, 1
      %s387 = scalar_select %p386, %s25, 1
      %p388 = scmp.lt.s32.totalorder %s380, 5
      %s389 = scalar_select %p388, %s380, 5
      %s390 = smul.addr %s389, 2
      %s391 = smul.addr %s387, 12
      %s392 = sadd.s32 %s390, %s391
      %s393 = smul.addr %s392, 4
      %s394 = scalar_lea.vmem %s0, %s393
      %p395 = pneg %p56
      %p396 = pneg %p53
      %s397 = sadd.s32 %s26, 1
      %s398 = smul.u32 %s397, 4
      %p399 = scmp.lt.s32.totalorder %s25, 1
      %s400 = scalar_select %p399, %s25, 1
      %p401 = scmp.lt.s32.totalorder %s398, 5
      %s402 = scalar_select %p401, %s398, 5
      %s403 = smul.addr %s402, 2
      %s404 = smul.addr %s400, 12
      %s405 = sadd.s32 %s403, %s404
      %s406 = smul.addr %s405, 4
      %s407 = scalar_lea.vmem %s1, %s406
      %p408 = pneg %p88
      %p409 = pneg %p85
      %s410 = sadd.s32 %s26, 1
      %s411 = smul.u32 %s410, 4
      %s412 = sadd.s32 %s411, 1
      %p413 = scmp.lt.s32.totalorder %s25, 1
      %s414 = scalar_select %p413, %s25, 1
      %p415 = scmp.lt.s32.totalorder %s412, 5
      %s416 = scalar_select %p415, %s412, 5
      %s417 = smul.addr %s416, 2
      %s418 = smul.addr %s414, 12
      %s419 = sadd.s32 %s417, %s418
      %s420 = smul.addr %s419, 4
      %s421 = scalar_lea.vmem %s2, %s420
      %p422 = pneg %p122
      %p423 = pneg %p119
      %p424 = pneg %p143
      %p425 = pneg %p140
      %p426 = pneg %p164
      %p427 = pneg %p161
      %p428 = pneg %p185
      %p429 = pneg %p182
      %p430 = pneg %p206
      %p431 = pneg %p203
      %p432 = pneg %p227
      %p433 = pneg %p224
      %p434 = pneg %p255
      %p435 = pneg %p252
      %s436 = smul.u32 4, %s26
      %p437 = scmp.lt.s32.totalorder %s25, 1
      %s438 = scalar_select %p437, %s25, 1
      %p439 = scmp.lt.s32.totalorder %s436, 3
      %s440 = scalar_select %p439, %s436, 3
      %s441 = smul.addr %s440, 2
      %s442 = smul.addr %s438, 8
      %s443 = sadd.s32 %s441, %s442
      %s444 = smul.addr %s443, 2
      %s445 = scalar_lea.vmem %s8, %s444
      %p446 = pneg %p281
      %p447 = pneg %p278
      %p448 = scmp.lt.s32.totalorder %s25, 1
      %s449 = scalar_select %p448, %s25, 1
      %s450 = smul.addr %s449, 2
      %s451 = scalar_lea.vmem %s9, %s450
      %s452 = smul.u32 4, %s26
      %s453 = ssub.s32 6, %s452
      %p454 = scmp.lt.s32.totalorder %s453, 4
      %s455 = scalar_select %p454, %s453, 4
      %s456 = smul.u32 64, %s455
      %s457 = smul.u32 %s456, 2
      %p458 = scmp.lt.s32.totalorder %s25, 1
      %s459 = scalar_select %p458, %s25, 1
      %p460 = scmp.lt.s32.totalorder %s452, 5
      %s461 = scalar_select %p460, %s452, 5
      %s462 = smul.addr %s461, 2
      %s463 = smul.addr %s459, 12
      %s464 = sadd.s32 %s462, %s463
      %s465 = smul.addr %s464, 4
      %s466 = scalar_lea.vmem %s0, %s465
      %s467 = smul.u32 4, %s26
      %s468 = ssub.s32 6, %s467
      %p469 = scmp.lt.s32.totalorder %s468, 4
      %s470 = scalar_select %p469, %s468, 4
      %s471 = smul.u32 64, %s470
      %s472 = smul.u32 %s471, 2
      %s473 = sadd.s32 %s26, 1
      %s474 = smul.u32 %s473, 4
      %p475 = scmp.lt.s32.totalorder %s25, 1
      %s476 = scalar_select %p475, %s25, 1
      %p477 = scmp.lt.s32.totalorder %s474, 5
      %s478 = scalar_select %p477, %s474, 5
      %s479 = smul.addr %s478, 2
      %s480 = smul.addr %s476, 12
      %s481 = sadd.s32 %s479, %s480
      %s482 = smul.addr %s481, 4
      %s483 = scalar_lea.vmem %s1, %s482
      %s484 = sadd.s32 %s26, 1
      %s485 = smul.u32 %s484, 4
      %s486 = sadd.s32 %s26, 1
      %s487 = smul.u32 %s486, 4
      %s488 = sadd.s32 %s487, 1
      %p489 = scmp.lt.s32.totalorder %s25, 1
      %s490 = scalar_select %p489, %s25, 1
      %p491 = scmp.lt.s32.totalorder %s488, 5
      %s492 = scalar_select %p491, %s488, 5
      %s493 = smul.addr %s492, 2
      %s494 = smul.addr %s490, 12
      %s495 = sadd.s32 %s493, %s494
      %s496 = smul.addr %s495, 4
      %s497 = scalar_lea.vmem %s2, %s496
      %s498 = sadd.s32 %s26, 1
      %s499 = smul.u32 %s498, 4
      %s500 = sadd.s32 %s499, 1
      %s501 = smul.u32 4, %s26
      %p502 = scmp.lt.s32.totalorder %s25, 1
      %s503 = scalar_select %p502, %s25, 1
      %p504 = scmp.lt.s32.totalorder %s501, 3
      %s505 = scalar_select %p504, %s501, 3
      %s506 = smul.addr %s505, 2
      %s507 = smul.addr %s503, 8
      %s508 = sadd.s32 %s506, %s507
      %s509 = smul.addr %s508, 2
      %s510 = scalar_lea.vmem %s8, %s509
      %s511 = smul.u32 4, %s26
      %p512 = scmp.lt.s32.totalorder %s25, 1
      %s513 = scalar_select %p512, %s25, 1
      %s514 = smul.addr %s513, 2
      %s515 = scalar_lea.vmem %s9, %s514
      %v516 = vld [vmem:[%s3] sm:$0xff]
      %v517 = vld [vmem:[%s3 + $0x8] sm:$0xff]
      %v518 = vld [vmem:[%s3 + $0x10] sm:$0x1]
      %v519 = vld [vmem:[%s3 + $0x18] sm:$0x1]
      %v520 = vld [vmem:[%s4] sm:$0x3]
      %v521 = vld [vmem:[%s5] sm:$0x3]
      %p522 = scmp.eq.s32.totalorder %s26, 0
      // Predicated region
      $region53: #{_lambda_.19} parent=51 // pred_check
        %p523 = pneg %p522
      $region54: #{_lambda_.19} parent=51 // pred_check_branch
        %525 = sbr.rel (%p523) target = $region56
      $region55: #{_lambda_.19} parent=51 // pred_region
        %v526 = vlaneseq
        %vm527 = vcmp.ge.s32.totalorder %v526, 0
        %vm528 = vcmp.lt.s32.totalorder %v526, 256
        %vm529 = vmand %vm527, %vm528
        %530 = vst.msk [vmem:[#allocation2] sm:$0x3] %vm529, 0.0
      $region56: #{_lambda_.19} parent=51 // pred_fallthru
        _
      %v531 = vld [vmem:[%s466] sm:$0x33]
      %v532 = vunpack.c.l.bf16 %v531
      %v533 = vunpack.c.h.bf16 %v531
      %v534 = vlaneseq
      %v535 = vshrl.u32 %v534, 7
      %v536 = vsub.s32 0, %v535
      %v537 = vrot.slane %v516, %v536
      %v538 = vlaneseq
      %v539 = vshrl.u32 %v538, 7
      %v540 = vsub.s32 0, %v539
      %v541 = vrot.slane %v517, %v540
      %v542 = vmul.f32 %v532, %v537
      %v543 = vmul.f32 %v533, %v541
      %v544 = vadd.f32 %v542, 0.0
      %v545 = vadd.f32 %v543, 0.0
      %v546 = vld [vmem:[%s466] sm:$0x77]
      %v547 = vunpack.c.l.bf16 %v546
      %v548 = vunpack.c.h.bf16 %v546
      %v549 = vlaneseq
      %v550 = vshrl.u32 %v549, 7
      %v551 = vsub.s32 1, %v550
      %v552 = vrot.slane %v516, %v551
      %v553 = vlaneseq
      %v554 = vshrl.u32 %v553, 7
      %v555 = vsub.s32 1, %v554
      %v556 = vrot.slane %v517, %v555
      %v557 = vmul.f32 %v547, %v552
      %v558 = vmul.f32 %v548, %v556
      %v561 = vrot.slane %v557, 1
      %v562 = vrot.slane %v558, 1
      %v565 = vadd.f32 %v544, %v561
      %v566 = vadd.f32 %v545, %v562
      %v567 = vld [vmem:[%s466] sm:$0x66]
      %v568 = vunpack.c.l.bf16 %v567
      %v569 = vunpack.c.h.bf16 %v567
      %v570 = vlaneseq
      %v571 = vshrl.u32 %v570, 7
      %v572 = vsub.s32 2, %v571
      %v573 = vrot.slane %v516, %v572
      %v574 = vlaneseq
      %v575 = vshrl.u32 %v574, 7
      %v576 = vsub.s32 2, %v575
      %v577 = vrot.slane %v517, %v576
      %v578 = vmul.f32 %v568, %v573
      %v579 = vmul.f32 %v569, %v577
      %v582 = vrot.slane %v578, 2
      %v583 = vrot.slane %v579, 2
      %v586 = vadd.f32 %v565, %v582
      %v587 = vadd.f32 %v566, %v583
      %s588 = scalar_lea.vmem %s466, 8
      %v589 = vld [vmem:[%s588] sm:$0x33]
      %v590 = vunpack.c.l.bf16 %v589
      %v591 = vunpack.c.h.bf16 %v589
      %v592 = vlaneseq
      %v593 = vshrl.u32 %v592, 7
      %v594 = vsub.s32 3, %v593
      %v595 = vrot.slane %v516, %v594
      %v596 = vlaneseq
      %v597 = vshrl.u32 %v596, 7
      %v598 = vsub.s32 3, %v597
      %v599 = vrot.slane %v517, %v598
      %v600 = vmul.f32 %v590, %v595
      %v601 = vmul.f32 %v591, %v599
      %v602 = vadd.f32 %v586, %v600
      %v603 = vadd.f32 %v587, %v601
      %v604 = vld [vmem:[%s588] sm:$0x77]
      %v605 = vunpack.c.l.bf16 %v604
      %v606 = vunpack.c.h.bf16 %v604
      %v607 = vlaneseq
      %v608 = vshrl.u32 %v607, 7
      %v609 = vsub.s32 4, %v608
      %v610 = vrot.slane %v516, %v609
      %v611 = vlaneseq
      %v612 = vshrl.u32 %v611, 7
      %v613 = vsub.s32 4, %v612
      %v614 = vrot.slane %v517, %v613
      %v615 = vmul.f32 %v605, %v610
      %v616 = vmul.f32 %v606, %v614
      %v619 = vrot.slane %v615, 1
      %v620 = vrot.slane %v616, 1
      %v623 = vadd.f32 %v602, %v619
      %v624 = vadd.f32 %v603, %v620
      %v625 = vld [vmem:[%s588] sm:$0x66]
      %v626 = vunpack.c.l.bf16 %v625
      %v627 = vunpack.c.h.bf16 %v625
      %v628 = vlaneseq
      %v629 = vshrl.u32 %v628, 7
      %v630 = vsub.s32 5, %v629
      %v631 = vrot.slane %v516, %v630
      %v632 = vlaneseq
      %v633 = vshrl.u32 %v632, 7
      %v634 = vsub.s32 5, %v633
      %v635 = vrot.slane %v517, %v634
      %v636 = vmul.f32 %v626, %v631
      %v637 = vmul.f32 %v627, %v635
      %v640 = vrot.slane %v636, 2
      %v641 = vrot.slane %v637, 2
      %v644 = vadd.f32 %v623, %v640
      %v645 = vadd.f32 %v624, %v641
      %s646 = scalar_lea.vmem %s466, 16
      %v647 = vld [vmem:[%s646] sm:$0x33]
      %v648 = vunpack.c.l.bf16 %v647
      %v649 = vunpack.c.h.bf16 %v647
      %v650 = vlaneseq
      %v651 = vshrl.u32 %v650, 7
      %v652 = vsub.s32 6, %v651
      %v653 = vrot.slane %v516, %v652
      %v654 = vlaneseq
      %v655 = vshrl.u32 %v654, 7
      %v656 = vsub.s32 6, %v655
      %v657 = vrot.slane %v517, %v656
      %v658 = vmul.f32 %v648, %v653
      %v659 = vmul.f32 %v649, %v657
      %v660 = vadd.f32 %v644, %v658
      %v661 = vadd.f32 %v645, %v659
      %v662 = vld [vmem:[%s646] sm:$0x77]
      %v663 = vunpack.c.l.bf16 %v662
      %v664 = vunpack.c.h.bf16 %v662
      %v665 = vlaneseq
      %v666 = vshrl.u32 %v665, 7
      %v667 = vsub.s32 7, %v666
      %v668 = vrot.slane %v516, %v667
      %v669 = vlaneseq
      %v670 = vshrl.u32 %v669, 7
      %v671 = vsub.s32 7, %v670
      %v672 = vrot.slane %v517, %v671
      %v673 = vmul.f32 %v663, %v668
      %v674 = vmul.f32 %v664, %v672
      %v677 = vrot.slane %v673, 1
      %v678 = vrot.slane %v674, 1
      %v681 = vadd.f32 %v660, %v677
      %v682 = vadd.f32 %v661, %v678
      %v683 = vld [vmem:[%s646] sm:$0x66]
      %v684 = vunpack.c.l.bf16 %v683
      %v685 = vunpack.c.h.bf16 %v683
      %v686 = vlaneseq
      %v687 = vshrl.u32 %v686, 7
      %v688 = vsub.s32 0, %v687
      %v689 = vrot.slane %v518, %v688
      %v690 = vlaneseq
      %v691 = vshrl.u32 %v690, 7
      %v692 = vsub.s32 0, %v691
      %v693 = vrot.slane %v519, %v692
      %v694 = vmul.f32 %v684, %v689
      %v695 = vmul.f32 %v685, %v693
      %v698 = vrot.slane %v694, 2
      %v699 = vrot.slane %v695, 2
      %v702 = vadd.f32 %v681, %v698
      %v703 = vadd.f32 %v682, %v699
      %v705 = vlaneseq
      %v706 = vshrl.u32 %v705, 7
      %v707 = vsub.s32 0, %v706
      %v708 = vrot.slane %v520, %v707
      %v709 = vlaneseq
      %v710 = vshrl.u32 %v709, 7
      %v711 = vsub.s32 1, %v710
      %v712 = vrot.slane %v520, %v711
      %v715 = vmul.f32 %v702, %v708
      %v716 = vmul.f32 %v703, %v712
      %v718 = vlaneseq
      %v719 = vshrl.u32 %v718, 7
      %v720 = vsub.s32 0, %v719
      %v721 = vrot.slane %v521, %v720
      %v722 = vlaneseq
      %v723 = vshrl.u32 %v722, 7
      %v724 = vsub.s32 1, %v723
      %v725 = vrot.slane %v521, %v724
      %v728 = vadd.f32 %v715, %v721
      %v729 = vadd.f32 %v716, %v725
      %v730 = vxor.u32 %v728, 2147483648
      %v731 = vxor.u32 %v729, 2147483648
      %v732 = vmul.f32 %v730, 1.442695
      %v733 = vpow.pop %v732
      %v734 = vmul.f32 %v731, 1.442695
      %v735 = vpow.pop %v734
      %v736 = vadd.f32 %v733, 1.0
      %v737 = vadd.f32 %v735, 1.0
      %v738 = vrcp.pop %v736
      %v739 = vmul.f32 1.0, %v738
      %v740 = vrcp.pop %v737
      %v741 = vmul.f32 1.0, %v740
      %v742 = vmul.f32 %v728, %v739
      %v743 = vmul.f32 %v729, %v741
      %v744 = vpack.c.bf16 %v742, %v742
      %v745 = vpack.c.bf16 %v743, %v743
      %v748 = vcombine.low %v744, %v745
      %v750 = vunpack.c.l.s4 1983009808
      %v751 = vunpack.c.0.s8 %v750
      %v752 = vlaneseq
      %v753 = vshrl.u32 %v752, 7
      %v754 = vsub.s32 %v751, %v753
      %v755 = vrot.slane %v748, %v754
      %757 = vst [vmem:[%s510] sm:$0xf] %v755
      %vm758 = vcmask 1043456
      %v759 = vsel %vm758, %v742, 0.0
      %v760 = vrot.slane %v759, 4
      %v761 = vadd.f32 %v759, %v760
      %v762 = vrot.slane %v761, 2
      %v763 = vadd.f32 %v761, %v762
      %v764 = vrot.slane %v763, 1
      %v765 = vadd.f32 %v763, %v764
      %v766 = vsel %vm758, %v743, 0.0
      %v767 = vrot.slane %v766, 4
      %v768 = vadd.f32 %v766, %v767
      %v769 = vrot.slane %v768, 2
      %v770 = vadd.f32 %v768, %v769
      %v771 = vrot.slane %v770, 1
      %v772 = vadd.f32 %v770, %v771
      %v773 = vadd.f32 %v765, 0.0
      %v774 = vadd.f32 %v772, 0.0
      %v775 = vld [vmem:[%s588] sm:$0x33]
      %v776 = vunpack.c.l.bf16 %v775
      %v777 = vunpack.c.h.bf16 %v775
      %v778 = vmul.f32 %v776, %v537
      %v779 = vmul.f32 %v777, %v541
      %v780 = vadd.f32 %v778, 0.0
      %v781 = vadd.f32 %v779, 0.0
      %v782 = vld [vmem:[%s588] sm:$0x77]
      %v783 = vunpack.c.l.bf16 %v782
      %v784 = vunpack.c.h.bf16 %v782
      %v785 = vmul.f32 %v783, %v552
      %v786 = vmul.f32 %v784, %v556
      %v789 = vrot.slane %v785, 1
      %v790 = vrot.slane %v786, 1
      %v793 = vadd.f32 %v780, %v789
      %v794 = vadd.f32 %v781, %v790
      %v795 = vld [vmem:[%s588] sm:$0x66]
      %v796 = vunpack.c.l.bf16 %v795
      %v797 = vunpack.c.h.bf16 %v795
      %v798 = vmul.f32 %v796, %v573
      %v799 = vmul.f32 %v797, %v577
      %v802 = vrot.slane %v798, 2
      %v803 = vrot.slane %v799, 2
      %v806 = vadd.f32 %v793, %v802
      %v807 = vadd.f32 %v794, %v803
      %v808 = vld [vmem:[%s646] sm:$0x33]
      %v809 = vunpack.c.l.bf16 %v808
      %v810 = vunpack.c.h.bf16 %v808
      %v811 = vmul.f32 %v809, %v595
      %v812 = vmul.f32 %v810, %v599
      %v813 = vadd.f32 %v806, %v811
      %v814 = vadd.f32 %v807, %v812
      %v815 = vld [vmem:[%s646] sm:$0x77]
      %v816 = vunpack.c.l.bf16 %v815
      %v817 = vunpack.c.h.bf16 %v815
      %v818 = vmul.f32 %v816, %v610
      %v819 = vmul.f32 %v817, %v614
      %v822 = vrot.slane %v818, 1
      %v823 = vrot.slane %v819, 1
      %v826 = vadd.f32 %v813, %v822
      %v827 = vadd.f32 %v814, %v823
      %v828 = vld [vmem:[%s646] sm:$0x66]
      %v829 = vunpack.c.l.bf16 %v828
      %v830 = vunpack.c.h.bf16 %v828
      %v831 = vmul.f32 %v829, %v631
      %v832 = vmul.f32 %v830, %v635
      %v835 = vrot.slane %v831, 2
      %v836 = vrot.slane %v832, 2
      %v839 = vadd.f32 %v826, %v835
      %v840 = vadd.f32 %v827, %v836
      %s841 = scalar_lea.vmem %s466, 24
      %v842 = vld [vmem:[%s841] sm:$0x33]
      %v843 = vunpack.c.l.bf16 %v842
      %v844 = vunpack.c.h.bf16 %v842
      %v845 = vmul.f32 %v843, %v653
      %v846 = vmul.f32 %v844, %v657
      %v847 = vadd.f32 %v839, %v845
      %v848 = vadd.f32 %v840, %v846
      %v849 = vld [vmem:[%s841] sm:$0x77]
      %v850 = vunpack.c.l.bf16 %v849
      %v851 = vunpack.c.h.bf16 %v849
      %v852 = vmul.f32 %v850, %v668
      %v853 = vmul.f32 %v851, %v672
      %v856 = vrot.slane %v852, 1
      %v857 = vrot.slane %v853, 1
      %v860 = vadd.f32 %v847, %v856
      %v861 = vadd.f32 %v848, %v857
      %v862 = vld [vmem:[%s841] sm:$0x66]
      %v863 = vunpack.c.l.bf16 %v862
      %v864 = vunpack.c.h.bf16 %v862
      %v865 = vmul.f32 %v863, %v689
      %v866 = vmul.f32 %v864, %v693
      %v869 = vrot.slane %v865, 2
      %v870 = vrot.slane %v866, 2
      %v873 = vadd.f32 %v860, %v869
      %v874 = vadd.f32 %v861, %v870
      %v875 = vmul.f32 %v873, %v708
      %v876 = vmul.f32 %v874, %v712
      %v877 = vadd.f32 %v875, %v721
      %v878 = vadd.f32 %v876, %v725
      %v879 = vxor.u32 %v877, 2147483648
      %v880 = vxor.u32 %v878, 2147483648
      %v881 = vmul.f32 %v879, 1.442695
      %v882 = vpow.pop %v881
      %v883 = vmul.f32 %v880, 1.442695
      %v884 = vpow.pop %v883
      %v885 = vadd.f32 %v882, 1.0
      %v886 = vadd.f32 %v884, 1.0
      %v887 = vrcp.pop %v885
      %v888 = vmul.f32 1.0, %v887
      %v889 = vrcp.pop %v886
      %v890 = vmul.f32 1.0, %v889
      %v891 = vmul.f32 %v877, %v888
      %v892 = vmul.f32 %v878, %v890
      %v893 = vpack.c.bf16 %v891, %v891
      %v894 = vpack.c.bf16 %v892, %v892
      %v897 = vcombine.low %v893, %v894
      %v899 = vunpack.c.l.s4 1983009808
      %v900 = vunpack.c.0.s8 %v899
      %v901 = vlaneseq
      %v902 = vshrl.u32 %v901, 7
      %v903 = vsub.s32 %v900, %v902
      %v904 = vrot.slane %v897, %v903
      %s906 = scalar_lea.vmem %s510, 4
      %907 = vst [vmem:[%s906] sm:$0xf] %v904
      %v908 = vsel %vm758, %v891, 0.0
      %v909 = vrot.slane %v908, 4
      %v910 = vadd.f32 %v908, %v909
      %v911 = vrot.slane %v910, 2
      %v912 = vadd.f32 %v910, %v911
      %v913 = vrot.slane %v912, 1
      %v914 = vadd.f32 %v912, %v913
      %v915 = vsel %vm758, %v892, 0.0
      %v916 = vrot.slane %v915, 4
      %v917 = vadd.f32 %v915, %v916
      %v918 = vrot.slane %v917, 2
      %v919 = vadd.f32 %v917, %v918
      %v920 = vrot.slane %v919, 1
      %v921 = vadd.f32 %v919, %v920
      %v922 = vadd.f32 %v773, %v914
      %v923 = vadd.f32 %v774, %v921
      %v924 = vld [vmem:[%s646] sm:$0x33]
      %v925 = vunpack.c.l.bf16 %v924
      %v926 = vunpack.c.h.bf16 %v924
      %v927 = vmul.f32 %v925, %v537
      %v928 = vmul.f32 %v926, %v541
      %v929 = vadd.f32 %v927, 0.0
      %v930 = vadd.f32 %v928, 0.0
      %v931 = vld [vmem:[%s646] sm:$0x77]
      %v932 = vunpack.c.l.bf16 %v931
      %v933 = vunpack.c.h.bf16 %v931
      %v934 = vmul.f32 %v932, %v552
      %v935 = vmul.f32 %v933, %v556
      %v938 = vrot.slane %v934, 1
      %v939 = vrot.slane %v935, 1
      %v942 = vadd.f32 %v929, %v938
      %v943 = vadd.f32 %v930, %v939
      %v944 = vld [vmem:[%s646] sm:$0x66]
      %v945 = vunpack.c.l.bf16 %v944
      %v946 = vunpack.c.h.bf16 %v944
      %v947 = vmul.f32 %v945, %v573
      %v948 = vmul.f32 %v946, %v577
      %v951 = vrot.slane %v947, 2
      %v952 = vrot.slane %v948, 2
      %v955 = vadd.f32 %v942, %v951
      %v956 = vadd.f32 %v943, %v952
      %v957 = vld [vmem:[%s841] sm:$0x33]
      %v958 = vunpack.c.l.bf16 %v957
      %v959 = vunpack.c.h.bf16 %v957
      %v960 = vmul.f32 %v958, %v595
      %v961 = vmul.f32 %v959, %v599
      %v962 = vadd.f32 %v955, %v960
      %v963 = vadd.f32 %v956, %v961
      %v964 = vld [vmem:[%s841] sm:$0x77]
      %v965 = vunpack.c.l.bf16 %v964
      %v966 = vunpack.c.h.bf16 %v964
      %v967 = vmul.f32 %v965, %v610
      %v968 = vmul.f32 %v966, %v614
      %v971 = vrot.slane %v967, 1
      %v972 = vrot.slane %v968, 1
      %v975 = vadd.f32 %v962, %v971
      %v976 = vadd.f32 %v963, %v972
      %v977 = vld [vmem:[%s841] sm:$0x66]
      %v978 = vunpack.c.l.bf16 %v977
      %v979 = vunpack.c.h.bf16 %v977
      %v980 = vmul.f32 %v978, %v631
      %v981 = vmul.f32 %v979, %v635
      %v984 = vrot.slane %v980, 2
      %v985 = vrot.slane %v981, 2
      %v988 = vadd.f32 %v975, %v984
      %v989 = vadd.f32 %v976, %v985
      %v990 = vld [vmem:[%s483] sm:$0x33]
      %v991 = vunpack.c.l.bf16 %v990
      %v992 = vunpack.c.h.bf16 %v990
      %v993 = vmul.f32 %v991, %v653
      %v994 = vmul.f32 %v992, %v657
      %v995 = vadd.f32 %v988, %v993
      %v996 = vadd.f32 %v989, %v994
      %v997 = vld [vmem:[%s483] sm:$0x77]
      %v998 = vunpack.c.l.bf16 %v997
      %v999 = vunpack.c.h.bf16 %v997
      %v1000 = vmul.f32 %v998, %v668
      %v1001 = vmul.f32 %v999, %v672
      %v1004 = vrot.slane %v1000, 1
      %v1005 = vrot.slane %v1001, 1
      %v1008 = vadd.f32 %v995, %v1004
      %v1009 = vadd.f32 %v996, %v1005
      %v1010 = vld [vmem:[%s483] sm:$0x66]
      %v1011 = vunpack.c.l.bf16 %v1010
      %v1012 = vunpack.c.h.bf16 %v1010
      %v1013 = vmul.f32 %v1011, %v689
      %v1014 = vmul.f32 %v1012, %v693
      %v1017 = vrot.slane %v1013, 2
      %v1018 = vrot.slane %v1014, 2
      %v1021 = vadd.f32 %v1008, %v1017
      %v1022 = vadd.f32 %v1009, %v1018
      %v1023 = vmul.f32 %v1021, %v708
      %v1024 = vmul.f32 %v1022, %v712
      %v1025 = vadd.f32 %v1023, %v721
      %v1026 = vadd.f32 %v1024, %v725
      %v1027 = vxor.u32 %v1025, 2147483648
      %v1028 = vxor.u32 %v1026, 2147483648
      %v1029 = vmul.f32 %v1027, 1.442695
      %v1030 = vpow.pop %v1029
      %v1031 = vmul.f32 %v1028, 1.442695
      %v1032 = vpow.pop %v1031
      %v1033 = vadd.f32 %v1030, 1.0
      %v1034 = vadd.f32 %v1032, 1.0
      %v1035 = vrcp.pop %v1033
      %v1036 = vmul.f32 1.0, %v1035
      %v1037 = vrcp.pop %v1034
      %v1038 = vmul.f32 1.0, %v1037
      %v1039 = vmul.f32 %v1025, %v1036
      %v1040 = vmul.f32 %v1026, %v1038
      %v1041 = vpack.c.bf16 %v1039, %v1039
      %v1042 = vpack.c.bf16 %v1040, %v1040
      %v1045 = vcombine.low %v1041, %v1042
      %v1047 = vunpack.c.l.s4 1983009808
      %v1048 = vunpack.c.0.s8 %v1047
      %v1049 = vlaneseq
      %v1050 = vshrl.u32 %v1049, 7
      %v1051 = vsub.s32 %v1048, %v1050
      %v1052 = vrot.slane %v1045, %v1051
      %s1054 = scalar_lea.vmem %s510, 8
      %1055 = vst [vmem:[%s1054] sm:$0xf] %v1052
      %v1056 = vsel %vm758, %v1039, 0.0
      %v1057 = vrot.slane %v1056, 4
      %v1058 = vadd.f32 %v1056, %v1057
      %v1059 = vrot.slane %v1058, 2
      %v1060 = vadd.f32 %v1058, %v1059
      %v1061 = vrot.slane %v1060, 1
      %v1062 = vadd.f32 %v1060, %v1061
      %v1063 = vsel %vm758, %v1040, 0.0
      %v1064 = vrot.slane %v1063, 4
      %v1065 = vadd.f32 %v1063, %v1064
      %v1066 = vrot.slane %v1065, 2
      %v1067 = vadd.f32 %v1065, %v1066
      %v1068 = vrot.slane %v1067, 1
      %v1069 = vadd.f32 %v1067, %v1068
      %v1070 = vadd.f32 %v922, %v1062
      %v1071 = vadd.f32 %v923, %v1069
      %v1072 = vld [vmem:[%s841] sm:$0x33]
      %v1073 = vunpack.c.l.bf16 %v1072
      %v1074 = vunpack.c.h.bf16 %v1072
      %v1075 = vmul.f32 %v1073, %v537
      %v1076 = vmul.f32 %v1074, %v541
      %v1077 = vadd.f32 %v1075, 0.0
      %v1078 = vadd.f32 %v1076, 0.0
      %v1079 = vld [vmem:[%s841] sm:$0x77]
      %v1080 = vunpack.c.l.bf16 %v1079
      %v1081 = vunpack.c.h.bf16 %v1079
      %v1082 = vmul.f32 %v1080, %v552
      %v1083 = vmul.f32 %v1081, %v556
      %v1086 = vrot.slane %v1082, 1
      %v1087 = vrot.slane %v1083, 1
      %v1090 = vadd.f32 %v1077, %v1086
      %v1091 = vadd.f32 %v1078, %v1087
      %v1092 = vld [vmem:[%s841] sm:$0x66]
      %v1093 = vunpack.c.l.bf16 %v1092
      %v1094 = vunpack.c.h.bf16 %v1092
      %v1095 = vmul.f32 %v1093, %v573
      %v1096 = vmul.f32 %v1094, %v577
      %v1099 = vrot.slane %v1095, 2
      %v1100 = vrot.slane %v1096, 2
      %v1103 = vadd.f32 %v1090, %v1099
      %v1104 = vadd.f32 %v1091, %v1100
      %v1105 = vld [vmem:[%s483] sm:$0x33]
      %v1106 = vunpack.c.l.bf16 %v1105
      %v1107 = vunpack.c.h.bf16 %v1105
      %v1108 = vmul.f32 %v1106, %v595
      %v1109 = vmul.f32 %v1107, %v599
      %v1110 = vadd.f32 %v1103, %v1108
      %v1111 = vadd.f32 %v1104, %v1109
      %v1112 = vld [vmem:[%s483] sm:$0x77]
      %v1113 = vunpack.c.l.bf16 %v1112
      %v1114 = vunpack.c.h.bf16 %v1112
      %v1115 = vmul.f32 %v1113, %v610
      %v1116 = vmul.f32 %v1114, %v614
      %v1119 = vrot.slane %v1115, 1
      %v1120 = vrot.slane %v1116, 1
      %v1123 = vadd.f32 %v1110, %v1119
      %v1124 = vadd.f32 %v1111, %v1120
      %v1125 = vld [vmem:[%s483] sm:$0x66]
      %v1126 = vunpack.c.l.bf16 %v1125
      %v1127 = vunpack.c.h.bf16 %v1125
      %v1128 = vmul.f32 %v1126, %v631
      %v1129 = vmul.f32 %v1127, %v635
      %v1132 = vrot.slane %v1128, 2
      %v1133 = vrot.slane %v1129, 2
      %v1136 = vadd.f32 %v1123, %v1132
      %v1137 = vadd.f32 %v1124, %v1133
      %v1138 = vld [vmem:[%s497] sm:$0x33]
      %v1139 = vunpack.c.l.bf16 %v1138
      %v1140 = vunpack.c.h.bf16 %v1138
      %v1141 = vmul.f32 %v1139, %v653
      %v1142 = vmul.f32 %v1140, %v657
      %v1143 = vadd.f32 %v1136, %v1141
      %v1144 = vadd.f32 %v1137, %v1142
      %v1145 = vld [vmem:[%s497] sm:$0x77]
      %v1146 = vunpack.c.l.bf16 %v1145
      %v1147 = vunpack.c.h.bf16 %v1145
      %v1148 = vmul.f32 %v1146, %v668
      %v1149 = vmul.f32 %v1147, %v672
      %v1152 = vrot.slane %v1148, 1
      %v1153 = vrot.slane %v1149, 1
      %v1156 = vadd.f32 %v1143, %v1152
      %v1157 = vadd.f32 %v1144, %v1153
      %v1158 = vld [vmem:[%s497] sm:$0x66]
      %v1159 = vunpack.c.l.bf16 %v1158
      %v1160 = vunpack.c.h.bf16 %v1158
      %v1161 = vmul.f32 %v1159, %v689
      %v1162 = vmul.f32 %v1160, %v693
      %v1165 = vrot.slane %v1161, 2
      %v1166 = vrot.slane %v1162, 2
      %v1169 = vadd.f32 %v1156, %v1165
      %v1170 = vadd.f32 %v1157, %v1166
      %v1171 = vmul.f32 %v1169, %v708
      %v1172 = vmul.f32 %v1170, %v712
      %v1173 = vadd.f32 %v1171, %v721
      %v1174 = vadd.f32 %v1172, %v725
      %v1175 = vxor.u32 %v1173, 2147483648
      %v1176 = vxor.u32 %v1174, 2147483648
      %v1177 = vmul.f32 %v1175, 1.442695
      %v1178 = vpow.pop %v1177
      %v1179 = vmul.f32 %v1176, 1.442695
      %v1180 = vpow.pop %v1179
      %v1181 = vadd.f32 %v1178, 1.0
      %v1182 = vadd.f32 %v1180, 1.0
      %v1183 = vrcp.pop %v1181
      %v1184 = vmul.f32 1.0, %v1183
      %v1185 = vrcp.pop %v1182
      %v1186 = vmul.f32 1.0, %v1185
      %v1187 = vmul.f32 %v1173, %v1184
      %v1188 = vmul.f32 %v1174, %v1186
      %v1189 = vpack.c.bf16 %v1187, %v1187
      %v1190 = vpack.c.bf16 %v1188, %v1188
      %v1193 = vcombine.low %v1189, %v1190
      %v1195 = vunpack.c.l.s4 1983009808
      %v1196 = vunpack.c.0.s8 %v1195
      %v1197 = vlaneseq
      %v1198 = vshrl.u32 %v1197, 7
      %v1199 = vsub.s32 %v1196, %v1198
      %v1200 = vrot.slane %v1193, %v1199
      %s1202 = scalar_lea.vmem %s510, 12
      %1203 = vst [vmem:[%s1202] sm:$0xf] %v1200
      %v1204 = vsel %vm758, %v1187, 0.0
      %v1205 = vrot.slane %v1204, 4
      %v1206 = vadd.f32 %v1204, %v1205
      %v1207 = vrot.slane %v1206, 2
      %v1208 = vadd.f32 %v1206, %v1207
      %v1209 = vrot.slane %v1208, 1
      %v1210 = vadd.f32 %v1208, %v1209
      %v1211 = vsel %vm758, %v1188, 0.0
      %v1212 = vrot.slane %v1211, 4
      %v1213 = vadd.f32 %v1211, %v1212
      %v1214 = vrot.slane %v1213, 2
      %v1215 = vadd.f32 %v1213, %v1214
      %v1216 = vrot.slane %v1215, 1
      %v1217 = vadd.f32 %v1215, %v1216
      %v1218 = vadd.f32 %v1070, %v1210
      %v1219 = vadd.f32 %v1071, %v1217
      %v1220 = vld [vmem:[#allocation2] sm:$0x3]
      %v1223 = vcombine.low %v1218, %v1219
      %v1225 = vunpack.c.l.s4 1966171168
      %v1226 = vunpack.c.0.s8 %v1225
      %v1227 = vlaneseq
      %v1228 = vshrl.u32 %v1227, 7
      %v1229 = vsub.s32 %v1226, %v1228
      %v1230 = vrot.slane %v1223, %v1229
      %v1232 = vunpack.c.l.s4 1966171168
      %v1233 = vunpack.c.0.s8 %v1232
      %v1234 = vlaneseq
      %v1235 = vshrl.u32 %v1234, 7
      %v1236 = vsub.s32 %v1233, %v1235
      %v1237 = vrot.slane %v1230, %v1236
      %v1239 = vadd.f32 %v1220, %v1237
      %v1240 = vlaneseq
      %vm1241 = vcmp.ge.s32.totalorder %v1240, 0
      %vm1242 = vcmp.lt.s32.totalorder %v1240, 256
      %vm1243 = vmand %vm1241, %vm1242
      %1244 = vst.msk [vmem:[#allocation2] sm:$0x3] %vm1243, %v1239
      // Predicated region
      $region57: #{_lambda_.19} parent=51 // pred_check
        %p1245 = pneg %p522
      $region58: #{_lambda_.19} parent=51 // pred_check_branch
        %1247 = sbr.rel (%p1245) target = $region60
      $region59: #{_lambda_.19} parent=51 // pred_region
        %v1248 = vld [vmem:[#allocation2] sm:$0x3]
        %v1249 = vmul.f32 %v1248, 0.0625
        %v1250 = vld [vmem:[%s6] sm:$0xff]
        %v1251 = vld [vmem:[%s6 + $0x8] sm:$0xff]
        %v1253 = vlaneseq
        %v1254 = vshrl.u32 %v1253, 7
        %v1255 = vsub.s32 0, %v1254
        %v1256 = vrot.slane %v1249, %v1255
        %v1257 = vlaneseq
        %v1258 = vshrl.u32 %v1257, 7
        %v1259 = vsub.s32 1, %v1258
        %v1260 = vrot.slane %v1249, %v1259
        %v1263 = vmul.f32 %v1256, %v1250
        %v1264 = vmul.f32 %v1260, %v1251
        %v1265 = vadd.f32 %v1263, %v1264
        %1266 = vadd.xlane.f32.xlu0 %v1265
        %v1267 = vpop.xlane.xlu0 %1266
        %v1268 = vxor.u32 %v1267, 2147483648
        %v1269 = vmul.f32 %v1268, 1.442695
        %v1270 = vpow.pop %v1269
        %v1271 = vadd.f32 %v1270, 1.0
        %v1272 = vrcp.pop %v1271
        %v1273 = vmul.f32 1.0, %v1272
        %v1274 = vmul.f32 %v1267, %v1273
        %v1275 = vld [vmem:[%s7] sm:$0xff]
        %v1276 = vld [vmem:[%s7 + $0x8] sm:$0xff]
        %v1277 = vmul.f32 %v1274, %v1275
        %v1278 = vmul.f32 %v1274, %v1276
        %v1279 = vrot.slane %v1277, 4
        %v1280 = vadd.f32 %v1277, %v1279
        %v1281 = vrot.slane %v1280, 2
        %v1282 = vadd.f32 %v1280, %v1281
        %v1283 = vrot.slane %v1282, 1
        %v1284 = vadd.f32 %v1282, %v1283
        %v1285 = vrot.slane %v1278, 4
        %v1286 = vadd.f32 %v1278, %v1285
        %v1287 = vrot.slane %v1286, 2
        %v1288 = vadd.f32 %v1286, %v1287
        %v1289 = vrot.slane %v1288, 1
        %v1290 = vadd.f32 %v1288, %v1289
        %v1291 = vxor.u32 %v1284, 2147483648
        %v1292 = vxor.u32 %v1290, 2147483648
        %v1293 = vmul.f32 %v1291, 1.442695
        %v1294 = vpow.pop %v1293
        %v1295 = vmul.f32 %v1292, 1.442695
        %v1296 = vpow.pop %v1295
        %v1297 = vadd.f32 %v1294, 1.0
        %v1298 = vadd.f32 %v1296, 1.0
        %v1299 = vrcp.pop %v1297
        %v1300 = vmul.f32 1.0, %v1299
        %v1301 = vrcp.pop %v1298
        %v1302 = vmul.f32 1.0, %v1301
        %v1305 = vcombine.low %v1300, %v1302
        %v1307 = vunpack.c.l.s4 1966171168
        %v1308 = vunpack.c.0.s8 %v1307
        %v1309 = vlaneseq
        %v1310 = vshrl.u32 %v1309, 7
        %v1311 = vsub.s32 %v1308, %v1310
        %v1312 = vrot.slane %v1305, %v1311
        %v1314 = vunpack.c.l.s4 1966171168
        %v1315 = vunpack.c.0.s8 %v1314
        %v1316 = vlaneseq
        %v1317 = vshrl.u32 %v1316, 7
        %v1318 = vsub.s32 %v1315, %v1317
        %v1319 = vrot.slane %v1312, %v1318
        %1321 = vst.msk [vmem:[%s515] sm:$0x3] %vm1243, %v1319
      $region60: #{_lambda_.19} parent=51 // pred_fallthru
        _
      %s1322 = smul.u32 4, %s26
      %p1323 = scmp.lt.s32.totalorder %s25, 1
      %s1324 = scalar_select %p1323, %s25, 1
      %p1325 = scmp.lt.s32.totalorder %s1322, 3
      %s1326 = scalar_select %p1325, %s1322, 3
      %s1327 = smul.addr %s1326, 2
      %s1328 = smul.addr %s1324, 8
      %s1329 = sadd.s32 %s1327, %s1328
      %s1330 = smul.addr %s1329, 2
      %s1331 = scalar_lea.vmem %s8, %s1330
      %p1332 = scmp.lt.s32.totalorder %s25, 1
      %s1333 = scalar_select %p1332, %s25, 1
      %s1334 = smul.addr %s1333, 2
      %s1335 = scalar_lea.vmem %s9, %s1334
      // Predicated region
      $region61: #{_lambda_.19} parent=51 // pred_check
        %p1336 = pneg %p252
      $region62: #{_lambda_.19} parent=51 // pred_check_branch
        %1338 = sbr.rel (%p1336) target = $region64
      $region63: #{_lambda_.19} parent=51 // pred_region
        %s1339 = smul.u32 4, %s26
      $region64: #{_lambda_.19} parent=51 // pred_fallthru
        _
      // Predicated region
      $region65: #{_lambda_.19} parent=51 // pred_check
        %p1340 = pneg %p278
      $region66: #{_lambda_.19} parent=51 // pred_check_branch
        %1342 = sbr.rel (%p1340) target = $region68
      $region67: #{_lambda_.19} parent=51 // pred_region
        _
      $region68: #{_lambda_.19} parent=51 // pred_fallthru
        _
    $region52: #{_lambda_.19} parent=5 // pred_fallthru
      _
    %p1343 = scmp.le.s32.totalorder 2, %s16
    // Predicated region
    $region69: #{_lambda_.19} parent=5 // pred_check
      %p1344 = pneg %p1343
    $region70: #{_lambda_.19} parent=5 // pred_check_branch
      %1346 = sbr.rel (%p1344) target = $region72
    $region71: #{_lambda_.19} parent=5 // pred_region
      %s1347 = ssub.s32 %s16, 2
      // Predicated region
      $region73: #{_lambda_.19} parent=71 // pred_check
        %p1348 = pneg %p258
      $region74: #{_lambda_.19} parent=71 // pred_check_branch
        %1350 = sbr.rel (%p1348) target = $region76
      $region75: #{_lambda_.19} parent=71 // pred_region
        %s1351 = smul.u32 4, %s28
        %p1352 = scmp.lt.s32.totalorder %s27, 1
        %s1353 = scalar_select %p1352, %s27, 1
        %p1354 = scmp.lt.s32.totalorder %s1351, 3
        %s1355 = scalar_select %p1354, %s1351, 3
        %s1356 = smul.addr %s1355, 2
        %s1357 = smul.addr %s1353, 8
        %s1358 = sadd.s32 %s1356, %s1357
        %s1359 = smul.addr %s1358, 2
        %s1360 = scalar_lea.vmem %s8, %s1359
      $region76: #{_lambda_.19} parent=71 // pred_fallthru
        _
      // Predicated region
      $region77: #{_lambda_.19} parent=71 // pred_check
        %p1361 = pneg %p284
      $region78: #{_lambda_.19} parent=71 // pred_check_branch
        %1363 = sbr.rel (%p1361) target = $region80
      $region79: #{_lambda_.19} parent=71 // pred_region
        %p1364 = scmp.lt.s32.totalorder %s27, 1
        %s1365 = scalar_select %p1364, %s27, 1
        %s1366 = smul.addr %s1365, 2
        %s1367 = scalar_lea.vmem %s9, %s1366
      $region80: #{_lambda_.19} parent=71 // pred_fallthru
        _
    $region72: #{_lambda_.19} parent=5 // pred_fallthru
      _
  $region6: #{_lambda_.19} parent=0 // loop_footer
    %s20 = sadd.s32 1, %s16
  $region7: #{_lambda_.19} parent=0 // loop_footer_branch
    %15 = sbr.rel target = $region3
  $region8: #{_lambda_.19} parent=0 // loop_exit
    _

</llo_original>
